<compile_context>
chip_gen: v5e
topology: v5e:2x2
jax: 0.10.0
libtpu: 0.0.40
codegen_flags: <defaults>
</compile_context>

<pallas_src>
import functools

import jax
import jax.numpy as jnp
from jax.experimental import pallas as pl
from jax.experimental.pallas import tpu as pltpu

LN_EPS = 1e-12          # BERT LayerNorm epsilon
NEG_INF = -1e9          # additive attention-mask fill
NEG_PAD = -1e30         # bias fill for padded vocab columns (exp(.) underflows to 0)

_CompilerParams = getattr(pltpu, "CompilerParams", None) or getattr(pltpu, "TPUCompilerParams")


def _vmem_limit():
    cap = 64 * 1024 * 1024
    try:
        cap = int(getattr(pltpu.get_tpu_info(), "vmem_capacity_bytes", cap))
    except Exception:
        pass
    # leave headroom for compiler scratch / double buffering (v7x has only 64 MiB)
    return int(min(cap * 3 // 4, 100 * 1024 * 1024))


VMEM_LIMIT = _vmem_limit()


def _cparams(dim_sem):
    return _CompilerParams(dimension_semantics=dim_sem, vmem_limit_bytes=VMEM_LIMIT)


def _pick_tile(dim, target, align):
    """Largest multiple-of-`align` divisor of `dim` that is <= target (else dim)."""
    if dim <= target:
        return dim
    t = (min(target, dim) // align) * align
    while t >= align:
        if dim % t == 0:
            return t
        t -= align
    return dim


# ----------------------------- in-kernel math helpers ------------------------
def _erf(x):
    # Abramowitz & Stegun 7.1.26 rational approximation (max abs err ~1.5e-7);
    # exp lands on the EUP so the epilogue stays cheap.
    a1, a2, a3, a4, a5 = 0.254829592, -0.284496736, 1.421413741, -1.453152027, 1.061405429
    p = 0.3275911
    sgn = jnp.where(x >= 0.0, 1.0, -1.0)
    z = jnp.abs(x)
    t = 1.0 / (1.0 + p * z)
    poly = ((((a5 * t + a4) * t + a3) * t + a2) * t + a1) * t
    return sgn * (1.0 - poly * jnp.exp(-z * z))


def _gelu(x):
    # BERT default hidden_act="gelu" (erf form)
    return 0.5 * x * (1.0 + _erf(x * 0.7071067811865476))


# ---------------- resident-weight linear: y = act(x @ w + b), bf16 I/O --------
def _linres_kernel(x_ref, w_ref, b_ref, o_ref, *, act):
    y = jnp.dot(x_ref[...], w_ref[...], preferred_element_type=jnp.float32) + b_ref[...]
    if act == "gelu":
        y = _gelu(y)
    o_ref[...] = y.astype(o_ref.dtype)


def linear_resident(x, w, b, act="none", out_dtype=jnp.bfloat16, tm=512):
    """x: (M,K) bf16, w: (K,N) bf16 (kept fully resident in VMEM), b: (1,N) f32."""
    M, K = x.shape
    N = w.shape[1]
    tm = _pick_tile(M, tm, 8)
    return pl.pallas_call(
        functools.partial(_linres_kernel, act=act),
        out_shape=jax.ShapeDtypeStruct((M, N), out_dtype),
        grid=(M // tm,),
        in_specs=[
            pl.BlockSpec((tm, K), lambda i: (i, 0)),
            pl.BlockSpec((K, N), lambda i: (0, 0)),   # whole weight, constant block index
            pl.BlockSpec((1, N), lambda i: (0, 0)),
        ],
        out_specs=pl.BlockSpec((tm, N), lambda i: (i, 0)),
        compiler_params=_cparams(("parallel",)),
    )(x, w, b)


# --------------------- (residual +) LayerNorm, tiled over rows ----------------
def _ln_kernel(*refs, has_res):
    if has_res:
        x_ref, r_ref, g_ref, b_ref, o_ref = refs
        x = x_ref[...].astype(jnp.float32) + r_ref[...].astype(jnp.float32)
    else:
        x_ref, g_ref, b_ref, o_ref = refs
        x = x_ref[...].astype(jnp.float32)
    mu = jnp.mean(x, axis=-1, keepdims=True)
    xc = x - mu
    var = jnp.mean(xc * xc, axis=-1, keepdims=True)
    o_ref[...] = (xc * jax.lax.rsqrt(var + LN_EPS) * g_ref[...] + b_ref[...]).astype(o_ref.dtype)


def layernorm(x, g, b, residual=None, out_dtype=jnp.bfloat16, tm=512):
    M, H = x.shape
    tm = _pick_tile(M, tm, 8)
    inputs = [x]
    specs = [pl.BlockSpec((tm, H), lambda i: (i, 0))]
    if residual is not None:
        inputs.append(residual)
        specs.append(pl.BlockSpec((tm, H), lambda i: (i, 0)))
    inputs += [g, b]
    specs += [pl.BlockSpec((1, H), lambda i: (0, 0)),
              pl.BlockSpec((1, H), lambda i: (0, 0))]
    return pl.pallas_call(
        functools.partial(_ln_kernel, has_res=residual is not None),
        out_shape=jax.ShapeDtypeStruct((M, H), out_dtype),
        grid=(M // tm,),
        in_specs=specs,
        out_specs=pl.BlockSpec((tm, H), lambda i: (i, 0)),
        compiler_params=_cparams(("parallel",)),
    )(*inputs)


# -------------------- flash attention over the fused QKV slab -----------------
def _flash_attn_kernel(q_ref, k_ref, v_ref, mask_ref, o_ref, m_sc, l_sc, acc_sc,
                       *, scale, nkv, hp, dh):
    ki = pl.program_id(3)

    @pl.when(ki == 0)
    def _():
        m_sc[...] = jnp.full_like(m_sc, -jnp.inf)
        l_sc[...] = jnp.zeros_like(l_sc)
        acc_sc[...] = jnp.zeros_like(acc_sc)

    mask = mask_ref[0]                                  # (1, tkv) additive, f32
    for h in range(hp):                                 # static unroll over heads in the group
        sl = pl.ds(h * dh, dh)
        q = q_ref[:, sl]                                # bf16, no re-cast
        k = k_ref[:, sl]
        v = v_ref[:, sl]
        s = jax.lax.dot_general(q, k, (((1,), (1,)), ((), ())),
                                preferred_element_type=jnp.float32) * scale + mask
        m_prev = m_sc[h]
        m_new = jnp.maximum(m_prev, jnp.max(s, axis=-1, keepdims=True))
        alpha = jnp.exp(m_prev - m_new)
        p = jnp.exp(s - m_new)
        l_sc[h] = alpha * l_sc[h] + jnp.sum(p, axis=-1, keepdims=True)
        acc_sc[h] = alpha * acc_sc[h] + jnp.dot(p.astype(jnp.bfloat16), v,
                                                preferred_element_type=jnp.float32)
        m_sc[h] = m_new

    @pl.when(ki == nkv - 1)
    def _():
        outs = [acc_sc[h] * pl.reciprocal(l_sc[h], approx=True) for h in range(hp)]
        o_ref[...] = jnp.concatenate(outs, axis=-1).astype(o_ref.dtype)


def mha_from_qkv(qkv, mask_add, B, S, nH, Dh, tq=256, tkv=256):
    """qkv: (B*S, 3*H) bf16 with q|k|v concatenated on the feature axis.
    Heads are grouped so each block is >=128 lanes wide (lane-dense stores /
    better MXU fill for head_dim < 128); head groups are sliced via index_maps."""
    M = B * S
    H = nH * Dh
    assert qkv.shape == (M, 3 * H)
    scale = 1.0 / (Dh ** 0.5)

    if Dh % 128 == 0:
        hp = 1
    else:
        assert 128 % Dh == 0, "head_dim must divide 128 or be a multiple of 128"
        hp = 128 // Dh
        assert nH % hp == 0, "num_heads must be divisible by the head-group size"
    W = hp * Dh
    nG = nH // hp

    tq = _pick_tile(S, tq, 8)
    tkv = _pick_tile(S, tkv, 128 if S % 128 == 0 else 8)
    nq, nkv = S // tq, S // tkv

    q_spec = pl.BlockSpec((tq, W), lambda b, g, qi, ki: (b * nq + qi, g))
    k_spec = pl.BlockSpec((tkv, W), lambda b, g, qi, ki: (b * nkv + ki, nG + g))
    v_spec = pl.BlockSpec((tkv, W), lambda b, g, qi, ki: (b * nkv + ki, 2 * nG + g))
    m_spec = pl.BlockSpec((1, 1, tkv), lambda b, g, qi, ki: (b, 0, ki))
    o_spec = pl.BlockSpec((tq, W), lambda b, g, qi, ki: (b * nq + qi, g))

    return pl.pallas_call(
        functools.partial(_flash_attn_kernel, scale=scale, nkv=nkv, hp=hp, dh=Dh),
        out_shape=jax.ShapeDtypeStruct((M, H), jnp.bfloat16),
        grid=(B, nG, nq, nkv),
        in_specs=[q_spec, k_spec, v_spec, m_spec],
        out_specs=o_spec,
        scratch_shapes=[pltpu.VMEM((hp, tq, 1), jnp.float32),
                        pltpu.VMEM((hp, tq, 1), jnp.float32),
                        pltpu.VMEM((hp, tq, Dh), jnp.float32)],
        compiler_params=_cparams(("parallel", "parallel", "parallel", "arbitrary")),
    )(qkv, qkv, qkv, mask_add)


# ------------- tied decoder matmul with fused masked-LM loss epilogue ---------
def _decoder_loss_kernel(x_ref, w_ref, b_ref, lbl_ref, logits_ref, nll_ref,
                         m_sc, l_sc, p_sc, *, nv, tv):
    vi = pl.program_id(1)

    @pl.when(vi == 0)
    def _():
        m_sc[...] = jnp.full_like(m_sc, -jnp.inf)
        l_sc[...] = jnp.zeros_like(l_sc)
        p_sc[...] = jnp.zeros_like(p_sc)

    logits = jax.lax.dot_general(x_ref[...], w_ref[...], (((1,), (1,)), ((), ())),
                                 preferred_element_type=jnp.float32) + b_ref[...]
    logits_ref[...] = logits                            # module must return logits

    labels = lbl_ref[...]                               # (tm, 1) int32
    m_prev = m_sc[...]
    m_new = jnp.maximum(m_prev, jnp.max(logits, axis=-1, keepdims=True))
    l_sc[...] = jnp.exp(m_prev - m_new) * l_sc[...] + \
        jnp.sum(jnp.exp(logits - m_new), axis=-1, keepdims=True)
    m_sc[...] = m_new

    col = jax.lax.broadcasted_iota(jnp.int32, logits.shape, 1) + vi * tv
    p_sc[...] += jnp.sum(jnp.where(col == labels, logits, 0.0), axis=-1, keepdims=True)

    @pl.when(vi == nv - 1)
    def _():
        lse = m_sc[...] + jnp.log(l_sc[...])
        valid = (labels != -100).astype(jnp.float32)
        nll_ref[...] = (lse - p_sc[...]) * valid        # per-row masked NLL


def decoder_with_loss(x, w_pad, b_pad, labels_col, tm=512, tv=1024):
    """logits = x @ w_pad.T + b_pad over the vocab-padded tied embedding, with the
    masked-LM per-row NLL fused into the epilogue (logits never re-read)."""
    M, H = x.shape
    Vp = w_pad.shape[0]
    tm = _pick_tile(M, tm, 8)
    tv = tv if Vp % tv == 0 else _pick_tile(Vp, tv, 128)
    nm, nv = M // tm, Vp // tv
    return pl.pallas_call(
        functools.partial(_decoder_loss_kernel, nv=nv, tv=tv),
        out_shape=(jax.ShapeDtypeStruct((M, Vp), jnp.float32),
                   jax.ShapeDtypeStruct((M, 1), jnp.float32)),
        grid=(nm, nv),
        in_specs=[
            pl.BlockSpec((tm, H), lambda i, j: (i, 0)),
            pl.BlockSpec((tv, H), lambda i, j: (j, 0)),
            pl.BlockSpec((1, tv), lambda i, j: (0, j)),
            pl.BlockSpec((tm, 1), lambda i, j: (i, 0)),
        ],
        out_specs=(pl.BlockSpec((tm, tv), lambda i, j: (i, j)),
                   pl.BlockSpec((tm, 1), lambda i, j: (i, 0))),
        scratch_shapes=[pltpu.VMEM((tm, 1), jnp.float32),
                        pltpu.VMEM((tm, 1), jnp.float32),
                        pltpu.VMEM((tm, 1), jnp.float32)],
        compiler_params=_cparams(("parallel", "arbitrary")),
    )(x, w_pad, b_pad, labels_col)


# ------------------------------ parameters ------------------------------------
def init_params(key, cfg):
    V, H, I, L, P = cfg["vocab"], cfg["hidden"], cfg["intermediate"], cfg["layers"], cfg["max_pos"]

    def nrm(k, shape):
        return 0.02 * jax.random.normal(k, shape, jnp.float32)

    keys = jax.random.split(key, 8 + L)
    params = {
        "word_emb": nrm(keys[0], (V, H)),
        "pos_emb": nrm(keys[1], (P, H)),
        "type_emb": nrm(keys[2], (2, H)),
        "emb_ln_g": jnp.ones((H,), jnp.float32), "emb_ln_b": jnp.zeros((H,), jnp.float32),
        "tr_w": nrm(keys[3], (H, H)), "tr_b": jnp.zeros((H,), jnp.float32),
        "tr_ln_g": jnp.ones((H,), jnp.float32), "tr_ln_b": jnp.zeros((H,), jnp.float32),
        "dec_b": jnp.zeros((V,), jnp.float32),   # decoder weight tied to word_emb
        "layers": [],
    }
    for l in range(L):
        lk = jax.random.split(keys[8 + l], 6)
        params["layers"].append({
            "wq": nrm(lk[0], (H, H)), "bq": jnp.zeros((H,), jnp.float32),
            "wk": nrm(lk[1], (H, H)), "bk": jnp.zeros((H,), jnp.float32),
            "wv": nrm(lk[2], (H, H)), "bv": jnp.zeros((H,), jnp.float32),
            "wo": nrm(lk[3], (H, H)), "bo": jnp.zeros((H,), jnp.float32),
            "ln1_g": jnp.ones((H,), jnp.float32), "ln1_b": jnp.zeros((H,), jnp.float32),
            "w1": nrm(lk[4], (H, I)), "b1": jnp.zeros((I,), jnp.float32),
            "w2": nrm(lk[5], (I, H)), "b2": jnp.zeros((H,), jnp.float32),
            "ln2_g": jnp.ones((H,), jnp.float32), "ln2_b": jnp.zeros((H,), jnp.float32),
        })
    return params


def prep_params(p, cfg):
    """One-time (construction-time) weight fusion / casting / vocab padding, so no
    concat / cast / pad re-executes inside the jitted forward."""
    V = cfg["vocab"]
    TV = 1024
    Vp = ((V + TV - 1) // TV) * TV

    def bf(a):
        return a.astype(jnp.bfloat16)

    def row(a):
        return a.reshape(1, -1).astype(jnp.float32)

    pp = {
        "word_emb": p["word_emb"],                       # f32 for the embedding gather
        "pos_emb": p["pos_emb"],
        "type_emb": p["type_emb"],
        "emb_ln_g": row(p["emb_ln_g"]), "emb_ln_b": row(p["emb_ln_b"]),
        "tr_w": bf(p["tr_w"]), "tr_b": row(p["tr_b"]),
        "tr_ln_g": row(p["tr_ln_g"]), "tr_ln_b": row(p["tr_ln_b"]),
        # tied decoder: bf16, vocab padded to a multiple of the decoder tile.
        # Padded columns: weight 0, bias -1e30 -> exp underflows to 0 in the loss.
        "dec_w": bf(jnp.pad(p["word_emb"], ((0, Vp - V), (0, 0)))),
        "dec_b": jnp.pad(p["dec_b"], (0, Vp - V),
                         constant_values=NEG_PAD).reshape(1, Vp).astype(jnp.float32),
        "layers": [],
    }
    for lyr in p["layers"]:
        pp["layers"].append({
            "wqkv": bf(jnp.concatenate([lyr["wq"], lyr["wk"], lyr["wv"]], axis=1)),
            "bqkv": jnp.concatenate([lyr["bq"], lyr["bk"], lyr["bv"]]).reshape(1, -1).astype(jnp.float32),
            "wo": bf(lyr["wo"]), "bo": row(lyr["bo"]),
            "ln1_g": row(lyr["ln1_g"]), "ln1_b": row(lyr["ln1_b"]),
            "w1": bf(lyr["w1"]), "b1": row(lyr["b1"]),
            "w2": bf(lyr["w2"]), "b2": row(lyr["b2"]),
            "ln2_g": row(lyr["ln2_g"]), "ln2_b": row(lyr["ln2_b"]),
        })
    return pp


# ------------------------------ model forward --------------------------------
def bert_mlm_forward(params, input_ids, attention_mask, labels, cfg):
    B, S = input_ids.shape
    H, nH, V = cfg["hidden"], cfg["heads"], cfg["vocab"]
    Dh = H // nH
    M = B * S

    # embeddings (gather + adds are JAX glue; token_type_ids default to 0)
    emb = (jnp.take(params["word_emb"], input_ids, axis=0)
           + params["pos_emb"][:S][None]
           + params["type_emb"][0][None, None])
    x = layernorm(emb.reshape(M, H).astype(jnp.bfloat16),
                  params["emb_ln_g"], params["emb_ln_b"])
    # TODO(synk): dropout layers are identity here (eval semantics of the forward).

    # additive padding mask kept per-batch: (B,1,S); broadcast to heads via index_map
    mask_add = ((1.0 - attention_mask.astype(jnp.float32)) * NEG_INF).reshape(B, 1, S)

    for lyr in params["layers"]:
        qkv = linear_resident(x, lyr["wqkv"], lyr["bqkv"])            # (M,3H) bf16
        ctx = mha_from_qkv(qkv, mask_add, B, S, nH, Dh)               # (M,H)  bf16
        attn = linear_resident(ctx, lyr["wo"], lyr["bo"])             # (M,H)  bf16
        x = layernorm(attn, lyr["ln1_g"], lyr["ln1_b"], residual=x)   # fused residual+LN
        h = linear_resident(x, lyr["w1"], lyr["b1"], act="gelu")      # (M,I)  bf16
        ff = linear_resident(h, lyr["w2"], lyr["b2"])                 # (M,H)  bf16
        x = layernorm(ff, lyr["ln2_g"], lyr["ln2_b"], residual=x)     # fused residual+LN

    # MLM head: transform (dense+gelu+LN), then tied decoder fused with the loss
    t = linear_resident(x, params["tr_w"], params["tr_b"], act="gelu")
    t = layernorm(t, params["tr_ln_g"], params["tr_ln_b"])

    logits_p, nll = decoder_with_loss(t, params["dec_w"], params["dec_b"],
                                      labels.reshape(M, 1).astype(jnp.int32))
    valid = (labels.reshape(-1) != -100).astype(jnp.float32)
    loss = jnp.sum(nll) / jnp.sum(valid)                 # matches CE(ignore_index=-100) mean
    logits = logits_p[:, :V].reshape(B, S, V)            # strip vocab padding
    return loss, logits


class PretrainBertForMLM:
    """JAX/Pallas analogue of the PyTorch module's forward pass."""

    def __init__(self, cfg, key):
        self.cfg = cfg
        self.params = init_params(key, cfg)               # f32 master copy (reference)
        self.run_params = prep_params(self.params, cfg)    # fused/bf16/padded, built once
        self._fwd = jax.jit(functools.partial(bert_mlm_forward, cfg=cfg))

    def forward(self, input_ids, attention_mask, labels):
        loss, logits = self._fwd(self.run_params, input_ids, attention_mask, labels)
        return {"loss": loss, "logits": logits}


# ------------------------------ pure-JAX reference ----------------------------
def reference_forward(params, input_ids, attention_mask, labels, cfg):
    B, S = input_ids.shape
    H, nH = cfg["hidden"], cfg["heads"]
    Dh = H // nH

    def ln(x, g, b):
        mu = jnp.mean(x, -1, keepdims=True)
        var = jnp.mean((x - mu) ** 2, -1, keepdims=True)
        return (x - mu) * jax.lax.rsqrt(var + LN_EPS) * g + b

    x = params["word_emb"][input_ids] + params["pos_emb"][:S][None] + params["type_emb"][0][None, None]
    x = ln(x, params["emb_ln_g"], params["emb_ln_b"])
    mask_add = (1.0 - attention_mask.astype(jnp.float32))[:, None, None, :] * NEG_INF
    scale = 1.0 / (Dh ** 0.5)

    def heads(t):
        return t.reshape(B, S, nH, Dh).transpose(0, 2, 1, 3)

    for lyr in params["layers"]:
        q = heads(x @ lyr["wq"] + lyr["bq"])
        k = heads(x @ lyr["wk"] + lyr["bk"])
        v = heads(x @ lyr["wv"] + lyr["bv"])
        s = jnp.einsum("bhqd,bhkd->bhqk", q, k) * scale + mask_add
        p = jax.nn.softmax(s, axis=-1)
        ctx = jnp.einsum("bhqk,bhkd->bhqd", p, v).transpose(0, 2, 1, 3).reshape(B, S, H)
        x = ln(x + ctx @ lyr["wo"] + lyr["bo"], lyr["ln1_g"], lyr["ln1_b"])
        h = jax.nn.gelu(x @ lyr["w1"] + lyr["b1"], approximate=False)
        x = ln(x + h @ lyr["w2"] + lyr["b2"], lyr["ln2_g"], lyr["ln2_b"])

    t = jax.nn.gelu(x @ params["tr_w"] + params["tr_b"], approximate=False)
    t = ln(t, params["tr_ln_g"], params["tr_ln_b"])
    logits = t @ params["word_emb"].T + params["dec_b"]

    flat = logits.reshape(B * S, -1)
    lbl = labels.reshape(-1)
    logp = jax.nn.log_softmax(flat, -1)
    valid = lbl != -100
    picked = jnp.take_along_axis(logp, jnp.where(valid, lbl, 0)[:, None], axis=1)[:, 0]
    loss = -jnp.sum(jnp.where(valid, picked, 0.0)) / jnp.sum(valid.astype(jnp.float32))
    return loss, logits


# ----------------------------------- main -------------------------------------
if __name__ == "__main__":
    # small shapes; heads=2, hidden=256 -> head_dim=128 (lane-dense attention blocks)
    cfg = dict(vocab=512, hidden=256, intermediate=512, layers=2, heads=2, max_pos=64)
    B, S = 2, 16

    key = jax.random.PRNGKey(0)
    kp, kid, klbl, kmsk = jax.random.split(key, 4)

    model = PretrainBertForMLM(cfg, kp)

    input_ids = jax.random.randint(kid, (B, S), 0, cfg["vocab"], dtype=jnp.int32)
    attention_mask = jnp.ones((B, S), jnp.int32).at[1, -4:].set(0)          # some padding
    rand_lbl = jax.random.randint(klbl, (B, S), 0, cfg["vocab"], dtype=jnp.int32)
    mask_pos = jax.random.bernoulli(kmsk, 0.25, (B, S))
    labels = jnp.where(mask_pos, rand_lbl, -100).astype(jnp.int32)
    labels = labels.at[0, 0].set(rand_lbl[0, 0])                            # >=1 supervised token

    out = model.forward(input_ids, attention_mask, labels)
    loss, logits = out["loss"], out["logits"]
    jax.block_until_ready((loss, logits))

    ref_loss, ref_logits = reference_forward(model.params, input_ids, attention_mask, labels, cfg)
    assert bool(jnp.isfinite(loss))
    assert bool(jnp.all(jnp.isfinite(logits)))
    assert jnp.allclose(logits, ref_logits, atol=5e-2, rtol=5e-2)
    assert jnp.allclose(loss, ref_loss, atol=5e-2, rtol=5e-2)

    print("KERNEL_OK")
</pallas_src>

<mosaic_0001>
module attributes {stable_mosaic.version = 11 : i64} {
  func.func @_linres_kernel(%arg0: i32, %arg1: memref<32x256xbf16, #tpu.memory_space<vmem>>, %arg2: memref<256x256xbf16, #tpu.memory_space<vmem>>, %arg3: memref<1x256xf32, #tpu.memory_space<vmem>>, %arg4: memref<32x256xbf16, #tpu.memory_space<vmem>>) attributes {dimension_semantics = [#tpu.dimension_semantics<parallel>], iteration_bounds = array<i64: 1>, scalar_prefetch = 0 : i64, scratch_operands = 0 : i64, tpu.core_type = #tpu.core_type<tc>, window_params = [{transform_indices = @transform_0, window_bounds = array<i64: 32, 256>}, {pipeline_mode = #tpu.pipeline_mode<synchronous>, transform_indices = @transform_1, window_bounds = array<i64: 256, 256>}, {pipeline_mode = #tpu.pipeline_mode<synchronous>, transform_indices = @transform_2, window_bounds = array<i64: 1, 256>}, {transform_indices = @transform_3, window_bounds = array<i64: 32, 256>}]} {
    %c0 = arith.constant 0 : index
    %c0_0 = arith.constant 0 : index
    %0 = vector.load %arg1[%c0, %c0_0] : memref<32x256xbf16, #tpu.memory_space<vmem>>, vector<32x256xbf16>
    %c0_1 = arith.constant 0 : index
    %c0_2 = arith.constant 0 : index
    %1 = vector.load %arg2[%c0_1, %c0_2] : memref<256x256xbf16, #tpu.memory_space<vmem>>, vector<256x256xbf16>
    %cst = arith.constant dense<0.000000e+00> : vector<32x256xf32>
    %2 = tpu.matmul %0, %1, %cst {dimension_numbers = #tpu.dot_dimension_numbers<[1], [0], [0], [1], [0, 0, 1, 1], [], []>} : vector<32x256xbf16>, vector<256x256xbf16>, vector<32x256xf32> -> vector<32x256xf32>
    %c0_3 = arith.constant 0 : index
    %c0_4 = arith.constant 0 : index
    %3 = vector.load %arg3[%c0_3, %c0_4] : memref<1x256xf32, #tpu.memory_space<vmem>>, vector<1x256xf32>
    %4 = vector.broadcast %3 : vector<1x256xf32> to vector<32x256xf32>
    %5 = arith.addf %2, %4 : vector<32x256xf32>
    %6 = arith.truncf %5 : vector<32x256xf32> to vector<32x256xbf16>
    %c0_5 = arith.constant 0 : index
    %c0_6 = arith.constant 0 : index
    %7 = vector.load %arg4[%c0_5, %c0_6] : memref<32x256xbf16, #tpu.memory_space<vmem>>, vector<32x256xbf16>
    tpu.vector_store %arg4[%c0_5, %c0_6], %6 {strides = array<i32>} : memref<32x256xbf16, #tpu.memory_space<vmem>>, vector<32x256xbf16>,
    return
  }
  func.func @transform_0(%arg0: i32) -> (i32, i32) {
    %c0_i32 = arith.constant 0 : i32
    %c0_i32_0 = arith.constant 0 : i32
    return %arg0, %c0_i32 : i32, i32
  }
  func.func @transform_1(%arg0: i32) -> (i32, i32) {
    %c0_i32 = arith.constant 0 : i32
    %c0_i32_0 = arith.constant 0 : i32
    %c0_i32_1 = arith.constant 0 : i32
    return %c0_i32, %c0_i32_0 : i32, i32
  }
  func.func @transform_2(%arg0: i32) -> (i32, i32) {
    %c0_i32 = arith.constant 0 : i32
    %c0_i32_0 = arith.constant 0 : i32
    %c0_i32_1 = arith.constant 0 : i32
    return %c0_i32, %c0_i32_0 : i32, i32
  }
  func.func @transform_3(%arg0: i32) -> (i32, i32) {
    %c0_i32 = arith.constant 0 : i32
    %c0_i32_0 = arith.constant 0 : i32
    return %arg0, %c0_i32 : i32, i32
  }
}

module attributes {stable_mosaic.version = 11 : i64} {
  func.func @_ln_kernel(%arg0: i32, %arg1: memref<32x256xbf16, #tpu.memory_space<vmem>>, %arg2: memref<1x256xf32, #tpu.memory_space<vmem>>, %arg3: memref<1x256xf32, #tpu.memory_space<vmem>>, %arg4: memref<32x256xbf16, #tpu.memory_space<vmem>>) attributes {dimension_semantics = [#tpu.dimension_semantics<parallel>], iteration_bounds = array<i64: 1>, scalar_prefetch = 0 : i64, scratch_operands = 0 : i64, tpu.core_type = #tpu.core_type<tc>, window_params = [{transform_indices = @transform_0, window_bounds = array<i64: 32, 256>}, {pipeline_mode = #tpu.pipeline_mode<synchronous>, transform_indices = @transform_1, window_bounds = array<i64: 1, 256>}, {pipeline_mode = #tpu.pipeline_mode<synchronous>, transform_indices = @transform_2, window_bounds = array<i64: 1, 256>}, {transform_indices = @transform_3, window_bounds = array<i64: 32, 256>}]} {
    %c0 = arith.constant 0 : index
    %c0_0 = arith.constant 0 : index
    %0 = vector.load %arg1[%c0, %c0_0] : memref<32x256xbf16, #tpu.memory_space<vmem>>, vector<32x256xbf16>
    %1 = arith.extf %0 : vector<32x256xbf16> to vector<32x256xf32>
    %cst = arith.constant dense<0.000000e+00> : vector<32xf32>
    %2 = vector.multi_reduction <add>, %1, %cst [1] : vector<32x256xf32> to vector<32xf32>
    %3 = vector.shape_cast %2 : vector<32xf32> to vector<32x1xf32>
    %cst_1 = arith.constant 2.560000e+02 : f32
    %4 = vector.broadcast %cst_1 : f32 to vector<32x1xf32>
    %5 = arith.divf %3, %4 : vector<32x1xf32>
    %6 = vector.broadcast %5 : vector<32x1xf32> to vector<32x256xf32>
    %7 = arith.subf %1, %6 : vector<32x256xf32>
    %8 = arith.mulf %7, %7 : vector<32x256xf32>
    %cst_2 = arith.constant dense<0.000000e+00> : vector<32xf32>
    %9 = vector.multi_reduction <add>, %8, %cst_2 [1] : vector<32x256xf32> to vector<32xf32>
    %10 = vector.shape_cast %9 : vector<32xf32> to vector<32x1xf32>
    %cst_3 = arith.constant 2.560000e+02 : f32
    %11 = vector.broadcast %cst_3 : f32 to vector<32x1xf32>
    %12 = arith.divf %10, %11 : vector<32x1xf32>
    %cst_4 = arith.constant 9.99999996E-13 : f32
    %13 = vector.broadcast %cst_4 : f32 to vector<32x1xf32>
    %14 = arith.addf %12, %13 : vector<32x1xf32>
    %15 = math.rsqrt %14 : vector<32x1xf32>
    %16 = vector.broadcast %15 : vector<32x1xf32> to vector<32x256xf32>
    %17 = arith.mulf %7, %16 : vector<32x256xf32>
    %c0_5 = arith.constant 0 : index
    %c0_6 = arith.constant 0 : index
    %18 = vector.load %arg2[%c0_5, %c0_6] : memref<1x256xf32, #tpu.memory_space<vmem>>, vector<1x256xf32>
    %19 = vector.broadcast %18 : vector<1x256xf32> to vector<32x256xf32>
    %20 = arith.mulf %17, %19 : vector<32x256xf32>
    %c0_7 = arith.constant 0 : index
    %c0_8 = arith.constant 0 : index
    %21 = vector.load %arg3[%c0_7, %c0_8] : memref<1x256xf32, #tpu.memory_space<vmem>>, vector<1x256xf32>
    %22 = vector.broadcast %21 : vector<1x256xf32> to vector<32x256xf32>
    %23 = arith.addf %20, %22 : vector<32x256xf32>
    %24 = arith.truncf %23 : vector<32x256xf32> to vector<32x256xbf16>
    %c0_9 = arith.constant 0 : index
    %c0_10 = arith.constant 0 : index
    %25 = vector.load %arg4[%c0_9, %c0_10] : memref<32x256xbf16, #tpu.memory_space<vmem>>, vector<32x256xbf16>
    tpu.vector_store %arg4[%c0_9, %c0_10], %24 {strides = array<i32>} : memref<32x256xbf16, #tpu.memory_space<vmem>>, vector<32x256xbf16>,
    return
  }
  func.func @transform_0(%arg0: i32) -> (i32, i32) {
    %c0_i32 = arith.constant 0 : i32
    %c0_i32_0 = arith.constant 0 : i32
    return %arg0, %c0_i32 : i32, i32
  }
  func.func @transform_1(%arg0: i32) -> (i32, i32) {
    %c0_i32 = arith.constant 0 : i32
    %c0_i32_0 = arith.constant 0 : i32
    %c0_i32_1 = arith.constant 0 : i32
    return %c0_i32, %c0_i32_0 : i32, i32
  }
  func.func @transform_2(%arg0: i32) -> (i32, i32) {
    %c0_i32 = arith.constant 0 : i32
    %c0_i32_0 = arith.constant 0 : i32
    %c0_i32_1 = arith.constant 0 : i32
    return %c0_i32, %c0_i32_0 : i32, i32
  }
  func.func @transform_3(%arg0: i32) -> (i32, i32) {
    %c0_i32 = arith.constant 0 : i32
    %c0_i32_0 = arith.constant 0 : i32
    return %arg0, %c0_i32 : i32, i32
  }
}

module attributes {stable_mosaic.version = 11 : i64} {
  func.func @_flash_attn_kernel(%arg0: i32, %arg1: i32, %arg2: i32, %arg3: i32, %arg4: memref<16x128xbf16, #tpu.memory_space<vmem>>, %arg5: memref<16x128xbf16, #tpu.memory_space<vmem>>, %arg6: memref<16x128xbf16, #tpu.memory_space<vmem>>, %arg7: memref<1x1x16xf32, #tpu.memory_space<vmem>>, %arg8: memref<16x128xbf16, #tpu.memory_space<vmem>>, %arg9: memref<1x16x1xf32, #tpu.memory_space<vmem>>, %arg10: memref<1x16x1xf32, #tpu.memory_space<vmem>>, %arg11: memref<1x16x128xf32, #tpu.memory_space<vmem>>) attributes {dimension_semantics = [#tpu.dimension_semantics<parallel>, #tpu.dimension_semantics<parallel>, #tpu.dimension_semantics<parallel>, #tpu.dimension_semantics<arbitrary>], iteration_bounds = array<i64: 2, 2, 1, 1>, scalar_prefetch = 0 : i64, scratch_operands = 3 : i64, tpu.core_type = #tpu.core_type<tc>, window_params = [{transform_indices = @transform_0, window_bounds = array<i64: 16, 128>}, {transform_indices = @transform_1, window_bounds = array<i64: 16, 128>}, {transform_indices = @transform_2, window_bounds = array<i64: 16, 128>}, {transform_indices = @transform_3, window_bounds = array<i64: 1, 1, 16>}, {transform_indices = @transform_4, window_bounds = array<i64: 16, 128>}]} {
    %c0_i32 = arith.constant 0 : i32
    %0 = arith.cmpi eq, %arg3, %c0_i32 : i32
    %1 = arith.extui %0 : i1 to i32
    %c0_i32_0 = arith.constant 0 : i32
    %2 = arith.cmpi ne, %1, %c0_i32_0 : i32
    scf.if %2 {
      %cst_33 = arith.constant 0xFF800000 : f32
      %48 = vector.broadcast %cst_33 : f32 to vector<1x16x1xf32>
      %c0_34 = arith.constant 0 : index
      %c0_35 = arith.constant 0 : index
      %c0_36 = arith.constant 0 : index
      %49 = vector.load %arg9[%c0_34, %c0_35, %c0_36] : memref<1x16x1xf32, #tpu.memory_space<vmem>>, vector<1x16x1xf32>
      tpu.vector_store %arg9[%c0_34, %c0_35, %c0_36], %48 {strides = array<i32>} : memref<1x16x1xf32, #tpu.memory_space<vmem>>, vector<1x16x1xf32>,
      %cst_37 = arith.constant 0.000000e+00 : f32
      %50 = vector.broadcast %cst_37 : f32 to vector<1x16x1xf32>
      %c0_38 = arith.constant 0 : index
      %c0_39 = arith.constant 0 : index
      %c0_40 = arith.constant 0 : index
      %51 = vector.load %arg10[%c0_38, %c0_39, %c0_40] : memref<1x16x1xf32, #tpu.memory_space<vmem>>, vector<1x16x1xf32>
      tpu.vector_store %arg10[%c0_38, %c0_39, %c0_40], %50 {strides = array<i32>} : memref<1x16x1xf32, #tpu.memory_space<vmem>>, vector<1x16x1xf32>,
      %cst_41 = arith.constant 0.000000e+00 : f32
      %52 = vector.broadcast %cst_41 : f32 to vector<1x16x128xf32>
      %c0_42 = arith.constant 0 : index
      %c0_43 = arith.constant 0 : index
      %c0_44 = arith.constant 0 : index
      %53 = vector.load %arg11[%c0_42, %c0_43, %c0_44] : memref<1x16x128xf32, #tpu.memory_space<vmem>>, vector<1x16x128xf32>
      tpu.vector_store %arg11[%c0_42, %c0_43, %c0_44], %52 {strides = array<i32>} : memref<1x16x128xf32, #tpu.memory_space<vmem>>, vector<1x16x128xf32>,
    } else {
    }
    %c0 = arith.constant 0 : index
    %c0_1 = arith.constant 0 : index
    %c0_2 = arith.constant 0 : index
    %3 = vector.load %arg7[%c0, %c0_1, %c0_2] : memref<1x1x16xf32, #tpu.memory_space<vmem>>, vector<1x1x16xf32>
    %4 = vector.shape_cast %3 : vector<1x1x16xf32> to vector<1x16xf32>
    %c0_3 = arith.constant 0 : index
    %c0_4 = arith.constant 0 : index
    %5 = vector.load %arg4[%c0_3, %c0_4] : memref<16x128xbf16, #tpu.memory_space<vmem>>, vector<16x128xbf16>
    %c0_5 = arith.constant 0 : index
    %c0_6 = arith.constant 0 : index
    %6 = vector.load %arg5[%c0_5, %c0_6] : memref<16x128xbf16, #tpu.memory_space<vmem>>, vector<16x128xbf16>
    %c0_7 = arith.constant 0 : index
    %c0_8 = arith.constant 0 : index
    %7 = vector.load %arg6[%c0_7, %c0_8] : memref<16x128xbf16, #tpu.memory_space<vmem>>, vector<16x128xbf16>
    %cst = arith.constant dense<0.000000e+00> : vector<16x16xf32>
    %8 = tpu.matmul %5, %6, %cst {dimension_numbers = #tpu.dot_dimension_numbers<[1], [1], [0], [0], [0, 0, 1, 0], [], []>} : vector<16x128xbf16>, vector<16x128xbf16>, vector<16x16xf32> -> vector<16x16xf32>
    %cst_9 = arith.constant 0.0883883461 : f32
    %9 = vector.broadcast %cst_9 : f32 to vector<16x16xf32>
    %10 = arith.mulf %8, %9 : vector<16x16xf32>
    %11 = vector.broadcast %4 : vector<1x16xf32> to vector<16x16xf32>
    %12 = arith.addf %10, %11 : vector<16x16xf32>
    %c0_10 = arith.constant 0 : index
    %c0_11 = arith.constant 0 : index
    %c0_12 = arith.constant 0 : index
    %13 = vector.load %arg9[%c0_10, %c0_11, %c0_12] : memref<1x16x1xf32, #tpu.memory_space<vmem>>, vector<1x16x1xf32>
    %14 = vector.shape_cast %13 : vector<1x16x1xf32> to vector<16x1xf32>
    %cst_13 = arith.constant dense<0xFF800000> : vector<16xf32>
    %15 = vector.multi_reduction <maximumf>, %12, %cst_13 [1] : vector<16x16xf32> to vector<16xf32>
    %16 = vector.shape_cast %15 : vector<16xf32> to vector<16x1xf32>
    %17 = arith.maximumf %14, %16 : vector<16x1xf32>
    %18 = arith.subf %14, %17 : vector<16x1xf32>
    %19 = math.exp %18 : vector<16x1xf32>
    %20 = vector.broadcast %17 : vector<16x1xf32> to vector<16x16xf32>
    %21 = arith.subf %12, %20 : vector<16x16xf32>
    %22 = math.exp %21 : vector<16x16xf32>
    %c0_14 = arith.constant 0 : index
    %c0_15 = arith.constant 0 : index
    %c0_16 = arith.constant 0 : index
    %23 = vector.load %arg10[%c0_14, %c0_15, %c0_16] : memref<1x16x1xf32, #tpu.memory_space<vmem>>, vector<1x16x1xf32>
    %24 = vector.shape_cast %23 : vector<1x16x1xf32> to vector<16x1xf32>
    %25 = arith.mulf %19, %24 : vector<16x1xf32>
    %cst_17 = arith.constant dense<0.000000e+00> : vector<16xf32>
    %26 = vector.multi_reduction <add>, %22, %cst_17 [1] : vector<16x16xf32> to vector<16xf32>
    %27 = vector.shape_cast %26 : vector<16xf32> to vector<16x1xf32>
    %28 = arith.addf %25, %27 : vector<16x1xf32>
    %c0_18 = arith.constant 0 : index
    %c0_19 = arith.constant 0 : index
    %c0_20 = arith.constant 0 : index
    %29 = vector.load %arg10[%c0_18, %c0_19, %c0_20] : memref<1x16x1xf32, #tpu.memory_space<vmem>>, vector<1x16x1xf32>
    %30 = vector.shape_cast %29 : vector<1x16x1xf32> to vector<16x1xf32>
    %31 = vector.shape_cast %28 : vector<16x1xf32> to vector<1x16x1xf32>
    tpu.vector_store %arg10[%c0_18, %c0_19, %c0_20], %31 {strides = array<i32>} : memref<1x16x1xf32, #tpu.memory_space<vmem>>, vector<1x16x1xf32>,
    %c0_21 = arith.constant 0 : index
    %c0_22 = arith.constant 0 : index
    %c0_23 = arith.constant 0 : index
    %32 = vector.load %arg11[%c0_21, %c0_22, %c0_23] : memref<1x16x128xf32, #tpu.memory_space<vmem>>, vector<1x16x128xf32>
    %33 = vector.shape_cast %32 : vector<1x16x128xf32> to vector<16x128xf32>
    %34 = vector.broadcast %19 : vector<16x1xf32> to vector<16x128xf32>
    %35 = arith.mulf %34, %33 : vector<16x128xf32>
    %36 = arith.truncf %22 : vector<16x16xf32> to vector<16x16xbf16>
    %cst_24 = arith.constant dense<0.000000e+00> : vector<16x128xf32>
    %37 = tpu.matmul %36, %7, %cst_24 {dimension_numbers = #tpu.dot_dimension_numbers<[1], [0], [0], [1], [0, 0, 1, 1], [], []>} : vector<16x16xbf16>, vector<16x128xbf16>, vector<16x128xf32> -> vector<16x128xf32>
    %38 = arith.addf %35, %37 : vector<16x128xf32>
    %c0_25 = arith.constant 0 : index
    %c0_26 = arith.constant 0 : index
    %c0_27 = arith.constant 0 : index
    %39 = vector.load %arg11[%c0_25, %c0_26, %c0_27] : memref<1x16x128xf32, #tpu.memory_space<vmem>>, vector<1x16x128xf32>
    %40 = vector.shape_cast %39 : vector<1x16x128xf32> to vector<16x128xf32>
    %41 = vector.shape_cast %38 : vector<16x128xf32> to vector<1x16x128xf32>
    tpu.vector_store %arg11[%c0_25, %c0_26, %c0_27], %41 {strides = array<i32>} : memref<1x16x128xf32, #tpu.memory_space<vmem>>, vector<1x16x128xf32>,
    %c0_28 = arith.constant 0 : index
    %c0_29 = arith.constant 0 : index
    %c0_30 = arith.constant 0 : index
    %42 = vector.load %arg9[%c0_28, %c0_29, %c0_30] : memref<1x16x1xf32, #tpu.memory_space<vmem>>, vector<1x16x1xf32>
    %43 = vector.shape_cast %42 : vector<1x16x1xf32> to vector<16x1xf32>
    %44 = vector.shape_cast %17 : vector<16x1xf32> to vector<1x16x1xf32>
    tpu.vector_store %arg9[%c0_28, %c0_29, %c0_30], %44 {strides = array<i32>} : memref<1x16x1xf32, #tpu.memory_space<vmem>>, vector<1x16x1xf32>,
    %c0_i32_31 = arith.constant 0 : i32
    %45 = arith.cmpi eq, %arg3, %c0_i32_31 : i32
    %46 = arith.extui %45 : i1 to i32
    %c0_i32_32 = arith.constant 0 : i32
    %47 = arith.cmpi ne, %46, %c0_i32_32 : i32
    scf.if %47 {
      %c0_33 = arith.constant 0 : index
      %c0_34 = arith.constant 0 : index
      %c0_35 = arith.constant 0 : index
      %48 = vector.load %arg11[%c0_33, %c0_34, %c0_35] : memref<1x16x128xf32, #tpu.memory_space<vmem>>, vector<1x16x128xf32>
      %49 = vector.shape_cast %48 : vector<1x16x128xf32> to vector<16x128xf32>
      %c0_36 = arith.constant 0 : index
      %c0_37 = arith.constant 0 : index
      %c0_38 = arith.constant 0 : index
      %50 = vector.load %arg10[%c0_36, %c0_37, %c0_38] : memref<1x16x1xf32, #tpu.memory_space<vmem>>, vector<1x16x1xf32>
      %51 = vector.shape_cast %50 : vector<1x16x1xf32> to vector<16x1xf32>
      %52 = tpu.reciprocal %51 {approx = true} : vector<16x1xf32> -> vector<16x1xf32>
      %53 = vector.broadcast %52 : vector<16x1xf32> to vector<16x128xf32>
      %54 = arith.mulf %49, %53 : vector<16x128xf32>
      %55 = arith.truncf %54 : vector<16x128xf32> to vector<16x128xbf16>
      %c0_39 = arith.constant 0 : index
      %c0_40 = arith.constant 0 : index
      %56 = vector.load %arg8[%c0_39, %c0_40] : memref<16x128xbf16, #tpu.memory_space<vmem>>, vector<16x128xbf16>
      tpu.vector_store %arg8[%c0_39, %c0_40], %55 {strides = array<i32>} : memref<16x128xbf16, #tpu.memory_space<vmem>>, vector<16x128xbf16>,
    } else {
    }
    return
  }
  func.func @transform_0(%arg0: i32, %arg1: i32, %arg2: i32, %arg3: i32) -> (i32, i32) {
    %c1_i32 = arith.constant 1 : i32
    %0 = arith.muli %arg0, %c1_i32 : i32
    %1 = arith.addi %0, %arg2 : i32
    %c0_i32 = arith.constant 0 : i32
    return %1, %arg1 : i32, i32
  }
  func.func @transform_1(%arg0: i32, %arg1: i32, %arg2: i32, %arg3: i32) -> (i32, i32) {
    %c1_i32 = arith.constant 1 : i32
    %0 = arith.muli %arg0, %c1_i32 : i32
    %1 = arith.addi %0, %arg3 : i32
    %c2_i32 = arith.constant 2 : i32
    %2 = arith.addi %c2_i32, %arg1 : i32
    %c0_i32 = arith.constant 0 : i32
    return %1, %2 : i32, i32
  }
  func.func @transform_2(%arg0: i32, %arg1: i32, %arg2: i32, %arg3: i32) -> (i32, i32) {
    %c1_i32 = arith.constant 1 : i32
    %0 = arith.muli %arg0, %c1_i32 : i32
    %1 = arith.addi %0, %arg3 : i32
    %c4_i32 = arith.constant 4 : i32
    %2 = arith.addi %c4_i32, %arg1 : i32
    %c0_i32 = arith.constant 0 : i32
    return %1, %2 : i32, i32
  }
  func.func @transform_3(%arg0: i32, %arg1: i32, %arg2: i32, %arg3: i32) -> (i32, i32, i32) {
    %c0_i32 = arith.constant 0 : i32
    %c0_i32_0 = arith.constant 0 : i32
    return %arg0, %c0_i32, %arg3 : i32, i32, i32
  }
  func.func @transform_4(%arg0: i32, %arg1: i32, %arg2: i32, %arg3: i32) -> (i32, i32) {
    %c1_i32 = arith.constant 1 : i32
    %0 = arith.muli %arg0, %c1_i32 : i32
    %1 = arith.addi %0, %arg2 : i32
    %c0_i32 = arith.constant 0 : i32
    return %1, %arg1 : i32, i32
  }
}

module attributes {stable_mosaic.version = 11 : i64} {
  func.func @_linres_kernel(%arg0: i32, %arg1: memref<32x256xbf16, #tpu.memory_space<vmem>>, %arg2: memref<256x768xbf16, #tpu.memory_space<vmem>>, %arg3: memref<1x768xf32, #tpu.memory_space<vmem>>, %arg4: memref<32x768xbf16, #tpu.memory_space<vmem>>) attributes {dimension_semantics = [#tpu.dimension_semantics<parallel>], iteration_bounds = array<i64: 1>, scalar_prefetch = 0 : i64, scratch_operands = 0 : i64, tpu.core_type = #tpu.core_type<tc>, window_params = [{transform_indices = @transform_0, window_bounds = array<i64: 32, 256>}, {pipeline_mode = #tpu.pipeline_mode<synchronous>, transform_indices = @transform_1, window_bounds = array<i64: 256, 768>}, {pipeline_mode = #tpu.pipeline_mode<synchronous>, transform_indices = @transform_2, window_bounds = array<i64: 1, 768>}, {transform_indices = @transform_3, window_bounds = array<i64: 32, 768>}]} {
    %c0 = arith.constant 0 : index
    %c0_0 = arith.constant 0 : index
    %0 = vector.load %arg1[%c0, %c0_0] : memref<32x256xbf16, #tpu.memory_space<vmem>>, vector<32x256xbf16>
    %c0_1 = arith.constant 0 : index
    %c0_2 = arith.constant 0 : index
    %1 = vector.load %arg2[%c0_1, %c0_2] : memref<256x768xbf16, #tpu.memory_space<vmem>>, vector<256x768xbf16>
    %cst = arith.constant dense<0.000000e+00> : vector<32x768xf32>
    %2 = tpu.matmul %0, %1, %cst {dimension_numbers = #tpu.dot_dimension_numbers<[1], [0], [0], [1], [0, 0, 1, 1], [], []>} : vector<32x256xbf16>, vector<256x768xbf16>, vector<32x768xf32> -> vector<32x768xf32>
    %c0_3 = arith.constant 0 : index
    %c0_4 = arith.constant 0 : index
    %3 = vector.load %arg3[%c0_3, %c0_4] : memref<1x768xf32, #tpu.memory_space<vmem>>, vector<1x768xf32>
    %4 = vector.broadcast %3 : vector<1x768xf32> to vector<32x768xf32>
    %5 = arith.addf %2, %4 : vector<32x768xf32>
    %6 = arith.truncf %5 : vector<32x768xf32> to vector<32x768xbf16>
    %c0_5 = arith.constant 0 : index
    %c0_6 = arith.constant 0 : index
    %7 = vector.load %arg4[%c0_5, %c0_6] : memref<32x768xbf16, #tpu.memory_space<vmem>>, vector<32x768xbf16>
    tpu.vector_store %arg4[%c0_5, %c0_6], %6 {strides = array<i32>} : memref<32x768xbf16, #tpu.memory_space<vmem>>, vector<32x768xbf16>,
    return
  }
  func.func @transform_0(%arg0: i32) -> (i32, i32) {
    %c0_i32 = arith.constant 0 : i32
    %c0_i32_0 = arith.constant 0 : i32
    return %arg0, %c0_i32 : i32, i32
  }
  func.func @transform_1(%arg0: i32) -> (i32, i32) {
    %c0_i32 = arith.constant 0 : i32
    %c0_i32_0 = arith.constant 0 : i32
    %c0_i32_1 = arith.constant 0 : i32
    return %c0_i32, %c0_i32_0 : i32, i32
  }
  func.func @transform_2(%arg0: i32) -> (i32, i32) {
    %c0_i32 = arith.constant 0 : i32
    %c0_i32_0 = arith.constant 0 : i32
    %c0_i32_1 = arith.constant 0 : i32
    return %c0_i32, %c0_i32_0 : i32, i32
  }
  func.func @transform_3(%arg0: i32) -> (i32, i32) {
    %c0_i32 = arith.constant 0 : i32
    %c0_i32_0 = arith.constant 0 : i32
    return %arg0, %c0_i32 : i32, i32
  }
}

module attributes {stable_mosaic.version = 11 : i64} {
  func.func @_ln_kernel(%arg0: i32, %arg1: memref<32x256xbf16, #tpu.memory_space<vmem>>, %arg2: memref<32x256xbf16, #tpu.memory_space<vmem>>, %arg3: memref<1x256xf32, #tpu.memory_space<vmem>>, %arg4: memref<1x256xf32, #tpu.memory_space<vmem>>, %arg5: memref<32x256xbf16, #tpu.memory_space<vmem>>) attributes {dimension_semantics = [#tpu.dimension_semantics<parallel>], iteration_bounds = array<i64: 1>, scalar_prefetch = 0 : i64, scratch_operands = 0 : i64, tpu.core_type = #tpu.core_type<tc>, window_params = [{transform_indices = @transform_0, window_bounds = array<i64: 32, 256>}, {transform_indices = @transform_1, window_bounds = array<i64: 32, 256>}, {pipeline_mode = #tpu.pipeline_mode<synchronous>, transform_indices = @transform_2, window_bounds = array<i64: 1, 256>}, {pipeline_mode = #tpu.pipeline_mode<synchronous>, transform_indices = @transform_3, window_bounds = array<i64: 1, 256>}, {transform_indices = @transform_4, window_bounds = array<i64: 32, 256>}]} {
    %c0 = arith.constant 0 : index
    %c0_0 = arith.constant 0 : index
    %0 = vector.load %arg1[%c0, %c0_0] : memref<32x256xbf16, #tpu.memory_space<vmem>>, vector<32x256xbf16>
    %1 = arith.extf %0 : vector<32x256xbf16> to vector<32x256xf32>
    %c0_1 = arith.constant 0 : index
    %c0_2 = arith.constant 0 : index
    %2 = vector.load %arg2[%c0_1, %c0_2] : memref<32x256xbf16, #tpu.memory_space<vmem>>, vector<32x256xbf16>
    %3 = arith.extf %2 : vector<32x256xbf16> to vector<32x256xf32>
    %4 = arith.addf %1, %3 : vector<32x256xf32>
    %cst = arith.constant dense<0.000000e+00> : vector<32xf32>
    %5 = vector.multi_reduction <add>, %4, %cst [1] : vector<32x256xf32> to vector<32xf32>
    %6 = vector.shape_cast %5 : vector<32xf32> to vector<32x1xf32>
    %cst_3 = arith.constant 2.560000e+02 : f32
    %7 = vector.broadcast %cst_3 : f32 to vector<32x1xf32>
    %8 = arith.divf %6, %7 : vector<32x1xf32>
    %9 = vector.broadcast %8 : vector<32x1xf32> to vector<32x256xf32>
    %10 = arith.subf %4, %9 : vector<32x256xf32>
    %11 = arith.mulf %10, %10 : vector<32x256xf32>
    %cst_4 = arith.constant dense<0.000000e+00> : vector<32xf32>
    %12 = vector.multi_reduction <add>, %11, %cst_4 [1] : vector<32x256xf32> to vector<32xf32>
    %13 = vector.shape_cast %12 : vector<32xf32> to vector<32x1xf32>
    %cst_5 = arith.constant 2.560000e+02 : f32
    %14 = vector.broadcast %cst_5 : f32 to vector<32x1xf32>
    %15 = arith.divf %13, %14 : vector<32x1xf32>
    %cst_6 = arith.constant 9.99999996E-13 : f32
    %16 = vector.broadcast %cst_6 : f32 to vector<32x1xf32>
    %17 = arith.addf %15, %16 : vector<32x1xf32>
    %18 = math.rsqrt %17 : vector<32x1xf32>
    %19 = vector.broadcast %18 : vector<32x1xf32> to vector<32x256xf32>
    %20 = arith.mulf %10, %19 : vector<32x256xf32>
    %c0_7 = arith.constant 0 : index
    %c0_8 = arith.constant 0 : index
    %21 = vector.load %arg3[%c0_7, %c0_8] : memref<1x256xf32, #tpu.memory_space<vmem>>, vector<1x256xf32>
    %22 = vector.broadcast %21 : vector<1x256xf32> to vector<32x256xf32>
    %23 = arith.mulf %20, %22 : vector<32x256xf32>
    %c0_9 = arith.constant 0 : index
    %c0_10 = arith.constant 0 : index
    %24 = vector.load %arg4[%c0_9, %c0_10] : memref<1x256xf32, #tpu.memory_space<vmem>>, vector<1x256xf32>
    %25 = vector.broadcast %24 : vector<1x256xf32> to vector<32x256xf32>
    %26 = arith.addf %23, %25 : vector<32x256xf32>
    %27 = arith.truncf %26 : vector<32x256xf32> to vector<32x256xbf16>
    %c0_11 = arith.constant 0 : index
    %c0_12 = arith.constant 0 : index
    %28 = vector.load %arg5[%c0_11, %c0_12] : memref<32x256xbf16, #tpu.memory_space<vmem>>, vector<32x256xbf16>
    tpu.vector_store %arg5[%c0_11, %c0_12], %27 {strides = array<i32>} : memref<32x256xbf16, #tpu.memory_space<vmem>>, vector<32x256xbf16>,
    return
  }
  func.func @transform_0(%arg0: i32) -> (i32, i32) {
    %c0_i32 = arith.constant 0 : i32
    %c0_i32_0 = arith.constant 0 : i32
    return %arg0, %c0_i32 : i32, i32
  }
  func.func @transform_1(%arg0: i32) -> (i32, i32) {
    %c0_i32 = arith.constant 0 : i32
    %c0_i32_0 = arith.constant 0 : i32
    return %arg0, %c0_i32 : i32, i32
  }
  func.func @transform_2(%arg0: i32) -> (i32, i32) {
    %c0_i32 = arith.constant 0 : i32
    %c0_i32_0 = arith.constant 0 : i32
    %c0_i32_1 = arith.constant 0 : i32
    return %c0_i32, %c0_i32_0 : i32, i32
  }
  func.func @transform_3(%arg0: i32) -> (i32, i32) {
    %c0_i32 = arith.constant 0 : i32
    %c0_i32_0 = arith.constant 0 : i32
    %c0_i32_1 = arith.constant 0 : i32
    return %c0_i32, %c0_i32_0 : i32, i32
  }
  func.func @transform_4(%arg0: i32) -> (i32, i32) {
    %c0_i32 = arith.constant 0 : i32
    %c0_i32_0 = arith.constant 0 : i32
    return %arg0, %c0_i32 : i32, i32
  }
}

module attributes {stable_mosaic.version = 11 : i64} {
  func.func @_linres_kernel(%arg0: i32, %arg1: memref<32x256xbf16, #tpu.memory_space<vmem>>, %arg2: memref<256x512xbf16, #tpu.memory_space<vmem>>, %arg3: memref<1x512xf32, #tpu.memory_space<vmem>>, %arg4: memref<32x512xbf16, #tpu.memory_space<vmem>>) attributes {dimension_semantics = [#tpu.dimension_semantics<parallel>], iteration_bounds = array<i64: 1>, scalar_prefetch = 0 : i64, scratch_operands = 0 : i64, tpu.core_type = #tpu.core_type<tc>, window_params = [{transform_indices = @transform_0, window_bounds = array<i64: 32, 256>}, {pipeline_mode = #tpu.pipeline_mode<synchronous>, transform_indices = @transform_1, window_bounds = array<i64: 256, 512>}, {pipeline_mode = #tpu.pipeline_mode<synchronous>, transform_indices = @transform_2, window_bounds = array<i64: 1, 512>}, {transform_indices = @transform_3, window_bounds = array<i64: 32, 512>}]} {
    %c0 = arith.constant 0 : index
    %c0_0 = arith.constant 0 : index
    %0 = vector.load %arg1[%c0, %c0_0] : memref<32x256xbf16, #tpu.memory_space<vmem>>, vector<32x256xbf16>
    %c0_1 = arith.constant 0 : index
    %c0_2 = arith.constant 0 : index
    %1 = vector.load %arg2[%c0_1, %c0_2] : memref<256x512xbf16, #tpu.memory_space<vmem>>, vector<256x512xbf16>
    %cst = arith.constant dense<0.000000e+00> : vector<32x512xf32>
    %2 = tpu.matmul %0, %1, %cst {dimension_numbers = #tpu.dot_dimension_numbers<[1], [0], [0], [1], [0, 0, 1, 1], [], []>} : vector<32x256xbf16>, vector<256x512xbf16>, vector<32x512xf32> -> vector<32x512xf32>
    %c0_3 = arith.constant 0 : index
    %c0_4 = arith.constant 0 : index
    %3 = vector.load %arg3[%c0_3, %c0_4] : memref<1x512xf32, #tpu.memory_space<vmem>>, vector<1x512xf32>
    %4 = vector.broadcast %3 : vector<1x512xf32> to vector<32x512xf32>
    %5 = arith.addf %2, %4 : vector<32x512xf32>
    %cst_5 = arith.constant 5.000000e-01 : f32
    %6 = vector.broadcast %cst_5 : f32 to vector<32x512xf32>
    %7 = arith.mulf %6, %5 : vector<32x512xf32>
    %cst_6 = arith.constant 0.707106769 : f32
    %8 = vector.broadcast %cst_6 : f32 to vector<32x512xf32>
    %9 = arith.mulf %5, %8 : vector<32x512xf32>
    %cst_7 = arith.constant 0.000000e+00 : f32
    %10 = vector.broadcast %cst_7 : f32 to vector<32x512xf32>
    %11 = arith.cmpf oge, %9, %10 : vector<32x512xf32>
    %cst_8 = arith.constant 1.000000e+00 : f32
    %cst_9 = arith.constant -1.000000e+00 : f32
    %12 = vector.broadcast %cst_8 : f32 to vector<32x512xf32>
    %13 = vector.broadcast %cst_9 : f32 to vector<32x512xf32>
    %14 = arith.select %11, %12, %13 : vector<32x512xi1>, vector<32x512xf32>
    %15 = math.absf %9 : vector<32x512xf32>
    %cst_10 = arith.constant 0.327591091 : f32
    %16 = vector.broadcast %cst_10 : f32 to vector<32x512xf32>
    %17 = arith.mulf %16, %15 : vector<32x512xf32>
    %cst_11 = arith.constant 1.000000e+00 : f32
    %18 = vector.broadcast %cst_11 : f32 to vector<32x512xf32>
    %19 = arith.addf %18, %17 : vector<32x512xf32>
    %cst_12 = arith.constant 1.000000e+00 : f32
    %20 = vector.broadcast %cst_12 : f32 to vector<32x512xf32>
    %21 = arith.divf %20, %19 : vector<32x512xf32>
    %cst_13 = arith.constant 1.06140542 : f32
    %22 = vector.broadcast %cst_13 : f32 to vector<32x512xf32>
    %23 = arith.mulf %22, %21 : vector<32x512xf32>
    %cst_14 = arith.constant -1.45315206 : f32
    %24 = vector.broadcast %cst_14 : f32 to vector<32x512xf32>
    %25 = arith.addf %23, %24 : vector<32x512xf32>
    %26 = arith.mulf %25, %21 : vector<32x512xf32>
    %cst_15 = arith.constant 1.42141378 : f32
    %27 = vector.broadcast %cst_15 : f32 to vector<32x512xf32>
    %28 = arith.addf %26, %27 : vector<32x512xf32>
    %29 = arith.mulf %28, %21 : vector<32x512xf32>
    %cst_16 = arith.constant -0.284496725 : f32
    %30 = vector.broadcast %cst_16 : f32 to vector<32x512xf32>
    %31 = arith.addf %29, %30 : vector<32x512xf32>
    %32 = arith.mulf %31, %21 : vector<32x512xf32>
    %cst_17 = arith.constant 0.254829586 : f32
    %33 = vector.broadcast %cst_17 : f32 to vector<32x512xf32>
    %34 = arith.addf %32, %33 : vector<32x512xf32>
    %35 = arith.mulf %34, %21 : vector<32x512xf32>
    %cst_18 = arith.constant 0.000000e+00 : f32
    %36 = vector.broadcast %cst_18 : f32 to vector<32x512xf32>
    %37 = arith.subf %36, %15 : vector<32x512xf32>
    %38 = arith.mulf %37, %15 : vector<32x512xf32>
    %39 = math.exp %38 : vector<32x512xf32>
    %40 = arith.mulf %35, %39 : vector<32x512xf32>
    %cst_19 = arith.constant 1.000000e+00 : f32
    %41 = vector.broadcast %cst_19 : f32 to vector<32x512xf32>
    %42 = arith.subf %41, %40 : vector<32x512xf32>
    %43 = arith.mulf %14, %42 : vector<32x512xf32>
    %cst_20 = arith.constant 1.000000e+00 : f32
    %44 = vector.broadcast %cst_20 : f32 to vector<32x512xf32>
    %45 = arith.addf %44, %43 : vector<32x512xf32>
    %46 = arith.mulf %7, %45 : vector<32x512xf32>
    %47 = arith.truncf %46 : vector<32x512xf32> to vector<32x512xbf16>
    %c0_21 = arith.constant 0 : index
    %c0_22 = arith.constant 0 : index
    %48 = vector.load %arg4[%c0_21, %c0_22] : memref<32x512xbf16, #tpu.memory_space<vmem>>, vector<32x512xbf16>
    tpu.vector_store %arg4[%c0_21, %c0_22], %47 {strides = array<i32>} : memref<32x512xbf16, #tpu.memory_space<vmem>>, vector<32x512xbf16>,
    return
  }
  func.func @transform_0(%arg0: i32) -> (i32, i32) {
    %c0_i32 = arith.constant 0 : i32
    %c0_i32_0 = arith.constant 0 : i32
    return %arg0, %c0_i32 : i32, i32
  }
  func.func @transform_1(%arg0: i32) -> (i32, i32) {
    %c0_i32 = arith.constant 0 : i32
    %c0_i32_0 = arith.constant 0 : i32
    %c0_i32_1 = arith.constant 0 : i32
    return %c0_i32, %c0_i32_0 : i32, i32
  }
  func.func @transform_2(%arg0: i32) -> (i32, i32) {
    %c0_i32 = arith.constant 0 : i32
    %c0_i32_0 = arith.constant 0 : i32
    %c0_i32_1 = arith.constant 0 : i32
    return %c0_i32, %c0_i32_0 : i32, i32
  }
  func.func @transform_3(%arg0: i32) -> (i32, i32) {
    %c0_i32 = arith.constant 0 : i32
    %c0_i32_0 = arith.constant 0 : i32
    return %arg0, %c0_i32 : i32, i32
  }
}

module attributes {stable_mosaic.version = 11 : i64} {
  func.func @_linres_kernel(%arg0: i32, %arg1: memref<32x512xbf16, #tpu.memory_space<vmem>>, %arg2: memref<512x256xbf16, #tpu.memory_space<vmem>>, %arg3: memref<1x256xf32, #tpu.memory_space<vmem>>, %arg4: memref<32x256xbf16, #tpu.memory_space<vmem>>) attributes {dimension_semantics = [#tpu.dimension_semantics<parallel>], iteration_bounds = array<i64: 1>, scalar_prefetch = 0 : i64, scratch_operands = 0 : i64, tpu.core_type = #tpu.core_type<tc>, window_params = [{transform_indices = @transform_0, window_bounds = array<i64: 32, 512>}, {pipeline_mode = #tpu.pipeline_mode<synchronous>, transform_indices = @transform_1, window_bounds = array<i64: 512, 256>}, {pipeline_mode = #tpu.pipeline_mode<synchronous>, transform_indices = @transform_2, window_bounds = array<i64: 1, 256>}, {transform_indices = @transform_3, window_bounds = array<i64: 32, 256>}]} {
    %c0 = arith.constant 0 : index
    %c0_0 = arith.constant 0 : index
    %0 = vector.load %arg1[%c0, %c0_0] : memref<32x512xbf16, #tpu.memory_space<vmem>>, vector<32x512xbf16>
    %c0_1 = arith.constant 0 : index
    %c0_2 = arith.constant 0 : index
    %1 = vector.load %arg2[%c0_1, %c0_2] : memref<512x256xbf16, #tpu.memory_space<vmem>>, vector<512x256xbf16>
    %cst = arith.constant dense<0.000000e+00> : vector<32x256xf32>
    %2 = tpu.matmul %0, %1, %cst {dimension_numbers = #tpu.dot_dimension_numbers<[1], [0], [0], [1], [0, 0, 1, 1], [], []>} : vector<32x512xbf16>, vector<512x256xbf16>, vector<32x256xf32> -> vector<32x256xf32>
    %c0_3 = arith.constant 0 : index
    %c0_4 = arith.constant 0 : index
    %3 = vector.load %arg3[%c0_3, %c0_4] : memref<1x256xf32, #tpu.memory_space<vmem>>, vector<1x256xf32>
    %4 = vector.broadcast %3 : vector<1x256xf32> to vector<32x256xf32>
    %5 = arith.addf %2, %4 : vector<32x256xf32>
    %6 = arith.truncf %5 : vector<32x256xf32> to vector<32x256xbf16>
    %c0_5 = arith.constant 0 : index
    %c0_6 = arith.constant 0 : index
    %7 = vector.load %arg4[%c0_5, %c0_6] : memref<32x256xbf16, #tpu.memory_space<vmem>>, vector<32x256xbf16>
    tpu.vector_store %arg4[%c0_5, %c0_6], %6 {strides = array<i32>} : memref<32x256xbf16, #tpu.memory_space<vmem>>, vector<32x256xbf16>,
    return
  }
  func.func @transform_0(%arg0: i32) -> (i32, i32) {
    %c0_i32 = arith.constant 0 : i32
    %c0_i32_0 = arith.constant 0 : i32
    return %arg0, %c0_i32 : i32, i32
  }
  func.func @transform_1(%arg0: i32) -> (i32, i32) {
    %c0_i32 = arith.constant 0 : i32
    %c0_i32_0 = arith.constant 0 : i32
    %c0_i32_1 = arith.constant 0 : i32
    return %c0_i32, %c0_i32_0 : i32, i32
  }
  func.func @transform_2(%arg0: i32) -> (i32, i32) {
    %c0_i32 = arith.constant 0 : i32
    %c0_i32_0 = arith.constant 0 : i32
    %c0_i32_1 = arith.constant 0 : i32
    return %c0_i32, %c0_i32_0 : i32, i32
  }
  func.func @transform_3(%arg0: i32) -> (i32, i32) {
    %c0_i32 = arith.constant 0 : i32
    %c0_i32_0 = arith.constant 0 : i32
    return %arg0, %c0_i32 : i32, i32
  }
}

module attributes {stable_mosaic.version = 11 : i64} {
  func.func @_linres_kernel(%arg0: i32, %arg1: memref<32x256xbf16, #tpu.memory_space<vmem>>, %arg2: memref<256x256xbf16, #tpu.memory_space<vmem>>, %arg3: memref<1x256xf32, #tpu.memory_space<vmem>>, %arg4: memref<32x256xbf16, #tpu.memory_space<vmem>>) attributes {dimension_semantics = [#tpu.dimension_semantics<parallel>], iteration_bounds = array<i64: 1>, scalar_prefetch = 0 : i64, scratch_operands = 0 : i64, tpu.core_type = #tpu.core_type<tc>, window_params = [{transform_indices = @transform_0, window_bounds = array<i64: 32, 256>}, {pipeline_mode = #tpu.pipeline_mode<synchronous>, transform_indices = @transform_1, window_bounds = array<i64: 256, 256>}, {pipeline_mode = #tpu.pipeline_mode<synchronous>, transform_indices = @transform_2, window_bounds = array<i64: 1, 256>}, {transform_indices = @transform_3, window_bounds = array<i64: 32, 256>}]} {
    %c0 = arith.constant 0 : index
    %c0_0 = arith.constant 0 : index
    %0 = vector.load %arg1[%c0, %c0_0] : memref<32x256xbf16, #tpu.memory_space<vmem>>, vector<32x256xbf16>
    %c0_1 = arith.constant 0 : index
    %c0_2 = arith.constant 0 : index
    %1 = vector.load %arg2[%c0_1, %c0_2] : memref<256x256xbf16, #tpu.memory_space<vmem>>, vector<256x256xbf16>
    %cst = arith.constant dense<0.000000e+00> : vector<32x256xf32>
    %2 = tpu.matmul %0, %1, %cst {dimension_numbers = #tpu.dot_dimension_numbers<[1], [0], [0], [1], [0, 0, 1, 1], [], []>} : vector<32x256xbf16>, vector<256x256xbf16>, vector<32x256xf32> -> vector<32x256xf32>
    %c0_3 = arith.constant 0 : index
    %c0_4 = arith.constant 0 : index
    %3 = vector.load %arg3[%c0_3, %c0_4] : memref<1x256xf32, #tpu.memory_space<vmem>>, vector<1x256xf32>
    %4 = vector.broadcast %3 : vector<1x256xf32> to vector<32x256xf32>
    %5 = arith.addf %2, %4 : vector<32x256xf32>
    %6 = arith.truncf %5 : vector<32x256xf32> to vector<32x256xbf16>
    %c0_5 = arith.constant 0 : index
    %c0_6 = arith.constant 0 : index
    %7 = vector.load %arg4[%c0_5, %c0_6] : memref<32x256xbf16, #tpu.memory_space<vmem>>, vector<32x256xbf16>
    tpu.vector_store %arg4[%c0_5, %c0_6], %6 {strides = array<i32>} : memref<32x256xbf16, #tpu.memory_space<vmem>>, vector<32x256xbf16>,
    return
  }
  func.func @transform_0(%arg0: i32) -> (i32, i32) {
    %c0_i32 = arith.constant 0 : i32
    %c0_i32_0 = arith.constant 0 : i32
    return %arg0, %c0_i32 : i32, i32
  }
  func.func @transform_1(%arg0: i32) -> (i32, i32) {
    %c0_i32 = arith.constant 0 : i32
    %c0_i32_0 = arith.constant 0 : i32
    %c0_i32_1 = arith.constant 0 : i32
    return %c0_i32, %c0_i32_0 : i32, i32
  }
  func.func @transform_2(%arg0: i32) -> (i32, i32) {
    %c0_i32 = arith.constant 0 : i32
    %c0_i32_0 = arith.constant 0 : i32
    %c0_i32_1 = arith.constant 0 : i32
    return %c0_i32, %c0_i32_0 : i32, i32
  }
  func.func @transform_3(%arg0: i32) -> (i32, i32) {
    %c0_i32 = arith.constant 0 : i32
    %c0_i32_0 = arith.constant 0 : i32
    return %arg0, %c0_i32 : i32, i32
  }
}

module attributes {stable_mosaic.version = 11 : i64} {
  func.func @_linres_kernel(%arg0: i32, %arg1: memref<32x256xbf16, #tpu.memory_space<vmem>>, %arg2: memref<256x512xbf16, #tpu.memory_space<vmem>>, %arg3: memref<1x512xf32, #tpu.memory_space<vmem>>, %arg4: memref<32x512xbf16, #tpu.memory_space<vmem>>) attributes {dimension_semantics = [#tpu.dimension_semantics<parallel>], iteration_bounds = array<i64: 1>, scalar_prefetch = 0 : i64, scratch_operands = 0 : i64, tpu.core_type = #tpu.core_type<tc>, window_params = [{transform_indices = @transform_0, window_bounds = array<i64: 32, 256>}, {pipeline_mode = #tpu.pipeline_mode<synchronous>, transform_indices = @transform_1, window_bounds = array<i64: 256, 512>}, {pipeline_mode = #tpu.pipeline_mode<synchronous>, transform_indices = @transform_2, window_bounds = array<i64: 1, 512>}, {transform_indices = @transform_3, window_bounds = array<i64: 32, 512>}]} {
    %c0 = arith.constant 0 : index
    %c0_0 = arith.constant 0 : index
    %0 = vector.load %arg1[%c0, %c0_0] : memref<32x256xbf16, #tpu.memory_space<vmem>>, vector<32x256xbf16>
    %c0_1 = arith.constant 0 : index
    %c0_2 = arith.constant 0 : index
    %1 = vector.load %arg2[%c0_1, %c0_2] : memref<256x512xbf16, #tpu.memory_space<vmem>>, vector<256x512xbf16>
    %cst = arith.constant dense<0.000000e+00> : vector<32x512xf32>
    %2 = tpu.matmul %0, %1, %cst {dimension_numbers = #tpu.dot_dimension_numbers<[1], [0], [0], [1], [0, 0, 1, 1], [], []>} : vector<32x256xbf16>, vector<256x512xbf16>, vector<32x512xf32> -> vector<32x512xf32>
    %c0_3 = arith.constant 0 : index
    %c0_4 = arith.constant 0 : index
    %3 = vector.load %arg3[%c0_3, %c0_4] : memref<1x512xf32, #tpu.memory_space<vmem>>, vector<1x512xf32>
    %4 = vector.broadcast %3 : vector<1x512xf32> to vector<32x512xf32>
    %5 = arith.addf %2, %4 : vector<32x512xf32>
    %cst_5 = arith.constant 5.000000e-01 : f32
    %6 = vector.broadcast %cst_5 : f32 to vector<32x512xf32>
    %7 = arith.mulf %6, %5 : vector<32x512xf32>
    %cst_6 = arith.constant 0.707106769 : f32
    %8 = vector.broadcast %cst_6 : f32 to vector<32x512xf32>
    %9 = arith.mulf %5, %8 : vector<32x512xf32>
    %cst_7 = arith.constant 0.000000e+00 : f32
    %10 = vector.broadcast %cst_7 : f32 to vector<32x512xf32>
    %11 = arith.cmpf oge, %9, %10 : vector<32x512xf32>
    %cst_8 = arith.constant 1.000000e+00 : f32
    %cst_9 = arith.constant -1.000000e+00 : f32
    %12 = vector.broadcast %cst_8 : f32 to vector<32x512xf32>
    %13 = vector.broadcast %cst_9 : f32 to vector<32x512xf32>
    %14 = arith.select %11, %12, %13 : vector<32x512xi1>, vector<32x512xf32>
    %15 = math.absf %9 : vector<32x512xf32>
    %cst_10 = arith.constant 0.327591091 : f32
    %16 = vector.broadcast %cst_10 : f32 to vector<32x512xf32>
    %17 = arith.mulf %16, %15 : vector<32x512xf32>
    %cst_11 = arith.constant 1.000000e+00 : f32
    %18 = vector.broadcast %cst_11 : f32 to vector<32x512xf32>
    %19 = arith.addf %18, %17 : vector<32x512xf32>
    %cst_12 = arith.constant 1.000000e+00 : f32
    %20 = vector.broadcast %cst_12 : f32 to vector<32x512xf32>
    %21 = arith.divf %20, %19 : vector<32x512xf32>
    %cst_13 = arith.constant 1.06140542 : f32
    %22 = vector.broadcast %cst_13 : f32 to vector<32x512xf32>
    %23 = arith.mulf %22, %21 : vector<32x512xf32>
    %cst_14 = arith.constant -1.45315206 : f32
    %24 = vector.broadcast %cst_14 : f32 to vector<32x512xf32>
    %25 = arith.addf %23, %24 : vector<32x512xf32>
    %26 = arith.mulf %25, %21 : vector<32x512xf32>
    %cst_15 = arith.constant 1.42141378 : f32
    %27 = vector.broadcast %cst_15 : f32 to vector<32x512xf32>
    %28 = arith.addf %26, %27 : vector<32x512xf32>
    %29 = arith.mulf %28, %21 : vector<32x512xf32>
    %cst_16 = arith.constant -0.284496725 : f32
    %30 = vector.broadcast %cst_16 : f32 to vector<32x512xf32>
    %31 = arith.addf %29, %30 : vector<32x512xf32>
    %32 = arith.mulf %31, %21 : vector<32x512xf32>
    %cst_17 = arith.constant 0.254829586 : f32
    %33 = vector.broadcast %cst_17 : f32 to vector<32x512xf32>
    %34 = arith.addf %32, %33 : vector<32x512xf32>
    %35 = arith.mulf %34, %21 : vector<32x512xf32>
    %cst_18 = arith.constant 0.000000e+00 : f32
    %36 = vector.broadcast %cst_18 : f32 to vector<32x512xf32>
    %37 = arith.subf %36, %15 : vector<32x512xf32>
    %38 = arith.mulf %37, %15 : vector<32x512xf32>
    %39 = math.exp %38 : vector<32x512xf32>
    %40 = arith.mulf %35, %39 : vector<32x512xf32>
    %cst_19 = arith.constant 1.000000e+00 : f32
    %41 = vector.broadcast %cst_19 : f32 to vector<32x512xf32>
    %42 = arith.subf %41, %40 : vector<32x512xf32>
    %43 = arith.mulf %14, %42 : vector<32x512xf32>
    %cst_20 = arith.constant 1.000000e+00 : f32
    %44 = vector.broadcast %cst_20 : f32 to vector<32x512xf32>
    %45 = arith.addf %44, %43 : vector<32x512xf32>
    %46 = arith.mulf %7, %45 : vector<32x512xf32>
    %47 = arith.truncf %46 : vector<32x512xf32> to vector<32x512xbf16>
    %c0_21 = arith.constant 0 : index
    %c0_22 = arith.constant 0 : index
    %48 = vector.load %arg4[%c0_21, %c0_22] : memref<32x512xbf16, #tpu.memory_space<vmem>>, vector<32x512xbf16>
    tpu.vector_store %arg4[%c0_21, %c0_22], %47 {strides = array<i32>} : memref<32x512xbf16, #tpu.memory_space<vmem>>, vector<32x512xbf16>,
    return
  }
  func.func @transform_0(%arg0: i32) -> (i32, i32) {
    %c0_i32 = arith.constant 0 : i32
    %c0_i32_0 = arith.constant 0 : i32
    return %arg0, %c0_i32 : i32, i32
  }
  func.func @transform_1(%arg0: i32) -> (i32, i32) {
    %c0_i32 = arith.constant 0 : i32
    %c0_i32_0 = arith.constant 0 : i32
    %c0_i32_1 = arith.constant 0 : i32
    return %c0_i32, %c0_i32_0 : i32, i32
  }
  func.func @transform_2(%arg0: i32) -> (i32, i32) {
    %c0_i32 = arith.constant 0 : i32
    %c0_i32_0 = arith.constant 0 : i32
    %c0_i32_1 = arith.constant 0 : i32
    return %c0_i32, %c0_i32_0 : i32, i32
  }
  func.func @transform_3(%arg0: i32) -> (i32, i32) {
    %c0_i32 = arith.constant 0 : i32
    %c0_i32_0 = arith.constant 0 : i32
    return %arg0, %c0_i32 : i32, i32
  }
}

module attributes {stable_mosaic.version = 11 : i64} {
  func.func @_linres_kernel(%arg0: i32, %arg1: memref<32x256xbf16, #tpu.memory_space<vmem>>, %arg2: memref<256x256xbf16, #tpu.memory_space<vmem>>, %arg3: memref<1x256xf32, #tpu.memory_space<vmem>>, %arg4: memref<32x256xbf16, #tpu.memory_space<vmem>>) attributes {dimension_semantics = [#tpu.dimension_semantics<parallel>], iteration_bounds = array<i64: 1>, scalar_prefetch = 0 : i64, scratch_operands = 0 : i64, tpu.core_type = #tpu.core_type<tc>, window_params = [{transform_indices = @transform_0, window_bounds = array<i64: 32, 256>}, {pipeline_mode = #tpu.pipeline_mode<synchronous>, transform_indices = @transform_1, window_bounds = array<i64: 256, 256>}, {pipeline_mode = #tpu.pipeline_mode<synchronous>, transform_indices = @transform_2, window_bounds = array<i64: 1, 256>}, {transform_indices = @transform_3, window_bounds = array<i64: 32, 256>}]} {
    %c0 = arith.constant 0 : index
    %c0_0 = arith.constant 0 : index
    %0 = vector.load %arg1[%c0, %c0_0] : memref<32x256xbf16, #tpu.memory_space<vmem>>, vector<32x256xbf16>
    %c0_1 = arith.constant 0 : index
    %c0_2 = arith.constant 0 : index
    %1 = vector.load %arg2[%c0_1, %c0_2] : memref<256x256xbf16, #tpu.memory_space<vmem>>, vector<256x256xbf16>
    %cst = arith.constant dense<0.000000e+00> : vector<32x256xf32>
    %2 = tpu.matmul %0, %1, %cst {dimension_numbers = #tpu.dot_dimension_numbers<[1], [0], [0], [1], [0, 0, 1, 1], [], []>} : vector<32x256xbf16>, vector<256x256xbf16>, vector<32x256xf32> -> vector<32x256xf32>
    %c0_3 = arith.constant 0 : index
    %c0_4 = arith.constant 0 : index
    %3 = vector.load %arg3[%c0_3, %c0_4] : memref<1x256xf32, #tpu.memory_space<vmem>>, vector<1x256xf32>
    %4 = vector.broadcast %3 : vector<1x256xf32> to vector<32x256xf32>
    %5 = arith.addf %2, %4 : vector<32x256xf32>
    %cst_5 = arith.constant 5.000000e-01 : f32
    %6 = vector.broadcast %cst_5 : f32 to vector<32x256xf32>
    %7 = arith.mulf %6, %5 : vector<32x256xf32>
    %cst_6 = arith.constant 0.707106769 : f32
    %8 = vector.broadcast %cst_6 : f32 to vector<32x256xf32>
    %9 = arith.mulf %5, %8 : vector<32x256xf32>
    %cst_7 = arith.constant 0.000000e+00 : f32
    %10 = vector.broadcast %cst_7 : f32 to vector<32x256xf32>
    %11 = arith.cmpf oge, %9, %10 : vector<32x256xf32>
    %cst_8 = arith.constant 1.000000e+00 : f32
    %cst_9 = arith.constant -1.000000e+00 : f32
    %12 = vector.broadcast %cst_8 : f32 to vector<32x256xf32>
    %13 = vector.broadcast %cst_9 : f32 to vector<32x256xf32>
    %14 = arith.select %11, %12, %13 : vector<32x256xi1>, vector<32x256xf32>
    %15 = math.absf %9 : vector<32x256xf32>
    %cst_10 = arith.constant 0.327591091 : f32
    %16 = vector.broadcast %cst_10 : f32 to vector<32x256xf32>
    %17 = arith.mulf %16, %15 : vector<32x256xf32>
    %cst_11 = arith.constant 1.000000e+00 : f32
    %18 = vector.broadcast %cst_11 : f32 to vector<32x256xf32>
    %19 = arith.addf %18, %17 : vector<32x256xf32>
    %cst_12 = arith.constant 1.000000e+00 : f32
    %20 = vector.broadcast %cst_12 : f32 to vector<32x256xf32>
    %21 = arith.divf %20, %19 : vector<32x256xf32>
    %cst_13 = arith.constant 1.06140542 : f32
    %22 = vector.broadcast %cst_13 : f32 to vector<32x256xf32>
    %23 = arith.mulf %22, %21 : vector<32x256xf32>
    %cst_14 = arith.constant -1.45315206 : f32
    %24 = vector.broadcast %cst_14 : f32 to vector<32x256xf32>
    %25 = arith.addf %23, %24 : vector<32x256xf32>
    %26 = arith.mulf %25, %21 : vector<32x256xf32>
    %cst_15 = arith.constant 1.42141378 : f32
    %27 = vector.broadcast %cst_15 : f32 to vector<32x256xf32>
    %28 = arith.addf %26, %27 : vector<32x256xf32>
    %29 = arith.mulf %28, %21 : vector<32x256xf32>
    %cst_16 = arith.constant -0.284496725 : f32
    %30 = vector.broadcast %cst_16 : f32 to vector<32x256xf32>
    %31 = arith.addf %29, %30 : vector<32x256xf32>
    %32 = arith.mulf %31, %21 : vector<32x256xf32>
    %cst_17 = arith.constant 0.254829586 : f32
    %33 = vector.broadcast %cst_17 : f32 to vector<32x256xf32>
    %34 = arith.addf %32, %33 : vector<32x256xf32>
    %35 = arith.mulf %34, %21 : vector<32x256xf32>
    %cst_18 = arith.constant 0.000000e+00 : f32
    %36 = vector.broadcast %cst_18 : f32 to vector<32x256xf32>
    %37 = arith.subf %36, %15 : vector<32x256xf32>
    %38 = arith.mulf %37, %15 : vector<32x256xf32>
    %39 = math.exp %38 : vector<32x256xf32>
    %40 = arith.mulf %35, %39 : vector<32x256xf32>
    %cst_19 = arith.constant 1.000000e+00 : f32
    %41 = vector.broadcast %cst_19 : f32 to vector<32x256xf32>
    %42 = arith.subf %41, %40 : vector<32x256xf32>
    %43 = arith.mulf %14, %42 : vector<32x256xf32>
    %cst_20 = arith.constant 1.000000e+00 : f32
    %44 = vector.broadcast %cst_20 : f32 to vector<32x256xf32>
    %45 = arith.addf %44, %43 : vector<32x256xf32>
    %46 = arith.mulf %7, %45 : vector<32x256xf32>
    %47 = arith.truncf %46 : vector<32x256xf32> to vector<32x256xbf16>
    %c0_21 = arith.constant 0 : index
    %c0_22 = arith.constant 0 : index
    %48 = vector.load %arg4[%c0_21, %c0_22] : memref<32x256xbf16, #tpu.memory_space<vmem>>, vector<32x256xbf16>
    tpu.vector_store %arg4[%c0_21, %c0_22], %47 {strides = array<i32>} : memref<32x256xbf16, #tpu.memory_space<vmem>>, vector<32x256xbf16>,
    return
  }
  func.func @transform_0(%arg0: i32) -> (i32, i32) {
    %c0_i32 = arith.constant 0 : i32
    %c0_i32_0 = arith.constant 0 : i32
    return %arg0, %c0_i32 : i32, i32
  }
  func.func @transform_1(%arg0: i32) -> (i32, i32) {
    %c0_i32 = arith.constant 0 : i32
    %c0_i32_0 = arith.constant 0 : i32
    %c0_i32_1 = arith.constant 0 : i32
    return %c0_i32, %c0_i32_0 : i32, i32
  }
  func.func @transform_2(%arg0: i32) -> (i32, i32) {
    %c0_i32 = arith.constant 0 : i32
    %c0_i32_0 = arith.constant 0 : i32
    %c0_i32_1 = arith.constant 0 : i32
    return %c0_i32, %c0_i32_0 : i32, i32
  }
  func.func @transform_3(%arg0: i32) -> (i32, i32) {
    %c0_i32 = arith.constant 0 : i32
    %c0_i32_0 = arith.constant 0 : i32
    return %arg0, %c0_i32 : i32, i32
  }
}

module attributes {stable_mosaic.version = 11 : i64} {
  func.func @_decoder_loss_kernel(%arg0: i32, %arg1: i32, %arg2: memref<32x256xbf16, #tpu.memory_space<vmem>>, %arg3: memref<1024x256xbf16, #tpu.memory_space<vmem>>, %arg4: memref<1x1024xf32, #tpu.memory_space<vmem>>, %arg5: memref<32x1xi32, #tpu.memory_space<vmem>>, %arg6: memref<32x1024xf32, #tpu.memory_space<vmem>>, %arg7: memref<32x1xf32, #tpu.memory_space<vmem>>, %arg8: memref<32x1xf32, #tpu.memory_space<vmem>>, %arg9: memref<32x1xf32, #tpu.memory_space<vmem>>, %arg10: memref<32x1xf32, #tpu.memory_space<vmem>>) attributes {dimension_semantics = [#tpu.dimension_semantics<parallel>, #tpu.dimension_semantics<arbitrary>], iteration_bounds = array<i64: 1, 1>, scalar_prefetch = 0 : i64, scratch_operands = 3 : i64, tpu.core_type = #tpu.core_type<tc>, window_params = [{transform_indices = @transform_0, window_bounds = array<i64: 32, 256>}, {transform_indices = @transform_1, window_bounds = array<i64: 1024, 256>}, {transform_indices = @transform_2, window_bounds = array<i64: 1, 1024>}, {transform_indices = @transform_3, window_bounds = array<i64: 32, 1>}, {transform_indices = @transform_4, window_bounds = array<i64: 32, 1024>}, {transform_indices = @transform_5, window_bounds = array<i64: 32, 1>}]} {
    %c0_i32 = arith.constant 0 : i32
    %0 = arith.cmpi eq, %arg1, %c0_i32 : i32
    %1 = arith.extui %0 : i1 to i32
    %c0_i32_0 = arith.constant 0 : i32
    %2 = arith.cmpi ne, %1, %c0_i32_0 : i32
    scf.if %2 {
      %cst_28 = arith.constant 0xFF800000 : f32
      %43 = vector.broadcast %cst_28 : f32 to vector<32x1xf32>
      %c0_29 = arith.constant 0 : index
      %c0_30 = arith.constant 0 : index
      %44 = vector.load %arg8[%c0_29, %c0_30] : memref<32x1xf32, #tpu.memory_space<vmem>>, vector<32x1xf32>
      tpu.vector_store %arg8[%c0_29, %c0_30], %43 {strides = array<i32>} : memref<32x1xf32, #tpu.memory_space<vmem>>, vector<32x1xf32>,
      %cst_31 = arith.constant 0.000000e+00 : f32
      %45 = vector.broadcast %cst_31 : f32 to vector<32x1xf32>
      %c0_32 = arith.constant 0 : index
      %c0_33 = arith.constant 0 : index
      %46 = vector.load %arg9[%c0_32, %c0_33] : memref<32x1xf32, #tpu.memory_space<vmem>>, vector<32x1xf32>
      tpu.vector_store %arg9[%c0_32, %c0_33], %45 {strides = array<i32>} : memref<32x1xf32, #tpu.memory_space<vmem>>, vector<32x1xf32>,
      %cst_34 = arith.constant 0.000000e+00 : f32
      %47 = vector.broadcast %cst_34 : f32 to vector<32x1xf32>
      %c0_35 = arith.constant 0 : index
      %c0_36 = arith.constant 0 : index
      %48 = vector.load %arg10[%c0_35, %c0_36] : memref<32x1xf32, #tpu.memory_space<vmem>>, vector<32x1xf32>
      tpu.vector_store %arg10[%c0_35, %c0_36], %47 {strides = array<i32>} : memref<32x1xf32, #tpu.memory_space<vmem>>, vector<32x1xf32>,
    } else {
    }
    %c0 = arith.constant 0 : index
    %c0_1 = arith.constant 0 : index
    %3 = vector.load %arg2[%c0, %c0_1] : memref<32x256xbf16, #tpu.memory_space<vmem>>, vector<32x256xbf16>
    %c0_2 = arith.constant 0 : index
    %c0_3 = arith.constant 0 : index
    %4 = vector.load %arg3[%c0_2, %c0_3] : memref<1024x256xbf16, #tpu.memory_space<vmem>>, vector<1024x256xbf16>
    %cst = arith.constant dense<0.000000e+00> : vector<32x1024xf32>
    %5 = tpu.matmul %3, %4, %cst {dimension_numbers = #tpu.dot_dimension_numbers<[1], [1], [0], [0], [0, 0, 1, 0], [], []>} : vector<32x256xbf16>, vector<1024x256xbf16>, vector<32x1024xf32> -> vector<32x1024xf32>
    %c0_4 = arith.constant 0 : index
    %c0_5 = arith.constant 0 : index
    %6 = vector.load %arg4[%c0_4, %c0_5] : memref<1x1024xf32, #tpu.memory_space<vmem>>, vector<1x1024xf32>
    %7 = vector.broadcast %6 : vector<1x1024xf32> to vector<32x1024xf32>
    %8 = arith.addf %5, %7 : vector<32x1024xf32>
    %c0_6 = arith.constant 0 : index
    %c0_7 = arith.constant 0 : index
    %9 = vector.load %arg6[%c0_6, %c0_7] : memref<32x1024xf32, #tpu.memory_space<vmem>>, vector<32x1024xf32>
    tpu.vector_store %arg6[%c0_6, %c0_7], %8 {strides = array<i32>} : memref<32x1024xf32, #tpu.memory_space<vmem>>, vector<32x1024xf32>,
    %c0_8 = arith.constant 0 : index
    %c0_9 = arith.constant 0 : index
    %10 = vector.load %arg5[%c0_8, %c0_9] : memref<32x1xi32, #tpu.memory_space<vmem>>, vector<32x1xi32>
    %c0_10 = arith.constant 0 : index
    %c0_11 = arith.constant 0 : index
    %11 = vector.load %arg8[%c0_10, %c0_11] : memref<32x1xf32, #tpu.memory_space<vmem>>, vector<32x1xf32>
    %cst_12 = arith.constant dense<0xFF800000> : vector<32xf32>
    %12 = vector.multi_reduction <maximumf>, %8, %cst_12 [1] : vector<32x1024xf32> to vector<32xf32>
    %13 = vector.shape_cast %12 : vector<32xf32> to vector<32x1xf32>
    %14 = arith.maximumf %11, %13 : vector<32x1xf32>
    %15 = arith.subf %11, %14 : vector<32x1xf32>
    %16 = math.exp %15 : vector<32x1xf32>
    %c0_13 = arith.constant 0 : index
    %c0_14 = arith.constant 0 : index
    %17 = vector.load %arg9[%c0_13, %c0_14] : memref<32x1xf32, #tpu.memory_space<vmem>>, vector<32x1xf32>
    %18 = arith.mulf %16, %17 : vector<32x1xf32>
    %19 = vector.broadcast %14 : vector<32x1xf32> to vector<32x1024xf32>
    %20 = arith.subf %8, %19 : vector<32x1024xf32>
    %21 = math.exp %20 : vector<32x1024xf32>
    %cst_15 = arith.constant dense<0.000000e+00> : vector<32xf32>
    %22 = vector.multi_reduction <add>, %21, %cst_15 [1] : vector<32x1024xf32> to vector<32xf32>
    %23 = vector.shape_cast %22 : vector<32xf32> to vector<32x1xf32>
    %24 = arith.addf %18, %23 : vector<32x1xf32>
    %c0_16 = arith.constant 0 : index
    %c0_17 = arith.constant 0 : index
    %25 = vector.load %arg9[%c0_16, %c0_17] : memref<32x1xf32, #tpu.memory_space<vmem>>, vector<32x1xf32>
    tpu.vector_store %arg9[%c0_16, %c0_17], %24 {strides = array<i32>} : memref<32x1xf32, #tpu.memory_space<vmem>>, vector<32x1xf32>,
    %c0_18 = arith.constant 0 : index
    %c0_19 = arith.constant 0 : index
    %26 = vector.load %arg8[%c0_18, %c0_19] : memref<32x1xf32, #tpu.memory_space<vmem>>, vector<32x1xf32>
    tpu.vector_store %arg8[%c0_18, %c0_19], %14 {strides = array<i32>} : memref<32x1xf32, #tpu.memory_space<vmem>>, vector<32x1xf32>,
    %27 = tpu.iota {dimensions = array<i32: 1>} : vector<32x1024xi32>
    %c1024_i32 = arith.constant 1024 : i32
    %28 = arith.muli %arg1, %c1024_i32 : i32
    %29 = vector.broadcast %28 : i32 to vector<32x1024xi32>
    %30 = arith.addi %27, %29 : vector<32x1024xi32>
    %c0_20 = arith.constant 0 : index
    %c0_21 = arith.constant 0 : index
    %31 = vector.load %arg10[%c0_20, %c0_21] : memref<32x1xf32, #tpu.memory_space<vmem>>, vector<32x1xf32>
    %32 = vector.broadcast %10 : vector<32x1xi32> to vector<32x1024xi32>
    %33 = arith.cmpi eq, %30, %32 : vector<32x1024xi32>
    %cst_22 = arith.constant 0.000000e+00 : f32
    %34 = vector.broadcast %cst_22 : f32 to vector<32x1024xf32>
    %35 = arith.select %33, %8, %34 : vector<32x1024xi1>, vector<32x1024xf32>
    %cst_23 = arith.constant dense<0.000000e+00> : vector<32xf32>
    %36 = vector.multi_reduction <add>, %35, %cst_23 [1] : vector<32x1024xf32> to vector<32xf32>
    %37 = vector.shape_cast %36 : vector<32xf32> to vector<32x1xf32>
    %38 = arith.addf %31, %37 : vector<32x1xf32>
    %c0_24 = arith.constant 0 : index
    %c0_25 = arith.constant 0 : index
    %39 = vector.load %arg10[%c0_24, %c0_25] : memref<32x1xf32, #tpu.memory_space<vmem>>, vector<32x1xf32>
    tpu.vector_store %arg10[%c0_24, %c0_25], %38 {strides = array<i32>} : memref<32x1xf32, #tpu.memory_space<vmem>>, vector<32x1xf32>,
    %c0_i32_26 = arith.constant 0 : i32
    %40 = arith.cmpi eq, %arg1, %c0_i32_26 : i32
    %41 = arith.extui %40 : i1 to i32
    %c0_i32_27 = arith.constant 0 : i32
    %42 = arith.cmpi ne, %41, %c0_i32_27 : i32
    scf.if %42 {
      %c0_28 = arith.constant 0 : index
      %c0_29 = arith.constant 0 : index
      %43 = vector.load %arg8[%c0_28, %c0_29] : memref<32x1xf32, #tpu.memory_space<vmem>>, vector<32x1xf32>
      %c0_30 = arith.constant 0 : index
      %c0_31 = arith.constant 0 : index
      %44 = vector.load %arg9[%c0_30, %c0_31] : memref<32x1xf32, #tpu.memory_space<vmem>>, vector<32x1xf32>
      %45 = math.log %44 : vector<32x1xf32>
      %46 = arith.addf %43, %45 : vector<32x1xf32>
      %c-100_i32 = arith.constant -100 : i32
      %47 = vector.broadcast %c-100_i32 : i32 to vector<32x1xi32>
      %48 = arith.cmpi ne, %10, %47 : vector<32x1xi32>
      %49 = arith.extui %48 : vector<32x1xi1> to vector<32x1xi32>
      %50 = arith.sitofp %49 : vector<32x1xi32> to vector<32x1xf32>
      %c0_32 = arith.constant 0 : index
      %c0_33 = arith.constant 0 : index
      %51 = vector.load %arg10[%c0_32, %c0_33] : memref<32x1xf32, #tpu.memory_space<vmem>>, vector<32x1xf32>
      %52 = arith.subf %46, %51 : vector<32x1xf32>
      %53 = arith.mulf %52, %50 : vector<32x1xf32>
      %c0_34 = arith.constant 0 : index
      %c0_35 = arith.constant 0 : index
      %54 = vector.load %arg7[%c0_34, %c0_35] : memref<32x1xf32, #tpu.memory_space<vmem>>, vector<32x1xf32>
      tpu.vector_store %arg7[%c0_34, %c0_35], %53 {strides = array<i32>} : memref<32x1xf32, #tpu.memory_space<vmem>>, vector<32x1xf32>,
    } else {
    }
    return
  }
  func.func @transform_0(%arg0: i32, %arg1: i32) -> (i32, i32) {
    %c0_i32 = arith.constant 0 : i32
    %c0_i32_0 = arith.constant 0 : i32
    return %arg0, %c0_i32 : i32, i32
  }
  func.func @transform_1(%arg0: i32, %arg1: i32) -> (i32, i32) {
    %c0_i32 = arith.constant 0 : i32
    %c0_i32_0 = arith.constant 0 : i32
    return %arg1, %c0_i32 : i32, i32
  }
  func.func @transform_2(%arg0: i32, %arg1: i32) -> (i32, i32) {
    %c0_i32 = arith.constant 0 : i32
    %c0_i32_0 = arith.constant 0 : i32
    return %c0_i32, %arg1 : i32, i32
  }
  func.func @transform_3(%arg0: i32, %arg1: i32) -> (i32, i32) {
    %c0_i32 = arith.constant 0 : i32
    %c0_i32_0 = arith.constant 0 : i32
    return %arg0, %c0_i32 : i32, i32
  }
  func.func @transform_4(%arg0: i32, %arg1: i32) -> (i32, i32) {
    %c0_i32 = arith.constant 0 : i32
    return %arg0, %arg1 : i32, i32
  }
  func.func @transform_5(%arg0: i32, %arg1: i32) -> (i32, i32) {
    %c0_i32 = arith.constant 0 : i32
    %c0_i32_0 = arith.constant 0 : i32
    return %arg0, %c0_i32 : i32, i32
  }
}

</mosaic_0001>

<llo_original>
// kernel: bert_mlm_forward.18
$region0: #{bert_mlm_forward.18}
  #allocation0 [shape = 'u32[]', space=smem, size = 0x4, offset = 0x4, fixed_abs, tag = 'smem constant byte address 0x4 - core index']
  #allocation1 [shape = 'u32[72,128]{1,0:T(1,128)}', space=vmem, size = 0x9000, scoped, tag = 'internal scratch']
  %s0 = inlined_call_operand.vmem [shape: bf16[32,256], index: 0, kind: input, shape index: {}]
  %s1 = inlined_call_operand.vmem [shape: f32[1,256], index: 1, kind: input, shape index: {}]
  %s2 = inlined_call_operand.vmem [shape: f32[1,256], index: 2, kind: input, shape index: {}]
  %s3 = inlined_call_operand.vmem [shape: bf16[32,256], index: 3, kind: output, shape index: {}]
  %s4 = sld [smem:[#allocation0]]
  $region22: #{bert_mlm_forward.18} parent=0
    _
  %s6 = ssub.s32 1, %s4
  %s7 = scalar_select 0, %s6, %s4
  // Predicated region
  $region2: #{bert_mlm_forward.18} parent=0 // pred_check
    _
  $region3: #{bert_mlm_forward.18} parent=0 // pred_check_branch
    %9 = sbr.rel (0) target = $region5
  $region4: #{bert_mlm_forward.18} parent=0 // pred_region
    _
  $region5: #{bert_mlm_forward.18} parent=0 // pred_fallthru
    _
  // Predicated region
  $region6: #{bert_mlm_forward.18} parent=0 // pred_check
    _
  $region7: #{bert_mlm_forward.18} parent=0 // pred_check_branch
    %11 = sbr.rel (0) target = $region9
  $region8: #{bert_mlm_forward.18} parent=0 // pred_region
    _
  $region9: #{bert_mlm_forward.18} parent=0 // pred_fallthru
    _
  // Predicated region
  $region10: #{bert_mlm_forward.18} parent=0 // pred_check
    _
  $region11: #{bert_mlm_forward.18} parent=0 // pred_check_branch
    %13 = sbr.rel (0) target = $region13
  $region12: #{bert_mlm_forward.18} parent=0 // pred_region
    _
  $region13: #{bert_mlm_forward.18} parent=0 // pred_fallthru
    _
  %v14 = vld [vmem:[%s0] sm:$0xff]
  %v15 = vld [vmem:[%s0 + $0x8] sm:$0xff]
  %v16 = vld [vmem:[%s0 + $0x10] sm:$0xff]
  %v17 = vld [vmem:[%s0 + $0x18] sm:$0xff]
  %v18 = vunpack.c.l.bf16 %v14
  %v19 = vunpack.c.h.bf16 %v14
  %v20 = vunpack.c.l.bf16 %v15
  %v21 = vunpack.c.h.bf16 %v15
  %v22 = vunpack.c.l.bf16 %v16
  %v23 = vunpack.c.h.bf16 %v16
  %v24 = vunpack.c.l.bf16 %v17
  %v25 = vunpack.c.h.bf16 %v17
  %v26 = vadd.f32 %v18, %v19
  %27 = vadd.xlane.f32.xlu0 %v26
  %v28 = vpop.xlane.xlu0 %27
  %v29 = vadd.f32 %v20, %v21
  %30 = vadd.xlane.f32.xlu0 %v29
  %v31 = vpop.xlane.xlu0 %30
  %v32 = vadd.f32 %v22, %v23
  %33 = vadd.xlane.f32.xlu0 %v32
  %v34 = vpop.xlane.xlu0 %33
  %v35 = vadd.f32 %v24, %v25
  %36 = vadd.xlane.f32.xlu0 %v35
  %v37 = vpop.xlane.xlu0 %36
  %v38 = vrcp.pop 256.0
  %v39 = vmul.f32 256.0, %v38
  %v40 = vsub.f32 1.0, %v39
  %v41 = vmul.f32 %v38, %v40
  %v42 = vadd.f32 %v38, %v41
  %vm43 = vweird.f32 %v38
  %v44 = vsel %vm43, %v38, %v42
  %v45 = vmul.f32 %v28, %v44
  %v46 = vmul.f32 %v31, %v44
  %v47 = vmul.f32 %v34, %v44
  %v48 = vmul.f32 %v37, %v44
  %v49 = vsub.f32 %v18, %v45
  %v50 = vsub.f32 %v19, %v45
  %v51 = vsub.f32 %v20, %v46
  %v52 = vsub.f32 %v21, %v46
  %v53 = vsub.f32 %v22, %v47
  %v54 = vsub.f32 %v23, %v47
  %v55 = vsub.f32 %v24, %v48
  %v56 = vsub.f32 %v25, %v48
  %v57 = vmul.f32 %v49, %v49
  %v58 = vmul.f32 %v50, %v50
  %v59 = vmul.f32 %v51, %v51
  %v60 = vmul.f32 %v52, %v52
  %v61 = vmul.f32 %v53, %v53
  %v62 = vmul.f32 %v54, %v54
  %v63 = vmul.f32 %v55, %v55
  %v64 = vmul.f32 %v56, %v56
  %v65 = vadd.f32 %v57, %v58
  %66 = vadd.xlane.f32.xlu0 %v65
  %v67 = vpop.xlane.xlu0 %66
  %v68 = vadd.f32 %v59, %v60
  %69 = vadd.xlane.f32.xlu0 %v68
  %v70 = vpop.xlane.xlu0 %69
  %v71 = vadd.f32 %v61, %v62
  %72 = vadd.xlane.f32.xlu0 %v71
  %v73 = vpop.xlane.xlu0 %72
  %v74 = vadd.f32 %v63, %v64
  %75 = vadd.xlane.f32.xlu0 %v74
  %v76 = vpop.xlane.xlu0 %75
  %v77 = vmul.f32 %v67, %v44
  %v78 = vmul.f32 %v70, %v44
  %v79 = vmul.f32 %v73, %v44
  %v80 = vmul.f32 %v76, %v44
  %v81 = vadd.f32 %v77, 1e-12
  %v82 = vadd.f32 %v78, 1e-12
  %v83 = vadd.f32 %v79, 1e-12
  %v84 = vadd.f32 %v80, 1e-12
  %v85 = vrsqrt.pop %v81
  %v86 = vmul.f32 %v85, %v81
  %v87 = vmul.f32 %v86, %v85
  %v88 = vmul.f32 0.5, %v87
  %v89 = vsub.f32 1.5, %v88
  %v90 = vmul.f32 %v85, %v89
  %vm91 = vweird.f32 %v81
  %vm92 = vweird.f32 %v85
  %vm93 = vmor %vm91, %vm92
  %v94 = vsel %vm93, %v85, %v90
  %v95 = vrsqrt.pop %v82
  %v96 = vmul.f32 %v95, %v82
  %v97 = vmul.f32 %v96, %v95
  %v98 = vmul.f32 0.5, %v97
  %v99 = vsub.f32 1.5, %v98
  %v100 = vmul.f32 %v95, %v99
  %vm101 = vweird.f32 %v82
  %vm102 = vweird.f32 %v95
  %vm103 = vmor %vm101, %vm102
  %v104 = vsel %vm103, %v95, %v100
  %v105 = vrsqrt.pop %v83
  %v106 = vmul.f32 %v105, %v83
  %v107 = vmul.f32 %v106, %v105
  %v108 = vmul.f32 0.5, %v107
  %v109 = vsub.f32 1.5, %v108
  %v110 = vmul.f32 %v105, %v109
  %vm111 = vweird.f32 %v83
  %vm112 = vweird.f32 %v105
  %vm113 = vmor %vm111, %vm112
  %v114 = vsel %vm113, %v105, %v110
  %v115 = vrsqrt.pop %v84
  %v116 = vmul.f32 %v115, %v84
  %v117 = vmul.f32 %v116, %v115
  %v118 = vmul.f32 0.5, %v117
  %v119 = vsub.f32 1.5, %v118
  %v120 = vmul.f32 %v115, %v119
  %vm121 = vweird.f32 %v84
  %vm122 = vweird.f32 %v115
  %vm123 = vmor %vm121, %vm122
  %v124 = vsel %vm123, %v115, %v120
  %v125 = vmul.f32 %v49, %v94
  %v126 = vmul.f32 %v50, %v94
  %v127 = vmul.f32 %v51, %v104
  %v128 = vmul.f32 %v52, %v104
  %v129 = vmul.f32 %v53, %v114
  %v130 = vmul.f32 %v54, %v114
  %v131 = vmul.f32 %v55, %v124
  %v132 = vmul.f32 %v56, %v124
  %v133 = vld [vmem:[%s1] sm:$0x3]
  %v135 = vperm.slane %v133, 0
  %v136 = vperm.slane %v133, 1
  %v139 = vmul.f32 %v125, %v135
  %v140 = vmul.f32 %v126, %v136
  %v141 = vmul.f32 %v127, %v135
  %v142 = vmul.f32 %v128, %v136
  %v143 = vmul.f32 %v129, %v135
  %v144 = vmul.f32 %v130, %v136
  %v145 = vmul.f32 %v131, %v135
  %v146 = vmul.f32 %v132, %v136
  %v147 = vld [vmem:[%s2] sm:$0x3]
  %v149 = vperm.slane %v147, 0
  %v150 = vperm.slane %v147, 1
  %v153 = vadd.f32 %v139, %v149
  %v154 = vadd.f32 %v140, %v150
  %v155 = vadd.f32 %v141, %v149
  %v156 = vadd.f32 %v142, %v150
  %v157 = vadd.f32 %v143, %v149
  %v158 = vadd.f32 %v144, %v150
  %v159 = vadd.f32 %v145, %v149
  %v160 = vadd.f32 %v146, %v150
  %v161 = vpack.c.bf16 %v154, %v153
  %v162 = vpack.c.bf16 %v156, %v155
  %v163 = vpack.c.bf16 %v158, %v157
  %v164 = vpack.c.bf16 %v160, %v159
  %165 = vst [vmem:[%s3] sm:$0xff] %v161
  %166 = vst [vmem:[%s3 + $0x8] sm:$0xff] %v162
  %167 = vst [vmem:[%s3 + $0x10] sm:$0xff] %v163
  %168 = vst [vmem:[%s3 + $0x18] sm:$0xff] %v164
  // Predicated region
  $region14: #{bert_mlm_forward.18} parent=0 // pred_check
    _
  $region15: #{bert_mlm_forward.18} parent=0 // pred_check_branch
    %170 = sbr.rel (0) target = $region17
  $region16: #{bert_mlm_forward.18} parent=0 // pred_region
    _
  $region17: #{bert_mlm_forward.18} parent=0 // pred_fallthru
    _
  // Predicated region
  $region18: #{bert_mlm_forward.18} parent=0 // pred_check
    _
  $region19: #{bert_mlm_forward.18} parent=0 // pred_check_branch
    %172 = sbr.rel (0) target = $region21
  $region20: #{bert_mlm_forward.18} parent=0 // pred_region
    _
  $region21: #{bert_mlm_forward.18} parent=0 // pred_fallthru
    _

// kernel: bert_mlm_forward.21
$region0: #{bert_mlm_forward.21}
  #allocation0 [shape = 'u32[]', space=smem, size = 0x4, offset = 0x4, fixed_abs, tag = 'smem constant byte address 0x4 - core index']
  #allocation1 [shape = 'u32[72,128]{1,0:T(1,128)}', space=vmem, size = 0x9000, scoped, tag = 'internal scratch']
  %s0 = inlined_call_operand.vmem [shape: bf16[32,256], index: 0, kind: input, shape index: {}]
  %s1 = inlined_call_operand.vmem [shape: bf16[256,256], index: 1, kind: input, shape index: {}]
  %s2 = inlined_call_operand.vmem [shape: f32[1,256], index: 2, kind: input, shape index: {}]
  %s3 = inlined_call_operand.vmem [shape: bf16[32,256], index: 3, kind: output, shape index: {}]
  %s4 = sld [smem:[#allocation0]]
  $region22: #{bert_mlm_forward.21} parent=0
    _
  %s6 = ssub.s32 1, %s4
  %s7 = scalar_select 0, %s6, %s4
  // Predicated region
  $region2: #{bert_mlm_forward.21} parent=0 // pred_check
    _
  $region3: #{bert_mlm_forward.21} parent=0 // pred_check_branch
    %9 = sbr.rel (0) target = $region5
  $region4: #{bert_mlm_forward.21} parent=0 // pred_region
    _
  $region5: #{bert_mlm_forward.21} parent=0 // pred_fallthru
    _
  // Predicated region
  $region6: #{bert_mlm_forward.21} parent=0 // pred_check
    _
  $region7: #{bert_mlm_forward.21} parent=0 // pred_check_branch
    %11 = sbr.rel (0) target = $region9
  $region8: #{bert_mlm_forward.21} parent=0 // pred_region
    _
  $region9: #{bert_mlm_forward.21} parent=0 // pred_fallthru
    _
  // Predicated region
  $region10: #{bert_mlm_forward.21} parent=0 // pred_check
    _
  $region11: #{bert_mlm_forward.21} parent=0 // pred_check_branch
    %13 = sbr.rel (0) target = $region13
  $region12: #{bert_mlm_forward.21} parent=0 // pred_region
    _
  $region13: #{bert_mlm_forward.21} parent=0 // pred_fallthru
    _
  %v14 = vld [vmem:[%s0] sm:$0xff]
  %v15 = vld [vmem:[%s0 + $0x8] sm:$0xff]
  %v16 = vld [vmem:[%s0 + $0x10] sm:$0xff]
  %v17 = vld [vmem:[%s0 + $0x18] sm:$0xff]
  %v18 = vld [vmem:[%s1] sm:$0xff]
  %v19 = vld [vmem:[%s1 + $0x8] sm:$0xff]
  %v20 = vld [vmem:[%s1 + $0x10] sm:$0xff]
  %v21 = vld [vmem:[%s1 + $0x18] sm:$0xff]
  %v22 = vld [vmem:[%s1 + $0x20] sm:$0xff]
  %v23 = vld [vmem:[%s1 + $0x28] sm:$0xff]
  %v24 = vld [vmem:[%s1 + $0x30] sm:$0xff]
  %v25 = vld [vmem:[%s1 + $0x38] sm:$0xff]
  %v26 = vld [vmem:[%s1 + $0x40] sm:$0xff]
  %v27 = vld [vmem:[%s1 + $0x48] sm:$0xff]
  %v28 = vld [vmem:[%s1 + $0x50] sm:$0xff]
  %v29 = vld [vmem:[%s1 + $0x58] sm:$0xff]
  %v30 = vld [vmem:[%s1 + $0x60] sm:$0xff]
  %v31 = vld [vmem:[%s1 + $0x68] sm:$0xff]
  %v32 = vld [vmem:[%s1 + $0x70] sm:$0xff]
  %v33 = vld [vmem:[%s1 + $0x78] sm:$0xff]
  %v34 = vld [vmem:[%s1 + $0x80] sm:$0xff]
  %v35 = vld [vmem:[%s1 + $0x88] sm:$0xff]
  %v36 = vld [vmem:[%s1 + $0x90] sm:$0xff]
  %v37 = vld [vmem:[%s1 + $0x98] sm:$0xff]
  %v38 = vld [vmem:[%s1 + $0xa0] sm:$0xff]
  %v39 = vld [vmem:[%s1 + $0xa8] sm:$0xff]
  %v40 = vld [vmem:[%s1 + $0xb0] sm:$0xff]
  %v41 = vld [vmem:[%s1 + $0xb8] sm:$0xff]
  %v42 = vld [vmem:[%s1 + $0xc0] sm:$0xff]
  %v43 = vld [vmem:[%s1 + $0xc8] sm:$0xff]
  %v44 = vld [vmem:[%s1 + $0xd0] sm:$0xff]
  %v45 = vld [vmem:[%s1 + $0xd8] sm:$0xff]
  %v46 = vld [vmem:[%s1 + $0xe0] sm:$0xff]
  %v47 = vld [vmem:[%s1 + $0xe8] sm:$0xff]
  %v48 = vld [vmem:[%s1 + $0xf0] sm:$0xff]
  %v49 = vld [vmem:[%s1 + $0xf8] sm:$0xff]
  %v50 = vld [vmem:[%s2] sm:$0x3]
  %v52 = vperm.slane %v50, 0
  %v53 = vperm.slane %v50, 1
  %v60 = vunpack.c.l.b16 %v14
  %v61 = vunpack.c.h.b16 %v14
  %v62 = vunpack.c.l.b16 %v15
  %v63 = vunpack.c.h.b16 %v15
  %v64 = vunpack.c.l.b16 %v16
  %v65 = vunpack.c.h.b16 %v16
  %v66 = vunpack.c.l.b16 %v17
  %v67 = vunpack.c.h.b16 %v17
  %v68 = vpack.c.b16 %v62, %v60
  %v69 = vpack.c.b16 %v63, %v61
  %v70 = vpack.c.b16 %v66, %v64
  %v71 = vpack.c.b16 %v67, %v65
  %v108 = vunpack.c.l.b16 %v18
  %v109 = vunpack.c.h.b16 %v18
  %v110 = vunpack.c.l.b16 %v19
  %v111 = vunpack.c.h.b16 %v19
  %v112 = vunpack.c.l.b16 %v20
  %v113 = vunpack.c.h.b16 %v20
  %v114 = vunpack.c.l.b16 %v21
  %v115 = vunpack.c.h.b16 %v21
  %v116 = vunpack.c.l.b16 %v22
  %v117 = vunpack.c.h.b16 %v22
  %v118 = vunpack.c.l.b16 %v23
  %v119 = vunpack.c.h.b16 %v23
  %v120 = vunpack.c.l.b16 %v24
  %v121 = vunpack.c.h.b16 %v24
  %v122 = vunpack.c.l.b16 %v25
  %v123 = vunpack.c.h.b16 %v25
  %v124 = vunpack.c.l.b16 %v26
  %v125 = vunpack.c.h.b16 %v26
  %v126 = vunpack.c.l.b16 %v27
  %v127 = vunpack.c.h.b16 %v27
  %v128 = vunpack.c.l.b16 %v28
  %v129 = vunpack.c.h.b16 %v28
  %v130 = vunpack.c.l.b16 %v29
  %v131 = vunpack.c.h.b16 %v29
  %v132 = vunpack.c.l.b16 %v30
  %v133 = vunpack.c.h.b16 %v30
  %v134 = vunpack.c.l.b16 %v31
  %v135 = vunpack.c.h.b16 %v31
  %v136 = vunpack.c.l.b16 %v32
  %v137 = vunpack.c.h.b16 %v32
  %v138 = vunpack.c.l.b16 %v33
  %v139 = vunpack.c.h.b16 %v33
  %v140 = vunpack.c.l.b16 %v34
  %v141 = vunpack.c.h.b16 %v34
  %v142 = vunpack.c.l.b16 %v35
  %v143 = vunpack.c.h.b16 %v35
  %v144 = vunpack.c.l.b16 %v36
  %v145 = vunpack.c.h.b16 %v36
  %v146 = vunpack.c.l.b16 %v37
  %v147 = vunpack.c.h.b16 %v37
  %v148 = vunpack.c.l.b16 %v38
  %v149 = vunpack.c.h.b16 %v38
  %v150 = vunpack.c.l.b16 %v39
  %v151 = vunpack.c.h.b16 %v39
  %v152 = vunpack.c.l.b16 %v40
  %v153 = vunpack.c.h.b16 %v40
  %v154 = vunpack.c.l.b16 %v41
  %v155 = vunpack.c.h.b16 %v41
  %v156 = vunpack.c.l.b16 %v42
  %v157 = vunpack.c.h.b16 %v42
  %v158 = vunpack.c.l.b16 %v43
  %v159 = vunpack.c.h.b16 %v43
  %v160 = vunpack.c.l.b16 %v44
  %v161 = vunpack.c.h.b16 %v44
  %v162 = vunpack.c.l.b16 %v45
  %v163 = vunpack.c.h.b16 %v45
  %v164 = vunpack.c.l.b16 %v46
  %v165 = vunpack.c.h.b16 %v46
  %v166 = vunpack.c.l.b16 %v47
  %v167 = vunpack.c.h.b16 %v47
  %v168 = vunpack.c.l.b16 %v48
  %v169 = vunpack.c.h.b16 %v48
  %v170 = vunpack.c.l.b16 %v49
  %v171 = vunpack.c.h.b16 %v49
  %v172 = vpack.c.b16 %v110, %v108
  %v173 = vpack.c.b16 %v111, %v109
  %v174 = vpack.c.b16 %v114, %v112
  %v175 = vpack.c.b16 %v115, %v113
  %v176 = vpack.c.b16 %v118, %v116
  %v177 = vpack.c.b16 %v119, %v117
  %v178 = vpack.c.b16 %v122, %v120
  %v179 = vpack.c.b16 %v123, %v121
  %v180 = vpack.c.b16 %v126, %v124
  %v181 = vpack.c.b16 %v127, %v125
  %v182 = vpack.c.b16 %v130, %v128
  %v183 = vpack.c.b16 %v131, %v129
  %v184 = vpack.c.b16 %v134, %v132
  %v185 = vpack.c.b16 %v135, %v133
  %v186 = vpack.c.b16 %v138, %v136
  %v187 = vpack.c.b16 %v139, %v137
  %v188 = vpack.c.b16 %v142, %v140
  %v189 = vpack.c.b16 %v143, %v141
  %v190 = vpack.c.b16 %v146, %v144
  %v191 = vpack.c.b16 %v147, %v145
  %v192 = vpack.c.b16 %v150, %v148
  %v193 = vpack.c.b16 %v151, %v149
  %v194 = vpack.c.b16 %v154, %v152
  %v195 = vpack.c.b16 %v155, %v153
  %v196 = vpack.c.b16 %v158, %v156
  %v197 = vpack.c.b16 %v159, %v157
  %v198 = vpack.c.b16 %v162, %v160
  %v199 = vpack.c.b16 %v163, %v161
  %v200 = vpack.c.b16 %v166, %v164
  %v201 = vpack.c.b16 %v167, %v165
  %v202 = vpack.c.b16 %v170, %v168
  %v203 = vpack.c.b16 %v171, %v169
  %236 = vmatpush.bf16.msra.mxu0 %v186
  %237 = vmatpush.bf16.msra.mxu0 %v184
  %238 = vmatpush.bf16.msra.mxu0 %v182
  %239 = vmatpush.bf16.msra.mxu0 %v180
  %240 = vmatpush.bf16.msra.mxu0 %v178
  %241 = vmatpush.bf16.msra.mxu0 %v176
  %242 = vmatpush.bf16.msra.mxu0 %v174
  %243 = vmatpush.bf16.msra.mxu0 %v172
  %244 = vmatmul.bf16.gmra.mxu0 %v68
  %v245 = vpop.f32.mrf.mxu0
  %v246 = vadd.f32 %v52, %v245
  %v247 = vpop.f32.mrf.mxu0
  %v248 = vadd.f32 %v52, %v247
  %249 = vmatmul.bf16.gmra.mxu0 %v70
  %v250 = vpop.f32.mrf.mxu0
  %v251 = vadd.f32 %v52, %v250
  %v252 = vpop.f32.mrf.mxu0
  %v253 = vadd.f32 %v52, %v252
  %254 = vdwg.mxu0
  %255 = vmatpush.bf16.msra.mxu0 %v202
  %256 = vmatpush.bf16.msra.mxu0 %v200
  %257 = vmatpush.bf16.msra.mxu0 %v198
  %258 = vmatpush.bf16.msra.mxu0 %v196
  %259 = vmatpush.bf16.msra.mxu0 %v194
  %260 = vmatpush.bf16.msra.mxu0 %v192
  %261 = vmatpush.bf16.msra.mxu0 %v190
  %262 = vmatpush.bf16.msra.mxu0 %v188
  %263 = vmatmul.bf16.gmra.mxu0 %v69
  %v264 = vpop.f32.mrf.mxu0
  %v265 = vadd.f32 %v246, %v264
  %v266 = vpop.f32.mrf.mxu0
  %v267 = vadd.f32 %v248, %v266
  %268 = vmatmul.bf16.gmra.mxu0 %v71
  %v269 = vpop.f32.mrf.mxu0
  %v270 = vadd.f32 %v251, %v269
  %v271 = vpop.f32.mrf.mxu0
  %v272 = vadd.f32 %v253, %v271
  %273 = vdwg.mxu0
  %274 = vmatpush.bf16.msra.mxu0 %v187
  %275 = vmatpush.bf16.msra.mxu0 %v185
  %276 = vmatpush.bf16.msra.mxu0 %v183
  %277 = vmatpush.bf16.msra.mxu0 %v181
  %278 = vmatpush.bf16.msra.mxu0 %v179
  %279 = vmatpush.bf16.msra.mxu0 %v177
  %280 = vmatpush.bf16.msra.mxu0 %v175
  %281 = vmatpush.bf16.msra.mxu0 %v173
  %282 = vmatmul.bf16.gmra.mxu0 %v68
  %v283 = vpop.f32.mrf.mxu0
  %v284 = vadd.f32 %v53, %v283
  %v285 = vpop.f32.mrf.mxu0
  %v286 = vadd.f32 %v53, %v285
  %287 = vmatmul.bf16.gmra.mxu0 %v70
  %v288 = vpop.f32.mrf.mxu0
  %v289 = vadd.f32 %v53, %v288
  %v290 = vpop.f32.mrf.mxu0
  %v291 = vadd.f32 %v53, %v290
  %292 = vdwg.mxu0
  %293 = vmatpush.bf16.msra.mxu0 %v203
  %294 = vmatpush.bf16.msra.mxu0 %v201
  %295 = vmatpush.bf16.msra.mxu0 %v199
  %296 = vmatpush.bf16.msra.mxu0 %v197
  %297 = vmatpush.bf16.msra.mxu0 %v195
  %298 = vmatpush.bf16.msra.mxu0 %v193
  %299 = vmatpush.bf16.msra.mxu0 %v191
  %300 = vmatpush.bf16.msra.mxu0 %v189
  %301 = vmatmul.bf16.gmra.mxu0 %v69
  %v302 = vpop.f32.mrf.mxu0
  %v303 = vadd.f32 %v284, %v302
  %v304 = vpop.f32.mrf.mxu0
  %v305 = vadd.f32 %v286, %v304
  %306 = vmatmul.bf16.gmra.mxu0 %v71
  %v307 = vpop.f32.mrf.mxu0
  %v308 = vadd.f32 %v289, %v307
  %v309 = vpop.f32.mrf.mxu0
  %v310 = vadd.f32 %v291, %v309
  %311 = vdwg.mxu0
  %v312 = vpack.c.bf16 %v303, %v265
  %v313 = vpack.c.bf16 %v305, %v267
  %v314 = vpack.c.bf16 %v308, %v270
  %v315 = vpack.c.bf16 %v310, %v272
  %316 = vst [vmem:[%s3] sm:$0xff] %v312
  %317 = vst [vmem:[%s3 + $0x8] sm:$0xff] %v313
  %318 = vst [vmem:[%s3 + $0x10] sm:$0xff] %v314
  %319 = vst [vmem:[%s3 + $0x18] sm:$0xff] %v315
  // Predicated region
  $region14: #{bert_mlm_forward.21} parent=0 // pred_check
    _
  $region15: #{bert_mlm_forward.21} parent=0 // pred_check_branch
    %321 = sbr.rel (0) target = $region17
  $region16: #{bert_mlm_forward.21} parent=0 // pred_region
    _
  $region17: #{bert_mlm_forward.21} parent=0 // pred_fallthru
    _
  // Predicated region
  $region18: #{bert_mlm_forward.21} parent=0 // pred_check
    _
  $region19: #{bert_mlm_forward.21} parent=0 // pred_check_branch
    %323 = sbr.rel (0) target = $region21
  $region20: #{bert_mlm_forward.21} parent=0 // pred_region
    _
  $region21: #{bert_mlm_forward.21} parent=0 // pred_fallthru
    _

// kernel: bert_mlm_forward.20
$region0: #{bert_mlm_forward.20}
  #allocation0 [shape = 'u32[]', space=smem, size = 0x4, offset = 0x4, fixed_abs, tag = 'smem constant byte address 0x4 - core index']
  #allocation1 [shape = 'u32[72,128]{1,0:T(1,128)}', space=vmem, size = 0x9000, scoped, tag = 'internal scratch']
  #allocation2 [shape = 'f32[1,16,1]{2,1,0:T(8,128)}', space=vmem, size = 0x2000, scoped, tag = 'scratch operand']
  #allocation3 [shape = 'f32[1,16,1]{2,1,0:T(8,128)}', space=vmem, size = 0x2000, scoped, tag = 'scratch operand']
  #allocation4 [shape = 'f32[1,16,128]{2,1,0:T(8,128)}', space=vmem, size = 0x2000, scoped, tag = 'scratch operand']
  %s0 = inlined_call_operand.vmem [shape: bf16[32,768], index: 0, kind: input, shape index: {}, may-alias: {0,1,2}]
  %s1 = inlined_call_operand.vmem [shape: bf16[32,768], index: 1, kind: input, shape index: {}, may-alias: {0,1,2}]
  %s2 = inlined_call_operand.vmem [shape: bf16[32,768], index: 2, kind: input, shape index: {}, may-alias: {0,1,2}]
  %s3 = inlined_call_operand.vmem [shape: f32[2,1,16], index: 3, kind: input, shape index: {}]
  %s4 = inlined_call_operand.vmem [shape: bf16[32,256], index: 4, kind: output, shape index: {}]
  %s5 = sld [smem:[#allocation0]]
  $region217: #{bert_mlm_forward.20} parent=0
    _
  %s7 = ssub.s32 1, %s5
  %s8 = scalar_select 0, %s7, %s5
  $region1: #{bert_mlm_forward.20} parent=0
    #allocation5 [shape = 'u8[8192]{0}', space=vmem, size = 0x2000, scoped, tag = 'input window, operand 0']
    #allocation6 [shape = 'u8[8192]{0}', space=vmem, size = 0x2000, scoped, tag = 'input window, operand 1']
    #allocation7 [shape = 'u8[8192]{0}', space=vmem, size = 0x2000, scoped, tag = 'input window, operand 2']
    #allocation8 [shape = 'u8[8192]{0}', space=vmem, size = 0x2000, scoped, tag = 'output window, operand 0']
    loop: start=0, step=1, limit=6
    $region2: #{bert_mlm_forward.20} parent=1 // loop_pre_header
      _
    $region3: #{bert_mlm_forward.20} parent=1 // loop_header
      %s10 = sphi 0, %s14
      %p11 = scmp.ge.s32.totalorder %s10, 6
      %s17 = sphi 0, %s43
      %s18 = sphi 0, %s39
      %s19 = sphi 0, %s35
      %s20 = sphi 0, %s31
      %s21 = sphi 0, %s17
      %s22 = sphi 0, %s18
      %s23 = sphi 0, %s19
      %s24 = sphi 0, %s20
      %s25 = sphi 0, %s21
      %s26 = sphi 0, %s22
      %s27 = sphi 0, %s23
      %s28 = sphi 0, %s24
      %s50 = sphi 0, %s52
      %s53 = sphi 0, %s50
      %s54 = sphi 0, %s53
      %s70 = sphi 0, %s54
      %s82 = sphi 0, %s84
      %s85 = sphi 0, %s82
      %s86 = sphi 0, %s85
      %s102 = sphi 0, %s86
      %s114 = sphi 0, %s116
      %s117 = sphi 0, %s114
      %s118 = sphi 0, %s117
      %s134 = sphi 0, %s118
      %s142 = sphi 0, %s144
      %s145 = sphi 0, %s142
      %s146 = sphi 0, %s145
      %s162 = sphi 0, %s146
      %s172 = sphi 0, %s174
      %s175 = sphi 0, %s172
      %s176 = sphi 0, %s175
      %s192 = sphi 0, %s176
    $region4: #{bert_mlm_forward.20} parent=1 // loop_header_branch
      %13 = sbr.rel (%p11) target = $region8
    $region5: #{bert_mlm_forward.20} parent=1 // loop_body
      %s15 = ssub.s32 %s10, 1
      %s16 = ssub.s32 %s10, 2
      %s29 = sadd.s32 1, %s20
      %p30 = scmp.ge.s32.totalorder %s29, 1
      %s31 = scalar_select %p30, 0, %s29
      %s32 = sadd.s32 1, %s19
      %s33 = scalar_select %p30, %s32, %s19
      %p34 = scmp.ge.s32.totalorder %s33, 1
      %s35 = scalar_select %p34, 0, %s33
      %s36 = sadd.s32 1, %s18
      %s37 = scalar_select %p34, %s36, %s18
      %p38 = scmp.ge.s32.totalorder %s37, 2
      %s39 = scalar_select %p38, 0, %s37
      %s40 = sadd.s32 1, %s17
      %s41 = scalar_select %p38, %s40, %s17
      %p42 = scmp.ge.s32.totalorder %s41, 2
      %s43 = scalar_select %p42, 0, %s41
      %s44 = sadd.s32 %s17, %s19
      %s45 = sadd.s32 %s43, %s35
      %s46 = ssub.s32 %s44, %s45
      %s47 = ssub.s32 %s18, %s39
      %s48 = sor.u32 %s46, %s47
      %p49 = scmp.eq.s32.totalorder %s48, 0
      %s51 = sadd.s32 %s50, 1
      %s52 = scalar_select %p49, %s50, %s51
      %p55 = pneg %p49
      %p56 = scmp.eq.s32.totalorder %s10, 3
      %p57 = por %p55, %p56
      %p58 = scmp.ne.s32.totalorder %s50, %s53
      %p59 = scmp.eq.s32.totalorder %s10, 0
      %p60 = por %p58, %p59
      %p61 = scmp.ne.s32.totalorder %s50, %s53
      %p62 = scmp.eq.s32.totalorder %s15, 3
      %p63 = por %p61, %p62
      %p64 = scmp.ne.s32.totalorder %s53, %s54
      %p65 = scmp.eq.s32.totalorder %s15, 0
      %p66 = por %p64, %p65
      %p67 = scmp.ne.s32.totalorder %s53, %s54
      %p68 = scmp.eq.s32.totalorder %s16, 3
      %p69 = por %p67, %p68
      %p71 = scmp.ne.s32.totalorder %s54, %s70
      %p72 = scmp.eq.s32.totalorder %s16, 0
      %p73 = por %p71, %p72
      %s74 = sadd.s32 %s17, %s20
      %s75 = sadd.s32 %s18, 2
      %s76 = sadd.s32 %s43, %s31
      %s77 = sadd.s32 %s39, 2
      %s78 = ssub.s32 %s74, %s76
      %s79 = ssub.s32 %s75, %s77
      %s80 = sor.u32 %s78, %s79
      %p81 = scmp.eq.s32.totalorder %s80, 0
      %s83 = sadd.s32 %s82, 1
      %s84 = scalar_select %p81, %s82, %s83
      %p87 = pneg %p81
      %p88 = scmp.eq.s32.totalorder %s10, 3
      %p89 = por %p87, %p88
      %p90 = scmp.ne.s32.totalorder %s82, %s85
      %p91 = scmp.eq.s32.totalorder %s10, 0
      %p92 = por %p90, %p91
      %p93 = scmp.ne.s32.totalorder %s82, %s85
      %p94 = scmp.eq.s32.totalorder %s15, 3
      %p95 = por %p93, %p94
      %p96 = scmp.ne.s32.totalorder %s85, %s86
      %p97 = scmp.eq.s32.totalorder %s15, 0
      %p98 = por %p96, %p97
      %p99 = scmp.ne.s32.totalorder %s85, %s86
      %p100 = scmp.eq.s32.totalorder %s16, 3
      %p101 = por %p99, %p100
      %p103 = scmp.ne.s32.totalorder %s86, %s102
      %p104 = scmp.eq.s32.totalorder %s16, 0
      %p105 = por %p103, %p104
      %s106 = sadd.s32 %s17, %s20
      %s107 = sadd.s32 %s18, 4
      %s108 = sadd.s32 %s43, %s31
      %s109 = sadd.s32 %s39, 4
      %s110 = ssub.s32 %s106, %s108
      %s111 = ssub.s32 %s107, %s109
      %s112 = sor.u32 %s110, %s111
      %p113 = scmp.eq.s32.totalorder %s112, 0
      %s115 = sadd.s32 %s114, 1
      %s116 = scalar_select %p113, %s114, %s115
      %p119 = pneg %p113
      %p120 = scmp.eq.s32.totalorder %s10, 3
      %p121 = por %p119, %p120
      %p122 = scmp.ne.s32.totalorder %s114, %s117
      %p123 = scmp.eq.s32.totalorder %s10, 0
      %p124 = por %p122, %p123
      %p125 = scmp.ne.s32.totalorder %s114, %s117
      %p126 = scmp.eq.s32.totalorder %s15, 3
      %p127 = por %p125, %p126
      %p128 = scmp.ne.s32.totalorder %s117, %s118
      %p129 = scmp.eq.s32.totalorder %s15, 0
      %p130 = por %p128, %p129
      %p131 = scmp.ne.s32.totalorder %s117, %s118
      %p132 = scmp.eq.s32.totalorder %s16, 3
      %p133 = por %p131, %p132
      %p135 = scmp.ne.s32.totalorder %s118, %s134
      %p136 = scmp.eq.s32.totalorder %s16, 0
      %p137 = por %p135, %p136
      %s138 = ssub.s32 %s17, %s43
      %s139 = ssub.s32 %s20, %s31
      %s140 = sor.u32 %s138, %s139
      %p141 = scmp.eq.s32.totalorder %s140, 0
      %s143 = sadd.s32 %s142, 1
      %s144 = scalar_select %p141, %s142, %s143
      %p147 = pneg %p141
      %p148 = scmp.eq.s32.totalorder %s10, 3
      %p149 = por %p147, %p148
      %p150 = scmp.ne.s32.totalorder %s142, %s145
      %p151 = scmp.eq.s32.totalorder %s10, 0
      %p152 = por %p150, %p151
      %p153 = scmp.ne.s32.totalorder %s142, %s145
      %p154 = scmp.eq.s32.totalorder %s15, 3
      %p155 = por %p153, %p154
      %p156 = scmp.ne.s32.totalorder %s145, %s146
      %p157 = scmp.eq.s32.totalorder %s15, 0
      %p158 = por %p156, %p157
      %p159 = scmp.ne.s32.totalorder %s145, %s146
      %p160 = scmp.eq.s32.totalorder %s16, 3
      %p161 = por %p159, %p160
      %p163 = scmp.ne.s32.totalorder %s146, %s162
      %p164 = scmp.eq.s32.totalorder %s16, 0
      %p165 = por %p163, %p164
      %s166 = sadd.s32 %s17, %s19
      %s167 = sadd.s32 %s43, %s35
      %s168 = ssub.s32 %s166, %s167
      %s169 = ssub.s32 %s18, %s39
      %s170 = sor.u32 %s168, %s169
      %p171 = scmp.eq.s32.totalorder %s170, 0
      %s173 = sadd.s32 %s172, 1
      %s174 = scalar_select %p171, %s172, %s173
      %p177 = pneg %p171
      %p178 = scmp.eq.s32.totalorder %s10, 3
      %p179 = por %p177, %p178
      %p180 = scmp.ne.s32.totalorder %s172, %s175
      %p181 = scmp.eq.s32.totalorder %s10, 0
      %p182 = por %p180, %p181
      %p183 = scmp.ne.s32.totalorder %s172, %s175
      %p184 = scmp.eq.s32.totalorder %s15, 3
      %p185 = por %p183, %p184
      %p186 = scmp.ne.s32.totalorder %s175, %s176
      %p187 = scmp.eq.s32.totalorder %s15, 0
      %p188 = por %p186, %p187
      %p189 = scmp.ne.s32.totalorder %s175, %s176
      %p190 = scmp.eq.s32.totalorder %s16, 3
      %p191 = por %p189, %p190
      %p193 = scmp.ne.s32.totalorder %s176, %s192
      %p194 = scmp.eq.s32.totalorder %s16, 0
      %p195 = por %p193, %p194
      %p196 = scmp.le.s32.totalorder 1, %s10
      %p197 = scmp.lt.s32.totalorder %s10, 5
      %p198 = pnand %p196, %p197
      %p199 = pneg %p198
      // Predicated region
      $region9: #{bert_mlm_forward.20} parent=5 // pred_check
        _
      $region10: #{bert_mlm_forward.20} parent=5 // pred_check_branch
        %201 = sbr.rel (%p198) target = $region12
      $region11: #{bert_mlm_forward.20} parent=5 // pred_region
        %s202 = ssub.s32 %s10, 1
      $region12: #{bert_mlm_forward.20} parent=5 // pred_fallthru
        _
      %p203 = scmp.lt.s32.totalorder %s10, 4
      // Predicated region
      $region13: #{bert_mlm_forward.20} parent=5 // pred_check
        %p204 = pneg %p203
      $region14: #{bert_mlm_forward.20} parent=5 // pred_check_branch
        %206 = sbr.rel (%p204) target = $region16
      $region15: #{bert_mlm_forward.20} parent=5 // pred_region
        // Predicated region
        $region17: #{bert_mlm_forward.20} parent=15 // pred_check
          %p207 = pneg %p60
        $region18: #{bert_mlm_forward.20} parent=15 // pred_check_branch
          %209 = sbr.rel (%p207) target = $region20
        $region19: #{bert_mlm_forward.20} parent=15 // pred_region
          %s210 = sand.u32 %s50, 1
          %s211 = sand.u32 %s50, 1
          %s212 = smul.addr %s211, 8
          %s213 = scalar_lea.vmem [#allocation5], %s212
          %s214 = sadd.s32 %s17, %s19
          %s215 = smul.u32 2, %s214
          %s216 = smul.addr %s215, 6
          %s217 = sadd.s32 %s18, %s216
          %s218 = smul.addr %s217, 4
          %s219 = scalar_lea.vmem %s0, %s218
          // Predicated region
          $region21: #{bert_mlm_forward.20} parent=19 // pred_check
            _
          $region22: #{bert_mlm_forward.20} parent=19 // pred_check_branch
            %221 = sbr.rel (0) target = $region24
          $region23: #{bert_mlm_forward.20} parent=19 // pred_region
            // Predicated region
            $region25: #{bert_mlm_forward.20} parent=23 // pred_check
              _
            $region26: #{bert_mlm_forward.20} parent=23 // pred_check_branch
              %223 = sbr.rel target = $region28
            $region27: #{bert_mlm_forward.20} parent=23 // pred_region
              // Predicated region
              $region40: #{bert_mlm_forward.20} parent=27 // pred_check
                _
              $region41: #{bert_mlm_forward.20} parent=27 // pred_check_branch
                %241 = sbr.rel (0) target = $region43
              $region42: #{bert_mlm_forward.20} parent=27 // pred_region
                loop: start=0, step=1, limit=1
                $region44: #{bert_mlm_forward.20} parent=42 // loop_pre_header
                  _
                $region45: #{bert_mlm_forward.20} parent=42 // loop_header
                  %s243 = sphi 0, %s247
                  %p244 = scmp.ge.s32.totalorder %s243, 1
                  %s248 = sphi %s219, %s219
                  %s249 = sphi %s213, %s213
                $region46: #{bert_mlm_forward.20} parent=42 // loop_header_branch
                  %246 = sbr.rel (%p244) target = $region50
                $region47: #{bert_mlm_forward.20} parent=42 // loop_body
                  _
                $region48: #{bert_mlm_forward.20} parent=42 // loop_footer
                  %s247 = sadd.s32 1, %s243
                $region49: #{bert_mlm_forward.20} parent=42 // loop_footer_branch
                  %242 = sbr.rel target = $region45
                $region50: #{bert_mlm_forward.20} parent=42 // loop_exit
                  _
                %s251 = ssub.s32 16, 1
                loop: start=0, step=1, limit=1
                $region51: #{bert_mlm_forward.20} parent=42 // loop_pre_header
                  _
                $region52: #{bert_mlm_forward.20} parent=42 // loop_header
                  %s253 = sphi 0, %s257
                  %p254 = scmp.ge.s32.totalorder %s253, 1
                  %s258 = sphi %s219, %s219
                  %s259 = sphi %s213, %s213
                $region53: #{bert_mlm_forward.20} parent=42 // loop_header_branch
                  %256 = sbr.rel (%p254) target = $region57
                $region54: #{bert_mlm_forward.20} parent=42 // loop_body
                  %v260 = vld [vmem:[%s258] sm:%s251]
                  %261 = vst [vmem:[%s259] sm:%s251] %v260
                  %v262 = vld [vmem:[%s258 + $0x18] sm:%s251]
                  %263 = vst [vmem:[%s259 + $0x4] sm:%s251] %v262
                $region55: #{bert_mlm_forward.20} parent=42 // loop_footer
                  %s257 = sadd.s32 1, %s253
                $region56: #{bert_mlm_forward.20} parent=42 // loop_footer_branch
                  %252 = sbr.rel target = $region52
                $region57: #{bert_mlm_forward.20} parent=42 // loop_exit
                  _
              $region43: #{bert_mlm_forward.20} parent=27 // pred_fallthru
                _
            $region28: #{bert_mlm_forward.20} parent=23 // pred_fallthru
              _
            // Predicated region
            $region29: #{bert_mlm_forward.20} parent=23 // pred_check
              _
            $region30: #{bert_mlm_forward.20} parent=23 // pred_check_branch
              %225 = sbr.rel (0) target = $region32
            $region31: #{bert_mlm_forward.20} parent=23 // pred_region
              %s227 = ssub.s32 16, 1
              loop: start=0, step=1, limit=1
              $region33: #{bert_mlm_forward.20} parent=31 // loop_pre_header
                _
              $region34: #{bert_mlm_forward.20} parent=31 // loop_header
                %s229 = sphi 0, %s233
                %p230 = scmp.ge.s32.totalorder %s229, 1
                %s234 = sphi %s219, %s219
                %s235 = sphi %s213, %s213
              $region35: #{bert_mlm_forward.20} parent=31 // loop_header_branch
                %232 = sbr.rel (%p230) target = $region39
              $region36: #{bert_mlm_forward.20} parent=31 // loop_body
                %v236 = vld [vmem:[%s234] sm:%s227]
                %237 = vst [vmem:[%s235] sm:%s227] %v236
                %v238 = vld [vmem:[%s234 + $0x18] sm:%s227]
                %239 = vst [vmem:[%s235 + $0x4] sm:%s227] %v238
              $region37: #{bert_mlm_forward.20} parent=31 // loop_footer
                %s233 = sadd.s32 1, %s229
              $region38: #{bert_mlm_forward.20} parent=31 // loop_footer_branch
                %228 = sbr.rel target = $region34
              $region39: #{bert_mlm_forward.20} parent=31 // loop_exit
                _
            $region32: #{bert_mlm_forward.20} parent=23 // pred_fallthru
              _
          $region24: #{bert_mlm_forward.20} parent=19 // pred_fallthru
            _
          %264 = vnop
        $region20: #{bert_mlm_forward.20} parent=15 // pred_fallthru
          _
        // Predicated region
        $region58: #{bert_mlm_forward.20} parent=15 // pred_check
          %p265 = pneg %p92
        $region59: #{bert_mlm_forward.20} parent=15 // pred_check_branch
          %267 = sbr.rel (%p265) target = $region61
        $region60: #{bert_mlm_forward.20} parent=15 // pred_region
          %s268 = sand.u32 %s82, 1
          %s269 = sand.u32 %s82, 1
          %s270 = smul.addr %s269, 8
          %s271 = scalar_lea.vmem [#allocation6], %s270
          %s272 = sadd.s32 %s17, %s20
          %s273 = sadd.s32 %s18, 2
          %s274 = smul.u32 2, %s272
          %s275 = smul.addr %s274, 6
          %s276 = sadd.s32 %s273, %s275
          %s277 = smul.addr %s276, 4
          %s278 = scalar_lea.vmem %s1, %s277
          // Predicated region
          $region62: #{bert_mlm_forward.20} parent=60 // pred_check
            _
          $region63: #{bert_mlm_forward.20} parent=60 // pred_check_branch
            %280 = sbr.rel (0) target = $region65
          $region64: #{bert_mlm_forward.20} parent=60 // pred_region
            // Predicated region
            $region66: #{bert_mlm_forward.20} parent=64 // pred_check
              _
            $region67: #{bert_mlm_forward.20} parent=64 // pred_check_branch
              %282 = sbr.rel target = $region69
            $region68: #{bert_mlm_forward.20} parent=64 // pred_region
              // Predicated region
              $region81: #{bert_mlm_forward.20} parent=68 // pred_check
                _
              $region82: #{bert_mlm_forward.20} parent=68 // pred_check_branch
                %300 = sbr.rel (0) target = $region84
              $region83: #{bert_mlm_forward.20} parent=68 // pred_region
                loop: start=0, step=1, limit=1
                $region85: #{bert_mlm_forward.20} parent=83 // loop_pre_header
                  _
                $region86: #{bert_mlm_forward.20} parent=83 // loop_header
                  %s302 = sphi 0, %s306
                  %p303 = scmp.ge.s32.totalorder %s302, 1
                  %s307 = sphi %s278, %s278
                  %s308 = sphi %s271, %s271
                $region87: #{bert_mlm_forward.20} parent=83 // loop_header_branch
                  %305 = sbr.rel (%p303) target = $region91
                $region88: #{bert_mlm_forward.20} parent=83 // loop_body
                  _
                $region89: #{bert_mlm_forward.20} parent=83 // loop_footer
                  %s306 = sadd.s32 1, %s302
                $region90: #{bert_mlm_forward.20} parent=83 // loop_footer_branch
                  %301 = sbr.rel target = $region86
                $region91: #{bert_mlm_forward.20} parent=83 // loop_exit
                  _
                %s310 = ssub.s32 16, 1
                loop: start=0, step=1, limit=1
                $region92: #{bert_mlm_forward.20} parent=83 // loop_pre_header
                  _
                $region93: #{bert_mlm_forward.20} parent=83 // loop_header
                  %s312 = sphi 0, %s316
                  %p313 = scmp.ge.s32.totalorder %s312, 1
                  %s317 = sphi %s278, %s278
                  %s318 = sphi %s271, %s271
                $region94: #{bert_mlm_forward.20} parent=83 // loop_header_branch
                  %315 = sbr.rel (%p313) target = $region98
                $region95: #{bert_mlm_forward.20} parent=83 // loop_body
                  %v319 = vld [vmem:[%s317] sm:%s310]
                  %320 = vst [vmem:[%s318] sm:%s310] %v319
                  %v321 = vld [vmem:[%s317 + $0x18] sm:%s310]
                  %322 = vst [vmem:[%s318 + $0x4] sm:%s310] %v321
                $region96: #{bert_mlm_forward.20} parent=83 // loop_footer
                  %s316 = sadd.s32 1, %s312
                $region97: #{bert_mlm_forward.20} parent=83 // loop_footer_branch
                  %311 = sbr.rel target = $region93
                $region98: #{bert_mlm_forward.20} parent=83 // loop_exit
                  _
              $region84: #{bert_mlm_forward.20} parent=68 // pred_fallthru
                _
            $region69: #{bert_mlm_forward.20} parent=64 // pred_fallthru
              _
            // Predicated region
            $region70: #{bert_mlm_forward.20} parent=64 // pred_check
              _
            $region71: #{bert_mlm_forward.20} parent=64 // pred_check_branch
              %284 = sbr.rel (0) target = $region73
            $region72: #{bert_mlm_forward.20} parent=64 // pred_region
              %s286 = ssub.s32 16, 1
              loop: start=0, step=1, limit=1
              $region74: #{bert_mlm_forward.20} parent=72 // loop_pre_header
                _
              $region75: #{bert_mlm_forward.20} parent=72 // loop_header
                %s288 = sphi 0, %s292
                %p289 = scmp.ge.s32.totalorder %s288, 1
                %s293 = sphi %s278, %s278
                %s294 = sphi %s271, %s271
              $region76: #{bert_mlm_forward.20} parent=72 // loop_header_branch
                %291 = sbr.rel (%p289) target = $region80
              $region77: #{bert_mlm_forward.20} parent=72 // loop_body
                %v295 = vld [vmem:[%s293] sm:%s286]
                %296 = vst [vmem:[%s294] sm:%s286] %v295
                %v297 = vld [vmem:[%s293 + $0x18] sm:%s286]
                %298 = vst [vmem:[%s294 + $0x4] sm:%s286] %v297
              $region78: #{bert_mlm_forward.20} parent=72 // loop_footer
                %s292 = sadd.s32 1, %s288
              $region79: #{bert_mlm_forward.20} parent=72 // loop_footer_branch
                %287 = sbr.rel target = $region75
              $region80: #{bert_mlm_forward.20} parent=72 // loop_exit
                _
            $region73: #{bert_mlm_forward.20} parent=64 // pred_fallthru
              _
          $region65: #{bert_mlm_forward.20} parent=60 // pred_fallthru
            _
          %323 = vnop
        $region61: #{bert_mlm_forward.20} parent=15 // pred_fallthru
          _
        // Predicated region
        $region99: #{bert_mlm_forward.20} parent=15 // pred_check
          %p324 = pneg %p124
        $region100: #{bert_mlm_forward.20} parent=15 // pred_check_branch
          %326 = sbr.rel (%p324) target = $region102
        $region101: #{bert_mlm_forward.20} parent=15 // pred_region
          %s327 = sand.u32 %s114, 1
          %s328 = sand.u32 %s114, 1
          %s329 = smul.addr %s328, 8
          %s330 = scalar_lea.vmem [#allocation7], %s329
          %s331 = sadd.s32 %s17, %s20
          %s332 = sadd.s32 %s18, 4
          %s333 = smul.u32 2, %s331
          %s334 = smul.addr %s333, 6
          %s335 = sadd.s32 %s332, %s334
          %s336 = smul.addr %s335, 4
          %s337 = scalar_lea.vmem %s2, %s336
          // Predicated region
          $region103: #{bert_mlm_forward.20} parent=101 // pred_check
            _
          $region104: #{bert_mlm_forward.20} parent=101 // pred_check_branch
            %339 = sbr.rel (0) target = $region106
          $region105: #{bert_mlm_forward.20} parent=101 // pred_region
            // Predicated region
            $region107: #{bert_mlm_forward.20} parent=105 // pred_check
              _
            $region108: #{bert_mlm_forward.20} parent=105 // pred_check_branch
              %341 = sbr.rel target = $region110
            $region109: #{bert_mlm_forward.20} parent=105 // pred_region
              // Predicated region
              $region122: #{bert_mlm_forward.20} parent=109 // pred_check
                _
              $region123: #{bert_mlm_forward.20} parent=109 // pred_check_branch
                %359 = sbr.rel (0) target = $region125
              $region124: #{bert_mlm_forward.20} parent=109 // pred_region
                loop: start=0, step=1, limit=1
                $region126: #{bert_mlm_forward.20} parent=124 // loop_pre_header
                  _
                $region127: #{bert_mlm_forward.20} parent=124 // loop_header
                  %s361 = sphi 0, %s365
                  %p362 = scmp.ge.s32.totalorder %s361, 1
                  %s366 = sphi %s337, %s337
                  %s367 = sphi %s330, %s330
                $region128: #{bert_mlm_forward.20} parent=124 // loop_header_branch
                  %364 = sbr.rel (%p362) target = $region132
                $region129: #{bert_mlm_forward.20} parent=124 // loop_body
                  _
                $region130: #{bert_mlm_forward.20} parent=124 // loop_footer
                  %s365 = sadd.s32 1, %s361
                $region131: #{bert_mlm_forward.20} parent=124 // loop_footer_branch
                  %360 = sbr.rel target = $region127
                $region132: #{bert_mlm_forward.20} parent=124 // loop_exit
                  _
                %s369 = ssub.s32 16, 1
                loop: start=0, step=1, limit=1
                $region133: #{bert_mlm_forward.20} parent=124 // loop_pre_header
                  _
                $region134: #{bert_mlm_forward.20} parent=124 // loop_header
                  %s371 = sphi 0, %s375
                  %p372 = scmp.ge.s32.totalorder %s371, 1
                  %s376 = sphi %s337, %s337
                  %s377 = sphi %s330, %s330
                $region135: #{bert_mlm_forward.20} parent=124 // loop_header_branch
                  %374 = sbr.rel (%p372) target = $region139
                $region136: #{bert_mlm_forward.20} parent=124 // loop_body
                  %v378 = vld [vmem:[%s376] sm:%s369]
                  %379 = vst [vmem:[%s377] sm:%s369] %v378
                  %v380 = vld [vmem:[%s376 + $0x18] sm:%s369]
                  %381 = vst [vmem:[%s377 + $0x4] sm:%s369] %v380
                $region137: #{bert_mlm_forward.20} parent=124 // loop_footer
                  %s375 = sadd.s32 1, %s371
                $region138: #{bert_mlm_forward.20} parent=124 // loop_footer_branch
                  %370 = sbr.rel target = $region134
                $region139: #{bert_mlm_forward.20} parent=124 // loop_exit
                  _
              $region125: #{bert_mlm_forward.20} parent=109 // pred_fallthru
                _
            $region110: #{bert_mlm_forward.20} parent=105 // pred_fallthru
              _
            // Predicated region
            $region111: #{bert_mlm_forward.20} parent=105 // pred_check
              _
            $region112: #{bert_mlm_forward.20} parent=105 // pred_check_branch
              %343 = sbr.rel (0) target = $region114
            $region113: #{bert_mlm_forward.20} parent=105 // pred_region
              %s345 = ssub.s32 16, 1
              loop: start=0, step=1, limit=1
              $region115: #{bert_mlm_forward.20} parent=113 // loop_pre_header
                _
              $region116: #{bert_mlm_forward.20} parent=113 // loop_header
                %s347 = sphi 0, %s351
                %p348 = scmp.ge.s32.totalorder %s347, 1
                %s352 = sphi %s337, %s337
                %s353 = sphi %s330, %s330
              $region117: #{bert_mlm_forward.20} parent=113 // loop_header_branch
                %350 = sbr.rel (%p348) target = $region121
              $region118: #{bert_mlm_forward.20} parent=113 // loop_body
                %v354 = vld [vmem:[%s352] sm:%s345]
                %355 = vst [vmem:[%s353] sm:%s345] %v354
                %v356 = vld [vmem:[%s352 + $0x18] sm:%s345]
                %357 = vst [vmem:[%s353 + $0x4] sm:%s345] %v356
              $region119: #{bert_mlm_forward.20} parent=113 // loop_footer
                %s351 = sadd.s32 1, %s347
              $region120: #{bert_mlm_forward.20} parent=113 // loop_footer_branch
                %346 = sbr.rel target = $region116
              $region121: #{bert_mlm_forward.20} parent=113 // loop_exit
                _
            $region114: #{bert_mlm_forward.20} parent=105 // pred_fallthru
              _
          $region106: #{bert_mlm_forward.20} parent=101 // pred_fallthru
            _
          %382 = vnop
        $region102: #{bert_mlm_forward.20} parent=15 // pred_fallthru
          _
        // Predicated region
        $region140: #{bert_mlm_forward.20} parent=15 // pred_check
          %p383 = pneg %p152
        $region141: #{bert_mlm_forward.20} parent=15 // pred_check_branch
          %385 = sbr.rel (%p383) target = $region143
        $region142: #{bert_mlm_forward.20} parent=15 // pred_region
          %p386 = scmp.lt.s32.totalorder %s17, 1
          %s387 = scalar_select %p386, %s17, 1
          %p388 = scmp.lt.s32.totalorder %s20, 0
          %s389 = scalar_select %p388, %s20, 0
          %s390 = sadd.s32 %s389, %s387
          %s391 = scalar_lea.vmem %s3, %s390
        $region143: #{bert_mlm_forward.20} parent=15 // pred_fallthru
          _
      $region16: #{bert_mlm_forward.20} parent=5 // pred_fallthru
        _
      %p392 = scmp.le.s32.totalorder 1, %s10
      %p393 = scmp.lt.s32.totalorder %s10, 5
      %p394 = pnand %p392, %p393
      %p395 = pneg %p394
      // Predicated region
      $region144: #{bert_mlm_forward.20} parent=5 // pred_check
        _
      $region145: #{bert_mlm_forward.20} parent=5 // pred_check_branch
        %397 = sbr.rel (%p394) target = $region147
      $region146: #{bert_mlm_forward.20} parent=5 // pred_region
        %s398 = ssub.s32 %s10, 1
        %s399 = sand.u32 %s53, 1
        %s400 = sand.u32 %s53, 1
        %s401 = smul.addr %s400, 8
        %s402 = scalar_lea.vmem [#allocation5], %s401
        // Predicated region
        $region148: #{bert_mlm_forward.20} parent=146 // pred_check
          %p403 = pneg %p66
        $region149: #{bert_mlm_forward.20} parent=146 // pred_check_branch
          %405 = sbr.rel (%p403) target = $region151
        $region150: #{bert_mlm_forward.20} parent=146 // pred_region
          _
        $region151: #{bert_mlm_forward.20} parent=146 // pred_fallthru
          _
        %s406 = sand.u32 %s85, 1
        %s407 = sand.u32 %s85, 1
        %s408 = smul.addr %s407, 8
        %s409 = scalar_lea.vmem [#allocation6], %s408
        // Predicated region
        $region152: #{bert_mlm_forward.20} parent=146 // pred_check
          %p410 = pneg %p98
        $region153: #{bert_mlm_forward.20} parent=146 // pred_check_branch
          %412 = sbr.rel (%p410) target = $region155
        $region154: #{bert_mlm_forward.20} parent=146 // pred_region
          _
        $region155: #{bert_mlm_forward.20} parent=146 // pred_fallthru
          _
        %s413 = sand.u32 %s117, 1
        %s414 = sand.u32 %s117, 1
        %s415 = smul.addr %s414, 8
        %s416 = scalar_lea.vmem [#allocation7], %s415
        // Predicated region
        $region156: #{bert_mlm_forward.20} parent=146 // pred_check
          %p417 = pneg %p130
        $region157: #{bert_mlm_forward.20} parent=146 // pred_check_branch
          %419 = sbr.rel (%p417) target = $region159
        $region158: #{bert_mlm_forward.20} parent=146 // pred_region
          _
        $region159: #{bert_mlm_forward.20} parent=146 // pred_fallthru
          _
        %s420 = sand.u32 %s53, 1
        %s421 = sand.u32 %s53, 1
        %s422 = smul.addr %s421, 8
        %s423 = scalar_lea.vmem [#allocation5], %s422
        %p424 = pneg %p66
        %p425 = pneg %p63
        %s426 = sand.u32 %s85, 1
        %s427 = sand.u32 %s85, 1
        %s428 = smul.addr %s427, 8
        %s429 = scalar_lea.vmem [#allocation6], %s428
        %p430 = pneg %p98
        %p431 = pneg %p95
        %s432 = sand.u32 %s117, 1
        %s433 = sand.u32 %s117, 1
        %s434 = smul.addr %s433, 8
        %s435 = scalar_lea.vmem [#allocation7], %s434
        %p436 = pneg %p130
        %p437 = pneg %p127
        %p438 = scmp.lt.s32.totalorder %s21, 1
        %s439 = scalar_select %p438, %s21, 1
        %p440 = scmp.lt.s32.totalorder %s24, 0
        %s441 = scalar_select %p440, %s24, 0
        %s442 = sadd.s32 %s441, %s439
        %s443 = scalar_lea.vmem %s3, %s442
        %p444 = pneg %p158
        %p445 = pneg %p155
        %p446 = pneg %p188
        %p447 = pneg %p185
        %s448 = sand.u32 %s175, 1
        %s449 = sand.u32 %s175, 1
        %s450 = smul.addr %s449, 8
        %s451 = scalar_lea.vmem [#allocation8], %s450
        %s452 = sadd.s32 %s21, %s23
        %s453 = smul.u32 2, %s452
        %s454 = sadd.s32 %s21, %s24
        %s455 = sadd.s32 %s22, 2
        %s456 = smul.u32 2, %s454
        %s457 = sadd.s32 %s21, %s24
        %s458 = sadd.s32 %s22, 4
        %s459 = smul.u32 2, %s457
        %p460 = scmp.lt.s32.totalorder %s21, 1
        %s461 = scalar_select %p460, %s21, 1
        %p462 = scmp.lt.s32.totalorder %s24, 0
        %s463 = scalar_select %p462, %s24, 0
        %s464 = sadd.s32 %s463, %s461
        %s465 = scalar_lea.vmem %s3, %s464
        %s466 = sadd.s32 %s21, %s23
        %s467 = smul.u32 2, %s466
        %p469 = scmp.eq.s32.totalorder %s24, 0
        // Predicated region
        $region160: #{bert_mlm_forward.20} parent=146 // pred_check
          %p470 = pneg %p469
        $region161: #{bert_mlm_forward.20} parent=146 // pred_check_branch
          %472 = sbr.rel (%p470) target = $region163
        $region162: #{bert_mlm_forward.20} parent=146 // pred_region
          %vm473 = vcmask 7168
          %474 = vst.msk [vmem:[#allocation2] sm:$0xff] %vm473, -inf
          %475 = vst.msk [vmem:[#allocation2 + $0x8] sm:$0xff] %vm473, -inf
          %476 = vst.msk [vmem:[#allocation3] sm:$0xff] %vm473, 0.0
          %477 = vst.msk [vmem:[#allocation3 + $0x8] sm:$0xff] %vm473, 0.0
          %478 = vst [vmem:[#allocation4] sm:$0xff] 0.0
          %479 = vst [vmem:[#allocation4 + $0x8] sm:$0xff] 0.0
        $region163: #{bert_mlm_forward.20} parent=146 // pred_fallthru
          _
        %v480 = vld [vmem:[%s465] sm:$0x1]
        %v481 = vld [vmem:[%s402] sm:$0xf]
        %v482 = vld [vmem:[%s402 + $0x4] sm:$0xf]
        %v483 = vld [vmem:[%s409] sm:$0xf]
        %v484 = vld [vmem:[%s409 + $0x4] sm:$0xf]
        %v485 = vld [vmem:[%s416] sm:$0xf]
        %v486 = vld [vmem:[%s416 + $0x4] sm:$0xf]
        %v489 = vunpack.c.l.b16 %v481
        %v490 = vunpack.c.l.b16 %v482
        %v491 = vpack.c.b16 %v490, %v489
        %v495 = vunpack.c.l.b16 %v483
        %v496 = vunpack.c.l.b16 %v484
        %v497 = vpack.c.b16 %v496, %v495
        %499 = vmatpush.bf16.xpose.msra.mxu0 0
        %500 = vmatpush.bf16.xpose.msra.mxu0 0
        %501 = vmatpush.bf16.xpose.msra.mxu0 0
        %502 = vmatpush.bf16.xpose.msra.mxu0 0
        %503 = vmatpush.bf16.xpose.msra.mxu0 0
        %504 = vmatpush.bf16.xpose.msra.mxu0 0
        %505 = vmatpush.bf16.xpose.msra.mxu0 0
        %506 = vmatpush.bf16.xpose.msra.mxu0 %v497
        %507 = vmatmul.bf16.gmra.mxu0 %v491
        %v508 = vpop.f32.mrf.mxu0
        %v509 = vadd.f32 0.0, %v508
        %v510 = vpop.f32.mrf.mxu0
        %v511 = vadd.f32 0.0, %v510
        %512 = vdwg.mxu0
        %v513 = vmul.f32 %v509, 0.088388346
        %v514 = vmul.f32 %v511, 0.088388346
        %v516 = vperm.slane %v480, 0
        %v518 = vadd.f32 %v513, %v516
        %v519 = vadd.f32 %v514, %v516
        %v520 = vld [vmem:[#allocation2] sm:$0xff]
        %v521 = vld [vmem:[#allocation2 + $0x8] sm:$0xff]
        %vm522 = vcmask 130048
        %v523 = vsel %vm522, %v518, -inf
        %524 = vmax.xlane.f32.xlu0 %v523
        %v525 = vpop.xlane.xlu0 %524
        %v526 = vsel %vm522, %v519, -inf
        %527 = vmax.xlane.f32.xlu0 %v526
        %v528 = vpop.xlane.xlu0 %527
        %v529 = vmax.f32 %v520, %v525
        %v530 = vmax.f32 %v521, %v528
        %v531 = vsub.f32 %v520, %v529
        %v532 = vsub.f32 %v521, %v530
        %v533 = vmul.f32 %v531, 1.442695
        %v534 = vpow.pop %v533
        %v535 = vmul.f32 %v532, 1.442695
        %v536 = vpow.pop %v535
        %538 = vset.pattern.permute.xlu0 0
        %539 = vperm.xlu0 %538, %v529
        %v540 = vpop.permute.xlu0 %539
        %543 = vset.pattern.permute.xlu0 0
        %544 = vperm.xlu0 %543, %v530
        %v545 = vpop.permute.xlu0 %544
        %v547 = vsub.f32 %v518, %v540
        %v548 = vsub.f32 %v519, %v545
        %v549 = vmul.f32 %v547, 1.442695
        %v550 = vpow.pop %v549
        %v551 = vmul.f32 %v548, 1.442695
        %v552 = vpow.pop %v551
        %v553 = vld [vmem:[#allocation3] sm:$0xff]
        %v554 = vld [vmem:[#allocation3 + $0x8] sm:$0xff]
        %v555 = vmul.f32 %v534, %v553
        %v556 = vmul.f32 %v536, %v554
        %v557 = vsel %vm522, %v550, 0.0
        %558 = vadd.xlane.f32.xlu0 %v557
        %v559 = vpop.xlane.xlu0 %558
        %v560 = vsel %vm522, %v552, 0.0
        %561 = vadd.xlane.f32.xlu0 %v560
        %v562 = vpop.xlane.xlu0 %561
        %v563 = vadd.f32 %v555, %v559
        %v564 = vadd.f32 %v556, %v562
        %vm565 = vcmask 7168
        %566 = vst.msk [vmem:[#allocation3] sm:$0xff] %vm565, %v563
        %567 = vst.msk [vmem:[#allocation3 + $0x8] sm:$0xff] %vm565, %v564
        %v568 = vld [vmem:[#allocation4] sm:$0xff]
        %v569 = vld [vmem:[#allocation4 + $0x8] sm:$0xff]
        %571 = vset.pattern.permute.xlu0 0
        %572 = vperm.xlu0 %571, %v534
        %v573 = vpop.permute.xlu0 %572
        %576 = vset.pattern.permute.xlu0 0
        %577 = vperm.xlu0 %576, %v536
        %v578 = vpop.permute.xlu0 %577
        %v580 = vmul.f32 %v573, %v568
        %v581 = vmul.f32 %v578, %v569
        %v582 = vpack.c.bf16 %v552, %v550
        %v585 = vunpack.c.l.b16 %v485
        %v586 = vunpack.c.l.b16 %v486
        %v587 = vpack.c.b16 %v586, %v585
        %v590 = vsel %vm522, %v582, 0
        %592 = vmatpush.bf16.msra.mxu0 0
        %593 = vmatpush.bf16.msra.mxu0 0
        %594 = vmatpush.bf16.msra.mxu0 0
        %595 = vmatpush.bf16.msra.mxu0 0
        %596 = vmatpush.bf16.msra.mxu0 0
        %597 = vmatpush.bf16.msra.mxu0 0
        %598 = vmatpush.bf16.msra.mxu0 0
        %599 = vmatpush.bf16.msra.mxu0 %v587
        %600 = vmatmul.bf16.gmra.mxu0 %v590
        %v601 = vpop.f32.mrf.mxu0
        %v602 = vadd.f32 0.0, %v601
        %v603 = vpop.f32.mrf.mxu0
        %v604 = vadd.f32 0.0, %v603
        %605 = vdwg.mxu0
        %v606 = vadd.f32 %v580, %v602
        %v607 = vadd.f32 %v581, %v604
        %608 = vst [vmem:[#allocation4] sm:$0xff] %v606
        %609 = vst [vmem:[#allocation4 + $0x8] sm:$0xff] %v607
        %610 = vst.msk [vmem:[#allocation2] sm:$0xff] %vm565, %v529
        %611 = vst.msk [vmem:[#allocation2 + $0x8] sm:$0xff] %vm565, %v530
        // Predicated region
        $region164: #{bert_mlm_forward.20} parent=146 // pred_check
          %p612 = pneg %p469
        $region165: #{bert_mlm_forward.20} parent=146 // pred_check_branch
          %614 = sbr.rel (%p612) target = $region167
        $region166: #{bert_mlm_forward.20} parent=146 // pred_region
          %v615 = vld [vmem:[#allocation4] sm:$0xff]
          %v616 = vld [vmem:[#allocation4 + $0x8] sm:$0xff]
          %v617 = vld [vmem:[#allocation3] sm:$0xff]
          %v618 = vld [vmem:[#allocation3 + $0x8] sm:$0xff]
          %v619 = vrcp.pop %v617
          %v620 = vrcp.pop %v618
          %622 = vset.pattern.permute.xlu0 0
          %623 = vperm.xlu0 %622, %v619
          %v624 = vpop.permute.xlu0 %623
          %627 = vset.pattern.permute.xlu0 0
          %628 = vperm.xlu0 %627, %v620
          %v629 = vpop.permute.xlu0 %628
          %v631 = vmul.f32 %v615, %v624
          %v632 = vmul.f32 %v616, %v629
          %v633 = vpack.c.bf16 %v631, %v631
          %v634 = vpack.c.bf16 %v632, %v632
          %635 = vst [vmem:[%s451] sm:$0xf] %v633
          %636 = vst [vmem:[%s451 + $0x4] sm:$0xf] %v634
        $region167: #{bert_mlm_forward.20} parent=146 // pred_fallthru
          _
        %s637 = sand.u32 %s175, 1
        %s638 = sand.u32 %s175, 1
        %s639 = smul.addr %s638, 8
        %s640 = scalar_lea.vmem [#allocation8], %s639
        // Predicated region
        $region168: #{bert_mlm_forward.20} parent=146 // pred_check
          %p641 = pneg %p185
        $region169: #{bert_mlm_forward.20} parent=146 // pred_check_branch
          %643 = sbr.rel (%p641) target = $region171
        $region170: #{bert_mlm_forward.20} parent=146 // pred_region
          %s644 = sadd.s32 %s21, %s23
          %s645 = smul.u32 2, %s644
          %s646 = smul.addr %s645, 2
          %s647 = sadd.s32 %s22, %s646
          %s648 = smul.addr %s647, 4
          %s649 = scalar_lea.vmem %s4, %s648
          // Predicated region
          $region172: #{bert_mlm_forward.20} parent=170 // pred_check
            _
          $region173: #{bert_mlm_forward.20} parent=170 // pred_check_branch
            %651 = sbr.rel (0) target = $region175
          $region174: #{bert_mlm_forward.20} parent=170 // pred_region
            // Predicated region
            $region176: #{bert_mlm_forward.20} parent=174 // pred_check
              _
            $region177: #{bert_mlm_forward.20} parent=174 // pred_check_branch
              %653 = sbr.rel target = $region179
            $region178: #{bert_mlm_forward.20} parent=174 // pred_region
              // Predicated region
              $region191: #{bert_mlm_forward.20} parent=178 // pred_check
                _
              $region192: #{bert_mlm_forward.20} parent=178 // pred_check_branch
                %671 = sbr.rel (0) target = $region194
              $region193: #{bert_mlm_forward.20} parent=178 // pred_region
                loop: start=0, step=1, limit=1
                $region195: #{bert_mlm_forward.20} parent=193 // loop_pre_header
                  _
                $region196: #{bert_mlm_forward.20} parent=193 // loop_header
                  %s673 = sphi 0, %s677
                  %p674 = scmp.ge.s32.totalorder %s673, 1
                  %s678 = sphi %s640, %s640
                  %s679 = sphi %s649, %s649
                $region197: #{bert_mlm_forward.20} parent=193 // loop_header_branch
                  %676 = sbr.rel (%p674) target = $region201
                $region198: #{bert_mlm_forward.20} parent=193 // loop_body
                  _
                $region199: #{bert_mlm_forward.20} parent=193 // loop_footer
                  %s677 = sadd.s32 1, %s673
                $region200: #{bert_mlm_forward.20} parent=193 // loop_footer_branch
                  %672 = sbr.rel target = $region196
                $region201: #{bert_mlm_forward.20} parent=193 // loop_exit
                  _
                %s681 = ssub.s32 16, 1
                loop: start=0, step=1, limit=1
                $region202: #{bert_mlm_forward.20} parent=193 // loop_pre_header
                  _
                $region203: #{bert_mlm_forward.20} parent=193 // loop_header
                  %s683 = sphi 0, %s687
                  %p684 = scmp.ge.s32.totalorder %s683, 1
                  %s688 = sphi %s640, %s640
                  %s689 = sphi %s649, %s649
                $region204: #{bert_mlm_forward.20} parent=193 // loop_header_branch
                  %686 = sbr.rel (%p684) target = $region208
                $region205: #{bert_mlm_forward.20} parent=193 // loop_body
                  %v690 = vld [vmem:[%s688] sm:%s681]
                  %691 = vst [vmem:[%s689] sm:%s681] %v690
                  %v692 = vld [vmem:[%s688 + $0x4] sm:%s681]
                  %693 = vst [vmem:[%s689 + $0x8] sm:%s681] %v692
                $region206: #{bert_mlm_forward.20} parent=193 // loop_footer
                  %s687 = sadd.s32 1, %s683
                $region207: #{bert_mlm_forward.20} parent=193 // loop_footer_branch
                  %682 = sbr.rel target = $region203
                $region208: #{bert_mlm_forward.20} parent=193 // loop_exit
                  _
              $region194: #{bert_mlm_forward.20} parent=178 // pred_fallthru
                _
            $region179: #{bert_mlm_forward.20} parent=174 // pred_fallthru
              _
            // Predicated region
            $region180: #{bert_mlm_forward.20} parent=174 // pred_check
              _
            $region181: #{bert_mlm_forward.20} parent=174 // pred_check_branch
              %655 = sbr.rel (0) target = $region183
            $region182: #{bert_mlm_forward.20} parent=174 // pred_region
              %s657 = ssub.s32 16, 1
              loop: start=0, step=1, limit=1
              $region184: #{bert_mlm_forward.20} parent=182 // loop_pre_header
                _
              $region185: #{bert_mlm_forward.20} parent=182 // loop_header
                %s659 = sphi 0, %s663
                %p660 = scmp.ge.s32.totalorder %s659, 1
                %s664 = sphi %s640, %s640
                %s665 = sphi %s649, %s649
              $region186: #{bert_mlm_forward.20} parent=182 // loop_header_branch
                %662 = sbr.rel (%p660) target = $region190
              $region187: #{bert_mlm_forward.20} parent=182 // loop_body
                %v666 = vld [vmem:[%s664] sm:%s657]
                %667 = vst [vmem:[%s665] sm:%s657] %v666
                %v668 = vld [vmem:[%s664 + $0x4] sm:%s657]
                %669 = vst [vmem:[%s665 + $0x8] sm:%s657] %v668
              $region188: #{bert_mlm_forward.20} parent=182 // loop_footer
                %s663 = sadd.s32 1, %s659
              $region189: #{bert_mlm_forward.20} parent=182 // loop_footer_branch
                %658 = sbr.rel target = $region185
              $region190: #{bert_mlm_forward.20} parent=182 // loop_exit
                _
            $region183: #{bert_mlm_forward.20} parent=174 // pred_fallthru
              _
          $region175: #{bert_mlm_forward.20} parent=170 // pred_fallthru
            _
          %694 = vnop
        $region171: #{bert_mlm_forward.20} parent=146 // pred_fallthru
          _
      $region147: #{bert_mlm_forward.20} parent=5 // pred_fallthru
        _
      %p695 = scmp.le.s32.totalorder 2, %s10
      // Predicated region
      $region209: #{bert_mlm_forward.20} parent=5 // pred_check
        %p696 = pneg %p695
      $region210: #{bert_mlm_forward.20} parent=5 // pred_check_branch
        %698 = sbr.rel (%p696) target = $region212
      $region211: #{bert_mlm_forward.20} parent=5 // pred_region
        %s699 = ssub.s32 %s10, 2
        // Predicated region
        $region213: #{bert_mlm_forward.20} parent=211 // pred_check
          %p700 = pneg %p191
        $region214: #{bert_mlm_forward.20} parent=211 // pred_check_branch
          %702 = sbr.rel (%p700) target = $region216
        $region215: #{bert_mlm_forward.20} parent=211 // pred_region
          %s703 = sand.u32 %s176, 1
          %s704 = sand.u32 %s176, 1
          %s705 = smul.addr %s704, 8
          %s706 = scalar_lea.vmem [#allocation8], %s705
        $region216: #{bert_mlm_forward.20} parent=211 // pred_fallthru
          _
      $region212: #{bert_mlm_forward.20} parent=5 // pred_fallthru
        _
    $region6: #{bert_mlm_forward.20} parent=1 // loop_footer
      %s14 = sadd.s32 1, %s10
    $region7: #{bert_mlm_forward.20} parent=1 // loop_footer_branch
      %9 = sbr.rel target = $region3
    $region8: #{bert_mlm_forward.20} parent=1 // loop_exit
      _

// kernel: bert_mlm_forward.19
$region0: #{bert_mlm_forward.19}
  #allocation0 [shape = 'u32[]', space=smem, size = 0x4, offset = 0x4, fixed_abs, tag = 'smem constant byte address 0x4 - core index']
  #allocation1 [shape = 'u32[72,128]{1,0:T(1,128)}', space=vmem, size = 0x9000, scoped, tag = 'internal scratch']
  %s0 = inlined_call_operand.vmem [shape: bf16[32,256], index: 0, kind: input, shape index: {}]
  %s1 = inlined_call_operand.hbm [shape: bf16[256,768], index: 1, kind: input, shape index: {}]
  %s2 = inlined_call_operand.vmem [shape: f32[1,768], index: 2, kind: input, shape index: {}]
  %s3 = inlined_call_operand.vmem [shape: bf16[32,768], index: 3, kind: output, shape index: {}]
  %s4 = sld [smem:[#allocation0]]
  $region26: #{bert_mlm_forward.19} parent=0
    _
  %s6 = ssub.s32 1, %s4
  %s7 = scalar_select 0, %s6, %s4
  $region1: #{bert_mlm_forward.19} parent=0
    #allocation2 [shape = 'u8[393216]{0}', space=vmem, size = 0x60000, scoped, tag = 'input window, operand 1, single buffered']
    #allocation3 [shape = 's32[1]{0}', space=sflag, size = 0x4, scoped, tag = 'scoped memory for bert_mlm_forward.19']
    %8 = vsyncpa [#allocation3], 0
    // Predicated region
    $region2: #{bert_mlm_forward.19} parent=1 // pred_check
      _
    $region3: #{bert_mlm_forward.19} parent=1 // pred_check_branch
      %10 = sbr.rel (0) target = $region5
    $region4: #{bert_mlm_forward.19} parent=1 // pred_region
      _
    $region5: #{bert_mlm_forward.19} parent=1 // pred_fallthru
      _
    // Predicated region
    $region6: #{bert_mlm_forward.19} parent=1 // pred_check
      _
    $region7: #{bert_mlm_forward.19} parent=1 // pred_check_branch
      %12 = sbr.rel (0) target = $region9
    $region8: #{bert_mlm_forward.19} parent=1 // pred_region
      %14 = vsyncadd [#allocation3], 0
      %s15 = sshll.u32 %s1, 4
      %s16 = int_to_ptr.hbm [resolvable:$true] %s15
      %s17 = sshll.u32 [#allocation2], 4
      %s18 = int_to_ptr.vmem [resolvable:$true] %s17
      %23 = dma.hbm_to_vmem [thread:$0]  %s16, 12288, %s18, [#allocation3], 384, 384, 24
    $region9: #{bert_mlm_forward.19} parent=1 // pred_fallthru
      _
    // Predicated region
    $region10: #{bert_mlm_forward.19} parent=1 // pred_check
      _
    $region11: #{bert_mlm_forward.19} parent=1 // pred_check_branch
      %25 = sbr.rel (0) target = $region13
    $region12: #{bert_mlm_forward.19} parent=1 // pred_region
      _
    $region13: #{bert_mlm_forward.19} parent=1 // pred_fallthru
      _
    // Predicated region
    $region14: #{bert_mlm_forward.19} parent=1 // pred_check
      _
    $region15: #{bert_mlm_forward.19} parent=1 // pred_check_branch
      %27 = sbr.rel (0) target = $region17
    $region16: #{bert_mlm_forward.19} parent=1 // pred_region
      %29 = dma.done [#allocation3], 12288
    $region17: #{bert_mlm_forward.19} parent=1 // pred_fallthru
      _
    %v30 = vld [vmem:[%s0] sm:$0xff]
    %v31 = vld [vmem:[%s0 + $0x8] sm:$0xff]
    %v32 = vld [vmem:[%s0 + $0x10] sm:$0xff]
    %v33 = vld [vmem:[%s0 + $0x18] sm:$0xff]
    %v34 = vld [vmem:[#allocation2] sm:$0xff]
    %v35 = vld [vmem:[#allocation2 + $0x8] sm:$0xff]
    %v36 = vld [vmem:[#allocation2 + $0x10] sm:$0xff]
    %v37 = vld [vmem:[#allocation2 + $0x18] sm:$0xff]
    %v38 = vld [vmem:[#allocation2 + $0x20] sm:$0xff]
    %v39 = vld [vmem:[#allocation2 + $0x28] sm:$0xff]
    %v40 = vld [vmem:[#allocation2 + $0x30] sm:$0xff]
    %v41 = vld [vmem:[#allocation2 + $0x38] sm:$0xff]
    %v42 = vld [vmem:[#allocation2 + $0x40] sm:$0xff]
    %v43 = vld [vmem:[#allocation2 + $0x48] sm:$0xff]
    %v44 = vld [vmem:[#allocation2 + $0x50] sm:$0xff]
    %v45 = vld [vmem:[#allocation2 + $0x58] sm:$0xff]
    %v46 = vld [vmem:[#allocation2 + $0x60] sm:$0xff]
    %v47 = vld [vmem:[#allocation2 + $0x68] sm:$0xff]
    %v48 = vld [vmem:[#allocation2 + $0x70] sm:$0xff]
    %v49 = vld [vmem:[#allocation2 + $0x78] sm:$0xff]
    %v50 = vld [vmem:[#allocation2 + $0x80] sm:$0xff]
    %v51 = vld [vmem:[#allocation2 + $0x88] sm:$0xff]
    %v52 = vld [vmem:[#allocation2 + $0x90] sm:$0xff]
    %v53 = vld [vmem:[#allocation2 + $0x98] sm:$0xff]
    %v54 = vld [vmem:[#allocation2 + $0xa0] sm:$0xff]
    %v55 = vld [vmem:[#allocation2 + $0xa8] sm:$0xff]
    %v56 = vld [vmem:[#allocation2 + $0xb0] sm:$0xff]
    %v57 = vld [vmem:[#allocation2 + $0xb8] sm:$0xff]
    %v58 = vld [vmem:[#allocation2 + $0xc0] sm:$0xff]
    %v59 = vld [vmem:[#allocation2 + $0xc8] sm:$0xff]
    %v60 = vld [vmem:[#allocation2 + $0xd0] sm:$0xff]
    %v61 = vld [vmem:[#allocation2 + $0xd8] sm:$0xff]
    %v62 = vld [vmem:[#allocation2 + $0xe0] sm:$0xff]
    %v63 = vld [vmem:[#allocation2 + $0xe8] sm:$0xff]
    %v64 = vld [vmem:[#allocation2 + $0xf0] sm:$0xff]
    %v65 = vld [vmem:[#allocation2 + $0xf8] sm:$0xff]
    %v66 = vld [vmem:[#allocation2 + $0x100] sm:$0xff]
    %v67 = vld [vmem:[#allocation2 + $0x108] sm:$0xff]
    %v68 = vld [vmem:[#allocation2 + $0x110] sm:$0xff]
    %v69 = vld [vmem:[#allocation2 + $0x118] sm:$0xff]
    %v70 = vld [vmem:[#allocation2 + $0x120] sm:$0xff]
    %v71 = vld [vmem:[#allocation2 + $0x128] sm:$0xff]
    %v72 = vld [vmem:[#allocation2 + $0x130] sm:$0xff]
    %v73 = vld [vmem:[#allocation2 + $0x138] sm:$0xff]
    %v74 = vld [vmem:[#allocation2 + $0x140] sm:$0xff]
    %v75 = vld [vmem:[#allocation2 + $0x148] sm:$0xff]
    %v76 = vld [vmem:[#allocation2 + $0x150] sm:$0xff]
    %v77 = vld [vmem:[#allocation2 + $0x158] sm:$0xff]
    %v78 = vld [vmem:[#allocation2 + $0x160] sm:$0xff]
    %v79 = vld [vmem:[#allocation2 + $0x168] sm:$0xff]
    %v80 = vld [vmem:[#allocation2 + $0x170] sm:$0xff]
    %v81 = vld [vmem:[#allocation2 + $0x178] sm:$0xff]
    %v82 = vld [vmem:[#allocation2 + $0x180] sm:$0xff]
    %v83 = vld [vmem:[#allocation2 + $0x188] sm:$0xff]
    %v84 = vld [vmem:[#allocation2 + $0x190] sm:$0xff]
    %v85 = vld [vmem:[#allocation2 + $0x198] sm:$0xff]
    %v86 = vld [vmem:[#allocation2 + $0x1a0] sm:$0xff]
    %v87 = vld [vmem:[#allocation2 + $0x1a8] sm:$0xff]
    %v88 = vld [vmem:[#allocation2 + $0x1b0] sm:$0xff]
    %v89 = vld [vmem:[#allocation2 + $0x1b8] sm:$0xff]
    %v90 = vld [vmem:[#allocation2 + $0x1c0] sm:$0xff]
    %v91 = vld [vmem:[#allocation2 + $0x1c8] sm:$0xff]
    %v92 = vld [vmem:[#allocation2 + $0x1d0] sm:$0xff]
    %v93 = vld [vmem:[#allocation2 + $0x1d8] sm:$0xff]
    %v94 = vld [vmem:[#allocation2 + $0x1e0] sm:$0xff]
    %v95 = vld [vmem:[#allocation2 + $0x1e8] sm:$0xff]
    %v96 = vld [vmem:[#allocation2 + $0x1f0] sm:$0xff]
    %v97 = vld [vmem:[#allocation2 + $0x1f8] sm:$0xff]
    %v98 = vld [vmem:[#allocation2 + $0x200] sm:$0xff]
    %v99 = vld [vmem:[#allocation2 + $0x208] sm:$0xff]
    %v100 = vld [vmem:[#allocation2 + $0x210] sm:$0xff]
    %v101 = vld [vmem:[#allocation2 + $0x218] sm:$0xff]
    %v102 = vld [vmem:[#allocation2 + $0x220] sm:$0xff]
    %v103 = vld [vmem:[#allocation2 + $0x228] sm:$0xff]
    %v104 = vld [vmem:[#allocation2 + $0x230] sm:$0xff]
    %v105 = vld [vmem:[#allocation2 + $0x238] sm:$0xff]
    %v106 = vld [vmem:[#allocation2 + $0x240] sm:$0xff]
    %v107 = vld [vmem:[#allocation2 + $0x248] sm:$0xff]
    %v108 = vld [vmem:[#allocation2 + $0x250] sm:$0xff]
    %v109 = vld [vmem:[#allocation2 + $0x258] sm:$0xff]
    %v110 = vld [vmem:[#allocation2 + $0x260] sm:$0xff]
    %v111 = vld [vmem:[#allocation2 + $0x268] sm:$0xff]
    %v112 = vld [vmem:[#allocation2 + $0x270] sm:$0xff]
    %v113 = vld [vmem:[#allocation2 + $0x278] sm:$0xff]
    %v114 = vld [vmem:[#allocation2 + $0x280] sm:$0xff]
    %v115 = vld [vmem:[#allocation2 + $0x288] sm:$0xff]
    %v116 = vld [vmem:[#allocation2 + $0x290] sm:$0xff]
    %v117 = vld [vmem:[#allocation2 + $0x298] sm:$0xff]
    %v118 = vld [vmem:[#allocation2 + $0x2a0] sm:$0xff]
    %v119 = vld [vmem:[#allocation2 + $0x2a8] sm:$0xff]
    %v120 = vld [vmem:[#allocation2 + $0x2b0] sm:$0xff]
    %v121 = vld [vmem:[#allocation2 + $0x2b8] sm:$0xff]
    %v122 = vld [vmem:[#allocation2 + $0x2c0] sm:$0xff]
    %v123 = vld [vmem:[#allocation2 + $0x2c8] sm:$0xff]
    %v124 = vld [vmem:[#allocation2 + $0x2d0] sm:$0xff]
    %v125 = vld [vmem:[#allocation2 + $0x2d8] sm:$0xff]
    %v126 = vld [vmem:[#allocation2 + $0x2e0] sm:$0xff]
    %v127 = vld [vmem:[#allocation2 + $0x2e8] sm:$0xff]
    %v128 = vld [vmem:[#allocation2 + $0x2f0] sm:$0xff]
    %v129 = vld [vmem:[#allocation2 + $0x2f8] sm:$0xff]
    %v130 = vld [vmem:[%s2] sm:$0x3f]
    %v132 = vperm.slane %v130, 0
    %v133 = vperm.slane %v130, 1
    %v134 = vperm.slane %v130, 2
    %v135 = vperm.slane %v130, 3
    %v136 = vperm.slane %v130, 4
    %v137 = vperm.slane %v130, 5
    %v148 = vunpack.c.l.b16 %v30
    %v149 = vunpack.c.h.b16 %v30
    %v150 = vunpack.c.l.b16 %v31
    %v151 = vunpack.c.h.b16 %v31
    %v152 = vunpack.c.l.b16 %v32
    %v153 = vunpack.c.h.b16 %v32
    %v154 = vunpack.c.l.b16 %v33
    %v155 = vunpack.c.h.b16 %v33
    %v156 = vpack.c.b16 %v150, %v148
    %v157 = vpack.c.b16 %v151, %v149
    %v158 = vpack.c.b16 %v154, %v152
    %v159 = vpack.c.b16 %v155, %v153
    %v260 = vunpack.c.l.b16 %v34
    %v261 = vunpack.c.h.b16 %v34
    %v262 = vunpack.c.l.b16 %v35
    %v263 = vunpack.c.h.b16 %v35
    %v264 = vunpack.c.l.b16 %v36
    %v265 = vunpack.c.h.b16 %v36
    %v266 = vunpack.c.l.b16 %v37
    %v267 = vunpack.c.h.b16 %v37
    %v268 = vunpack.c.l.b16 %v38
    %v269 = vunpack.c.h.b16 %v38
    %v270 = vunpack.c.l.b16 %v39
    %v271 = vunpack.c.h.b16 %v39
    %v272 = vunpack.c.l.b16 %v40
    %v273 = vunpack.c.h.b16 %v40
    %v274 = vunpack.c.l.b16 %v41
    %v275 = vunpack.c.h.b16 %v41
    %v276 = vunpack.c.l.b16 %v42
    %v277 = vunpack.c.h.b16 %v42
    %v278 = vunpack.c.l.b16 %v43
    %v279 = vunpack.c.h.b16 %v43
    %v280 = vunpack.c.l.b16 %v44
    %v281 = vunpack.c.h.b16 %v44
    %v282 = vunpack.c.l.b16 %v45
    %v283 = vunpack.c.h.b16 %v45
    %v284 = vunpack.c.l.b16 %v46
    %v285 = vunpack.c.h.b16 %v46
    %v286 = vunpack.c.l.b16 %v47
    %v287 = vunpack.c.h.b16 %v47
    %v288 = vunpack.c.l.b16 %v48
    %v289 = vunpack.c.h.b16 %v48
    %v290 = vunpack.c.l.b16 %v49
    %v291 = vunpack.c.h.b16 %v49
    %v292 = vunpack.c.l.b16 %v50
    %v293 = vunpack.c.h.b16 %v50
    %v294 = vunpack.c.l.b16 %v51
    %v295 = vunpack.c.h.b16 %v51
    %v296 = vunpack.c.l.b16 %v52
    %v297 = vunpack.c.h.b16 %v52
    %v298 = vunpack.c.l.b16 %v53
    %v299 = vunpack.c.h.b16 %v53
    %v300 = vunpack.c.l.b16 %v54
    %v301 = vunpack.c.h.b16 %v54
    %v302 = vunpack.c.l.b16 %v55
    %v303 = vunpack.c.h.b16 %v55
    %v304 = vunpack.c.l.b16 %v56
    %v305 = vunpack.c.h.b16 %v56
    %v306 = vunpack.c.l.b16 %v57
    %v307 = vunpack.c.h.b16 %v57
    %v308 = vunpack.c.l.b16 %v58
    %v309 = vunpack.c.h.b16 %v58
    %v310 = vunpack.c.l.b16 %v59
    %v311 = vunpack.c.h.b16 %v59
    %v312 = vunpack.c.l.b16 %v60
    %v313 = vunpack.c.h.b16 %v60
    %v314 = vunpack.c.l.b16 %v61
    %v315 = vunpack.c.h.b16 %v61
    %v316 = vunpack.c.l.b16 %v62
    %v317 = vunpack.c.h.b16 %v62
    %v318 = vunpack.c.l.b16 %v63
    %v319 = vunpack.c.h.b16 %v63
    %v320 = vunpack.c.l.b16 %v64
    %v321 = vunpack.c.h.b16 %v64
    %v322 = vunpack.c.l.b16 %v65
    %v323 = vunpack.c.h.b16 %v65
    %v324 = vunpack.c.l.b16 %v66
    %v325 = vunpack.c.h.b16 %v66
    %v326 = vunpack.c.l.b16 %v67
    %v327 = vunpack.c.h.b16 %v67
    %v328 = vunpack.c.l.b16 %v68
    %v329 = vunpack.c.h.b16 %v68
    %v330 = vunpack.c.l.b16 %v69
    %v331 = vunpack.c.h.b16 %v69
    %v332 = vunpack.c.l.b16 %v70
    %v333 = vunpack.c.h.b16 %v70
    %v334 = vunpack.c.l.b16 %v71
    %v335 = vunpack.c.h.b16 %v71
    %v336 = vunpack.c.l.b16 %v72
    %v337 = vunpack.c.h.b16 %v72
    %v338 = vunpack.c.l.b16 %v73
    %v339 = vunpack.c.h.b16 %v73
    %v340 = vunpack.c.l.b16 %v74
    %v341 = vunpack.c.h.b16 %v74
    %v342 = vunpack.c.l.b16 %v75
    %v343 = vunpack.c.h.b16 %v75
    %v344 = vunpack.c.l.b16 %v76
    %v345 = vunpack.c.h.b16 %v76
    %v346 = vunpack.c.l.b16 %v77
    %v347 = vunpack.c.h.b16 %v77
    %v348 = vunpack.c.l.b16 %v78
    %v349 = vunpack.c.h.b16 %v78
    %v350 = vunpack.c.l.b16 %v79
    %v351 = vunpack.c.h.b16 %v79
    %v352 = vunpack.c.l.b16 %v80
    %v353 = vunpack.c.h.b16 %v80
    %v354 = vunpack.c.l.b16 %v81
    %v355 = vunpack.c.h.b16 %v81
    %v356 = vunpack.c.l.b16 %v82
    %v357 = vunpack.c.h.b16 %v82
    %v358 = vunpack.c.l.b16 %v83
    %v359 = vunpack.c.h.b16 %v83
    %v360 = vunpack.c.l.b16 %v84
    %v361 = vunpack.c.h.b16 %v84
    %v362 = vunpack.c.l.b16 %v85
    %v363 = vunpack.c.h.b16 %v85
    %v364 = vunpack.c.l.b16 %v86
    %v365 = vunpack.c.h.b16 %v86
    %v366 = vunpack.c.l.b16 %v87
    %v367 = vunpack.c.h.b16 %v87
    %v368 = vunpack.c.l.b16 %v88
    %v369 = vunpack.c.h.b16 %v88
    %v370 = vunpack.c.l.b16 %v89
    %v371 = vunpack.c.h.b16 %v89
    %v372 = vunpack.c.l.b16 %v90
    %v373 = vunpack.c.h.b16 %v90
    %v374 = vunpack.c.l.b16 %v91
    %v375 = vunpack.c.h.b16 %v91
    %v376 = vunpack.c.l.b16 %v92
    %v377 = vunpack.c.h.b16 %v92
    %v378 = vunpack.c.l.b16 %v93
    %v379 = vunpack.c.h.b16 %v93
    %v380 = vunpack.c.l.b16 %v94
    %v381 = vunpack.c.h.b16 %v94
    %v382 = vunpack.c.l.b16 %v95
    %v383 = vunpack.c.h.b16 %v95
    %v384 = vunpack.c.l.b16 %v96
    %v385 = vunpack.c.h.b16 %v96
    %v386 = vunpack.c.l.b16 %v97
    %v387 = vunpack.c.h.b16 %v97
    %v388 = vunpack.c.l.b16 %v98
    %v389 = vunpack.c.h.b16 %v98
    %v390 = vunpack.c.l.b16 %v99
    %v391 = vunpack.c.h.b16 %v99
    %v392 = vunpack.c.l.b16 %v100
    %v393 = vunpack.c.h.b16 %v100
    %v394 = vunpack.c.l.b16 %v101
    %v395 = vunpack.c.h.b16 %v101
    %v396 = vunpack.c.l.b16 %v102
    %v397 = vunpack.c.h.b16 %v102
    %v398 = vunpack.c.l.b16 %v103
    %v399 = vunpack.c.h.b16 %v103
    %v400 = vunpack.c.l.b16 %v104
    %v401 = vunpack.c.h.b16 %v104
    %v402 = vunpack.c.l.b16 %v105
    %v403 = vunpack.c.h.b16 %v105
    %v404 = vunpack.c.l.b16 %v106
    %v405 = vunpack.c.h.b16 %v106
    %v406 = vunpack.c.l.b16 %v107
    %v407 = vunpack.c.h.b16 %v107
    %v408 = vunpack.c.l.b16 %v108
    %v409 = vunpack.c.h.b16 %v108
    %v410 = vunpack.c.l.b16 %v109
    %v411 = vunpack.c.h.b16 %v109
    %v412 = vunpack.c.l.b16 %v110
    %v413 = vunpack.c.h.b16 %v110
    %v414 = vunpack.c.l.b16 %v111
    %v415 = vunpack.c.h.b16 %v111
    %v416 = vunpack.c.l.b16 %v112
    %v417 = vunpack.c.h.b16 %v112
    %v418 = vunpack.c.l.b16 %v113
    %v419 = vunpack.c.h.b16 %v113
    %v420 = vunpack.c.l.b16 %v114
    %v421 = vunpack.c.h.b16 %v114
    %v422 = vunpack.c.l.b16 %v115
    %v423 = vunpack.c.h.b16 %v115
    %v424 = vunpack.c.l.b16 %v116
    %v425 = vunpack.c.h.b16 %v116
    %v426 = vunpack.c.l.b16 %v117
    %v427 = vunpack.c.h.b16 %v117
    %v428 = vunpack.c.l.b16 %v118
    %v429 = vunpack.c.h.b16 %v118
    %v430 = vunpack.c.l.b16 %v119
    %v431 = vunpack.c.h.b16 %v119
    %v432 = vunpack.c.l.b16 %v120
    %v433 = vunpack.c.h.b16 %v120
    %v434 = vunpack.c.l.b16 %v121
    %v435 = vunpack.c.h.b16 %v121
    %v436 = vunpack.c.l.b16 %v122
    %v437 = vunpack.c.h.b16 %v122
    %v438 = vunpack.c.l.b16 %v123
    %v439 = vunpack.c.h.b16 %v123
    %v440 = vunpack.c.l.b16 %v124
    %v441 = vunpack.c.h.b16 %v124
    %v442 = vunpack.c.l.b16 %v125
    %v443 = vunpack.c.h.b16 %v125
    %v444 = vunpack.c.l.b16 %v126
    %v445 = vunpack.c.h.b16 %v126
    %v446 = vunpack.c.l.b16 %v127
    %v447 = vunpack.c.h.b16 %v127
    %v448 = vunpack.c.l.b16 %v128
    %v449 = vunpack.c.h.b16 %v128
    %v450 = vunpack.c.l.b16 %v129
    %v451 = vunpack.c.h.b16 %v129
    %v452 = vpack.c.b16 %v266, %v260
    %v453 = vpack.c.b16 %v267, %v261
    %v454 = vpack.c.b16 %v268, %v262
    %v455 = vpack.c.b16 %v269, %v263
    %v456 = vpack.c.b16 %v270, %v264
    %v457 = vpack.c.b16 %v271, %v265
    %v458 = vpack.c.b16 %v278, %v272
    %v459 = vpack.c.b16 %v279, %v273
    %v460 = vpack.c.b16 %v280, %v274
    %v461 = vpack.c.b16 %v281, %v275
    %v462 = vpack.c.b16 %v282, %v276
    %v463 = vpack.c.b16 %v283, %v277
    %v464 = vpack.c.b16 %v290, %v284
    %v465 = vpack.c.b16 %v291, %v285
    %v466 = vpack.c.b16 %v292, %v286
    %v467 = vpack.c.b16 %v293, %v287
    %v468 = vpack.c.b16 %v294, %v288
    %v469 = vpack.c.b16 %v295, %v289
    %v470 = vpack.c.b16 %v302, %v296
    %v471 = vpack.c.b16 %v303, %v297
    %v472 = vpack.c.b16 %v304, %v298
    %v473 = vpack.c.b16 %v305, %v299
    %v474 = vpack.c.b16 %v306, %v300
    %v475 = vpack.c.b16 %v307, %v301
    %v476 = vpack.c.b16 %v314, %v308
    %v477 = vpack.c.b16 %v315, %v309
    %v478 = vpack.c.b16 %v316, %v310
    %v479 = vpack.c.b16 %v317, %v311
    %v480 = vpack.c.b16 %v318, %v312
    %v481 = vpack.c.b16 %v319, %v313
    %v482 = vpack.c.b16 %v326, %v320
    %v483 = vpack.c.b16 %v327, %v321
    %v484 = vpack.c.b16 %v328, %v322
    %v485 = vpack.c.b16 %v329, %v323
    %v486 = vpack.c.b16 %v330, %v324
    %v487 = vpack.c.b16 %v331, %v325
    %v488 = vpack.c.b16 %v338, %v332
    %v489 = vpack.c.b16 %v339, %v333
    %v490 = vpack.c.b16 %v340, %v334
    %v491 = vpack.c.b16 %v341, %v335
    %v492 = vpack.c.b16 %v342, %v336
    %v493 = vpack.c.b16 %v343, %v337
    %v494 = vpack.c.b16 %v350, %v344
    %v495 = vpack.c.b16 %v351, %v345
    %v496 = vpack.c.b16 %v352, %v346
    %v497 = vpack.c.b16 %v353, %v347
    %v498 = vpack.c.b16 %v354, %v348
    %v499 = vpack.c.b16 %v355, %v349
    %v500 = vpack.c.b16 %v362, %v356
    %v501 = vpack.c.b16 %v363, %v357
    %v502 = vpack.c.b16 %v364, %v358
    %v503 = vpack.c.b16 %v365, %v359
    %v504 = vpack.c.b16 %v366, %v360
    %v505 = vpack.c.b16 %v367, %v361
    %v506 = vpack.c.b16 %v374, %v368
    %v507 = vpack.c.b16 %v375, %v369
    %v508 = vpack.c.b16 %v376, %v370
    %v509 = vpack.c.b16 %v377, %v371
    %v510 = vpack.c.b16 %v378, %v372
    %v511 = vpack.c.b16 %v379, %v373
    %v512 = vpack.c.b16 %v386, %v380
    %v513 = vpack.c.b16 %v387, %v381
    %v514 = vpack.c.b16 %v388, %v382
    %v515 = vpack.c.b16 %v389, %v383
    %v516 = vpack.c.b16 %v390, %v384
    %v517 = vpack.c.b16 %v391, %v385
    %v518 = vpack.c.b16 %v398, %v392
    %v519 = vpack.c.b16 %v399, %v393
    %v520 = vpack.c.b16 %v400, %v394
    %v521 = vpack.c.b16 %v401, %v395
    %v522 = vpack.c.b16 %v402, %v396
    %v523 = vpack.c.b16 %v403, %v397
    %v524 = vpack.c.b16 %v410, %v404
    %v525 = vpack.c.b16 %v411, %v405
    %v526 = vpack.c.b16 %v412, %v406
    %v527 = vpack.c.b16 %v413, %v407
    %v528 = vpack.c.b16 %v414, %v408
    %v529 = vpack.c.b16 %v415, %v409
    %v530 = vpack.c.b16 %v422, %v416
    %v531 = vpack.c.b16 %v423, %v417
    %v532 = vpack.c.b16 %v424, %v418
    %v533 = vpack.c.b16 %v425, %v419
    %v534 = vpack.c.b16 %v426, %v420
    %v535 = vpack.c.b16 %v427, %v421
    %v536 = vpack.c.b16 %v434, %v428
    %v537 = vpack.c.b16 %v435, %v429
    %v538 = vpack.c.b16 %v436, %v430
    %v539 = vpack.c.b16 %v437, %v431
    %v540 = vpack.c.b16 %v438, %v432
    %v541 = vpack.c.b16 %v439, %v433
    %v542 = vpack.c.b16 %v446, %v440
    %v543 = vpack.c.b16 %v447, %v441
    %v544 = vpack.c.b16 %v448, %v442
    %v545 = vpack.c.b16 %v449, %v443
    %v546 = vpack.c.b16 %v450, %v444
    %v547 = vpack.c.b16 %v451, %v445
    %644 = vmatpush.bf16.msra.mxu0 %v494
    %645 = vmatpush.bf16.msra.mxu0 %v488
    %646 = vmatpush.bf16.msra.mxu0 %v482
    %647 = vmatpush.bf16.msra.mxu0 %v476
    %648 = vmatpush.bf16.msra.mxu0 %v470
    %649 = vmatpush.bf16.msra.mxu0 %v464
    %650 = vmatpush.bf16.msra.mxu0 %v458
    %651 = vmatpush.bf16.msra.mxu0 %v452
    %652 = vmatmul.bf16.gmra.mxu0 %v156
    %v653 = vpop.f32.mrf.mxu0
    %v654 = vadd.f32 %v132, %v653
    %v655 = vpop.f32.mrf.mxu0
    %v656 = vadd.f32 %v132, %v655
    %657 = vmatmul.bf16.gmra.mxu0 %v158
    %v658 = vpop.f32.mrf.mxu0
    %v659 = vadd.f32 %v132, %v658
    %v660 = vpop.f32.mrf.mxu0
    %v661 = vadd.f32 %v132, %v660
    %662 = vdwg.mxu0
    %663 = vmatpush.bf16.msra.mxu0 %v542
    %664 = vmatpush.bf16.msra.mxu0 %v536
    %665 = vmatpush.bf16.msra.mxu0 %v530
    %666 = vmatpush.bf16.msra.mxu0 %v524
    %667 = vmatpush.bf16.msra.mxu0 %v518
    %668 = vmatpush.bf16.msra.mxu0 %v512
    %669 = vmatpush.bf16.msra.mxu0 %v506
    %670 = vmatpush.bf16.msra.mxu0 %v500
    %671 = vmatmul.bf16.gmra.mxu0 %v157
    %v672 = vpop.f32.mrf.mxu0
    %v673 = vadd.f32 %v654, %v672
    %v674 = vpop.f32.mrf.mxu0
    %v675 = vadd.f32 %v656, %v674
    %676 = vmatmul.bf16.gmra.mxu0 %v159
    %v677 = vpop.f32.mrf.mxu0
    %v678 = vadd.f32 %v659, %v677
    %v679 = vpop.f32.mrf.mxu0
    %v680 = vadd.f32 %v661, %v679
    %681 = vdwg.mxu0
    %682 = vmatpush.bf16.msra.mxu0 %v495
    %683 = vmatpush.bf16.msra.mxu0 %v489
    %684 = vmatpush.bf16.msra.mxu0 %v483
    %685 = vmatpush.bf16.msra.mxu0 %v477
    %686 = vmatpush.bf16.msra.mxu0 %v471
    %687 = vmatpush.bf16.msra.mxu0 %v465
    %688 = vmatpush.bf16.msra.mxu0 %v459
    %689 = vmatpush.bf16.msra.mxu0 %v453
    %690 = vmatmul.bf16.gmra.mxu0 %v156
    %v691 = vpop.f32.mrf.mxu0
    %v692 = vadd.f32 %v133, %v691
    %v693 = vpop.f32.mrf.mxu0
    %v694 = vadd.f32 %v133, %v693
    %695 = vmatmul.bf16.gmra.mxu0 %v158
    %v696 = vpop.f32.mrf.mxu0
    %v697 = vadd.f32 %v133, %v696
    %v698 = vpop.f32.mrf.mxu0
    %v699 = vadd.f32 %v133, %v698
    %700 = vdwg.mxu0
    %701 = vmatpush.bf16.msra.mxu0 %v543
    %702 = vmatpush.bf16.msra.mxu0 %v537
    %703 = vmatpush.bf16.msra.mxu0 %v531
    %704 = vmatpush.bf16.msra.mxu0 %v525
    %705 = vmatpush.bf16.msra.mxu0 %v519
    %706 = vmatpush.bf16.msra.mxu0 %v513
    %707 = vmatpush.bf16.msra.mxu0 %v507
    %708 = vmatpush.bf16.msra.mxu0 %v501
    %709 = vmatmul.bf16.gmra.mxu0 %v157
    %v710 = vpop.f32.mrf.mxu0
    %v711 = vadd.f32 %v692, %v710
    %v712 = vpop.f32.mrf.mxu0
    %v713 = vadd.f32 %v694, %v712
    %714 = vmatmul.bf16.gmra.mxu0 %v159
    %v715 = vpop.f32.mrf.mxu0
    %v716 = vadd.f32 %v697, %v715
    %v717 = vpop.f32.mrf.mxu0
    %v718 = vadd.f32 %v699, %v717
    %719 = vdwg.mxu0
    %720 = vmatpush.bf16.msra.mxu0 %v496
    %721 = vmatpush.bf16.msra.mxu0 %v490
    %722 = vmatpush.bf16.msra.mxu0 %v484
    %723 = vmatpush.bf16.msra.mxu0 %v478
    %724 = vmatpush.bf16.msra.mxu0 %v472
    %725 = vmatpush.bf16.msra.mxu0 %v466
    %726 = vmatpush.bf16.msra.mxu0 %v460
    %727 = vmatpush.bf16.msra.mxu0 %v454
    %728 = vmatmul.bf16.gmra.mxu0 %v156
    %v729 = vpop.f32.mrf.mxu0
    %v730 = vadd.f32 %v134, %v729
    %v731 = vpop.f32.mrf.mxu0
    %v732 = vadd.f32 %v134, %v731
    %733 = vmatmul.bf16.gmra.mxu0 %v158
    %v734 = vpop.f32.mrf.mxu0
    %v735 = vadd.f32 %v134, %v734
    %v736 = vpop.f32.mrf.mxu0
    %v737 = vadd.f32 %v134, %v736
    %738 = vdwg.mxu0
    %739 = vmatpush.bf16.msra.mxu0 %v544
    %740 = vmatpush.bf16.msra.mxu0 %v538
    %741 = vmatpush.bf16.msra.mxu0 %v532
    %742 = vmatpush.bf16.msra.mxu0 %v526
    %743 = vmatpush.bf16.msra.mxu0 %v520
    %744 = vmatpush.bf16.msra.mxu0 %v514
    %745 = vmatpush.bf16.msra.mxu0 %v508
    %746 = vmatpush.bf16.msra.mxu0 %v502
    %747 = vmatmul.bf16.gmra.mxu0 %v157
    %v748 = vpop.f32.mrf.mxu0
    %v749 = vadd.f32 %v730, %v748
    %v750 = vpop.f32.mrf.mxu0
    %v751 = vadd.f32 %v732, %v750
    %752 = vmatmul.bf16.gmra.mxu0 %v159
    %v753 = vpop.f32.mrf.mxu0
    %v754 = vadd.f32 %v735, %v753
    %v755 = vpop.f32.mrf.mxu0
    %v756 = vadd.f32 %v737, %v755
    %757 = vdwg.mxu0
    %758 = vmatpush.bf16.msra.mxu0 %v497
    %759 = vmatpush.bf16.msra.mxu0 %v491
    %760 = vmatpush.bf16.msra.mxu0 %v485
    %761 = vmatpush.bf16.msra.mxu0 %v479
    %762 = vmatpush.bf16.msra.mxu0 %v473
    %763 = vmatpush.bf16.msra.mxu0 %v467
    %764 = vmatpush.bf16.msra.mxu0 %v461
    %765 = vmatpush.bf16.msra.mxu0 %v455
    %766 = vmatmul.bf16.gmra.mxu0 %v156
    %v767 = vpop.f32.mrf.mxu0
    %v768 = vadd.f32 %v135, %v767
    %v769 = vpop.f32.mrf.mxu0
    %v770 = vadd.f32 %v135, %v769
    %771 = vmatmul.bf16.gmra.mxu0 %v158
    %v772 = vpop.f32.mrf.mxu0
    %v773 = vadd.f32 %v135, %v772
    %v774 = vpop.f32.mrf.mxu0
    %v775 = vadd.f32 %v135, %v774
    %776 = vdwg.mxu0
    %777 = vmatpush.bf16.msra.mxu0 %v545
    %778 = vmatpush.bf16.msra.mxu0 %v539
    %779 = vmatpush.bf16.msra.mxu0 %v533
    %780 = vmatpush.bf16.msra.mxu0 %v527
    %781 = vmatpush.bf16.msra.mxu0 %v521
    %782 = vmatpush.bf16.msra.mxu0 %v515
    %783 = vmatpush.bf16.msra.mxu0 %v509
    %784 = vmatpush.bf16.msra.mxu0 %v503
    %785 = vmatmul.bf16.gmra.mxu0 %v157
    %v786 = vpop.f32.mrf.mxu0
    %v787 = vadd.f32 %v768, %v786
    %v788 = vpop.f32.mrf.mxu0
    %v789 = vadd.f32 %v770, %v788
    %790 = vmatmul.bf16.gmra.mxu0 %v159
    %v791 = vpop.f32.mrf.mxu0
    %v792 = vadd.f32 %v773, %v791
    %v793 = vpop.f32.mrf.mxu0
    %v794 = vadd.f32 %v775, %v793
    %795 = vdwg.mxu0
    %796 = vmatpush.bf16.msra.mxu0 %v498
    %797 = vmatpush.bf16.msra.mxu0 %v492
    %798 = vmatpush.bf16.msra.mxu0 %v486
    %799 = vmatpush.bf16.msra.mxu0 %v480
    %800 = vmatpush.bf16.msra.mxu0 %v474
    %801 = vmatpush.bf16.msra.mxu0 %v468
    %802 = vmatpush.bf16.msra.mxu0 %v462
    %803 = vmatpush.bf16.msra.mxu0 %v456
    %804 = vmatmul.bf16.gmra.mxu0 %v156
    %v805 = vpop.f32.mrf.mxu0
    %v806 = vadd.f32 %v136, %v805
    %v807 = vpop.f32.mrf.mxu0
    %v808 = vadd.f32 %v136, %v807
    %809 = vmatmul.bf16.gmra.mxu0 %v158
    %v810 = vpop.f32.mrf.mxu0
    %v811 = vadd.f32 %v136, %v810
    %v812 = vpop.f32.mrf.mxu0
    %v813 = vadd.f32 %v136, %v812
    %814 = vdwg.mxu0
    %815 = vmatpush.bf16.msra.mxu0 %v546
    %816 = vmatpush.bf16.msra.mxu0 %v540
    %817 = vmatpush.bf16.msra.mxu0 %v534
    %818 = vmatpush.bf16.msra.mxu0 %v528
    %819 = vmatpush.bf16.msra.mxu0 %v522
    %820 = vmatpush.bf16.msra.mxu0 %v516
    %821 = vmatpush.bf16.msra.mxu0 %v510
    %822 = vmatpush.bf16.msra.mxu0 %v504
    %823 = vmatmul.bf16.gmra.mxu0 %v157
    %v824 = vpop.f32.mrf.mxu0
    %v825 = vadd.f32 %v806, %v824
    %v826 = vpop.f32.mrf.mxu0
    %v827 = vadd.f32 %v808, %v826
    %828 = vmatmul.bf16.gmra.mxu0 %v159
    %v829 = vpop.f32.mrf.mxu0
    %v830 = vadd.f32 %v811, %v829
    %v831 = vpop.f32.mrf.mxu0
    %v832 = vadd.f32 %v813, %v831
    %833 = vdwg.mxu0
    %834 = vmatpush.bf16.msra.mxu0 %v499
    %835 = vmatpush.bf16.msra.mxu0 %v493
    %836 = vmatpush.bf16.msra.mxu0 %v487
    %837 = vmatpush.bf16.msra.mxu0 %v481
    %838 = vmatpush.bf16.msra.mxu0 %v475
    %839 = vmatpush.bf16.msra.mxu0 %v469
    %840 = vmatpush.bf16.msra.mxu0 %v463
    %841 = vmatpush.bf16.msra.mxu0 %v457
    %842 = vmatmul.bf16.gmra.mxu0 %v156
    %v843 = vpop.f32.mrf.mxu0
    %v844 = vadd.f32 %v137, %v843
    %v845 = vpop.f32.mrf.mxu0
    %v846 = vadd.f32 %v137, %v845
    %847 = vmatmul.bf16.gmra.mxu0 %v158
    %v848 = vpop.f32.mrf.mxu0
    %v849 = vadd.f32 %v137, %v848
    %v850 = vpop.f32.mrf.mxu0
    %v851 = vadd.f32 %v137, %v850
    %852 = vdwg.mxu0
    %853 = vmatpush.bf16.msra.mxu0 %v547
    %854 = vmatpush.bf16.msra.mxu0 %v541
    %855 = vmatpush.bf16.msra.mxu0 %v535
    %856 = vmatpush.bf16.msra.mxu0 %v529
    %857 = vmatpush.bf16.msra.mxu0 %v523
    %858 = vmatpush.bf16.msra.mxu0 %v517
    %859 = vmatpush.bf16.msra.mxu0 %v511
    %860 = vmatpush.bf16.msra.mxu0 %v505
    %861 = vmatmul.bf16.gmra.mxu0 %v157
    %v862 = vpop.f32.mrf.mxu0
    %v863 = vadd.f32 %v844, %v862
    %v864 = vpop.f32.mrf.mxu0
    %v865 = vadd.f32 %v846, %v864
    %866 = vmatmul.bf16.gmra.mxu0 %v159
    %v867 = vpop.f32.mrf.mxu0
    %v868 = vadd.f32 %v849, %v867
    %v869 = vpop.f32.mrf.mxu0
    %v870 = vadd.f32 %v851, %v869
    %871 = vdwg.mxu0
    %v872 = vpack.c.bf16 %v711, %v673
    %v873 = vpack.c.bf16 %v787, %v749
    %v874 = vpack.c.bf16 %v863, %v825
    %v875 = vpack.c.bf16 %v713, %v675
    %v876 = vpack.c.bf16 %v789, %v751
    %v877 = vpack.c.bf16 %v865, %v827
    %v878 = vpack.c.bf16 %v716, %v678
    %v879 = vpack.c.bf16 %v792, %v754
    %v880 = vpack.c.bf16 %v868, %v830
    %v881 = vpack.c.bf16 %v718, %v680
    %v882 = vpack.c.bf16 %v794, %v756
    %v883 = vpack.c.bf16 %v870, %v832
    %884 = vst [vmem:[%s3] sm:$0xff] %v872
    %885 = vst [vmem:[%s3 + $0x8] sm:$0xff] %v873
    %886 = vst [vmem:[%s3 + $0x10] sm:$0xff] %v874
    %887 = vst [vmem:[%s3 + $0x18] sm:$0xff] %v875
    %888 = vst [vmem:[%s3 + $0x20] sm:$0xff] %v876
    %889 = vst [vmem:[%s3 + $0x28] sm:$0xff] %v877
    %890 = vst [vmem:[%s3 + $0x30] sm:$0xff] %v878
    %891 = vst [vmem:[%s3 + $0x38] sm:$0xff] %v879
    %892 = vst [vmem:[%s3 + $0x40] sm:$0xff] %v880
    %893 = vst [vmem:[%s3 + $0x48] sm:$0xff] %v881
    %894 = vst [vmem:[%s3 + $0x50] sm:$0xff] %v882
    %895 = vst [vmem:[%s3 + $0x58] sm:$0xff] %v883
    // Predicated region
    $region18: #{bert_mlm_forward.19} parent=1 // pred_check
      _
    $region19: #{bert_mlm_forward.19} parent=1 // pred_check_branch
      %897 = sbr.rel (0) target = $region21
    $region20: #{bert_mlm_forward.19} parent=1 // pred_region
      _
    $region21: #{bert_mlm_forward.19} parent=1 // pred_fallthru
      _
    // Predicated region
    $region22: #{bert_mlm_forward.19} parent=1 // pred_check
      _
    $region23: #{bert_mlm_forward.19} parent=1 // pred_check_branch
      %899 = sbr.rel (0) target = $region25
    $region24: #{bert_mlm_forward.19} parent=1 // pred_region
      _
    $region25: #{bert_mlm_forward.19} parent=1 // pred_fallthru
      _
    %900 = vsyncpa [#allocation3], 1

// kernel: bert_mlm_forward.22
$region0: #{bert_mlm_forward.22}
  #allocation0 [shape = 'u32[]', space=smem, size = 0x4, offset = 0x4, fixed_abs, tag = 'smem constant byte address 0x4 - core index']
  #allocation1 [shape = 'u32[72,128]{1,0:T(1,128)}', space=vmem, size = 0x9000, scoped, tag = 'internal scratch']
  %s0 = inlined_call_operand.vmem [shape: bf16[32,256], index: 0, kind: input, shape index: {}]
  %s1 = inlined_call_operand.vmem [shape: bf16[32,256], index: 1, kind: input, shape index: {}]
  %s2 = inlined_call_operand.vmem [shape: f32[1,256], index: 2, kind: input, shape index: {}]
  %s3 = inlined_call_operand.vmem [shape: f32[1,256], index: 3, kind: input, shape index: {}]
  %s4 = inlined_call_operand.vmem [shape: bf16[32,256], index: 4, kind: output, shape index: {}]
  %s5 = sld [smem:[#allocation0]]
  $region26: #{bert_mlm_forward.22} parent=0
    _
  %s7 = ssub.s32 1, %s5
  %s8 = scalar_select 0, %s7, %s5
  // Predicated region
  $region2: #{bert_mlm_forward.22} parent=0 // pred_check
    _
  $region3: #{bert_mlm_forward.22} parent=0 // pred_check_branch
    %10 = sbr.rel (0) target = $region5
  $region4: #{bert_mlm_forward.22} parent=0 // pred_region
    _
  $region5: #{bert_mlm_forward.22} parent=0 // pred_fallthru
    _
  // Predicated region
  $region6: #{bert_mlm_forward.22} parent=0 // pred_check
    _
  $region7: #{bert_mlm_forward.22} parent=0 // pred_check_branch
    %12 = sbr.rel (0) target = $region9
  $region8: #{bert_mlm_forward.22} parent=0 // pred_region
    _
  $region9: #{bert_mlm_forward.22} parent=0 // pred_fallthru
    _
  // Predicated region
  $region10: #{bert_mlm_forward.22} parent=0 // pred_check
    _
  $region11: #{bert_mlm_forward.22} parent=0 // pred_check_branch
    %14 = sbr.rel (0) target = $region13
  $region12: #{bert_mlm_forward.22} parent=0 // pred_region
    _
  $region13: #{bert_mlm_forward.22} parent=0 // pred_fallthru
    _
  // Predicated region
  $region14: #{bert_mlm_forward.22} parent=0 // pred_check
    _
  $region15: #{bert_mlm_forward.22} parent=0 // pred_check_branch
    %16 = sbr.rel (0) target = $region17
  $region16: #{bert_mlm_forward.22} parent=0 // pred_region
    _
  $region17: #{bert_mlm_forward.22} parent=0 // pred_fallthru
    _
  %v17 = vld [vmem:[%s0] sm:$0xff]
  %v18 = vld [vmem:[%s0 + $0x8] sm:$0xff]
  %v19 = vld [vmem:[%s0 + $0x10] sm:$0xff]
  %v20 = vld [vmem:[%s0 + $0x18] sm:$0xff]
  %v21 = vunpack.c.l.bf16 %v17
  %v22 = vunpack.c.h.bf16 %v17
  %v23 = vunpack.c.l.bf16 %v18
  %v24 = vunpack.c.h.bf16 %v18
  %v25 = vunpack.c.l.bf16 %v19
  %v26 = vunpack.c.h.bf16 %v19
  %v27 = vunpack.c.l.bf16 %v20
  %v28 = vunpack.c.h.bf16 %v20
  %v29 = vld [vmem:[%s1] sm:$0xff]
  %v30 = vld [vmem:[%s1 + $0x8] sm:$0xff]
  %v31 = vld [vmem:[%s1 + $0x10] sm:$0xff]
  %v32 = vld [vmem:[%s1 + $0x18] sm:$0xff]
  %v33 = vunpack.c.l.bf16 %v29
  %v34 = vunpack.c.h.bf16 %v29
  %v35 = vunpack.c.l.bf16 %v30
  %v36 = vunpack.c.h.bf16 %v30
  %v37 = vunpack.c.l.bf16 %v31
  %v38 = vunpack.c.h.bf16 %v31
  %v39 = vunpack.c.l.bf16 %v32
  %v40 = vunpack.c.h.bf16 %v32
  %v41 = vadd.f32 %v21, %v33
  %v42 = vadd.f32 %v22, %v34
  %v43 = vadd.f32 %v23, %v35
  %v44 = vadd.f32 %v24, %v36
  %v45 = vadd.f32 %v25, %v37
  %v46 = vadd.f32 %v26, %v38
  %v47 = vadd.f32 %v27, %v39
  %v48 = vadd.f32 %v28, %v40
  %v49 = vadd.f32 %v41, %v42
  %50 = vadd.xlane.f32.xlu0 %v49
  %v51 = vpop.xlane.xlu0 %50
  %v52 = vadd.f32 %v43, %v44
  %53 = vadd.xlane.f32.xlu0 %v52
  %v54 = vpop.xlane.xlu0 %53
  %v55 = vadd.f32 %v45, %v46
  %56 = vadd.xlane.f32.xlu0 %v55
  %v57 = vpop.xlane.xlu0 %56
  %v58 = vadd.f32 %v47, %v48
  %59 = vadd.xlane.f32.xlu0 %v58
  %v60 = vpop.xlane.xlu0 %59
  %v61 = vrcp.pop 256.0
  %v62 = vmul.f32 256.0, %v61
  %v63 = vsub.f32 1.0, %v62
  %v64 = vmul.f32 %v61, %v63
  %v65 = vadd.f32 %v61, %v64
  %vm66 = vweird.f32 %v61
  %v67 = vsel %vm66, %v61, %v65
  %v68 = vmul.f32 %v51, %v67
  %v69 = vmul.f32 %v54, %v67
  %v70 = vmul.f32 %v57, %v67
  %v71 = vmul.f32 %v60, %v67
  %v72 = vsub.f32 %v41, %v68
  %v73 = vsub.f32 %v42, %v68
  %v74 = vsub.f32 %v43, %v69
  %v75 = vsub.f32 %v44, %v69
  %v76 = vsub.f32 %v45, %v70
  %v77 = vsub.f32 %v46, %v70
  %v78 = vsub.f32 %v47, %v71
  %v79 = vsub.f32 %v48, %v71
  %v80 = vmul.f32 %v72, %v72
  %v81 = vmul.f32 %v73, %v73
  %v82 = vmul.f32 %v74, %v74
  %v83 = vmul.f32 %v75, %v75
  %v84 = vmul.f32 %v76, %v76
  %v85 = vmul.f32 %v77, %v77
  %v86 = vmul.f32 %v78, %v78
  %v87 = vmul.f32 %v79, %v79
  %v88 = vadd.f32 %v80, %v81
  %89 = vadd.xlane.f32.xlu0 %v88
  %v90 = vpop.xlane.xlu0 %89
  %v91 = vadd.f32 %v82, %v83
  %92 = vadd.xlane.f32.xlu0 %v91
  %v93 = vpop.xlane.xlu0 %92
  %v94 = vadd.f32 %v84, %v85
  %95 = vadd.xlane.f32.xlu0 %v94
  %v96 = vpop.xlane.xlu0 %95
  %v97 = vadd.f32 %v86, %v87
  %98 = vadd.xlane.f32.xlu0 %v97
  %v99 = vpop.xlane.xlu0 %98
  %v100 = vmul.f32 %v90, %v67
  %v101 = vmul.f32 %v93, %v67
  %v102 = vmul.f32 %v96, %v67
  %v103 = vmul.f32 %v99, %v67
  %v104 = vadd.f32 %v100, 1e-12
  %v105 = vadd.f32 %v101, 1e-12
  %v106 = vadd.f32 %v102, 1e-12
  %v107 = vadd.f32 %v103, 1e-12
  %v108 = vrsqrt.pop %v104
  %v109 = vmul.f32 %v108, %v104
  %v110 = vmul.f32 %v109, %v108
  %v111 = vmul.f32 0.5, %v110
  %v112 = vsub.f32 1.5, %v111
  %v113 = vmul.f32 %v108, %v112
  %vm114 = vweird.f32 %v104
  %vm115 = vweird.f32 %v108
  %vm116 = vmor %vm114, %vm115
  %v117 = vsel %vm116, %v108, %v113
  %v118 = vrsqrt.pop %v105
  %v119 = vmul.f32 %v118, %v105
  %v120 = vmul.f32 %v119, %v118
  %v121 = vmul.f32 0.5, %v120
  %v122 = vsub.f32 1.5, %v121
  %v123 = vmul.f32 %v118, %v122
  %vm124 = vweird.f32 %v105
  %vm125 = vweird.f32 %v118
  %vm126 = vmor %vm124, %vm125
  %v127 = vsel %vm126, %v118, %v123
  %v128 = vrsqrt.pop %v106
  %v129 = vmul.f32 %v128, %v106
  %v130 = vmul.f32 %v129, %v128
  %v131 = vmul.f32 0.5, %v130
  %v132 = vsub.f32 1.5, %v131
  %v133 = vmul.f32 %v128, %v132
  %vm134 = vweird.f32 %v106
  %vm135 = vweird.f32 %v128
  %vm136 = vmor %vm134, %vm135
  %v137 = vsel %vm136, %v128, %v133
  %v138 = vrsqrt.pop %v107
  %v139 = vmul.f32 %v138, %v107
  %v140 = vmul.f32 %v139, %v138
  %v141 = vmul.f32 0.5, %v140
  %v142 = vsub.f32 1.5, %v141
  %v143 = vmul.f32 %v138, %v142
  %vm144 = vweird.f32 %v107
  %vm145 = vweird.f32 %v138
  %vm146 = vmor %vm144, %vm145
  %v147 = vsel %vm146, %v138, %v143
  %v148 = vmul.f32 %v72, %v117
  %v149 = vmul.f32 %v73, %v117
  %v150 = vmul.f32 %v74, %v127
  %v151 = vmul.f32 %v75, %v127
  %v152 = vmul.f32 %v76, %v137
  %v153 = vmul.f32 %v77, %v137
  %v154 = vmul.f32 %v78, %v147
  %v155 = vmul.f32 %v79, %v147
  %v156 = vld [vmem:[%s2] sm:$0x3]
  %v158 = vperm.slane %v156, 0
  %v159 = vperm.slane %v156, 1
  %v162 = vmul.f32 %v148, %v158
  %v163 = vmul.f32 %v149, %v159
  %v164 = vmul.f32 %v150, %v158
  %v165 = vmul.f32 %v151, %v159
  %v166 = vmul.f32 %v152, %v158
  %v167 = vmul.f32 %v153, %v159
  %v168 = vmul.f32 %v154, %v158
  %v169 = vmul.f32 %v155, %v159
  %v170 = vld [vmem:[%s3] sm:$0x3]
  %v172 = vperm.slane %v170, 0
  %v173 = vperm.slane %v170, 1
  %v176 = vadd.f32 %v162, %v172
  %v177 = vadd.f32 %v163, %v173
  %v178 = vadd.f32 %v164, %v172
  %v179 = vadd.f32 %v165, %v173
  %v180 = vadd.f32 %v166, %v172
  %v181 = vadd.f32 %v167, %v173
  %v182 = vadd.f32 %v168, %v172
  %v183 = vadd.f32 %v169, %v173
  %v184 = vpack.c.bf16 %v177, %v176
  %v185 = vpack.c.bf16 %v179, %v178
  %v186 = vpack.c.bf16 %v181, %v180
  %v187 = vpack.c.bf16 %v183, %v182
  %188 = vst [vmem:[%s4] sm:$0xff] %v184
  %189 = vst [vmem:[%s4 + $0x8] sm:$0xff] %v185
  %190 = vst [vmem:[%s4 + $0x10] sm:$0xff] %v186
  %191 = vst [vmem:[%s4 + $0x18] sm:$0xff] %v187
  // Predicated region
  $region18: #{bert_mlm_forward.22} parent=0 // pred_check
    _
  $region19: #{bert_mlm_forward.22} parent=0 // pred_check_branch
    %193 = sbr.rel (0) target = $region21
  $region20: #{bert_mlm_forward.22} parent=0 // pred_region
    _
  $region21: #{bert_mlm_forward.22} parent=0 // pred_fallthru
    _
  // Predicated region
  $region22: #{bert_mlm_forward.22} parent=0 // pred_check
    _
  $region23: #{bert_mlm_forward.22} parent=0 // pred_check_branch
    %195 = sbr.rel (0) target = $region25
  $region24: #{bert_mlm_forward.22} parent=0 // pred_region
    _
  $region25: #{bert_mlm_forward.22} parent=0 // pred_fallthru
    _

// kernel: bert_mlm_forward.23
$region0: #{bert_mlm_forward.23}
  #allocation0 [shape = 'u32[]', space=smem, size = 0x4, offset = 0x4, fixed_abs, tag = 'smem constant byte address 0x4 - core index']
  #allocation1 [shape = 'u32[72,128]{1,0:T(1,128)}', space=vmem, size = 0x9000, scoped, tag = 'internal scratch']
  %s0 = inlined_call_operand.vmem [shape: bf16[32,256], index: 0, kind: input, shape index: {}]
  %s1 = inlined_call_operand.vmem [shape: bf16[256,512], index: 1, kind: input, shape index: {}]
  %s2 = inlined_call_operand.vmem [shape: f32[1,512], index: 2, kind: input, shape index: {}]
  %s3 = inlined_call_operand.vmem [shape: bf16[32,512], index: 3, kind: output, shape index: {}]
  %s4 = sld [smem:[#allocation0]]
  $region22: #{bert_mlm_forward.23} parent=0
    _
  %s6 = ssub.s32 1, %s4
  %s7 = scalar_select 0, %s6, %s4
  // Predicated region
  $region2: #{bert_mlm_forward.23} parent=0 // pred_check
    _
  $region3: #{bert_mlm_forward.23} parent=0 // pred_check_branch
    %9 = sbr.rel (0) target = $region5
  $region4: #{bert_mlm_forward.23} parent=0 // pred_region
    _
  $region5: #{bert_mlm_forward.23} parent=0 // pred_fallthru
    _
  // Predicated region
  $region6: #{bert_mlm_forward.23} parent=0 // pred_check
    _
  $region7: #{bert_mlm_forward.23} parent=0 // pred_check_branch
    %11 = sbr.rel (0) target = $region9
  $region8: #{bert_mlm_forward.23} parent=0 // pred_region
    _
  $region9: #{bert_mlm_forward.23} parent=0 // pred_fallthru
    _
  // Predicated region
  $region10: #{bert_mlm_forward.23} parent=0 // pred_check
    _
  $region11: #{bert_mlm_forward.23} parent=0 // pred_check_branch
    %13 = sbr.rel (0) target = $region13
  $region12: #{bert_mlm_forward.23} parent=0 // pred_region
    _
  $region13: #{bert_mlm_forward.23} parent=0 // pred_fallthru
    _
  %v14 = vld [vmem:[%s0] sm:$0xff]
  %v15 = vld [vmem:[%s0 + $0x8] sm:$0xff]
  %v16 = vld [vmem:[%s0 + $0x10] sm:$0xff]
  %v17 = vld [vmem:[%s0 + $0x18] sm:$0xff]
  %v18 = vld [vmem:[%s1] sm:$0xff]
  %v19 = vld [vmem:[%s1 + $0x8] sm:$0xff]
  %v20 = vld [vmem:[%s1 + $0x10] sm:$0xff]
  %v21 = vld [vmem:[%s1 + $0x18] sm:$0xff]
  %v22 = vld [vmem:[%s1 + $0x20] sm:$0xff]
  %v23 = vld [vmem:[%s1 + $0x28] sm:$0xff]
  %v24 = vld [vmem:[%s1 + $0x30] sm:$0xff]
  %v25 = vld [vmem:[%s1 + $0x38] sm:$0xff]
  %v26 = vld [vmem:[%s1 + $0x40] sm:$0xff]
  %v27 = vld [vmem:[%s1 + $0x48] sm:$0xff]
  %v28 = vld [vmem:[%s1 + $0x50] sm:$0xff]
  %v29 = vld [vmem:[%s1 + $0x58] sm:$0xff]
  %v30 = vld [vmem:[%s1 + $0x60] sm:$0xff]
  %v31 = vld [vmem:[%s1 + $0x68] sm:$0xff]
  %v32 = vld [vmem:[%s1 + $0x70] sm:$0xff]
  %v33 = vld [vmem:[%s1 + $0x78] sm:$0xff]
  %v34 = vld [vmem:[%s1 + $0x80] sm:$0xff]
  %v35 = vld [vmem:[%s1 + $0x88] sm:$0xff]
  %v36 = vld [vmem:[%s1 + $0x90] sm:$0xff]
  %v37 = vld [vmem:[%s1 + $0x98] sm:$0xff]
  %v38 = vld [vmem:[%s1 + $0xa0] sm:$0xff]
  %v39 = vld [vmem:[%s1 + $0xa8] sm:$0xff]
  %v40 = vld [vmem:[%s1 + $0xb0] sm:$0xff]
  %v41 = vld [vmem:[%s1 + $0xb8] sm:$0xff]
  %v42 = vld [vmem:[%s1 + $0xc0] sm:$0xff]
  %v43 = vld [vmem:[%s1 + $0xc8] sm:$0xff]
  %v44 = vld [vmem:[%s1 + $0xd0] sm:$0xff]
  %v45 = vld [vmem:[%s1 + $0xd8] sm:$0xff]
  %v46 = vld [vmem:[%s1 + $0xe0] sm:$0xff]
  %v47 = vld [vmem:[%s1 + $0xe8] sm:$0xff]
  %v48 = vld [vmem:[%s1 + $0xf0] sm:$0xff]
  %v49 = vld [vmem:[%s1 + $0xf8] sm:$0xff]
  %v50 = vld [vmem:[%s1 + $0x100] sm:$0xff]
  %v51 = vld [vmem:[%s1 + $0x108] sm:$0xff]
  %v52 = vld [vmem:[%s1 + $0x110] sm:$0xff]
  %v53 = vld [vmem:[%s1 + $0x118] sm:$0xff]
  %v54 = vld [vmem:[%s1 + $0x120] sm:$0xff]
  %v55 = vld [vmem:[%s1 + $0x128] sm:$0xff]
  %v56 = vld [vmem:[%s1 + $0x130] sm:$0xff]
  %v57 = vld [vmem:[%s1 + $0x138] sm:$0xff]
  %v58 = vld [vmem:[%s1 + $0x140] sm:$0xff]
  %v59 = vld [vmem:[%s1 + $0x148] sm:$0xff]
  %v60 = vld [vmem:[%s1 + $0x150] sm:$0xff]
  %v61 = vld [vmem:[%s1 + $0x158] sm:$0xff]
  %v62 = vld [vmem:[%s1 + $0x160] sm:$0xff]
  %v63 = vld [vmem:[%s1 + $0x168] sm:$0xff]
  %v64 = vld [vmem:[%s1 + $0x170] sm:$0xff]
  %v65 = vld [vmem:[%s1 + $0x178] sm:$0xff]
  %v66 = vld [vmem:[%s1 + $0x180] sm:$0xff]
  %v67 = vld [vmem:[%s1 + $0x188] sm:$0xff]
  %v68 = vld [vmem:[%s1 + $0x190] sm:$0xff]
  %v69 = vld [vmem:[%s1 + $0x198] sm:$0xff]
  %v70 = vld [vmem:[%s1 + $0x1a0] sm:$0xff]
  %v71 = vld [vmem:[%s1 + $0x1a8] sm:$0xff]
  %v72 = vld [vmem:[%s1 + $0x1b0] sm:$0xff]
  %v73 = vld [vmem:[%s1 + $0x1b8] sm:$0xff]
  %v74 = vld [vmem:[%s1 + $0x1c0] sm:$0xff]
  %v75 = vld [vmem:[%s1 + $0x1c8] sm:$0xff]
  %v76 = vld [vmem:[%s1 + $0x1d0] sm:$0xff]
  %v77 = vld [vmem:[%s1 + $0x1d8] sm:$0xff]
  %v78 = vld [vmem:[%s1 + $0x1e0] sm:$0xff]
  %v79 = vld [vmem:[%s1 + $0x1e8] sm:$0xff]
  %v80 = vld [vmem:[%s1 + $0x1f0] sm:$0xff]
  %v81 = vld [vmem:[%s1 + $0x1f8] sm:$0xff]
  %v82 = vld [vmem:[%s2] sm:$0xf]
  %v84 = vperm.slane %v82, 0
  %v85 = vperm.slane %v82, 1
  %v86 = vperm.slane %v82, 2
  %v87 = vperm.slane %v82, 3
  %v96 = vunpack.c.l.b16 %v14
  %v97 = vunpack.c.h.b16 %v14
  %v98 = vunpack.c.l.b16 %v15
  %v99 = vunpack.c.h.b16 %v15
  %v100 = vunpack.c.l.b16 %v16
  %v101 = vunpack.c.h.b16 %v16
  %v102 = vunpack.c.l.b16 %v17
  %v103 = vunpack.c.h.b16 %v17
  %v104 = vpack.c.b16 %v98, %v96
  %v105 = vpack.c.b16 %v99, %v97
  %v106 = vpack.c.b16 %v102, %v100
  %v107 = vpack.c.b16 %v103, %v101
  %v176 = vunpack.c.l.b16 %v18
  %v177 = vunpack.c.h.b16 %v18
  %v178 = vunpack.c.l.b16 %v19
  %v179 = vunpack.c.h.b16 %v19
  %v180 = vunpack.c.l.b16 %v20
  %v181 = vunpack.c.h.b16 %v20
  %v182 = vunpack.c.l.b16 %v21
  %v183 = vunpack.c.h.b16 %v21
  %v184 = vunpack.c.l.b16 %v22
  %v185 = vunpack.c.h.b16 %v22
  %v186 = vunpack.c.l.b16 %v23
  %v187 = vunpack.c.h.b16 %v23
  %v188 = vunpack.c.l.b16 %v24
  %v189 = vunpack.c.h.b16 %v24
  %v190 = vunpack.c.l.b16 %v25
  %v191 = vunpack.c.h.b16 %v25
  %v192 = vunpack.c.l.b16 %v26
  %v193 = vunpack.c.h.b16 %v26
  %v194 = vunpack.c.l.b16 %v27
  %v195 = vunpack.c.h.b16 %v27
  %v196 = vunpack.c.l.b16 %v28
  %v197 = vunpack.c.h.b16 %v28
  %v198 = vunpack.c.l.b16 %v29
  %v199 = vunpack.c.h.b16 %v29
  %v200 = vunpack.c.l.b16 %v30
  %v201 = vunpack.c.h.b16 %v30
  %v202 = vunpack.c.l.b16 %v31
  %v203 = vunpack.c.h.b16 %v31
  %v204 = vunpack.c.l.b16 %v32
  %v205 = vunpack.c.h.b16 %v32
  %v206 = vunpack.c.l.b16 %v33
  %v207 = vunpack.c.h.b16 %v33
  %v208 = vunpack.c.l.b16 %v34
  %v209 = vunpack.c.h.b16 %v34
  %v210 = vunpack.c.l.b16 %v35
  %v211 = vunpack.c.h.b16 %v35
  %v212 = vunpack.c.l.b16 %v36
  %v213 = vunpack.c.h.b16 %v36
  %v214 = vunpack.c.l.b16 %v37
  %v215 = vunpack.c.h.b16 %v37
  %v216 = vunpack.c.l.b16 %v38
  %v217 = vunpack.c.h.b16 %v38
  %v218 = vunpack.c.l.b16 %v39
  %v219 = vunpack.c.h.b16 %v39
  %v220 = vunpack.c.l.b16 %v40
  %v221 = vunpack.c.h.b16 %v40
  %v222 = vunpack.c.l.b16 %v41
  %v223 = vunpack.c.h.b16 %v41
  %v224 = vunpack.c.l.b16 %v42
  %v225 = vunpack.c.h.b16 %v42
  %v226 = vunpack.c.l.b16 %v43
  %v227 = vunpack.c.h.b16 %v43
  %v228 = vunpack.c.l.b16 %v44
  %v229 = vunpack.c.h.b16 %v44
  %v230 = vunpack.c.l.b16 %v45
  %v231 = vunpack.c.h.b16 %v45
  %v232 = vunpack.c.l.b16 %v46
  %v233 = vunpack.c.h.b16 %v46
  %v234 = vunpack.c.l.b16 %v47
  %v235 = vunpack.c.h.b16 %v47
  %v236 = vunpack.c.l.b16 %v48
  %v237 = vunpack.c.h.b16 %v48
  %v238 = vunpack.c.l.b16 %v49
  %v239 = vunpack.c.h.b16 %v49
  %v240 = vunpack.c.l.b16 %v50
  %v241 = vunpack.c.h.b16 %v50
  %v242 = vunpack.c.l.b16 %v51
  %v243 = vunpack.c.h.b16 %v51
  %v244 = vunpack.c.l.b16 %v52
  %v245 = vunpack.c.h.b16 %v52
  %v246 = vunpack.c.l.b16 %v53
  %v247 = vunpack.c.h.b16 %v53
  %v248 = vunpack.c.l.b16 %v54
  %v249 = vunpack.c.h.b16 %v54
  %v250 = vunpack.c.l.b16 %v55
  %v251 = vunpack.c.h.b16 %v55
  %v252 = vunpack.c.l.b16 %v56
  %v253 = vunpack.c.h.b16 %v56
  %v254 = vunpack.c.l.b16 %v57
  %v255 = vunpack.c.h.b16 %v57
  %v256 = vunpack.c.l.b16 %v58
  %v257 = vunpack.c.h.b16 %v58
  %v258 = vunpack.c.l.b16 %v59
  %v259 = vunpack.c.h.b16 %v59
  %v260 = vunpack.c.l.b16 %v60
  %v261 = vunpack.c.h.b16 %v60
  %v262 = vunpack.c.l.b16 %v61
  %v263 = vunpack.c.h.b16 %v61
  %v264 = vunpack.c.l.b16 %v62
  %v265 = vunpack.c.h.b16 %v62
  %v266 = vunpack.c.l.b16 %v63
  %v267 = vunpack.c.h.b16 %v63
  %v268 = vunpack.c.l.b16 %v64
  %v269 = vunpack.c.h.b16 %v64
  %v270 = vunpack.c.l.b16 %v65
  %v271 = vunpack.c.h.b16 %v65
  %v272 = vunpack.c.l.b16 %v66
  %v273 = vunpack.c.h.b16 %v66
  %v274 = vunpack.c.l.b16 %v67
  %v275 = vunpack.c.h.b16 %v67
  %v276 = vunpack.c.l.b16 %v68
  %v277 = vunpack.c.h.b16 %v68
  %v278 = vunpack.c.l.b16 %v69
  %v279 = vunpack.c.h.b16 %v69
  %v280 = vunpack.c.l.b16 %v70
  %v281 = vunpack.c.h.b16 %v70
  %v282 = vunpack.c.l.b16 %v71
  %v283 = vunpack.c.h.b16 %v71
  %v284 = vunpack.c.l.b16 %v72
  %v285 = vunpack.c.h.b16 %v72
  %v286 = vunpack.c.l.b16 %v73
  %v287 = vunpack.c.h.b16 %v73
  %v288 = vunpack.c.l.b16 %v74
  %v289 = vunpack.c.h.b16 %v74
  %v290 = vunpack.c.l.b16 %v75
  %v291 = vunpack.c.h.b16 %v75
  %v292 = vunpack.c.l.b16 %v76
  %v293 = vunpack.c.h.b16 %v76
  %v294 = vunpack.c.l.b16 %v77
  %v295 = vunpack.c.h.b16 %v77
  %v296 = vunpack.c.l.b16 %v78
  %v297 = vunpack.c.h.b16 %v78
  %v298 = vunpack.c.l.b16 %v79
  %v299 = vunpack.c.h.b16 %v79
  %v300 = vunpack.c.l.b16 %v80
  %v301 = vunpack.c.h.b16 %v80
  %v302 = vunpack.c.l.b16 %v81
  %v303 = vunpack.c.h.b16 %v81
  %v304 = vpack.c.b16 %v180, %v176
  %v305 = vpack.c.b16 %v181, %v177
  %v306 = vpack.c.b16 %v182, %v178
  %v307 = vpack.c.b16 %v183, %v179
  %v308 = vpack.c.b16 %v188, %v184
  %v309 = vpack.c.b16 %v189, %v185
  %v310 = vpack.c.b16 %v190, %v186
  %v311 = vpack.c.b16 %v191, %v187
  %v312 = vpack.c.b16 %v196, %v192
  %v313 = vpack.c.b16 %v197, %v193
  %v314 = vpack.c.b16 %v198, %v194
  %v315 = vpack.c.b16 %v199, %v195
  %v316 = vpack.c.b16 %v204, %v200
  %v317 = vpack.c.b16 %v205, %v201
  %v318 = vpack.c.b16 %v206, %v202
  %v319 = vpack.c.b16 %v207, %v203
  %v320 = vpack.c.b16 %v212, %v208
  %v321 = vpack.c.b16 %v213, %v209
  %v322 = vpack.c.b16 %v214, %v210
  %v323 = vpack.c.b16 %v215, %v211
  %v324 = vpack.c.b16 %v220, %v216
  %v325 = vpack.c.b16 %v221, %v217
  %v326 = vpack.c.b16 %v222, %v218
  %v327 = vpack.c.b16 %v223, %v219
  %v328 = vpack.c.b16 %v228, %v224
  %v329 = vpack.c.b16 %v229, %v225
  %v330 = vpack.c.b16 %v230, %v226
  %v331 = vpack.c.b16 %v231, %v227
  %v332 = vpack.c.b16 %v236, %v232
  %v333 = vpack.c.b16 %v237, %v233
  %v334 = vpack.c.b16 %v238, %v234
  %v335 = vpack.c.b16 %v239, %v235
  %v336 = vpack.c.b16 %v244, %v240
  %v337 = vpack.c.b16 %v245, %v241
  %v338 = vpack.c.b16 %v246, %v242
  %v339 = vpack.c.b16 %v247, %v243
  %v340 = vpack.c.b16 %v252, %v248
  %v341 = vpack.c.b16 %v253, %v249
  %v342 = vpack.c.b16 %v254, %v250
  %v343 = vpack.c.b16 %v255, %v251
  %v344 = vpack.c.b16 %v260, %v256
  %v345 = vpack.c.b16 %v261, %v257
  %v346 = vpack.c.b16 %v262, %v258
  %v347 = vpack.c.b16 %v263, %v259
  %v348 = vpack.c.b16 %v268, %v264
  %v349 = vpack.c.b16 %v269, %v265
  %v350 = vpack.c.b16 %v270, %v266
  %v351 = vpack.c.b16 %v271, %v267
  %v352 = vpack.c.b16 %v276, %v272
  %v353 = vpack.c.b16 %v277, %v273
  %v354 = vpack.c.b16 %v278, %v274
  %v355 = vpack.c.b16 %v279, %v275
  %v356 = vpack.c.b16 %v284, %v280
  %v357 = vpack.c.b16 %v285, %v281
  %v358 = vpack.c.b16 %v286, %v282
  %v359 = vpack.c.b16 %v287, %v283
  %v360 = vpack.c.b16 %v292, %v288
  %v361 = vpack.c.b16 %v293, %v289
  %v362 = vpack.c.b16 %v294, %v290
  %v363 = vpack.c.b16 %v295, %v291
  %v364 = vpack.c.b16 %v300, %v296
  %v365 = vpack.c.b16 %v301, %v297
  %v366 = vpack.c.b16 %v302, %v298
  %v367 = vpack.c.b16 %v303, %v299
  %432 = vmatpush.bf16.msra.mxu0 %v332
  %433 = vmatpush.bf16.msra.mxu0 %v328
  %434 = vmatpush.bf16.msra.mxu0 %v324
  %435 = vmatpush.bf16.msra.mxu0 %v320
  %436 = vmatpush.bf16.msra.mxu0 %v316
  %437 = vmatpush.bf16.msra.mxu0 %v312
  %438 = vmatpush.bf16.msra.mxu0 %v308
  %439 = vmatpush.bf16.msra.mxu0 %v304
  %440 = vmatmul.bf16.gmra.mxu0 %v104
  %v441 = vpop.f32.mrf.mxu0
  %v442 = vadd.f32 %v84, %v441
  %v443 = vpop.f32.mrf.mxu0
  %v444 = vadd.f32 %v84, %v443
  %445 = vmatmul.bf16.gmra.mxu0 %v106
  %v446 = vpop.f32.mrf.mxu0
  %v447 = vadd.f32 %v84, %v446
  %v448 = vpop.f32.mrf.mxu0
  %v449 = vadd.f32 %v84, %v448
  %450 = vdwg.mxu0
  %451 = vmatpush.bf16.msra.mxu0 %v364
  %452 = vmatpush.bf16.msra.mxu0 %v360
  %453 = vmatpush.bf16.msra.mxu0 %v356
  %454 = vmatpush.bf16.msra.mxu0 %v352
  %455 = vmatpush.bf16.msra.mxu0 %v348
  %456 = vmatpush.bf16.msra.mxu0 %v344
  %457 = vmatpush.bf16.msra.mxu0 %v340
  %458 = vmatpush.bf16.msra.mxu0 %v336
  %459 = vmatmul.bf16.gmra.mxu0 %v105
  %v460 = vpop.f32.mrf.mxu0
  %v461 = vadd.f32 %v442, %v460
  %v462 = vpop.f32.mrf.mxu0
  %v463 = vadd.f32 %v444, %v462
  %464 = vmatmul.bf16.gmra.mxu0 %v107
  %v465 = vpop.f32.mrf.mxu0
  %v466 = vadd.f32 %v447, %v465
  %v467 = vpop.f32.mrf.mxu0
  %v468 = vadd.f32 %v449, %v467
  %469 = vdwg.mxu0
  %470 = vmatpush.bf16.msra.mxu0 %v333
  %471 = vmatpush.bf16.msra.mxu0 %v329
  %472 = vmatpush.bf16.msra.mxu0 %v325
  %473 = vmatpush.bf16.msra.mxu0 %v321
  %474 = vmatpush.bf16.msra.mxu0 %v317
  %475 = vmatpush.bf16.msra.mxu0 %v313
  %476 = vmatpush.bf16.msra.mxu0 %v309
  %477 = vmatpush.bf16.msra.mxu0 %v305
  %478 = vmatmul.bf16.gmra.mxu0 %v104
  %v479 = vpop.f32.mrf.mxu0
  %v480 = vadd.f32 %v85, %v479
  %v481 = vpop.f32.mrf.mxu0
  %v482 = vadd.f32 %v85, %v481
  %483 = vmatmul.bf16.gmra.mxu0 %v106
  %v484 = vpop.f32.mrf.mxu0
  %v485 = vadd.f32 %v85, %v484
  %v486 = vpop.f32.mrf.mxu0
  %v487 = vadd.f32 %v85, %v486
  %488 = vdwg.mxu0
  %489 = vmatpush.bf16.msra.mxu0 %v365
  %490 = vmatpush.bf16.msra.mxu0 %v361
  %491 = vmatpush.bf16.msra.mxu0 %v357
  %492 = vmatpush.bf16.msra.mxu0 %v353
  %493 = vmatpush.bf16.msra.mxu0 %v349
  %494 = vmatpush.bf16.msra.mxu0 %v345
  %495 = vmatpush.bf16.msra.mxu0 %v341
  %496 = vmatpush.bf16.msra.mxu0 %v337
  %497 = vmatmul.bf16.gmra.mxu0 %v105
  %v498 = vpop.f32.mrf.mxu0
  %v499 = vadd.f32 %v480, %v498
  %v500 = vpop.f32.mrf.mxu0
  %v501 = vadd.f32 %v482, %v500
  %502 = vmatmul.bf16.gmra.mxu0 %v107
  %v503 = vpop.f32.mrf.mxu0
  %v504 = vadd.f32 %v485, %v503
  %v505 = vpop.f32.mrf.mxu0
  %v506 = vadd.f32 %v487, %v505
  %507 = vdwg.mxu0
  %508 = vmatpush.bf16.msra.mxu0 %v334
  %509 = vmatpush.bf16.msra.mxu0 %v330
  %510 = vmatpush.bf16.msra.mxu0 %v326
  %511 = vmatpush.bf16.msra.mxu0 %v322
  %512 = vmatpush.bf16.msra.mxu0 %v318
  %513 = vmatpush.bf16.msra.mxu0 %v314
  %514 = vmatpush.bf16.msra.mxu0 %v310
  %515 = vmatpush.bf16.msra.mxu0 %v306
  %516 = vmatmul.bf16.gmra.mxu0 %v104
  %v517 = vpop.f32.mrf.mxu0
  %v518 = vadd.f32 %v86, %v517
  %v519 = vpop.f32.mrf.mxu0
  %v520 = vadd.f32 %v86, %v519
  %521 = vmatmul.bf16.gmra.mxu0 %v106
  %v522 = vpop.f32.mrf.mxu0
  %v523 = vadd.f32 %v86, %v522
  %v524 = vpop.f32.mrf.mxu0
  %v525 = vadd.f32 %v86, %v524
  %526 = vdwg.mxu0
  %527 = vmatpush.bf16.msra.mxu0 %v366
  %528 = vmatpush.bf16.msra.mxu0 %v362
  %529 = vmatpush.bf16.msra.mxu0 %v358
  %530 = vmatpush.bf16.msra.mxu0 %v354
  %531 = vmatpush.bf16.msra.mxu0 %v350
  %532 = vmatpush.bf16.msra.mxu0 %v346
  %533 = vmatpush.bf16.msra.mxu0 %v342
  %534 = vmatpush.bf16.msra.mxu0 %v338
  %535 = vmatmul.bf16.gmra.mxu0 %v105
  %v536 = vpop.f32.mrf.mxu0
  %v537 = vadd.f32 %v518, %v536
  %v538 = vpop.f32.mrf.mxu0
  %v539 = vadd.f32 %v520, %v538
  %540 = vmatmul.bf16.gmra.mxu0 %v107
  %v541 = vpop.f32.mrf.mxu0
  %v542 = vadd.f32 %v523, %v541
  %v543 = vpop.f32.mrf.mxu0
  %v544 = vadd.f32 %v525, %v543
  %545 = vdwg.mxu0
  %546 = vmatpush.bf16.msra.mxu0 %v335
  %547 = vmatpush.bf16.msra.mxu0 %v331
  %548 = vmatpush.bf16.msra.mxu0 %v327
  %549 = vmatpush.bf16.msra.mxu0 %v323
  %550 = vmatpush.bf16.msra.mxu0 %v319
  %551 = vmatpush.bf16.msra.mxu0 %v315
  %552 = vmatpush.bf16.msra.mxu0 %v311
  %553 = vmatpush.bf16.msra.mxu0 %v307
  %554 = vmatmul.bf16.gmra.mxu0 %v104
  %v555 = vpop.f32.mrf.mxu0
  %v556 = vadd.f32 %v87, %v555
  %v557 = vpop.f32.mrf.mxu0
  %v558 = vadd.f32 %v87, %v557
  %559 = vmatmul.bf16.gmra.mxu0 %v106
  %v560 = vpop.f32.mrf.mxu0
  %v561 = vadd.f32 %v87, %v560
  %v562 = vpop.f32.mrf.mxu0
  %v563 = vadd.f32 %v87, %v562
  %564 = vdwg.mxu0
  %565 = vmatpush.bf16.msra.mxu0 %v367
  %566 = vmatpush.bf16.msra.mxu0 %v363
  %567 = vmatpush.bf16.msra.mxu0 %v359
  %568 = vmatpush.bf16.msra.mxu0 %v355
  %569 = vmatpush.bf16.msra.mxu0 %v351
  %570 = vmatpush.bf16.msra.mxu0 %v347
  %571 = vmatpush.bf16.msra.mxu0 %v343
  %572 = vmatpush.bf16.msra.mxu0 %v339
  %573 = vmatmul.bf16.gmra.mxu0 %v105
  %v574 = vpop.f32.mrf.mxu0
  %v575 = vadd.f32 %v556, %v574
  %v576 = vpop.f32.mrf.mxu0
  %v577 = vadd.f32 %v558, %v576
  %578 = vmatmul.bf16.gmra.mxu0 %v107
  %v579 = vpop.f32.mrf.mxu0
  %v580 = vadd.f32 %v561, %v579
  %v581 = vpop.f32.mrf.mxu0
  %v582 = vadd.f32 %v563, %v581
  %583 = vdwg.mxu0
  %v584 = vmul.f32 %v461, 0.5
  %v585 = vmul.f32 %v499, 0.5
  %v586 = vmul.f32 %v537, 0.5
  %v587 = vmul.f32 %v575, 0.5
  %v588 = vmul.f32 %v463, 0.5
  %v589 = vmul.f32 %v501, 0.5
  %v590 = vmul.f32 %v539, 0.5
  %v591 = vmul.f32 %v577, 0.5
  %v592 = vmul.f32 %v466, 0.5
  %v593 = vmul.f32 %v504, 0.5
  %v594 = vmul.f32 %v542, 0.5
  %v595 = vmul.f32 %v580, 0.5
  %v596 = vmul.f32 %v468, 0.5
  %v597 = vmul.f32 %v506, 0.5
  %v598 = vmul.f32 %v544, 0.5
  %v599 = vmul.f32 %v582, 0.5
  %v600 = vmul.f32 %v461, 0.70710677
  %v601 = vmul.f32 %v499, 0.70710677
  %v602 = vmul.f32 %v537, 0.70710677
  %v603 = vmul.f32 %v575, 0.70710677
  %v604 = vmul.f32 %v463, 0.70710677
  %v605 = vmul.f32 %v501, 0.70710677
  %v606 = vmul.f32 %v539, 0.70710677
  %v607 = vmul.f32 %v577, 0.70710677
  %v608 = vmul.f32 %v466, 0.70710677
  %v609 = vmul.f32 %v504, 0.70710677
  %v610 = vmul.f32 %v542, 0.70710677
  %v611 = vmul.f32 %v580, 0.70710677
  %v612 = vmul.f32 %v468, 0.70710677
  %v613 = vmul.f32 %v506, 0.70710677
  %v614 = vmul.f32 %v544, 0.70710677
  %v615 = vmul.f32 %v582, 0.70710677
  %vm616 = vcmp.ge.f32.partialorder %v600, 0.0
  %vm617 = vcmp.ge.f32.partialorder %v601, 0.0
  %vm618 = vcmp.ge.f32.partialorder %v602, 0.0
  %vm619 = vcmp.ge.f32.partialorder %v603, 0.0
  %vm620 = vcmp.ge.f32.partialorder %v604, 0.0
  %vm621 = vcmp.ge.f32.partialorder %v605, 0.0
  %vm622 = vcmp.ge.f32.partialorder %v606, 0.0
  %vm623 = vcmp.ge.f32.partialorder %v607, 0.0
  %vm624 = vcmp.ge.f32.partialorder %v608, 0.0
  %vm625 = vcmp.ge.f32.partialorder %v609, 0.0
  %vm626 = vcmp.ge.f32.partialorder %v610, 0.0
  %vm627 = vcmp.ge.f32.partialorder %v611, 0.0
  %vm628 = vcmp.ge.f32.partialorder %v612, 0.0
  %vm629 = vcmp.ge.f32.partialorder %v613, 0.0
  %vm630 = vcmp.ge.f32.partialorder %v614, 0.0
  %vm631 = vcmp.ge.f32.partialorder %v615, 0.0
  %v632 = vsel %vm616, 1.0, -1.0
  %v633 = vsel %vm617, 1.0, -1.0
  %v634 = vsel %vm618, 1.0, -1.0
  %v635 = vsel %vm619, 1.0, -1.0
  %v636 = vsel %vm620, 1.0, -1.0
  %v637 = vsel %vm621, 1.0, -1.0
  %v638 = vsel %vm622, 1.0, -1.0
  %v639 = vsel %vm623, 1.0, -1.0
  %v640 = vsel %vm624, 1.0, -1.0
  %v641 = vsel %vm625, 1.0, -1.0
  %v642 = vsel %vm626, 1.0, -1.0
  %v643 = vsel %vm627, 1.0, -1.0
  %v644 = vsel %vm628, 1.0, -1.0
  %v645 = vsel %vm629, 1.0, -1.0
  %v646 = vsel %vm630, 1.0, -1.0
  %v647 = vsel %vm631, 1.0, -1.0
  %v648 = vand.u32 2147483647, %v600
  %v649 = vand.u32 2147483647, %v601
  %v650 = vand.u32 2147483647, %v602
  %v651 = vand.u32 2147483647, %v603
  %v652 = vand.u32 2147483647, %v604
  %v653 = vand.u32 2147483647, %v605
  %v654 = vand.u32 2147483647, %v606
  %v655 = vand.u32 2147483647, %v607
  %v656 = vand.u32 2147483647, %v608
  %v657 = vand.u32 2147483647, %v609
  %v658 = vand.u32 2147483647, %v610
  %v659 = vand.u32 2147483647, %v611
  %v660 = vand.u32 2147483647, %v612
  %v661 = vand.u32 2147483647, %v613
  %v662 = vand.u32 2147483647, %v614
  %v663 = vand.u32 2147483647, %v615
  %v664 = vmul.f32 %v648, 0.3275911
  %v665 = vmul.f32 %v649, 0.3275911
  %v666 = vmul.f32 %v650, 0.3275911
  %v667 = vmul.f32 %v651, 0.3275911
  %v668 = vmul.f32 %v652, 0.3275911
  %v669 = vmul.f32 %v653, 0.3275911
  %v670 = vmul.f32 %v654, 0.3275911
  %v671 = vmul.f32 %v655, 0.3275911
  %v672 = vmul.f32 %v656, 0.3275911
  %v673 = vmul.f32 %v657, 0.3275911
  %v674 = vmul.f32 %v658, 0.3275911
  %v675 = vmul.f32 %v659, 0.3275911
  %v676 = vmul.f32 %v660, 0.3275911
  %v677 = vmul.f32 %v661, 0.3275911
  %v678 = vmul.f32 %v662, 0.3275911
  %v679 = vmul.f32 %v663, 0.3275911
  %v680 = vadd.f32 %v664, 1.0
  %v681 = vadd.f32 %v665, 1.0
  %v682 = vadd.f32 %v666, 1.0
  %v683 = vadd.f32 %v667, 1.0
  %v684 = vadd.f32 %v668, 1.0
  %v685 = vadd.f32 %v669, 1.0
  %v686 = vadd.f32 %v670, 1.0
  %v687 = vadd.f32 %v671, 1.0
  %v688 = vadd.f32 %v672, 1.0
  %v689 = vadd.f32 %v673, 1.0
  %v690 = vadd.f32 %v674, 1.0
  %v691 = vadd.f32 %v675, 1.0
  %v692 = vadd.f32 %v676, 1.0
  %v693 = vadd.f32 %v677, 1.0
  %v694 = vadd.f32 %v678, 1.0
  %v695 = vadd.f32 %v679, 1.0
  %v696 = vrcp.pop %v680
  %v697 = vmul.f32 %v680, %v696
  %v698 = vsub.f32 1.0, %v697
  %v699 = vmul.f32 %v696, %v698
  %v700 = vadd.f32 %v696, %v699
  %vm701 = vweird.f32 %v680
  %vm702 = vweird.f32 %v696
  %vm703 = vmor %vm701, %vm702
  %v704 = vsel %vm703, %v696, %v700
  %v705 = vand.u32 2147483647, %v680
  %vm706 = vcmp.eq.f32.partialorder %v705, 8.507059e+37
  %v707 = vand.u32 %v680, 2147483648
  %v708 = vor.u32 1.1754944e-38, %v707
  %v709 = vsel %vm706, %v708, %v704
  %v710 = vmul.f32 1.0, %v709
  %v711 = vrcp.pop %v681
  %v712 = vmul.f32 %v681, %v711
  %v713 = vsub.f32 1.0, %v712
  %v714 = vmul.f32 %v711, %v713
  %v715 = vadd.f32 %v711, %v714
  %vm716 = vweird.f32 %v681
  %vm717 = vweird.f32 %v711
  %vm718 = vmor %vm716, %vm717
  %v719 = vsel %vm718, %v711, %v715
  %v720 = vand.u32 2147483647, %v681
  %vm721 = vcmp.eq.f32.partialorder %v720, 8.507059e+37
  %v722 = vand.u32 %v681, 2147483648
  %v723 = vor.u32 1.1754944e-38, %v722
  %v724 = vsel %vm721, %v723, %v719
  %v725 = vmul.f32 1.0, %v724
  %v726 = vrcp.pop %v682
  %v727 = vmul.f32 %v682, %v726
  %v728 = vsub.f32 1.0, %v727
  %v729 = vmul.f32 %v726, %v728
  %v730 = vadd.f32 %v726, %v729
  %vm731 = vweird.f32 %v682
  %vm732 = vweird.f32 %v726
  %vm733 = vmor %vm731, %vm732
  %v734 = vsel %vm733, %v726, %v730
  %v735 = vand.u32 2147483647, %v682
  %vm736 = vcmp.eq.f32.partialorder %v735, 8.507059e+37
  %v737 = vand.u32 %v682, 2147483648
  %v738 = vor.u32 1.1754944e-38, %v737
  %v739 = vsel %vm736, %v738, %v734
  %v740 = vmul.f32 1.0, %v739
  %v741 = vrcp.pop %v683
  %v742 = vmul.f32 %v683, %v741
  %v743 = vsub.f32 1.0, %v742
  %v744 = vmul.f32 %v741, %v743
  %v745 = vadd.f32 %v741, %v744
  %vm746 = vweird.f32 %v683
  %vm747 = vweird.f32 %v741
  %vm748 = vmor %vm746, %vm747
  %v749 = vsel %vm748, %v741, %v745
  %v750 = vand.u32 2147483647, %v683
  %vm751 = vcmp.eq.f32.partialorder %v750, 8.507059e+37
  %v752 = vand.u32 %v683, 2147483648
  %v753 = vor.u32 1.1754944e-38, %v752
  %v754 = vsel %vm751, %v753, %v749
  %v755 = vmul.f32 1.0, %v754
  %v756 = vrcp.pop %v684
  %v757 = vmul.f32 %v684, %v756
  %v758 = vsub.f32 1.0, %v757
  %v759 = vmul.f32 %v756, %v758
  %v760 = vadd.f32 %v756, %v759
  %vm761 = vweird.f32 %v684
  %vm762 = vweird.f32 %v756
  %vm763 = vmor %vm761, %vm762
  %v764 = vsel %vm763, %v756, %v760
  %v765 = vand.u32 2147483647, %v684
  %vm766 = vcmp.eq.f32.partialorder %v765, 8.507059e+37
  %v767 = vand.u32 %v684, 2147483648
  %v768 = vor.u32 1.1754944e-38, %v767
  %v769 = vsel %vm766, %v768, %v764
  %v770 = vmul.f32 1.0, %v769
  %v771 = vrcp.pop %v685
  %v772 = vmul.f32 %v685, %v771
  %v773 = vsub.f32 1.0, %v772
  %v774 = vmul.f32 %v771, %v773
  %v775 = vadd.f32 %v771, %v774
  %vm776 = vweird.f32 %v685
  %vm777 = vweird.f32 %v771
  %vm778 = vmor %vm776, %vm777
  %v779 = vsel %vm778, %v771, %v775
  %v780 = vand.u32 2147483647, %v685
  %vm781 = vcmp.eq.f32.partialorder %v780, 8.507059e+37
  %v782 = vand.u32 %v685, 2147483648
  %v783 = vor.u32 1.1754944e-38, %v782
  %v784 = vsel %vm781, %v783, %v779
  %v785 = vmul.f32 1.0, %v784
  %v786 = vrcp.pop %v686
  %v787 = vmul.f32 %v686, %v786
  %v788 = vsub.f32 1.0, %v787
  %v789 = vmul.f32 %v786, %v788
  %v790 = vadd.f32 %v786, %v789
  %vm791 = vweird.f32 %v686
  %vm792 = vweird.f32 %v786
  %vm793 = vmor %vm791, %vm792
  %v794 = vsel %vm793, %v786, %v790
  %v795 = vand.u32 2147483647, %v686
  %vm796 = vcmp.eq.f32.partialorder %v795, 8.507059e+37
  %v797 = vand.u32 %v686, 2147483648
  %v798 = vor.u32 1.1754944e-38, %v797
  %v799 = vsel %vm796, %v798, %v794
  %v800 = vmul.f32 1.0, %v799
  %v801 = vrcp.pop %v687
  %v802 = vmul.f32 %v687, %v801
  %v803 = vsub.f32 1.0, %v802
  %v804 = vmul.f32 %v801, %v803
  %v805 = vadd.f32 %v801, %v804
  %vm806 = vweird.f32 %v687
  %vm807 = vweird.f32 %v801
  %vm808 = vmor %vm806, %vm807
  %v809 = vsel %vm808, %v801, %v805
  %v810 = vand.u32 2147483647, %v687
  %vm811 = vcmp.eq.f32.partialorder %v810, 8.507059e+37
  %v812 = vand.u32 %v687, 2147483648
  %v813 = vor.u32 1.1754944e-38, %v812
  %v814 = vsel %vm811, %v813, %v809
  %v815 = vmul.f32 1.0, %v814
  %v816 = vrcp.pop %v688
  %v817 = vmul.f32 %v688, %v816
  %v818 = vsub.f32 1.0, %v817
  %v819 = vmul.f32 %v816, %v818
  %v820 = vadd.f32 %v816, %v819
  %vm821 = vweird.f32 %v688
  %vm822 = vweird.f32 %v816
  %vm823 = vmor %vm821, %vm822
  %v824 = vsel %vm823, %v816, %v820
  %v825 = vand.u32 2147483647, %v688
  %vm826 = vcmp.eq.f32.partialorder %v825, 8.507059e+37
  %v827 = vand.u32 %v688, 2147483648
  %v828 = vor.u32 1.1754944e-38, %v827
  %v829 = vsel %vm826, %v828, %v824
  %v830 = vmul.f32 1.0, %v829
  %v831 = vrcp.pop %v689
  %v832 = vmul.f32 %v689, %v831
  %v833 = vsub.f32 1.0, %v832
  %v834 = vmul.f32 %v831, %v833
  %v835 = vadd.f32 %v831, %v834
  %vm836 = vweird.f32 %v689
  %vm837 = vweird.f32 %v831
  %vm838 = vmor %vm836, %vm837
  %v839 = vsel %vm838, %v831, %v835
  %v840 = vand.u32 2147483647, %v689
  %vm841 = vcmp.eq.f32.partialorder %v840, 8.507059e+37
  %v842 = vand.u32 %v689, 2147483648
  %v843 = vor.u32 1.1754944e-38, %v842
  %v844 = vsel %vm841, %v843, %v839
  %v845 = vmul.f32 1.0, %v844
  %v846 = vrcp.pop %v690
  %v847 = vmul.f32 %v690, %v846
  %v848 = vsub.f32 1.0, %v847
  %v849 = vmul.f32 %v846, %v848
  %v850 = vadd.f32 %v846, %v849
  %vm851 = vweird.f32 %v690
  %vm852 = vweird.f32 %v846
  %vm853 = vmor %vm851, %vm852
  %v854 = vsel %vm853, %v846, %v850
  %v855 = vand.u32 2147483647, %v690
  %vm856 = vcmp.eq.f32.partialorder %v855, 8.507059e+37
  %v857 = vand.u32 %v690, 2147483648
  %v858 = vor.u32 1.1754944e-38, %v857
  %v859 = vsel %vm856, %v858, %v854
  %v860 = vmul.f32 1.0, %v859
  %v861 = vrcp.pop %v691
  %v862 = vmul.f32 %v691, %v861
  %v863 = vsub.f32 1.0, %v862
  %v864 = vmul.f32 %v861, %v863
  %v865 = vadd.f32 %v861, %v864
  %vm866 = vweird.f32 %v691
  %vm867 = vweird.f32 %v861
  %vm868 = vmor %vm866, %vm867
  %v869 = vsel %vm868, %v861, %v865
  %v870 = vand.u32 2147483647, %v691
  %vm871 = vcmp.eq.f32.partialorder %v870, 8.507059e+37
  %v872 = vand.u32 %v691, 2147483648
  %v873 = vor.u32 1.1754944e-38, %v872
  %v874 = vsel %vm871, %v873, %v869
  %v875 = vmul.f32 1.0, %v874
  %v876 = vrcp.pop %v692
  %v877 = vmul.f32 %v692, %v876
  %v878 = vsub.f32 1.0, %v877
  %v879 = vmul.f32 %v876, %v878
  %v880 = vadd.f32 %v876, %v879
  %vm881 = vweird.f32 %v692
  %vm882 = vweird.f32 %v876
  %vm883 = vmor %vm881, %vm882
  %v884 = vsel %vm883, %v876, %v880
  %v885 = vand.u32 2147483647, %v692
  %vm886 = vcmp.eq.f32.partialorder %v885, 8.507059e+37
  %v887 = vand.u32 %v692, 2147483648
  %v888 = vor.u32 1.1754944e-38, %v887
  %v889 = vsel %vm886, %v888, %v884
  %v890 = vmul.f32 1.0, %v889
  %v891 = vrcp.pop %v693
  %v892 = vmul.f32 %v693, %v891
  %v893 = vsub.f32 1.0, %v892
  %v894 = vmul.f32 %v891, %v893
  %v895 = vadd.f32 %v891, %v894
  %vm896 = vweird.f32 %v693
  %vm897 = vweird.f32 %v891
  %vm898 = vmor %vm896, %vm897
  %v899 = vsel %vm898, %v891, %v895
  %v900 = vand.u32 2147483647, %v693
  %vm901 = vcmp.eq.f32.partialorder %v900, 8.507059e+37
  %v902 = vand.u32 %v693, 2147483648
  %v903 = vor.u32 1.1754944e-38, %v902
  %v904 = vsel %vm901, %v903, %v899
  %v905 = vmul.f32 1.0, %v904
  %v906 = vrcp.pop %v694
  %v907 = vmul.f32 %v694, %v906
  %v908 = vsub.f32 1.0, %v907
  %v909 = vmul.f32 %v906, %v908
  %v910 = vadd.f32 %v906, %v909
  %vm911 = vweird.f32 %v694
  %vm912 = vweird.f32 %v906
  %vm913 = vmor %vm911, %vm912
  %v914 = vsel %vm913, %v906, %v910
  %v915 = vand.u32 2147483647, %v694
  %vm916 = vcmp.eq.f32.partialorder %v915, 8.507059e+37
  %v917 = vand.u32 %v694, 2147483648
  %v918 = vor.u32 1.1754944e-38, %v917
  %v919 = vsel %vm916, %v918, %v914
  %v920 = vmul.f32 1.0, %v919
  %v921 = vrcp.pop %v695
  %v922 = vmul.f32 %v695, %v921
  %v923 = vsub.f32 1.0, %v922
  %v924 = vmul.f32 %v921, %v923
  %v925 = vadd.f32 %v921, %v924
  %vm926 = vweird.f32 %v695
  %vm927 = vweird.f32 %v921
  %vm928 = vmor %vm926, %vm927
  %v929 = vsel %vm928, %v921, %v925
  %v930 = vand.u32 2147483647, %v695
  %vm931 = vcmp.eq.f32.partialorder %v930, 8.507059e+37
  %v932 = vand.u32 %v695, 2147483648
  %v933 = vor.u32 1.1754944e-38, %v932
  %v934 = vsel %vm931, %v933, %v929
  %v935 = vmul.f32 1.0, %v934
  %v936 = vmul.f32 %v710, 1.0614054
  %v937 = vmul.f32 %v725, 1.0614054
  %v938 = vmul.f32 %v740, 1.0614054
  %v939 = vmul.f32 %v755, 1.0614054
  %v940 = vmul.f32 %v770, 1.0614054
  %v941 = vmul.f32 %v785, 1.0614054
  %v942 = vmul.f32 %v800, 1.0614054
  %v943 = vmul.f32 %v815, 1.0614054
  %v944 = vmul.f32 %v830, 1.0614054
  %v945 = vmul.f32 %v845, 1.0614054
  %v946 = vmul.f32 %v860, 1.0614054
  %v947 = vmul.f32 %v875, 1.0614054
  %v948 = vmul.f32 %v890, 1.0614054
  %v949 = vmul.f32 %v905, 1.0614054
  %v950 = vmul.f32 %v920, 1.0614054
  %v951 = vmul.f32 %v935, 1.0614054
  %v952 = vadd.f32 %v936, -1.4531521
  %v953 = vadd.f32 %v937, -1.4531521
  %v954 = vadd.f32 %v938, -1.4531521
  %v955 = vadd.f32 %v939, -1.4531521
  %v956 = vadd.f32 %v940, -1.4531521
  %v957 = vadd.f32 %v941, -1.4531521
  %v958 = vadd.f32 %v942, -1.4531521
  %v959 = vadd.f32 %v943, -1.4531521
  %v960 = vadd.f32 %v944, -1.4531521
  %v961 = vadd.f32 %v945, -1.4531521
  %v962 = vadd.f32 %v946, -1.4531521
  %v963 = vadd.f32 %v947, -1.4531521
  %v964 = vadd.f32 %v948, -1.4531521
  %v965 = vadd.f32 %v949, -1.4531521
  %v966 = vadd.f32 %v950, -1.4531521
  %v967 = vadd.f32 %v951, -1.4531521
  %v968 = vmul.f32 %v952, %v710
  %v969 = vmul.f32 %v953, %v725
  %v970 = vmul.f32 %v954, %v740
  %v971 = vmul.f32 %v955, %v755
  %v972 = vmul.f32 %v956, %v770
  %v973 = vmul.f32 %v957, %v785
  %v974 = vmul.f32 %v958, %v800
  %v975 = vmul.f32 %v959, %v815
  %v976 = vmul.f32 %v960, %v830
  %v977 = vmul.f32 %v961, %v845
  %v978 = vmul.f32 %v962, %v860
  %v979 = vmul.f32 %v963, %v875
  %v980 = vmul.f32 %v964, %v890
  %v981 = vmul.f32 %v965, %v905
  %v982 = vmul.f32 %v966, %v920
  %v983 = vmul.f32 %v967, %v935
  %v984 = vadd.f32 %v968, 1.4214138
  %v985 = vadd.f32 %v969, 1.4214138
  %v986 = vadd.f32 %v970, 1.4214138
  %v987 = vadd.f32 %v971, 1.4214138
  %v988 = vadd.f32 %v972, 1.4214138
  %v989 = vadd.f32 %v973, 1.4214138
  %v990 = vadd.f32 %v974, 1.4214138
  %v991 = vadd.f32 %v975, 1.4214138
  %v992 = vadd.f32 %v976, 1.4214138
  %v993 = vadd.f32 %v977, 1.4214138
  %v994 = vadd.f32 %v978, 1.4214138
  %v995 = vadd.f32 %v979, 1.4214138
  %v996 = vadd.f32 %v980, 1.4214138
  %v997 = vadd.f32 %v981, 1.4214138
  %v998 = vadd.f32 %v982, 1.4214138
  %v999 = vadd.f32 %v983, 1.4214138
  %v1000 = vmul.f32 %v984, %v710
  %v1001 = vmul.f32 %v985, %v725
  %v1002 = vmul.f32 %v986, %v740
  %v1003 = vmul.f32 %v987, %v755
  %v1004 = vmul.f32 %v988, %v770
  %v1005 = vmul.f32 %v989, %v785
  %v1006 = vmul.f32 %v990, %v800
  %v1007 = vmul.f32 %v991, %v815
  %v1008 = vmul.f32 %v992, %v830
  %v1009 = vmul.f32 %v993, %v845
  %v1010 = vmul.f32 %v994, %v860
  %v1011 = vmul.f32 %v995, %v875
  %v1012 = vmul.f32 %v996, %v890
  %v1013 = vmul.f32 %v997, %v905
  %v1014 = vmul.f32 %v998, %v920
  %v1015 = vmul.f32 %v999, %v935
  %v1016 = vadd.f32 %v1000, -0.28449672
  %v1017 = vadd.f32 %v1001, -0.28449672
  %v1018 = vadd.f32 %v1002, -0.28449672
  %v1019 = vadd.f32 %v1003, -0.28449672
  %v1020 = vadd.f32 %v1004, -0.28449672
  %v1021 = vadd.f32 %v1005, -0.28449672
  %v1022 = vadd.f32 %v1006, -0.28449672
  %v1023 = vadd.f32 %v1007, -0.28449672
  %v1024 = vadd.f32 %v1008, -0.28449672
  %v1025 = vadd.f32 %v1009, -0.28449672
  %v1026 = vadd.f32 %v1010, -0.28449672
  %v1027 = vadd.f32 %v1011, -0.28449672
  %v1028 = vadd.f32 %v1012, -0.28449672
  %v1029 = vadd.f32 %v1013, -0.28449672
  %v1030 = vadd.f32 %v1014, -0.28449672
  %v1031 = vadd.f32 %v1015, -0.28449672
  %v1032 = vmul.f32 %v1016, %v710
  %v1033 = vmul.f32 %v1017, %v725
  %v1034 = vmul.f32 %v1018, %v740
  %v1035 = vmul.f32 %v1019, %v755
  %v1036 = vmul.f32 %v1020, %v770
  %v1037 = vmul.f32 %v1021, %v785
  %v1038 = vmul.f32 %v1022, %v800
  %v1039 = vmul.f32 %v1023, %v815
  %v1040 = vmul.f32 %v1024, %v830
  %v1041 = vmul.f32 %v1025, %v845
  %v1042 = vmul.f32 %v1026, %v860
  %v1043 = vmul.f32 %v1027, %v875
  %v1044 = vmul.f32 %v1028, %v890
  %v1045 = vmul.f32 %v1029, %v905
  %v1046 = vmul.f32 %v1030, %v920
  %v1047 = vmul.f32 %v1031, %v935
  %v1048 = vadd.f32 %v1032, 0.2548296
  %v1049 = vadd.f32 %v1033, 0.2548296
  %v1050 = vadd.f32 %v1034, 0.2548296
  %v1051 = vadd.f32 %v1035, 0.2548296
  %v1052 = vadd.f32 %v1036, 0.2548296
  %v1053 = vadd.f32 %v1037, 0.2548296
  %v1054 = vadd.f32 %v1038, 0.2548296
  %v1055 = vadd.f32 %v1039, 0.2548296
  %v1056 = vadd.f32 %v1040, 0.2548296
  %v1057 = vadd.f32 %v1041, 0.2548296
  %v1058 = vadd.f32 %v1042, 0.2548296
  %v1059 = vadd.f32 %v1043, 0.2548296
  %v1060 = vadd.f32 %v1044, 0.2548296
  %v1061 = vadd.f32 %v1045, 0.2548296
  %v1062 = vadd.f32 %v1046, 0.2548296
  %v1063 = vadd.f32 %v1047, 0.2548296
  %v1064 = vmul.f32 %v1048, %v710
  %v1065 = vmul.f32 %v1049, %v725
  %v1066 = vmul.f32 %v1050, %v740
  %v1067 = vmul.f32 %v1051, %v755
  %v1068 = vmul.f32 %v1052, %v770
  %v1069 = vmul.f32 %v1053, %v785
  %v1070 = vmul.f32 %v1054, %v800
  %v1071 = vmul.f32 %v1055, %v815
  %v1072 = vmul.f32 %v1056, %v830
  %v1073 = vmul.f32 %v1057, %v845
  %v1074 = vmul.f32 %v1058, %v860
  %v1075 = vmul.f32 %v1059, %v875
  %v1076 = vmul.f32 %v1060, %v890
  %v1077 = vmul.f32 %v1061, %v905
  %v1078 = vmul.f32 %v1062, %v920
  %v1079 = vmul.f32 %v1063, %v935
  %v1080 = vsub.f32 0.0, %v648
  %v1081 = vsub.f32 0.0, %v649
  %v1082 = vsub.f32 0.0, %v650
  %v1083 = vsub.f32 0.0, %v651
  %v1084 = vsub.f32 0.0, %v652
  %v1085 = vsub.f32 0.0, %v653
  %v1086 = vsub.f32 0.0, %v654
  %v1087 = vsub.f32 0.0, %v655
  %v1088 = vsub.f32 0.0, %v656
  %v1089 = vsub.f32 0.0, %v657
  %v1090 = vsub.f32 0.0, %v658
  %v1091 = vsub.f32 0.0, %v659
  %v1092 = vsub.f32 0.0, %v660
  %v1093 = vsub.f32 0.0, %v661
  %v1094 = vsub.f32 0.0, %v662
  %v1095 = vsub.f32 0.0, %v663
  %v1096 = vmul.f32 %v1080, %v648
  %v1097 = vmul.f32 %v1081, %v649
  %v1098 = vmul.f32 %v1082, %v650
  %v1099 = vmul.f32 %v1083, %v651
  %v1100 = vmul.f32 %v1084, %v652
  %v1101 = vmul.f32 %v1085, %v653
  %v1102 = vmul.f32 %v1086, %v654
  %v1103 = vmul.f32 %v1087, %v655
  %v1104 = vmul.f32 %v1088, %v656
  %v1105 = vmul.f32 %v1089, %v657
  %v1106 = vmul.f32 %v1090, %v658
  %v1107 = vmul.f32 %v1091, %v659
  %v1108 = vmul.f32 %v1092, %v660
  %v1109 = vmul.f32 %v1093, %v661
  %v1110 = vmul.f32 %v1094, %v662
  %v1111 = vmul.f32 %v1095, %v663
  %v1112 = vmul.f32 %v1096, 1.442695
  %v1113 = vpow.pop %v1112
  %v1114 = vmul.f32 %v1097, 1.442695
  %v1115 = vpow.pop %v1114
  %v1116 = vmul.f32 %v1098, 1.442695
  %v1117 = vpow.pop %v1116
  %v1118 = vmul.f32 %v1099, 1.442695
  %v1119 = vpow.pop %v1118
  %v1120 = vmul.f32 %v1100, 1.442695
  %v1121 = vpow.pop %v1120
  %v1122 = vmul.f32 %v1101, 1.442695
  %v1123 = vpow.pop %v1122
  %v1124 = vmul.f32 %v1102, 1.442695
  %v1125 = vpow.pop %v1124
  %v1126 = vmul.f32 %v1103, 1.442695
  %v1127 = vpow.pop %v1126
  %v1128 = vmul.f32 %v1104, 1.442695
  %v1129 = vpow.pop %v1128
  %v1130 = vmul.f32 %v1105, 1.442695
  %v1131 = vpow.pop %v1130
  %v1132 = vmul.f32 %v1106, 1.442695
  %v1133 = vpow.pop %v1132
  %v1134 = vmul.f32 %v1107, 1.442695
  %v1135 = vpow.pop %v1134
  %v1136 = vmul.f32 %v1108, 1.442695
  %v1137 = vpow.pop %v1136
  %v1138 = vmul.f32 %v1109, 1.442695
  %v1139 = vpow.pop %v1138
  %v1140 = vmul.f32 %v1110, 1.442695
  %v1141 = vpow.pop %v1140
  %v1142 = vmul.f32 %v1111, 1.442695
  %v1143 = vpow.pop %v1142
  %v1144 = vmul.f32 %v1064, %v1113
  %v1145 = vmul.f32 %v1065, %v1115
  %v1146 = vmul.f32 %v1066, %v1117
  %v1147 = vmul.f32 %v1067, %v1119
  %v1148 = vmul.f32 %v1068, %v1121
  %v1149 = vmul.f32 %v1069, %v1123
  %v1150 = vmul.f32 %v1070, %v1125
  %v1151 = vmul.f32 %v1071, %v1127
  %v1152 = vmul.f32 %v1072, %v1129
  %v1153 = vmul.f32 %v1073, %v1131
  %v1154 = vmul.f32 %v1074, %v1133
  %v1155 = vmul.f32 %v1075, %v1135
  %v1156 = vmul.f32 %v1076, %v1137
  %v1157 = vmul.f32 %v1077, %v1139
  %v1158 = vmul.f32 %v1078, %v1141
  %v1159 = vmul.f32 %v1079, %v1143
  %v1160 = vsub.f32 1.0, %v1144
  %v1161 = vsub.f32 1.0, %v1145
  %v1162 = vsub.f32 1.0, %v1146
  %v1163 = vsub.f32 1.0, %v1147
  %v1164 = vsub.f32 1.0, %v1148
  %v1165 = vsub.f32 1.0, %v1149
  %v1166 = vsub.f32 1.0, %v1150
  %v1167 = vsub.f32 1.0, %v1151
  %v1168 = vsub.f32 1.0, %v1152
  %v1169 = vsub.f32 1.0, %v1153
  %v1170 = vsub.f32 1.0, %v1154
  %v1171 = vsub.f32 1.0, %v1155
  %v1172 = vsub.f32 1.0, %v1156
  %v1173 = vsub.f32 1.0, %v1157
  %v1174 = vsub.f32 1.0, %v1158
  %v1175 = vsub.f32 1.0, %v1159
  %v1176 = vmul.f32 %v632, %v1160
  %v1177 = vmul.f32 %v633, %v1161
  %v1178 = vmul.f32 %v634, %v1162
  %v1179 = vmul.f32 %v635, %v1163
  %v1180 = vmul.f32 %v636, %v1164
  %v1181 = vmul.f32 %v637, %v1165
  %v1182 = vmul.f32 %v638, %v1166
  %v1183 = vmul.f32 %v639, %v1167
  %v1184 = vmul.f32 %v640, %v1168
  %v1185 = vmul.f32 %v641, %v1169
  %v1186 = vmul.f32 %v642, %v1170
  %v1187 = vmul.f32 %v643, %v1171
  %v1188 = vmul.f32 %v644, %v1172
  %v1189 = vmul.f32 %v645, %v1173
  %v1190 = vmul.f32 %v646, %v1174
  %v1191 = vmul.f32 %v647, %v1175
  %v1192 = vadd.f32 %v1176, 1.0
  %v1193 = vadd.f32 %v1177, 1.0
  %v1194 = vadd.f32 %v1178, 1.0
  %v1195 = vadd.f32 %v1179, 1.0
  %v1196 = vadd.f32 %v1180, 1.0
  %v1197 = vadd.f32 %v1181, 1.0
  %v1198 = vadd.f32 %v1182, 1.0
  %v1199 = vadd.f32 %v1183, 1.0
  %v1200 = vadd.f32 %v1184, 1.0
  %v1201 = vadd.f32 %v1185, 1.0
  %v1202 = vadd.f32 %v1186, 1.0
  %v1203 = vadd.f32 %v1187, 1.0
  %v1204 = vadd.f32 %v1188, 1.0
  %v1205 = vadd.f32 %v1189, 1.0
  %v1206 = vadd.f32 %v1190, 1.0
  %v1207 = vadd.f32 %v1191, 1.0
  %v1208 = vmul.f32 %v584, %v1192
  %v1209 = vmul.f32 %v585, %v1193
  %v1210 = vmul.f32 %v586, %v1194
  %v1211 = vmul.f32 %v587, %v1195
  %v1212 = vmul.f32 %v588, %v1196
  %v1213 = vmul.f32 %v589, %v1197
  %v1214 = vmul.f32 %v590, %v1198
  %v1215 = vmul.f32 %v591, %v1199
  %v1216 = vmul.f32 %v592, %v1200
  %v1217 = vmul.f32 %v593, %v1201
  %v1218 = vmul.f32 %v594, %v1202
  %v1219 = vmul.f32 %v595, %v1203
  %v1220 = vmul.f32 %v596, %v1204
  %v1221 = vmul.f32 %v597, %v1205
  %v1222 = vmul.f32 %v598, %v1206
  %v1223 = vmul.f32 %v599, %v1207
  %v1224 = vpack.c.bf16 %v1209, %v1208
  %v1225 = vpack.c.bf16 %v1211, %v1210
  %v1226 = vpack.c.bf16 %v1213, %v1212
  %v1227 = vpack.c.bf16 %v1215, %v1214
  %v1228 = vpack.c.bf16 %v1217, %v1216
  %v1229 = vpack.c.bf16 %v1219, %v1218
  %v1230 = vpack.c.bf16 %v1221, %v1220
  %v1231 = vpack.c.bf16 %v1223, %v1222
  %1232 = vst [vmem:[%s3] sm:$0xff] %v1224
  %1233 = vst [vmem:[%s3 + $0x8] sm:$0xff] %v1225
  %1234 = vst [vmem:[%s3 + $0x10] sm:$0xff] %v1226
  %1235 = vst [vmem:[%s3 + $0x18] sm:$0xff] %v1227
  %1236 = vst [vmem:[%s3 + $0x20] sm:$0xff] %v1228
  %1237 = vst [vmem:[%s3 + $0x28] sm:$0xff] %v1229
  %1238 = vst [vmem:[%s3 + $0x30] sm:$0xff] %v1230
  %1239 = vst [vmem:[%s3 + $0x38] sm:$0xff] %v1231
  // Predicated region
  $region14: #{bert_mlm_forward.23} parent=0 // pred_check
    _
  $region15: #{bert_mlm_forward.23} parent=0 // pred_check_branch
    %1241 = sbr.rel (0) target = $region17
  $region16: #{bert_mlm_forward.23} parent=0 // pred_region
    _
  $region17: #{bert_mlm_forward.23} parent=0 // pred_fallthru
    _
  // Predicated region
  $region18: #{bert_mlm_forward.23} parent=0 // pred_check
    _
  $region19: #{bert_mlm_forward.23} parent=0 // pred_check_branch
    %1243 = sbr.rel (0) target = $region21
  $region20: #{bert_mlm_forward.23} parent=0 // pred_region
    _
  $region21: #{bert_mlm_forward.23} parent=0 // pred_fallthru
    _

// kernel: bert_mlm_forward.24
$region0: #{bert_mlm_forward.24}
  #allocation0 [shape = 'u32[]', space=smem, size = 0x4, offset = 0x4, fixed_abs, tag = 'smem constant byte address 0x4 - core index']
  #allocation1 [shape = 'u32[72,128]{1,0:T(1,128)}', space=vmem, size = 0x9000, scoped, tag = 'internal scratch']
  %s0 = inlined_call_operand.vmem [shape: bf16[32,512], index: 0, kind: input, shape index: {}]
  %s1 = inlined_call_operand.hbm [shape: bf16[512,256], index: 1, kind: input, shape index: {}]
  %s2 = inlined_call_operand.vmem [shape: f32[1,256], index: 2, kind: input, shape index: {}]
  %s3 = inlined_call_operand.vmem [shape: bf16[32,256], index: 3, kind: output, shape index: {}]
  %s4 = sld [smem:[#allocation0]]
  $region26: #{bert_mlm_forward.24} parent=0
    _
  %s6 = ssub.s32 1, %s4
  %s7 = scalar_select 0, %s6, %s4
  $region1: #{bert_mlm_forward.24} parent=0
    #allocation2 [shape = 'u8[262144]{0}', space=vmem, size = 0x40000, scoped, tag = 'input window, operand 1, single buffered']
    #allocation3 [shape = 's32[1]{0}', space=sflag, size = 0x4, scoped, tag = 'scoped memory for bert_mlm_forward.24']
    %8 = vsyncpa [#allocation3], 0
    // Predicated region
    $region2: #{bert_mlm_forward.24} parent=1 // pred_check
      _
    $region3: #{bert_mlm_forward.24} parent=1 // pred_check_branch
      %10 = sbr.rel (0) target = $region5
    $region4: #{bert_mlm_forward.24} parent=1 // pred_region
      _
    $region5: #{bert_mlm_forward.24} parent=1 // pred_fallthru
      _
    // Predicated region
    $region6: #{bert_mlm_forward.24} parent=1 // pred_check
      _
    $region7: #{bert_mlm_forward.24} parent=1 // pred_check_branch
      %12 = sbr.rel (0) target = $region9
    $region8: #{bert_mlm_forward.24} parent=1 // pred_region
      %14 = vsyncadd [#allocation3], 0
      %s15 = sshll.u32 %s1, 4
      %s16 = int_to_ptr.hbm [resolvable:$true] %s15
      %s17 = sshll.u32 [#allocation2], 4
      %s18 = int_to_ptr.vmem [resolvable:$true] %s17
      %23 = dma.hbm_to_vmem [thread:$0]  %s16, 8192, %s18, [#allocation3], 128, 128, 8
    $region9: #{bert_mlm_forward.24} parent=1 // pred_fallthru
      _
    // Predicated region
    $region10: #{bert_mlm_forward.24} parent=1 // pred_check
      _
    $region11: #{bert_mlm_forward.24} parent=1 // pred_check_branch
      %25 = sbr.rel (0) target = $region13
    $region12: #{bert_mlm_forward.24} parent=1 // pred_region
      _
    $region13: #{bert_mlm_forward.24} parent=1 // pred_fallthru
      _
    // Predicated region
    $region14: #{bert_mlm_forward.24} parent=1 // pred_check
      _
    $region15: #{bert_mlm_forward.24} parent=1 // pred_check_branch
      %27 = sbr.rel (0) target = $region17
    $region16: #{bert_mlm_forward.24} parent=1 // pred_region
      %29 = dma.done [#allocation3], 8192
    $region17: #{bert_mlm_forward.24} parent=1 // pred_fallthru
      _
    %v30 = vld [vmem:[%s0] sm:$0xff]
    %v31 = vld [vmem:[%s0 + $0x8] sm:$0xff]
    %v32 = vld [vmem:[%s0 + $0x10] sm:$0xff]
    %v33 = vld [vmem:[%s0 + $0x18] sm:$0xff]
    %v34 = vld [vmem:[%s0 + $0x20] sm:$0xff]
    %v35 = vld [vmem:[%s0 + $0x28] sm:$0xff]
    %v36 = vld [vmem:[%s0 + $0x30] sm:$0xff]
    %v37 = vld [vmem:[%s0 + $0x38] sm:$0xff]
    %v38 = vld [vmem:[#allocation2] sm:$0xff]
    %v39 = vld [vmem:[#allocation2 + $0x8] sm:$0xff]
    %v40 = vld [vmem:[#allocation2 + $0x10] sm:$0xff]
    %v41 = vld [vmem:[#allocation2 + $0x18] sm:$0xff]
    %v42 = vld [vmem:[#allocation2 + $0x20] sm:$0xff]
    %v43 = vld [vmem:[#allocation2 + $0x28] sm:$0xff]
    %v44 = vld [vmem:[#allocation2 + $0x30] sm:$0xff]
    %v45 = vld [vmem:[#allocation2 + $0x38] sm:$0xff]
    %v46 = vld [vmem:[#allocation2 + $0x40] sm:$0xff]
    %v47 = vld [vmem:[#allocation2 + $0x48] sm:$0xff]
    %v48 = vld [vmem:[#allocation2 + $0x50] sm:$0xff]
    %v49 = vld [vmem:[#allocation2 + $0x58] sm:$0xff]
    %v50 = vld [vmem:[#allocation2 + $0x60] sm:$0xff]
    %v51 = vld [vmem:[#allocation2 + $0x68] sm:$0xff]
    %v52 = vld [vmem:[#allocation2 + $0x70] sm:$0xff]
    %v53 = vld [vmem:[#allocation2 + $0x78] sm:$0xff]
    %v54 = vld [vmem:[#allocation2 + $0x80] sm:$0xff]
    %v55 = vld [vmem:[#allocation2 + $0x88] sm:$0xff]
    %v56 = vld [vmem:[#allocation2 + $0x90] sm:$0xff]
    %v57 = vld [vmem:[#allocation2 + $0x98] sm:$0xff]
    %v58 = vld [vmem:[#allocation2 + $0xa0] sm:$0xff]
    %v59 = vld [vmem:[#allocation2 + $0xa8] sm:$0xff]
    %v60 = vld [vmem:[#allocation2 + $0xb0] sm:$0xff]
    %v61 = vld [vmem:[#allocation2 + $0xb8] sm:$0xff]
    %v62 = vld [vmem:[#allocation2 + $0xc0] sm:$0xff]
    %v63 = vld [vmem:[#allocation2 + $0xc8] sm:$0xff]
    %v64 = vld [vmem:[#allocation2 + $0xd0] sm:$0xff]
    %v65 = vld [vmem:[#allocation2 + $0xd8] sm:$0xff]
    %v66 = vld [vmem:[#allocation2 + $0xe0] sm:$0xff]
    %v67 = vld [vmem:[#allocation2 + $0xe8] sm:$0xff]
    %v68 = vld [vmem:[#allocation2 + $0xf0] sm:$0xff]
    %v69 = vld [vmem:[#allocation2 + $0xf8] sm:$0xff]
    %v70 = vld [vmem:[#allocation2 + $0x100] sm:$0xff]
    %v71 = vld [vmem:[#allocation2 + $0x108] sm:$0xff]
    %v72 = vld [vmem:[#allocation2 + $0x110] sm:$0xff]
    %v73 = vld [vmem:[#allocation2 + $0x118] sm:$0xff]
    %v74 = vld [vmem:[#allocation2 + $0x120] sm:$0xff]
    %v75 = vld [vmem:[#allocation2 + $0x128] sm:$0xff]
    %v76 = vld [vmem:[#allocation2 + $0x130] sm:$0xff]
    %v77 = vld [vmem:[#allocation2 + $0x138] sm:$0xff]
    %v78 = vld [vmem:[#allocation2 + $0x140] sm:$0xff]
    %v79 = vld [vmem:[#allocation2 + $0x148] sm:$0xff]
    %v80 = vld [vmem:[#allocation2 + $0x150] sm:$0xff]
    %v81 = vld [vmem:[#allocation2 + $0x158] sm:$0xff]
    %v82 = vld [vmem:[#allocation2 + $0x160] sm:$0xff]
    %v83 = vld [vmem:[#allocation2 + $0x168] sm:$0xff]
    %v84 = vld [vmem:[#allocation2 + $0x170] sm:$0xff]
    %v85 = vld [vmem:[#allocation2 + $0x178] sm:$0xff]
    %v86 = vld [vmem:[#allocation2 + $0x180] sm:$0xff]
    %v87 = vld [vmem:[#allocation2 + $0x188] sm:$0xff]
    %v88 = vld [vmem:[#allocation2 + $0x190] sm:$0xff]
    %v89 = vld [vmem:[#allocation2 + $0x198] sm:$0xff]
    %v90 = vld [vmem:[#allocation2 + $0x1a0] sm:$0xff]
    %v91 = vld [vmem:[#allocation2 + $0x1a8] sm:$0xff]
    %v92 = vld [vmem:[#allocation2 + $0x1b0] sm:$0xff]
    %v93 = vld [vmem:[#allocation2 + $0x1b8] sm:$0xff]
    %v94 = vld [vmem:[#allocation2 + $0x1c0] sm:$0xff]
    %v95 = vld [vmem:[#allocation2 + $0x1c8] sm:$0xff]
    %v96 = vld [vmem:[#allocation2 + $0x1d0] sm:$0xff]
    %v97 = vld [vmem:[#allocation2 + $0x1d8] sm:$0xff]
    %v98 = vld [vmem:[#allocation2 + $0x1e0] sm:$0xff]
    %v99 = vld [vmem:[#allocation2 + $0x1e8] sm:$0xff]
    %v100 = vld [vmem:[#allocation2 + $0x1f0] sm:$0xff]
    %v101 = vld [vmem:[#allocation2 + $0x1f8] sm:$0xff]
    %v102 = vld [vmem:[%s2] sm:$0x3]
    %v104 = vperm.slane %v102, 0
    %v105 = vperm.slane %v102, 1
    %v116 = vunpack.c.l.b16 %v30
    %v117 = vunpack.c.h.b16 %v30
    %v118 = vunpack.c.l.b16 %v31
    %v119 = vunpack.c.h.b16 %v31
    %v120 = vunpack.c.l.b16 %v32
    %v121 = vunpack.c.h.b16 %v32
    %v122 = vunpack.c.l.b16 %v33
    %v123 = vunpack.c.h.b16 %v33
    %v124 = vunpack.c.l.b16 %v34
    %v125 = vunpack.c.h.b16 %v34
    %v126 = vunpack.c.l.b16 %v35
    %v127 = vunpack.c.h.b16 %v35
    %v128 = vunpack.c.l.b16 %v36
    %v129 = vunpack.c.h.b16 %v36
    %v130 = vunpack.c.l.b16 %v37
    %v131 = vunpack.c.h.b16 %v37
    %v132 = vpack.c.b16 %v120, %v116
    %v133 = vpack.c.b16 %v121, %v117
    %v134 = vpack.c.b16 %v122, %v118
    %v135 = vpack.c.b16 %v123, %v119
    %v136 = vpack.c.b16 %v128, %v124
    %v137 = vpack.c.b16 %v129, %v125
    %v138 = vpack.c.b16 %v130, %v126
    %v139 = vpack.c.b16 %v131, %v127
    %v212 = vunpack.c.l.b16 %v38
    %v213 = vunpack.c.h.b16 %v38
    %v214 = vunpack.c.l.b16 %v39
    %v215 = vunpack.c.h.b16 %v39
    %v216 = vunpack.c.l.b16 %v40
    %v217 = vunpack.c.h.b16 %v40
    %v218 = vunpack.c.l.b16 %v41
    %v219 = vunpack.c.h.b16 %v41
    %v220 = vunpack.c.l.b16 %v42
    %v221 = vunpack.c.h.b16 %v42
    %v222 = vunpack.c.l.b16 %v43
    %v223 = vunpack.c.h.b16 %v43
    %v224 = vunpack.c.l.b16 %v44
    %v225 = vunpack.c.h.b16 %v44
    %v226 = vunpack.c.l.b16 %v45
    %v227 = vunpack.c.h.b16 %v45
    %v228 = vunpack.c.l.b16 %v46
    %v229 = vunpack.c.h.b16 %v46
    %v230 = vunpack.c.l.b16 %v47
    %v231 = vunpack.c.h.b16 %v47
    %v232 = vunpack.c.l.b16 %v48
    %v233 = vunpack.c.h.b16 %v48
    %v234 = vunpack.c.l.b16 %v49
    %v235 = vunpack.c.h.b16 %v49
    %v236 = vunpack.c.l.b16 %v50
    %v237 = vunpack.c.h.b16 %v50
    %v238 = vunpack.c.l.b16 %v51
    %v239 = vunpack.c.h.b16 %v51
    %v240 = vunpack.c.l.b16 %v52
    %v241 = vunpack.c.h.b16 %v52
    %v242 = vunpack.c.l.b16 %v53
    %v243 = vunpack.c.h.b16 %v53
    %v244 = vunpack.c.l.b16 %v54
    %v245 = vunpack.c.h.b16 %v54
    %v246 = vunpack.c.l.b16 %v55
    %v247 = vunpack.c.h.b16 %v55
    %v248 = vunpack.c.l.b16 %v56
    %v249 = vunpack.c.h.b16 %v56
    %v250 = vunpack.c.l.b16 %v57
    %v251 = vunpack.c.h.b16 %v57
    %v252 = vunpack.c.l.b16 %v58
    %v253 = vunpack.c.h.b16 %v58
    %v254 = vunpack.c.l.b16 %v59
    %v255 = vunpack.c.h.b16 %v59
    %v256 = vunpack.c.l.b16 %v60
    %v257 = vunpack.c.h.b16 %v60
    %v258 = vunpack.c.l.b16 %v61
    %v259 = vunpack.c.h.b16 %v61
    %v260 = vunpack.c.l.b16 %v62
    %v261 = vunpack.c.h.b16 %v62
    %v262 = vunpack.c.l.b16 %v63
    %v263 = vunpack.c.h.b16 %v63
    %v264 = vunpack.c.l.b16 %v64
    %v265 = vunpack.c.h.b16 %v64
    %v266 = vunpack.c.l.b16 %v65
    %v267 = vunpack.c.h.b16 %v65
    %v268 = vunpack.c.l.b16 %v66
    %v269 = vunpack.c.h.b16 %v66
    %v270 = vunpack.c.l.b16 %v67
    %v271 = vunpack.c.h.b16 %v67
    %v272 = vunpack.c.l.b16 %v68
    %v273 = vunpack.c.h.b16 %v68
    %v274 = vunpack.c.l.b16 %v69
    %v275 = vunpack.c.h.b16 %v69
    %v276 = vunpack.c.l.b16 %v70
    %v277 = vunpack.c.h.b16 %v70
    %v278 = vunpack.c.l.b16 %v71
    %v279 = vunpack.c.h.b16 %v71
    %v280 = vunpack.c.l.b16 %v72
    %v281 = vunpack.c.h.b16 %v72
    %v282 = vunpack.c.l.b16 %v73
    %v283 = vunpack.c.h.b16 %v73
    %v284 = vunpack.c.l.b16 %v74
    %v285 = vunpack.c.h.b16 %v74
    %v286 = vunpack.c.l.b16 %v75
    %v287 = vunpack.c.h.b16 %v75
    %v288 = vunpack.c.l.b16 %v76
    %v289 = vunpack.c.h.b16 %v76
    %v290 = vunpack.c.l.b16 %v77
    %v291 = vunpack.c.h.b16 %v77
    %v292 = vunpack.c.l.b16 %v78
    %v293 = vunpack.c.h.b16 %v78
    %v294 = vunpack.c.l.b16 %v79
    %v295 = vunpack.c.h.b16 %v79
    %v296 = vunpack.c.l.b16 %v80
    %v297 = vunpack.c.h.b16 %v80
    %v298 = vunpack.c.l.b16 %v81
    %v299 = vunpack.c.h.b16 %v81
    %v300 = vunpack.c.l.b16 %v82
    %v301 = vunpack.c.h.b16 %v82
    %v302 = vunpack.c.l.b16 %v83
    %v303 = vunpack.c.h.b16 %v83
    %v304 = vunpack.c.l.b16 %v84
    %v305 = vunpack.c.h.b16 %v84
    %v306 = vunpack.c.l.b16 %v85
    %v307 = vunpack.c.h.b16 %v85
    %v308 = vunpack.c.l.b16 %v86
    %v309 = vunpack.c.h.b16 %v86
    %v310 = vunpack.c.l.b16 %v87
    %v311 = vunpack.c.h.b16 %v87
    %v312 = vunpack.c.l.b16 %v88
    %v313 = vunpack.c.h.b16 %v88
    %v314 = vunpack.c.l.b16 %v89
    %v315 = vunpack.c.h.b16 %v89
    %v316 = vunpack.c.l.b16 %v90
    %v317 = vunpack.c.h.b16 %v90
    %v318 = vunpack.c.l.b16 %v91
    %v319 = vunpack.c.h.b16 %v91
    %v320 = vunpack.c.l.b16 %v92
    %v321 = vunpack.c.h.b16 %v92
    %v322 = vunpack.c.l.b16 %v93
    %v323 = vunpack.c.h.b16 %v93
    %v324 = vunpack.c.l.b16 %v94
    %v325 = vunpack.c.h.b16 %v94
    %v326 = vunpack.c.l.b16 %v95
    %v327 = vunpack.c.h.b16 %v95
    %v328 = vunpack.c.l.b16 %v96
    %v329 = vunpack.c.h.b16 %v96
    %v330 = vunpack.c.l.b16 %v97
    %v331 = vunpack.c.h.b16 %v97
    %v332 = vunpack.c.l.b16 %v98
    %v333 = vunpack.c.h.b16 %v98
    %v334 = vunpack.c.l.b16 %v99
    %v335 = vunpack.c.h.b16 %v99
    %v336 = vunpack.c.l.b16 %v100
    %v337 = vunpack.c.h.b16 %v100
    %v338 = vunpack.c.l.b16 %v101
    %v339 = vunpack.c.h.b16 %v101
    %v340 = vpack.c.b16 %v214, %v212
    %v341 = vpack.c.b16 %v215, %v213
    %v342 = vpack.c.b16 %v218, %v216
    %v343 = vpack.c.b16 %v219, %v217
    %v344 = vpack.c.b16 %v222, %v220
    %v345 = vpack.c.b16 %v223, %v221
    %v346 = vpack.c.b16 %v226, %v224
    %v347 = vpack.c.b16 %v227, %v225
    %v348 = vpack.c.b16 %v230, %v228
    %v349 = vpack.c.b16 %v231, %v229
    %v350 = vpack.c.b16 %v234, %v232
    %v351 = vpack.c.b16 %v235, %v233
    %v352 = vpack.c.b16 %v238, %v236
    %v353 = vpack.c.b16 %v239, %v237
    %v354 = vpack.c.b16 %v242, %v240
    %v355 = vpack.c.b16 %v243, %v241
    %v356 = vpack.c.b16 %v246, %v244
    %v357 = vpack.c.b16 %v247, %v245
    %v358 = vpack.c.b16 %v250, %v248
    %v359 = vpack.c.b16 %v251, %v249
    %v360 = vpack.c.b16 %v254, %v252
    %v361 = vpack.c.b16 %v255, %v253
    %v362 = vpack.c.b16 %v258, %v256
    %v363 = vpack.c.b16 %v259, %v257
    %v364 = vpack.c.b16 %v262, %v260
    %v365 = vpack.c.b16 %v263, %v261
    %v366 = vpack.c.b16 %v266, %v264
    %v367 = vpack.c.b16 %v267, %v265
    %v368 = vpack.c.b16 %v270, %v268
    %v369 = vpack.c.b16 %v271, %v269
    %v370 = vpack.c.b16 %v274, %v272
    %v371 = vpack.c.b16 %v275, %v273
    %v372 = vpack.c.b16 %v278, %v276
    %v373 = vpack.c.b16 %v279, %v277
    %v374 = vpack.c.b16 %v282, %v280
    %v375 = vpack.c.b16 %v283, %v281
    %v376 = vpack.c.b16 %v286, %v284
    %v377 = vpack.c.b16 %v287, %v285
    %v378 = vpack.c.b16 %v290, %v288
    %v379 = vpack.c.b16 %v291, %v289
    %v380 = vpack.c.b16 %v294, %v292
    %v381 = vpack.c.b16 %v295, %v293
    %v382 = vpack.c.b16 %v298, %v296
    %v383 = vpack.c.b16 %v299, %v297
    %v384 = vpack.c.b16 %v302, %v300
    %v385 = vpack.c.b16 %v303, %v301
    %v386 = vpack.c.b16 %v306, %v304
    %v387 = vpack.c.b16 %v307, %v305
    %v388 = vpack.c.b16 %v310, %v308
    %v389 = vpack.c.b16 %v311, %v309
    %v390 = vpack.c.b16 %v314, %v312
    %v391 = vpack.c.b16 %v315, %v313
    %v392 = vpack.c.b16 %v318, %v316
    %v393 = vpack.c.b16 %v319, %v317
    %v394 = vpack.c.b16 %v322, %v320
    %v395 = vpack.c.b16 %v323, %v321
    %v396 = vpack.c.b16 %v326, %v324
    %v397 = vpack.c.b16 %v327, %v325
    %v398 = vpack.c.b16 %v330, %v328
    %v399 = vpack.c.b16 %v331, %v329
    %v400 = vpack.c.b16 %v334, %v332
    %v401 = vpack.c.b16 %v335, %v333
    %v402 = vpack.c.b16 %v338, %v336
    %v403 = vpack.c.b16 %v339, %v337
    %468 = vmatpush.bf16.msra.mxu0 %v354
    %469 = vmatpush.bf16.msra.mxu0 %v352
    %470 = vmatpush.bf16.msra.mxu0 %v350
    %471 = vmatpush.bf16.msra.mxu0 %v348
    %472 = vmatpush.bf16.msra.mxu0 %v346
    %473 = vmatpush.bf16.msra.mxu0 %v344
    %474 = vmatpush.bf16.msra.mxu0 %v342
    %475 = vmatpush.bf16.msra.mxu0 %v340
    %476 = vmatmul.bf16.gmra.mxu0 %v132
    %v477 = vpop.f32.mrf.mxu0
    %v478 = vadd.f32 %v104, %v477
    %v479 = vpop.f32.mrf.mxu0
    %v480 = vadd.f32 %v104, %v479
    %481 = vmatmul.bf16.gmra.mxu0 %v136
    %v482 = vpop.f32.mrf.mxu0
    %v483 = vadd.f32 %v104, %v482
    %v484 = vpop.f32.mrf.mxu0
    %v485 = vadd.f32 %v104, %v484
    %486 = vdwg.mxu0
    %487 = vmatpush.bf16.msra.mxu0 %v370
    %488 = vmatpush.bf16.msra.mxu0 %v368
    %489 = vmatpush.bf16.msra.mxu0 %v366
    %490 = vmatpush.bf16.msra.mxu0 %v364
    %491 = vmatpush.bf16.msra.mxu0 %v362
    %492 = vmatpush.bf16.msra.mxu0 %v360
    %493 = vmatpush.bf16.msra.mxu0 %v358
    %494 = vmatpush.bf16.msra.mxu0 %v356
    %495 = vmatmul.bf16.gmra.mxu0 %v133
    %v496 = vpop.f32.mrf.mxu0
    %v497 = vadd.f32 %v478, %v496
    %v498 = vpop.f32.mrf.mxu0
    %v499 = vadd.f32 %v480, %v498
    %500 = vmatmul.bf16.gmra.mxu0 %v137
    %v501 = vpop.f32.mrf.mxu0
    %v502 = vadd.f32 %v483, %v501
    %v503 = vpop.f32.mrf.mxu0
    %v504 = vadd.f32 %v485, %v503
    %505 = vdwg.mxu0
    %506 = vmatpush.bf16.msra.mxu0 %v386
    %507 = vmatpush.bf16.msra.mxu0 %v384
    %508 = vmatpush.bf16.msra.mxu0 %v382
    %509 = vmatpush.bf16.msra.mxu0 %v380
    %510 = vmatpush.bf16.msra.mxu0 %v378
    %511 = vmatpush.bf16.msra.mxu0 %v376
    %512 = vmatpush.bf16.msra.mxu0 %v374
    %513 = vmatpush.bf16.msra.mxu0 %v372
    %514 = vmatmul.bf16.gmra.mxu0 %v134
    %v515 = vpop.f32.mrf.mxu0
    %v516 = vadd.f32 %v497, %v515
    %v517 = vpop.f32.mrf.mxu0
    %v518 = vadd.f32 %v499, %v517
    %519 = vmatmul.bf16.gmra.mxu0 %v138
    %v520 = vpop.f32.mrf.mxu0
    %v521 = vadd.f32 %v502, %v520
    %v522 = vpop.f32.mrf.mxu0
    %v523 = vadd.f32 %v504, %v522
    %524 = vdwg.mxu0
    %525 = vmatpush.bf16.msra.mxu0 %v402
    %526 = vmatpush.bf16.msra.mxu0 %v400
    %527 = vmatpush.bf16.msra.mxu0 %v398
    %528 = vmatpush.bf16.msra.mxu0 %v396
    %529 = vmatpush.bf16.msra.mxu0 %v394
    %530 = vmatpush.bf16.msra.mxu0 %v392
    %531 = vmatpush.bf16.msra.mxu0 %v390
    %532 = vmatpush.bf16.msra.mxu0 %v388
    %533 = vmatmul.bf16.gmra.mxu0 %v135
    %v534 = vpop.f32.mrf.mxu0
    %v535 = vadd.f32 %v516, %v534
    %v536 = vpop.f32.mrf.mxu0
    %v537 = vadd.f32 %v518, %v536
    %538 = vmatmul.bf16.gmra.mxu0 %v139
    %v539 = vpop.f32.mrf.mxu0
    %v540 = vadd.f32 %v521, %v539
    %v541 = vpop.f32.mrf.mxu0
    %v542 = vadd.f32 %v523, %v541
    %543 = vdwg.mxu0
    %544 = vmatpush.bf16.msra.mxu0 %v355
    %545 = vmatpush.bf16.msra.mxu0 %v353
    %546 = vmatpush.bf16.msra.mxu0 %v351
    %547 = vmatpush.bf16.msra.mxu0 %v349
    %548 = vmatpush.bf16.msra.mxu0 %v347
    %549 = vmatpush.bf16.msra.mxu0 %v345
    %550 = vmatpush.bf16.msra.mxu0 %v343
    %551 = vmatpush.bf16.msra.mxu0 %v341
    %552 = vmatmul.bf16.gmra.mxu0 %v132
    %v553 = vpop.f32.mrf.mxu0
    %v554 = vadd.f32 %v105, %v553
    %v555 = vpop.f32.mrf.mxu0
    %v556 = vadd.f32 %v105, %v555
    %557 = vmatmul.bf16.gmra.mxu0 %v136
    %v558 = vpop.f32.mrf.mxu0
    %v559 = vadd.f32 %v105, %v558
    %v560 = vpop.f32.mrf.mxu0
    %v561 = vadd.f32 %v105, %v560
    %562 = vdwg.mxu0
    %563 = vmatpush.bf16.msra.mxu0 %v371
    %564 = vmatpush.bf16.msra.mxu0 %v369
    %565 = vmatpush.bf16.msra.mxu0 %v367
    %566 = vmatpush.bf16.msra.mxu0 %v365
    %567 = vmatpush.bf16.msra.mxu0 %v363
    %568 = vmatpush.bf16.msra.mxu0 %v361
    %569 = vmatpush.bf16.msra.mxu0 %v359
    %570 = vmatpush.bf16.msra.mxu0 %v357
    %571 = vmatmul.bf16.gmra.mxu0 %v133
    %v572 = vpop.f32.mrf.mxu0
    %v573 = vadd.f32 %v554, %v572
    %v574 = vpop.f32.mrf.mxu0
    %v575 = vadd.f32 %v556, %v574
    %576 = vmatmul.bf16.gmra.mxu0 %v137
    %v577 = vpop.f32.mrf.mxu0
    %v578 = vadd.f32 %v559, %v577
    %v579 = vpop.f32.mrf.mxu0
    %v580 = vadd.f32 %v561, %v579
    %581 = vdwg.mxu0
    %582 = vmatpush.bf16.msra.mxu0 %v387
    %583 = vmatpush.bf16.msra.mxu0 %v385
    %584 = vmatpush.bf16.msra.mxu0 %v383
    %585 = vmatpush.bf16.msra.mxu0 %v381
    %586 = vmatpush.bf16.msra.mxu0 %v379
    %587 = vmatpush.bf16.msra.mxu0 %v377
    %588 = vmatpush.bf16.msra.mxu0 %v375
    %589 = vmatpush.bf16.msra.mxu0 %v373
    %590 = vmatmul.bf16.gmra.mxu0 %v134
    %v591 = vpop.f32.mrf.mxu0
    %v592 = vadd.f32 %v573, %v591
    %v593 = vpop.f32.mrf.mxu0
    %v594 = vadd.f32 %v575, %v593
    %595 = vmatmul.bf16.gmra.mxu0 %v138
    %v596 = vpop.f32.mrf.mxu0
    %v597 = vadd.f32 %v578, %v596
    %v598 = vpop.f32.mrf.mxu0
    %v599 = vadd.f32 %v580, %v598
    %600 = vdwg.mxu0
    %601 = vmatpush.bf16.msra.mxu0 %v403
    %602 = vmatpush.bf16.msra.mxu0 %v401
    %603 = vmatpush.bf16.msra.mxu0 %v399
    %604 = vmatpush.bf16.msra.mxu0 %v397
    %605 = vmatpush.bf16.msra.mxu0 %v395
    %606 = vmatpush.bf16.msra.mxu0 %v393
    %607 = vmatpush.bf16.msra.mxu0 %v391
    %608 = vmatpush.bf16.msra.mxu0 %v389
    %609 = vmatmul.bf16.gmra.mxu0 %v135
    %v610 = vpop.f32.mrf.mxu0
    %v611 = vadd.f32 %v592, %v610
    %v612 = vpop.f32.mrf.mxu0
    %v613 = vadd.f32 %v594, %v612
    %614 = vmatmul.bf16.gmra.mxu0 %v139
    %v615 = vpop.f32.mrf.mxu0
    %v616 = vadd.f32 %v597, %v615
    %v617 = vpop.f32.mrf.mxu0
    %v618 = vadd.f32 %v599, %v617
    %619 = vdwg.mxu0
    %v620 = vpack.c.bf16 %v611, %v535
    %v621 = vpack.c.bf16 %v613, %v537
    %v622 = vpack.c.bf16 %v616, %v540
    %v623 = vpack.c.bf16 %v618, %v542
    %624 = vst [vmem:[%s3] sm:$0xff] %v620
    %625 = vst [vmem:[%s3 + $0x8] sm:$0xff] %v621
    %626 = vst [vmem:[%s3 + $0x10] sm:$0xff] %v622
    %627 = vst [vmem:[%s3 + $0x18] sm:$0xff] %v623
    // Predicated region
    $region18: #{bert_mlm_forward.24} parent=1 // pred_check
      _
    $region19: #{bert_mlm_forward.24} parent=1 // pred_check_branch
      %629 = sbr.rel (0) target = $region21
    $region20: #{bert_mlm_forward.24} parent=1 // pred_region
      _
    $region21: #{bert_mlm_forward.24} parent=1 // pred_fallthru
      _
    // Predicated region
    $region22: #{bert_mlm_forward.24} parent=1 // pred_check
      _
    $region23: #{bert_mlm_forward.24} parent=1 // pred_check_branch
      %631 = sbr.rel (0) target = $region25
    $region24: #{bert_mlm_forward.24} parent=1 // pred_region
      _
    $region25: #{bert_mlm_forward.24} parent=1 // pred_fallthru
      _
    %632 = vsyncpa [#allocation3], 1

// kernel: bert_mlm_forward.28
$region0: #{bert_mlm_forward.28}
  #allocation0 [shape = 'u32[]', space=smem, size = 0x4, offset = 0x4, fixed_abs, tag = 'smem constant byte address 0x4 - core index']
  #allocation1 [shape = 'u32[72,128]{1,0:T(1,128)}', space=vmem, size = 0x9000, scoped, tag = 'internal scratch']
  %s0 = inlined_call_operand.vmem [shape: bf16[32,256], index: 0, kind: input, shape index: {}]
  %s1 = inlined_call_operand.hbm [shape: bf16[256,256], index: 1, kind: input, shape index: {}]
  %s2 = inlined_call_operand.vmem [shape: f32[1,256], index: 2, kind: input, shape index: {}]
  %s3 = inlined_call_operand.vmem [shape: bf16[32,256], index: 3, kind: output, shape index: {}]
  %s4 = sld [smem:[#allocation0]]
  $region26: #{bert_mlm_forward.28} parent=0
    _
  %s6 = ssub.s32 1, %s4
  %s7 = scalar_select 0, %s6, %s4
  $region1: #{bert_mlm_forward.28} parent=0
    #allocation2 [shape = 'u8[131072]{0}', space=vmem, size = 0x20000, scoped, tag = 'input window, operand 1, single buffered']
    #allocation3 [shape = 's32[1]{0}', space=sflag, size = 0x4, scoped, tag = 'scoped memory for bert_mlm_forward.28']
    %8 = vsyncpa [#allocation3], 0
    // Predicated region
    $region2: #{bert_mlm_forward.28} parent=1 // pred_check
      _
    $region3: #{bert_mlm_forward.28} parent=1 // pred_check_branch
      %10 = sbr.rel (0) target = $region5
    $region4: #{bert_mlm_forward.28} parent=1 // pred_region
      _
    $region5: #{bert_mlm_forward.28} parent=1 // pred_fallthru
      _
    // Predicated region
    $region6: #{bert_mlm_forward.28} parent=1 // pred_check
      _
    $region7: #{bert_mlm_forward.28} parent=1 // pred_check_branch
      %12 = sbr.rel (0) target = $region9
    $region8: #{bert_mlm_forward.28} parent=1 // pred_region
      %14 = vsyncadd [#allocation3], 0
      %s15 = sshll.u32 %s1, 4
      %s16 = int_to_ptr.hbm [resolvable:$true] %s15
      %s17 = sshll.u32 [#allocation2], 4
      %s18 = int_to_ptr.vmem [resolvable:$true] %s17
      %23 = dma.hbm_to_vmem [thread:$0]  %s16, 4096, %s18, [#allocation3], 128, 128, 8
    $region9: #{bert_mlm_forward.28} parent=1 // pred_fallthru
      _
    // Predicated region
    $region10: #{bert_mlm_forward.28} parent=1 // pred_check
      _
    $region11: #{bert_mlm_forward.28} parent=1 // pred_check_branch
      %25 = sbr.rel (0) target = $region13
    $region12: #{bert_mlm_forward.28} parent=1 // pred_region
      _
    $region13: #{bert_mlm_forward.28} parent=1 // pred_fallthru
      _
    // Predicated region
    $region14: #{bert_mlm_forward.28} parent=1 // pred_check
      _
    $region15: #{bert_mlm_forward.28} parent=1 // pred_check_branch
      %27 = sbr.rel (0) target = $region17
    $region16: #{bert_mlm_forward.28} parent=1 // pred_region
      %29 = dma.done [#allocation3], 4096
    $region17: #{bert_mlm_forward.28} parent=1 // pred_fallthru
      _
    %v30 = vld [vmem:[%s0] sm:$0xff]
    %v31 = vld [vmem:[%s0 + $0x8] sm:$0xff]
    %v32 = vld [vmem:[%s0 + $0x10] sm:$0xff]
    %v33 = vld [vmem:[%s0 + $0x18] sm:$0xff]
    %v34 = vld [vmem:[#allocation2] sm:$0xff]
    %v35 = vld [vmem:[#allocation2 + $0x8] sm:$0xff]
    %v36 = vld [vmem:[#allocation2 + $0x10] sm:$0xff]
    %v37 = vld [vmem:[#allocation2 + $0x18] sm:$0xff]
    %v38 = vld [vmem:[#allocation2 + $0x20] sm:$0xff]
    %v39 = vld [vmem:[#allocation2 + $0x28] sm:$0xff]
    %v40 = vld [vmem:[#allocation2 + $0x30] sm:$0xff]
    %v41 = vld [vmem:[#allocation2 + $0x38] sm:$0xff]
    %v42 = vld [vmem:[#allocation2 + $0x40] sm:$0xff]
    %v43 = vld [vmem:[#allocation2 + $0x48] sm:$0xff]
    %v44 = vld [vmem:[#allocation2 + $0x50] sm:$0xff]
    %v45 = vld [vmem:[#allocation2 + $0x58] sm:$0xff]
    %v46 = vld [vmem:[#allocation2 + $0x60] sm:$0xff]
    %v47 = vld [vmem:[#allocation2 + $0x68] sm:$0xff]
    %v48 = vld [vmem:[#allocation2 + $0x70] sm:$0xff]
    %v49 = vld [vmem:[#allocation2 + $0x78] sm:$0xff]
    %v50 = vld [vmem:[#allocation2 + $0x80] sm:$0xff]
    %v51 = vld [vmem:[#allocation2 + $0x88] sm:$0xff]
    %v52 = vld [vmem:[#allocation2 + $0x90] sm:$0xff]
    %v53 = vld [vmem:[#allocation2 + $0x98] sm:$0xff]
    %v54 = vld [vmem:[#allocation2 + $0xa0] sm:$0xff]
    %v55 = vld [vmem:[#allocation2 + $0xa8] sm:$0xff]
    %v56 = vld [vmem:[#allocation2 + $0xb0] sm:$0xff]
    %v57 = vld [vmem:[#allocation2 + $0xb8] sm:$0xff]
    %v58 = vld [vmem:[#allocation2 + $0xc0] sm:$0xff]
    %v59 = vld [vmem:[#allocation2 + $0xc8] sm:$0xff]
    %v60 = vld [vmem:[#allocation2 + $0xd0] sm:$0xff]
    %v61 = vld [vmem:[#allocation2 + $0xd8] sm:$0xff]
    %v62 = vld [vmem:[#allocation2 + $0xe0] sm:$0xff]
    %v63 = vld [vmem:[#allocation2 + $0xe8] sm:$0xff]
    %v64 = vld [vmem:[#allocation2 + $0xf0] sm:$0xff]
    %v65 = vld [vmem:[#allocation2 + $0xf8] sm:$0xff]
    %v66 = vld [vmem:[%s2] sm:$0x3]
    %v68 = vperm.slane %v66, 0
    %v69 = vperm.slane %v66, 1
    %v76 = vunpack.c.l.b16 %v30
    %v77 = vunpack.c.h.b16 %v30
    %v78 = vunpack.c.l.b16 %v31
    %v79 = vunpack.c.h.b16 %v31
    %v80 = vunpack.c.l.b16 %v32
    %v81 = vunpack.c.h.b16 %v32
    %v82 = vunpack.c.l.b16 %v33
    %v83 = vunpack.c.h.b16 %v33
    %v84 = vpack.c.b16 %v78, %v76
    %v85 = vpack.c.b16 %v79, %v77
    %v86 = vpack.c.b16 %v82, %v80
    %v87 = vpack.c.b16 %v83, %v81
    %v124 = vunpack.c.l.b16 %v34
    %v125 = vunpack.c.h.b16 %v34
    %v126 = vunpack.c.l.b16 %v35
    %v127 = vunpack.c.h.b16 %v35
    %v128 = vunpack.c.l.b16 %v36
    %v129 = vunpack.c.h.b16 %v36
    %v130 = vunpack.c.l.b16 %v37
    %v131 = vunpack.c.h.b16 %v37
    %v132 = vunpack.c.l.b16 %v38
    %v133 = vunpack.c.h.b16 %v38
    %v134 = vunpack.c.l.b16 %v39
    %v135 = vunpack.c.h.b16 %v39
    %v136 = vunpack.c.l.b16 %v40
    %v137 = vunpack.c.h.b16 %v40
    %v138 = vunpack.c.l.b16 %v41
    %v139 = vunpack.c.h.b16 %v41
    %v140 = vunpack.c.l.b16 %v42
    %v141 = vunpack.c.h.b16 %v42
    %v142 = vunpack.c.l.b16 %v43
    %v143 = vunpack.c.h.b16 %v43
    %v144 = vunpack.c.l.b16 %v44
    %v145 = vunpack.c.h.b16 %v44
    %v146 = vunpack.c.l.b16 %v45
    %v147 = vunpack.c.h.b16 %v45
    %v148 = vunpack.c.l.b16 %v46
    %v149 = vunpack.c.h.b16 %v46
    %v150 = vunpack.c.l.b16 %v47
    %v151 = vunpack.c.h.b16 %v47
    %v152 = vunpack.c.l.b16 %v48
    %v153 = vunpack.c.h.b16 %v48
    %v154 = vunpack.c.l.b16 %v49
    %v155 = vunpack.c.h.b16 %v49
    %v156 = vunpack.c.l.b16 %v50
    %v157 = vunpack.c.h.b16 %v50
    %v158 = vunpack.c.l.b16 %v51
    %v159 = vunpack.c.h.b16 %v51
    %v160 = vunpack.c.l.b16 %v52
    %v161 = vunpack.c.h.b16 %v52
    %v162 = vunpack.c.l.b16 %v53
    %v163 = vunpack.c.h.b16 %v53
    %v164 = vunpack.c.l.b16 %v54
    %v165 = vunpack.c.h.b16 %v54
    %v166 = vunpack.c.l.b16 %v55
    %v167 = vunpack.c.h.b16 %v55
    %v168 = vunpack.c.l.b16 %v56
    %v169 = vunpack.c.h.b16 %v56
    %v170 = vunpack.c.l.b16 %v57
    %v171 = vunpack.c.h.b16 %v57
    %v172 = vunpack.c.l.b16 %v58
    %v173 = vunpack.c.h.b16 %v58
    %v174 = vunpack.c.l.b16 %v59
    %v175 = vunpack.c.h.b16 %v59
    %v176 = vunpack.c.l.b16 %v60
    %v177 = vunpack.c.h.b16 %v60
    %v178 = vunpack.c.l.b16 %v61
    %v179 = vunpack.c.h.b16 %v61
    %v180 = vunpack.c.l.b16 %v62
    %v181 = vunpack.c.h.b16 %v62
    %v182 = vunpack.c.l.b16 %v63
    %v183 = vunpack.c.h.b16 %v63
    %v184 = vunpack.c.l.b16 %v64
    %v185 = vunpack.c.h.b16 %v64
    %v186 = vunpack.c.l.b16 %v65
    %v187 = vunpack.c.h.b16 %v65
    %v188 = vpack.c.b16 %v126, %v124
    %v189 = vpack.c.b16 %v127, %v125
    %v190 = vpack.c.b16 %v130, %v128
    %v191 = vpack.c.b16 %v131, %v129
    %v192 = vpack.c.b16 %v134, %v132
    %v193 = vpack.c.b16 %v135, %v133
    %v194 = vpack.c.b16 %v138, %v136
    %v195 = vpack.c.b16 %v139, %v137
    %v196 = vpack.c.b16 %v142, %v140
    %v197 = vpack.c.b16 %v143, %v141
    %v198 = vpack.c.b16 %v146, %v144
    %v199 = vpack.c.b16 %v147, %v145
    %v200 = vpack.c.b16 %v150, %v148
    %v201 = vpack.c.b16 %v151, %v149
    %v202 = vpack.c.b16 %v154, %v152
    %v203 = vpack.c.b16 %v155, %v153
    %v204 = vpack.c.b16 %v158, %v156
    %v205 = vpack.c.b16 %v159, %v157
    %v206 = vpack.c.b16 %v162, %v160
    %v207 = vpack.c.b16 %v163, %v161
    %v208 = vpack.c.b16 %v166, %v164
    %v209 = vpack.c.b16 %v167, %v165
    %v210 = vpack.c.b16 %v170, %v168
    %v211 = vpack.c.b16 %v171, %v169
    %v212 = vpack.c.b16 %v174, %v172
    %v213 = vpack.c.b16 %v175, %v173
    %v214 = vpack.c.b16 %v178, %v176
    %v215 = vpack.c.b16 %v179, %v177
    %v216 = vpack.c.b16 %v182, %v180
    %v217 = vpack.c.b16 %v183, %v181
    %v218 = vpack.c.b16 %v186, %v184
    %v219 = vpack.c.b16 %v187, %v185
    %252 = vmatpush.bf16.msra.mxu0 %v202
    %253 = vmatpush.bf16.msra.mxu0 %v200
    %254 = vmatpush.bf16.msra.mxu0 %v198
    %255 = vmatpush.bf16.msra.mxu0 %v196
    %256 = vmatpush.bf16.msra.mxu0 %v194
    %257 = vmatpush.bf16.msra.mxu0 %v192
    %258 = vmatpush.bf16.msra.mxu0 %v190
    %259 = vmatpush.bf16.msra.mxu0 %v188
    %260 = vmatmul.bf16.gmra.mxu0 %v84
    %v261 = vpop.f32.mrf.mxu0
    %v262 = vadd.f32 %v68, %v261
    %v263 = vpop.f32.mrf.mxu0
    %v264 = vadd.f32 %v68, %v263
    %265 = vmatmul.bf16.gmra.mxu0 %v86
    %v266 = vpop.f32.mrf.mxu0
    %v267 = vadd.f32 %v68, %v266
    %v268 = vpop.f32.mrf.mxu0
    %v269 = vadd.f32 %v68, %v268
    %270 = vdwg.mxu0
    %271 = vmatpush.bf16.msra.mxu0 %v218
    %272 = vmatpush.bf16.msra.mxu0 %v216
    %273 = vmatpush.bf16.msra.mxu0 %v214
    %274 = vmatpush.bf16.msra.mxu0 %v212
    %275 = vmatpush.bf16.msra.mxu0 %v210
    %276 = vmatpush.bf16.msra.mxu0 %v208
    %277 = vmatpush.bf16.msra.mxu0 %v206
    %278 = vmatpush.bf16.msra.mxu0 %v204
    %279 = vmatmul.bf16.gmra.mxu0 %v85
    %v280 = vpop.f32.mrf.mxu0
    %v281 = vadd.f32 %v262, %v280
    %v282 = vpop.f32.mrf.mxu0
    %v283 = vadd.f32 %v264, %v282
    %284 = vmatmul.bf16.gmra.mxu0 %v87
    %v285 = vpop.f32.mrf.mxu0
    %v286 = vadd.f32 %v267, %v285
    %v287 = vpop.f32.mrf.mxu0
    %v288 = vadd.f32 %v269, %v287
    %289 = vdwg.mxu0
    %290 = vmatpush.bf16.msra.mxu0 %v203
    %291 = vmatpush.bf16.msra.mxu0 %v201
    %292 = vmatpush.bf16.msra.mxu0 %v199
    %293 = vmatpush.bf16.msra.mxu0 %v197
    %294 = vmatpush.bf16.msra.mxu0 %v195
    %295 = vmatpush.bf16.msra.mxu0 %v193
    %296 = vmatpush.bf16.msra.mxu0 %v191
    %297 = vmatpush.bf16.msra.mxu0 %v189
    %298 = vmatmul.bf16.gmra.mxu0 %v84
    %v299 = vpop.f32.mrf.mxu0
    %v300 = vadd.f32 %v69, %v299
    %v301 = vpop.f32.mrf.mxu0
    %v302 = vadd.f32 %v69, %v301
    %303 = vmatmul.bf16.gmra.mxu0 %v86
    %v304 = vpop.f32.mrf.mxu0
    %v305 = vadd.f32 %v69, %v304
    %v306 = vpop.f32.mrf.mxu0
    %v307 = vadd.f32 %v69, %v306
    %308 = vdwg.mxu0
    %309 = vmatpush.bf16.msra.mxu0 %v219
    %310 = vmatpush.bf16.msra.mxu0 %v217
    %311 = vmatpush.bf16.msra.mxu0 %v215
    %312 = vmatpush.bf16.msra.mxu0 %v213
    %313 = vmatpush.bf16.msra.mxu0 %v211
    %314 = vmatpush.bf16.msra.mxu0 %v209
    %315 = vmatpush.bf16.msra.mxu0 %v207
    %316 = vmatpush.bf16.msra.mxu0 %v205
    %317 = vmatmul.bf16.gmra.mxu0 %v85
    %v318 = vpop.f32.mrf.mxu0
    %v319 = vadd.f32 %v300, %v318
    %v320 = vpop.f32.mrf.mxu0
    %v321 = vadd.f32 %v302, %v320
    %322 = vmatmul.bf16.gmra.mxu0 %v87
    %v323 = vpop.f32.mrf.mxu0
    %v324 = vadd.f32 %v305, %v323
    %v325 = vpop.f32.mrf.mxu0
    %v326 = vadd.f32 %v307, %v325
    %327 = vdwg.mxu0
    %v328 = vpack.c.bf16 %v319, %v281
    %v329 = vpack.c.bf16 %v321, %v283
    %v330 = vpack.c.bf16 %v324, %v286
    %v331 = vpack.c.bf16 %v326, %v288
    %332 = vst [vmem:[%s3] sm:$0xff] %v328
    %333 = vst [vmem:[%s3 + $0x8] sm:$0xff] %v329
    %334 = vst [vmem:[%s3 + $0x10] sm:$0xff] %v330
    %335 = vst [vmem:[%s3 + $0x18] sm:$0xff] %v331
    // Predicated region
    $region18: #{bert_mlm_forward.28} parent=1 // pred_check
      _
    $region19: #{bert_mlm_forward.28} parent=1 // pred_check_branch
      %337 = sbr.rel (0) target = $region21
    $region20: #{bert_mlm_forward.28} parent=1 // pred_region
      _
    $region21: #{bert_mlm_forward.28} parent=1 // pred_fallthru
      _
    // Predicated region
    $region22: #{bert_mlm_forward.28} parent=1 // pred_check
      _
    $region23: #{bert_mlm_forward.28} parent=1 // pred_check_branch
      %339 = sbr.rel (0) target = $region25
    $region24: #{bert_mlm_forward.28} parent=1 // pred_region
      _
    $region25: #{bert_mlm_forward.28} parent=1 // pred_fallthru
      _
    %340 = vsyncpa [#allocation3], 1

// kernel: bert_mlm_forward.30
$region0: #{bert_mlm_forward.30}
  #allocation0 [shape = 'u32[]', space=smem, size = 0x4, offset = 0x4, fixed_abs, tag = 'smem constant byte address 0x4 - core index']
  #allocation1 [shape = 'u32[72,128]{1,0:T(1,128)}', space=vmem, size = 0x9000, scoped, tag = 'internal scratch']
  %s0 = inlined_call_operand.vmem [shape: bf16[32,256], index: 0, kind: input, shape index: {}]
  %s1 = inlined_call_operand.hbm [shape: bf16[256,512], index: 1, kind: input, shape index: {}]
  %s2 = inlined_call_operand.vmem [shape: f32[1,512], index: 2, kind: input, shape index: {}]
  %s3 = inlined_call_operand.vmem [shape: bf16[32,512], index: 3, kind: output, shape index: {}]
  %s4 = sld [smem:[#allocation0]]
  $region26: #{bert_mlm_forward.30} parent=0
    _
  %s6 = ssub.s32 1, %s4
  %s7 = scalar_select 0, %s6, %s4
  $region1: #{bert_mlm_forward.30} parent=0
    #allocation2 [shape = 'u8[262144]{0}', space=vmem, size = 0x40000, scoped, tag = 'input window, operand 1, single buffered']
    #allocation3 [shape = 's32[1]{0}', space=sflag, size = 0x4, scoped, tag = 'scoped memory for bert_mlm_forward.30']
    %8 = vsyncpa [#allocation3], 0
    // Predicated region
    $region2: #{bert_mlm_forward.30} parent=1 // pred_check
      _
    $region3: #{bert_mlm_forward.30} parent=1 // pred_check_branch
      %10 = sbr.rel (0) target = $region5
    $region4: #{bert_mlm_forward.30} parent=1 // pred_region
      _
    $region5: #{bert_mlm_forward.30} parent=1 // pred_fallthru
      _
    // Predicated region
    $region6: #{bert_mlm_forward.30} parent=1 // pred_check
      _
    $region7: #{bert_mlm_forward.30} parent=1 // pred_check_branch
      %12 = sbr.rel (0) target = $region9
    $region8: #{bert_mlm_forward.30} parent=1 // pred_region
      %14 = vsyncadd [#allocation3], 0
      %s15 = sshll.u32 %s1, 4
      %s16 = int_to_ptr.hbm [resolvable:$true] %s15
      %s17 = sshll.u32 [#allocation2], 4
      %s18 = int_to_ptr.vmem [resolvable:$true] %s17
      %23 = dma.hbm_to_vmem [thread:$0]  %s16, 8192, %s18, [#allocation3], 256, 256, 16
    $region9: #{bert_mlm_forward.30} parent=1 // pred_fallthru
      _
    // Predicated region
    $region10: #{bert_mlm_forward.30} parent=1 // pred_check
      _
    $region11: #{bert_mlm_forward.30} parent=1 // pred_check_branch
      %25 = sbr.rel (0) target = $region13
    $region12: #{bert_mlm_forward.30} parent=1 // pred_region
      _
    $region13: #{bert_mlm_forward.30} parent=1 // pred_fallthru
      _
    // Predicated region
    $region14: #{bert_mlm_forward.30} parent=1 // pred_check
      _
    $region15: #{bert_mlm_forward.30} parent=1 // pred_check_branch
      %27 = sbr.rel (0) target = $region17
    $region16: #{bert_mlm_forward.30} parent=1 // pred_region
      %29 = dma.done [#allocation3], 8192
    $region17: #{bert_mlm_forward.30} parent=1 // pred_fallthru
      _
    %v30 = vld [vmem:[%s0] sm:$0xff]
    %v31 = vld [vmem:[%s0 + $0x8] sm:$0xff]
    %v32 = vld [vmem:[%s0 + $0x10] sm:$0xff]
    %v33 = vld [vmem:[%s0 + $0x18] sm:$0xff]
    %v34 = vld [vmem:[#allocation2] sm:$0xff]
    %v35 = vld [vmem:[#allocation2 + $0x8] sm:$0xff]
    %v36 = vld [vmem:[#allocation2 + $0x10] sm:$0xff]
    %v37 = vld [vmem:[#allocation2 + $0x18] sm:$0xff]
    %v38 = vld [vmem:[#allocation2 + $0x20] sm:$0xff]
    %v39 = vld [vmem:[#allocation2 + $0x28] sm:$0xff]
    %v40 = vld [vmem:[#allocation2 + $0x30] sm:$0xff]
    %v41 = vld [vmem:[#allocation2 + $0x38] sm:$0xff]
    %v42 = vld [vmem:[#allocation2 + $0x40] sm:$0xff]
    %v43 = vld [vmem:[#allocation2 + $0x48] sm:$0xff]
    %v44 = vld [vmem:[#allocation2 + $0x50] sm:$0xff]
    %v45 = vld [vmem:[#allocation2 + $0x58] sm:$0xff]
    %v46 = vld [vmem:[#allocation2 + $0x60] sm:$0xff]
    %v47 = vld [vmem:[#allocation2 + $0x68] sm:$0xff]
    %v48 = vld [vmem:[#allocation2 + $0x70] sm:$0xff]
    %v49 = vld [vmem:[#allocation2 + $0x78] sm:$0xff]
    %v50 = vld [vmem:[#allocation2 + $0x80] sm:$0xff]
    %v51 = vld [vmem:[#allocation2 + $0x88] sm:$0xff]
    %v52 = vld [vmem:[#allocation2 + $0x90] sm:$0xff]
    %v53 = vld [vmem:[#allocation2 + $0x98] sm:$0xff]
    %v54 = vld [vmem:[#allocation2 + $0xa0] sm:$0xff]
    %v55 = vld [vmem:[#allocation2 + $0xa8] sm:$0xff]
    %v56 = vld [vmem:[#allocation2 + $0xb0] sm:$0xff]
    %v57 = vld [vmem:[#allocation2 + $0xb8] sm:$0xff]
    %v58 = vld [vmem:[#allocation2 + $0xc0] sm:$0xff]
    %v59 = vld [vmem:[#allocation2 + $0xc8] sm:$0xff]
    %v60 = vld [vmem:[#allocation2 + $0xd0] sm:$0xff]
    %v61 = vld [vmem:[#allocation2 + $0xd8] sm:$0xff]
    %v62 = vld [vmem:[#allocation2 + $0xe0] sm:$0xff]
    %v63 = vld [vmem:[#allocation2 + $0xe8] sm:$0xff]
    %v64 = vld [vmem:[#allocation2 + $0xf0] sm:$0xff]
    %v65 = vld [vmem:[#allocation2 + $0xf8] sm:$0xff]
    %v66 = vld [vmem:[#allocation2 + $0x100] sm:$0xff]
    %v67 = vld [vmem:[#allocation2 + $0x108] sm:$0xff]
    %v68 = vld [vmem:[#allocation2 + $0x110] sm:$0xff]
    %v69 = vld [vmem:[#allocation2 + $0x118] sm:$0xff]
    %v70 = vld [vmem:[#allocation2 + $0x120] sm:$0xff]
    %v71 = vld [vmem:[#allocation2 + $0x128] sm:$0xff]
    %v72 = vld [vmem:[#allocation2 + $0x130] sm:$0xff]
    %v73 = vld [vmem:[#allocation2 + $0x138] sm:$0xff]
    %v74 = vld [vmem:[#allocation2 + $0x140] sm:$0xff]
    %v75 = vld [vmem:[#allocation2 + $0x148] sm:$0xff]
    %v76 = vld [vmem:[#allocation2 + $0x150] sm:$0xff]
    %v77 = vld [vmem:[#allocation2 + $0x158] sm:$0xff]
    %v78 = vld [vmem:[#allocation2 + $0x160] sm:$0xff]
    %v79 = vld [vmem:[#allocation2 + $0x168] sm:$0xff]
    %v80 = vld [vmem:[#allocation2 + $0x170] sm:$0xff]
    %v81 = vld [vmem:[#allocation2 + $0x178] sm:$0xff]
    %v82 = vld [vmem:[#allocation2 + $0x180] sm:$0xff]
    %v83 = vld [vmem:[#allocation2 + $0x188] sm:$0xff]
    %v84 = vld [vmem:[#allocation2 + $0x190] sm:$0xff]
    %v85 = vld [vmem:[#allocation2 + $0x198] sm:$0xff]
    %v86 = vld [vmem:[#allocation2 + $0x1a0] sm:$0xff]
    %v87 = vld [vmem:[#allocation2 + $0x1a8] sm:$0xff]
    %v88 = vld [vmem:[#allocation2 + $0x1b0] sm:$0xff]
    %v89 = vld [vmem:[#allocation2 + $0x1b8] sm:$0xff]
    %v90 = vld [vmem:[#allocation2 + $0x1c0] sm:$0xff]
    %v91 = vld [vmem:[#allocation2 + $0x1c8] sm:$0xff]
    %v92 = vld [vmem:[#allocation2 + $0x1d0] sm:$0xff]
    %v93 = vld [vmem:[#allocation2 + $0x1d8] sm:$0xff]
    %v94 = vld [vmem:[#allocation2 + $0x1e0] sm:$0xff]
    %v95 = vld [vmem:[#allocation2 + $0x1e8] sm:$0xff]
    %v96 = vld [vmem:[#allocation2 + $0x1f0] sm:$0xff]
    %v97 = vld [vmem:[#allocation2 + $0x1f8] sm:$0xff]
    %v98 = vld [vmem:[%s2] sm:$0xf]
    %v100 = vperm.slane %v98, 0
    %v101 = vperm.slane %v98, 1
    %v102 = vperm.slane %v98, 2
    %v103 = vperm.slane %v98, 3
    %v112 = vunpack.c.l.b16 %v30
    %v113 = vunpack.c.h.b16 %v30
    %v114 = vunpack.c.l.b16 %v31
    %v115 = vunpack.c.h.b16 %v31
    %v116 = vunpack.c.l.b16 %v32
    %v117 = vunpack.c.h.b16 %v32
    %v118 = vunpack.c.l.b16 %v33
    %v119 = vunpack.c.h.b16 %v33
    %v120 = vpack.c.b16 %v114, %v112
    %v121 = vpack.c.b16 %v115, %v113
    %v122 = vpack.c.b16 %v118, %v116
    %v123 = vpack.c.b16 %v119, %v117
    %v192 = vunpack.c.l.b16 %v34
    %v193 = vunpack.c.h.b16 %v34
    %v194 = vunpack.c.l.b16 %v35
    %v195 = vunpack.c.h.b16 %v35
    %v196 = vunpack.c.l.b16 %v36
    %v197 = vunpack.c.h.b16 %v36
    %v198 = vunpack.c.l.b16 %v37
    %v199 = vunpack.c.h.b16 %v37
    %v200 = vunpack.c.l.b16 %v38
    %v201 = vunpack.c.h.b16 %v38
    %v202 = vunpack.c.l.b16 %v39
    %v203 = vunpack.c.h.b16 %v39
    %v204 = vunpack.c.l.b16 %v40
    %v205 = vunpack.c.h.b16 %v40
    %v206 = vunpack.c.l.b16 %v41
    %v207 = vunpack.c.h.b16 %v41
    %v208 = vunpack.c.l.b16 %v42
    %v209 = vunpack.c.h.b16 %v42
    %v210 = vunpack.c.l.b16 %v43
    %v211 = vunpack.c.h.b16 %v43
    %v212 = vunpack.c.l.b16 %v44
    %v213 = vunpack.c.h.b16 %v44
    %v214 = vunpack.c.l.b16 %v45
    %v215 = vunpack.c.h.b16 %v45
    %v216 = vunpack.c.l.b16 %v46
    %v217 = vunpack.c.h.b16 %v46
    %v218 = vunpack.c.l.b16 %v47
    %v219 = vunpack.c.h.b16 %v47
    %v220 = vunpack.c.l.b16 %v48
    %v221 = vunpack.c.h.b16 %v48
    %v222 = vunpack.c.l.b16 %v49
    %v223 = vunpack.c.h.b16 %v49
    %v224 = vunpack.c.l.b16 %v50
    %v225 = vunpack.c.h.b16 %v50
    %v226 = vunpack.c.l.b16 %v51
    %v227 = vunpack.c.h.b16 %v51
    %v228 = vunpack.c.l.b16 %v52
    %v229 = vunpack.c.h.b16 %v52
    %v230 = vunpack.c.l.b16 %v53
    %v231 = vunpack.c.h.b16 %v53
    %v232 = vunpack.c.l.b16 %v54
    %v233 = vunpack.c.h.b16 %v54
    %v234 = vunpack.c.l.b16 %v55
    %v235 = vunpack.c.h.b16 %v55
    %v236 = vunpack.c.l.b16 %v56
    %v237 = vunpack.c.h.b16 %v56
    %v238 = vunpack.c.l.b16 %v57
    %v239 = vunpack.c.h.b16 %v57
    %v240 = vunpack.c.l.b16 %v58
    %v241 = vunpack.c.h.b16 %v58
    %v242 = vunpack.c.l.b16 %v59
    %v243 = vunpack.c.h.b16 %v59
    %v244 = vunpack.c.l.b16 %v60
    %v245 = vunpack.c.h.b16 %v60
    %v246 = vunpack.c.l.b16 %v61
    %v247 = vunpack.c.h.b16 %v61
    %v248 = vunpack.c.l.b16 %v62
    %v249 = vunpack.c.h.b16 %v62
    %v250 = vunpack.c.l.b16 %v63
    %v251 = vunpack.c.h.b16 %v63
    %v252 = vunpack.c.l.b16 %v64
    %v253 = vunpack.c.h.b16 %v64
    %v254 = vunpack.c.l.b16 %v65
    %v255 = vunpack.c.h.b16 %v65
    %v256 = vunpack.c.l.b16 %v66
    %v257 = vunpack.c.h.b16 %v66
    %v258 = vunpack.c.l.b16 %v67
    %v259 = vunpack.c.h.b16 %v67
    %v260 = vunpack.c.l.b16 %v68
    %v261 = vunpack.c.h.b16 %v68
    %v262 = vunpack.c.l.b16 %v69
    %v263 = vunpack.c.h.b16 %v69
    %v264 = vunpack.c.l.b16 %v70
    %v265 = vunpack.c.h.b16 %v70
    %v266 = vunpack.c.l.b16 %v71
    %v267 = vunpack.c.h.b16 %v71
    %v268 = vunpack.c.l.b16 %v72
    %v269 = vunpack.c.h.b16 %v72
    %v270 = vunpack.c.l.b16 %v73
    %v271 = vunpack.c.h.b16 %v73
    %v272 = vunpack.c.l.b16 %v74
    %v273 = vunpack.c.h.b16 %v74
    %v274 = vunpack.c.l.b16 %v75
    %v275 = vunpack.c.h.b16 %v75
    %v276 = vunpack.c.l.b16 %v76
    %v277 = vunpack.c.h.b16 %v76
    %v278 = vunpack.c.l.b16 %v77
    %v279 = vunpack.c.h.b16 %v77
    %v280 = vunpack.c.l.b16 %v78
    %v281 = vunpack.c.h.b16 %v78
    %v282 = vunpack.c.l.b16 %v79
    %v283 = vunpack.c.h.b16 %v79
    %v284 = vunpack.c.l.b16 %v80
    %v285 = vunpack.c.h.b16 %v80
    %v286 = vunpack.c.l.b16 %v81
    %v287 = vunpack.c.h.b16 %v81
    %v288 = vunpack.c.l.b16 %v82
    %v289 = vunpack.c.h.b16 %v82
    %v290 = vunpack.c.l.b16 %v83
    %v291 = vunpack.c.h.b16 %v83
    %v292 = vunpack.c.l.b16 %v84
    %v293 = vunpack.c.h.b16 %v84
    %v294 = vunpack.c.l.b16 %v85
    %v295 = vunpack.c.h.b16 %v85
    %v296 = vunpack.c.l.b16 %v86
    %v297 = vunpack.c.h.b16 %v86
    %v298 = vunpack.c.l.b16 %v87
    %v299 = vunpack.c.h.b16 %v87
    %v300 = vunpack.c.l.b16 %v88
    %v301 = vunpack.c.h.b16 %v88
    %v302 = vunpack.c.l.b16 %v89
    %v303 = vunpack.c.h.b16 %v89
    %v304 = vunpack.c.l.b16 %v90
    %v305 = vunpack.c.h.b16 %v90
    %v306 = vunpack.c.l.b16 %v91
    %v307 = vunpack.c.h.b16 %v91
    %v308 = vunpack.c.l.b16 %v92
    %v309 = vunpack.c.h.b16 %v92
    %v310 = vunpack.c.l.b16 %v93
    %v311 = vunpack.c.h.b16 %v93
    %v312 = vunpack.c.l.b16 %v94
    %v313 = vunpack.c.h.b16 %v94
    %v314 = vunpack.c.l.b16 %v95
    %v315 = vunpack.c.h.b16 %v95
    %v316 = vunpack.c.l.b16 %v96
    %v317 = vunpack.c.h.b16 %v96
    %v318 = vunpack.c.l.b16 %v97
    %v319 = vunpack.c.h.b16 %v97
    %v320 = vpack.c.b16 %v196, %v192
    %v321 = vpack.c.b16 %v197, %v193
    %v322 = vpack.c.b16 %v198, %v194
    %v323 = vpack.c.b16 %v199, %v195
    %v324 = vpack.c.b16 %v204, %v200
    %v325 = vpack.c.b16 %v205, %v201
    %v326 = vpack.c.b16 %v206, %v202
    %v327 = vpack.c.b16 %v207, %v203
    %v328 = vpack.c.b16 %v212, %v208
    %v329 = vpack.c.b16 %v213, %v209
    %v330 = vpack.c.b16 %v214, %v210
    %v331 = vpack.c.b16 %v215, %v211
    %v332 = vpack.c.b16 %v220, %v216
    %v333 = vpack.c.b16 %v221, %v217
    %v334 = vpack.c.b16 %v222, %v218
    %v335 = vpack.c.b16 %v223, %v219
    %v336 = vpack.c.b16 %v228, %v224
    %v337 = vpack.c.b16 %v229, %v225
    %v338 = vpack.c.b16 %v230, %v226
    %v339 = vpack.c.b16 %v231, %v227
    %v340 = vpack.c.b16 %v236, %v232
    %v341 = vpack.c.b16 %v237, %v233
    %v342 = vpack.c.b16 %v238, %v234
    %v343 = vpack.c.b16 %v239, %v235
    %v344 = vpack.c.b16 %v244, %v240
    %v345 = vpack.c.b16 %v245, %v241
    %v346 = vpack.c.b16 %v246, %v242
    %v347 = vpack.c.b16 %v247, %v243
    %v348 = vpack.c.b16 %v252, %v248
    %v349 = vpack.c.b16 %v253, %v249
    %v350 = vpack.c.b16 %v254, %v250
    %v351 = vpack.c.b16 %v255, %v251
    %v352 = vpack.c.b16 %v260, %v256
    %v353 = vpack.c.b16 %v261, %v257
    %v354 = vpack.c.b16 %v262, %v258
    %v355 = vpack.c.b16 %v263, %v259
    %v356 = vpack.c.b16 %v268, %v264
    %v357 = vpack.c.b16 %v269, %v265
    %v358 = vpack.c.b16 %v270, %v266
    %v359 = vpack.c.b16 %v271, %v267
    %v360 = vpack.c.b16 %v276, %v272
    %v361 = vpack.c.b16 %v277, %v273
    %v362 = vpack.c.b16 %v278, %v274
    %v363 = vpack.c.b16 %v279, %v275
    %v364 = vpack.c.b16 %v284, %v280
    %v365 = vpack.c.b16 %v285, %v281
    %v366 = vpack.c.b16 %v286, %v282
    %v367 = vpack.c.b16 %v287, %v283
    %v368 = vpack.c.b16 %v292, %v288
    %v369 = vpack.c.b16 %v293, %v289
    %v370 = vpack.c.b16 %v294, %v290
    %v371 = vpack.c.b16 %v295, %v291
    %v372 = vpack.c.b16 %v300, %v296
    %v373 = vpack.c.b16 %v301, %v297
    %v374 = vpack.c.b16 %v302, %v298
    %v375 = vpack.c.b16 %v303, %v299
    %v376 = vpack.c.b16 %v308, %v304
    %v377 = vpack.c.b16 %v309, %v305
    %v378 = vpack.c.b16 %v310, %v306
    %v379 = vpack.c.b16 %v311, %v307
    %v380 = vpack.c.b16 %v316, %v312
    %v381 = vpack.c.b16 %v317, %v313
    %v382 = vpack.c.b16 %v318, %v314
    %v383 = vpack.c.b16 %v319, %v315
    %448 = vmatpush.bf16.msra.mxu0 %v348
    %449 = vmatpush.bf16.msra.mxu0 %v344
    %450 = vmatpush.bf16.msra.mxu0 %v340
    %451 = vmatpush.bf16.msra.mxu0 %v336
    %452 = vmatpush.bf16.msra.mxu0 %v332
    %453 = vmatpush.bf16.msra.mxu0 %v328
    %454 = vmatpush.bf16.msra.mxu0 %v324
    %455 = vmatpush.bf16.msra.mxu0 %v320
    %456 = vmatmul.bf16.gmra.mxu0 %v120
    %v457 = vpop.f32.mrf.mxu0
    %v458 = vadd.f32 %v100, %v457
    %v459 = vpop.f32.mrf.mxu0
    %v460 = vadd.f32 %v100, %v459
    %461 = vmatmul.bf16.gmra.mxu0 %v122
    %v462 = vpop.f32.mrf.mxu0
    %v463 = vadd.f32 %v100, %v462
    %v464 = vpop.f32.mrf.mxu0
    %v465 = vadd.f32 %v100, %v464
    %466 = vdwg.mxu0
    %467 = vmatpush.bf16.msra.mxu0 %v380
    %468 = vmatpush.bf16.msra.mxu0 %v376
    %469 = vmatpush.bf16.msra.mxu0 %v372
    %470 = vmatpush.bf16.msra.mxu0 %v368
    %471 = vmatpush.bf16.msra.mxu0 %v364
    %472 = vmatpush.bf16.msra.mxu0 %v360
    %473 = vmatpush.bf16.msra.mxu0 %v356
    %474 = vmatpush.bf16.msra.mxu0 %v352
    %475 = vmatmul.bf16.gmra.mxu0 %v121
    %v476 = vpop.f32.mrf.mxu0
    %v477 = vadd.f32 %v458, %v476
    %v478 = vpop.f32.mrf.mxu0
    %v479 = vadd.f32 %v460, %v478
    %480 = vmatmul.bf16.gmra.mxu0 %v123
    %v481 = vpop.f32.mrf.mxu0
    %v482 = vadd.f32 %v463, %v481
    %v483 = vpop.f32.mrf.mxu0
    %v484 = vadd.f32 %v465, %v483
    %485 = vdwg.mxu0
    %486 = vmatpush.bf16.msra.mxu0 %v349
    %487 = vmatpush.bf16.msra.mxu0 %v345
    %488 = vmatpush.bf16.msra.mxu0 %v341
    %489 = vmatpush.bf16.msra.mxu0 %v337
    %490 = vmatpush.bf16.msra.mxu0 %v333
    %491 = vmatpush.bf16.msra.mxu0 %v329
    %492 = vmatpush.bf16.msra.mxu0 %v325
    %493 = vmatpush.bf16.msra.mxu0 %v321
    %494 = vmatmul.bf16.gmra.mxu0 %v120
    %v495 = vpop.f32.mrf.mxu0
    %v496 = vadd.f32 %v101, %v495
    %v497 = vpop.f32.mrf.mxu0
    %v498 = vadd.f32 %v101, %v497
    %499 = vmatmul.bf16.gmra.mxu0 %v122
    %v500 = vpop.f32.mrf.mxu0
    %v501 = vadd.f32 %v101, %v500
    %v502 = vpop.f32.mrf.mxu0
    %v503 = vadd.f32 %v101, %v502
    %504 = vdwg.mxu0
    %505 = vmatpush.bf16.msra.mxu0 %v381
    %506 = vmatpush.bf16.msra.mxu0 %v377
    %507 = vmatpush.bf16.msra.mxu0 %v373
    %508 = vmatpush.bf16.msra.mxu0 %v369
    %509 = vmatpush.bf16.msra.mxu0 %v365
    %510 = vmatpush.bf16.msra.mxu0 %v361
    %511 = vmatpush.bf16.msra.mxu0 %v357
    %512 = vmatpush.bf16.msra.mxu0 %v353
    %513 = vmatmul.bf16.gmra.mxu0 %v121
    %v514 = vpop.f32.mrf.mxu0
    %v515 = vadd.f32 %v496, %v514
    %v516 = vpop.f32.mrf.mxu0
    %v517 = vadd.f32 %v498, %v516
    %518 = vmatmul.bf16.gmra.mxu0 %v123
    %v519 = vpop.f32.mrf.mxu0
    %v520 = vadd.f32 %v501, %v519
    %v521 = vpop.f32.mrf.mxu0
    %v522 = vadd.f32 %v503, %v521
    %523 = vdwg.mxu0
    %524 = vmatpush.bf16.msra.mxu0 %v350
    %525 = vmatpush.bf16.msra.mxu0 %v346
    %526 = vmatpush.bf16.msra.mxu0 %v342
    %527 = vmatpush.bf16.msra.mxu0 %v338
    %528 = vmatpush.bf16.msra.mxu0 %v334
    %529 = vmatpush.bf16.msra.mxu0 %v330
    %530 = vmatpush.bf16.msra.mxu0 %v326
    %531 = vmatpush.bf16.msra.mxu0 %v322
    %532 = vmatmul.bf16.gmra.mxu0 %v120
    %v533 = vpop.f32.mrf.mxu0
    %v534 = vadd.f32 %v102, %v533
    %v535 = vpop.f32.mrf.mxu0
    %v536 = vadd.f32 %v102, %v535
    %537 = vmatmul.bf16.gmra.mxu0 %v122
    %v538 = vpop.f32.mrf.mxu0
    %v539 = vadd.f32 %v102, %v538
    %v540 = vpop.f32.mrf.mxu0
    %v541 = vadd.f32 %v102, %v540
    %542 = vdwg.mxu0
    %543 = vmatpush.bf16.msra.mxu0 %v382
    %544 = vmatpush.bf16.msra.mxu0 %v378
    %545 = vmatpush.bf16.msra.mxu0 %v374
    %546 = vmatpush.bf16.msra.mxu0 %v370
    %547 = vmatpush.bf16.msra.mxu0 %v366
    %548 = vmatpush.bf16.msra.mxu0 %v362
    %549 = vmatpush.bf16.msra.mxu0 %v358
    %550 = vmatpush.bf16.msra.mxu0 %v354
    %551 = vmatmul.bf16.gmra.mxu0 %v121
    %v552 = vpop.f32.mrf.mxu0
    %v553 = vadd.f32 %v534, %v552
    %v554 = vpop.f32.mrf.mxu0
    %v555 = vadd.f32 %v536, %v554
    %556 = vmatmul.bf16.gmra.mxu0 %v123
    %v557 = vpop.f32.mrf.mxu0
    %v558 = vadd.f32 %v539, %v557
    %v559 = vpop.f32.mrf.mxu0
    %v560 = vadd.f32 %v541, %v559
    %561 = vdwg.mxu0
    %562 = vmatpush.bf16.msra.mxu0 %v351
    %563 = vmatpush.bf16.msra.mxu0 %v347
    %564 = vmatpush.bf16.msra.mxu0 %v343
    %565 = vmatpush.bf16.msra.mxu0 %v339
    %566 = vmatpush.bf16.msra.mxu0 %v335
    %567 = vmatpush.bf16.msra.mxu0 %v331
    %568 = vmatpush.bf16.msra.mxu0 %v327
    %569 = vmatpush.bf16.msra.mxu0 %v323
    %570 = vmatmul.bf16.gmra.mxu0 %v120
    %v571 = vpop.f32.mrf.mxu0
    %v572 = vadd.f32 %v103, %v571
    %v573 = vpop.f32.mrf.mxu0
    %v574 = vadd.f32 %v103, %v573
    %575 = vmatmul.bf16.gmra.mxu0 %v122
    %v576 = vpop.f32.mrf.mxu0
    %v577 = vadd.f32 %v103, %v576
    %v578 = vpop.f32.mrf.mxu0
    %v579 = vadd.f32 %v103, %v578
    %580 = vdwg.mxu0
    %581 = vmatpush.bf16.msra.mxu0 %v383
    %582 = vmatpush.bf16.msra.mxu0 %v379
    %583 = vmatpush.bf16.msra.mxu0 %v375
    %584 = vmatpush.bf16.msra.mxu0 %v371
    %585 = vmatpush.bf16.msra.mxu0 %v367
    %586 = vmatpush.bf16.msra.mxu0 %v363
    %587 = vmatpush.bf16.msra.mxu0 %v359
    %588 = vmatpush.bf16.msra.mxu0 %v355
    %589 = vmatmul.bf16.gmra.mxu0 %v121
    %v590 = vpop.f32.mrf.mxu0
    %v591 = vadd.f32 %v572, %v590
    %v592 = vpop.f32.mrf.mxu0
    %v593 = vadd.f32 %v574, %v592
    %594 = vmatmul.bf16.gmra.mxu0 %v123
    %v595 = vpop.f32.mrf.mxu0
    %v596 = vadd.f32 %v577, %v595
    %v597 = vpop.f32.mrf.mxu0
    %v598 = vadd.f32 %v579, %v597
    %599 = vdwg.mxu0
    %v600 = vmul.f32 %v477, 0.5
    %v601 = vmul.f32 %v515, 0.5
    %v602 = vmul.f32 %v553, 0.5
    %v603 = vmul.f32 %v591, 0.5
    %v604 = vmul.f32 %v479, 0.5
    %v605 = vmul.f32 %v517, 0.5
    %v606 = vmul.f32 %v555, 0.5
    %v607 = vmul.f32 %v593, 0.5
    %v608 = vmul.f32 %v482, 0.5
    %v609 = vmul.f32 %v520, 0.5
    %v610 = vmul.f32 %v558, 0.5
    %v611 = vmul.f32 %v596, 0.5
    %v612 = vmul.f32 %v484, 0.5
    %v613 = vmul.f32 %v522, 0.5
    %v614 = vmul.f32 %v560, 0.5
    %v615 = vmul.f32 %v598, 0.5
    %v616 = vmul.f32 %v477, 0.70710677
    %v617 = vmul.f32 %v515, 0.70710677
    %v618 = vmul.f32 %v553, 0.70710677
    %v619 = vmul.f32 %v591, 0.70710677
    %v620 = vmul.f32 %v479, 0.70710677
    %v621 = vmul.f32 %v517, 0.70710677
    %v622 = vmul.f32 %v555, 0.70710677
    %v623 = vmul.f32 %v593, 0.70710677
    %v624 = vmul.f32 %v482, 0.70710677
    %v625 = vmul.f32 %v520, 0.70710677
    %v626 = vmul.f32 %v558, 0.70710677
    %v627 = vmul.f32 %v596, 0.70710677
    %v628 = vmul.f32 %v484, 0.70710677
    %v629 = vmul.f32 %v522, 0.70710677
    %v630 = vmul.f32 %v560, 0.70710677
    %v631 = vmul.f32 %v598, 0.70710677
    %vm632 = vcmp.ge.f32.partialorder %v616, 0.0
    %vm633 = vcmp.ge.f32.partialorder %v617, 0.0
    %vm634 = vcmp.ge.f32.partialorder %v618, 0.0
    %vm635 = vcmp.ge.f32.partialorder %v619, 0.0
    %vm636 = vcmp.ge.f32.partialorder %v620, 0.0
    %vm637 = vcmp.ge.f32.partialorder %v621, 0.0
    %vm638 = vcmp.ge.f32.partialorder %v622, 0.0
    %vm639 = vcmp.ge.f32.partialorder %v623, 0.0
    %vm640 = vcmp.ge.f32.partialorder %v624, 0.0
    %vm641 = vcmp.ge.f32.partialorder %v625, 0.0
    %vm642 = vcmp.ge.f32.partialorder %v626, 0.0
    %vm643 = vcmp.ge.f32.partialorder %v627, 0.0
    %vm644 = vcmp.ge.f32.partialorder %v628, 0.0
    %vm645 = vcmp.ge.f32.partialorder %v629, 0.0
    %vm646 = vcmp.ge.f32.partialorder %v630, 0.0
    %vm647 = vcmp.ge.f32.partialorder %v631, 0.0
    %v648 = vsel %vm632, 1.0, -1.0
    %v649 = vsel %vm633, 1.0, -1.0
    %v650 = vsel %vm634, 1.0, -1.0
    %v651 = vsel %vm635, 1.0, -1.0
    %v652 = vsel %vm636, 1.0, -1.0
    %v653 = vsel %vm637, 1.0, -1.0
    %v654 = vsel %vm638, 1.0, -1.0
    %v655 = vsel %vm639, 1.0, -1.0
    %v656 = vsel %vm640, 1.0, -1.0
    %v657 = vsel %vm641, 1.0, -1.0
    %v658 = vsel %vm642, 1.0, -1.0
    %v659 = vsel %vm643, 1.0, -1.0
    %v660 = vsel %vm644, 1.0, -1.0
    %v661 = vsel %vm645, 1.0, -1.0
    %v662 = vsel %vm646, 1.0, -1.0
    %v663 = vsel %vm647, 1.0, -1.0
    %v664 = vand.u32 2147483647, %v616
    %v665 = vand.u32 2147483647, %v617
    %v666 = vand.u32 2147483647, %v618
    %v667 = vand.u32 2147483647, %v619
    %v668 = vand.u32 2147483647, %v620
    %v669 = vand.u32 2147483647, %v621
    %v670 = vand.u32 2147483647, %v622
    %v671 = vand.u32 2147483647, %v623
    %v672 = vand.u32 2147483647, %v624
    %v673 = vand.u32 2147483647, %v625
    %v674 = vand.u32 2147483647, %v626
    %v675 = vand.u32 2147483647, %v627
    %v676 = vand.u32 2147483647, %v628
    %v677 = vand.u32 2147483647, %v629
    %v678 = vand.u32 2147483647, %v630
    %v679 = vand.u32 2147483647, %v631
    %v680 = vmul.f32 %v664, 0.3275911
    %v681 = vmul.f32 %v665, 0.3275911
    %v682 = vmul.f32 %v666, 0.3275911
    %v683 = vmul.f32 %v667, 0.3275911
    %v684 = vmul.f32 %v668, 0.3275911
    %v685 = vmul.f32 %v669, 0.3275911
    %v686 = vmul.f32 %v670, 0.3275911
    %v687 = vmul.f32 %v671, 0.3275911
    %v688 = vmul.f32 %v672, 0.3275911
    %v689 = vmul.f32 %v673, 0.3275911
    %v690 = vmul.f32 %v674, 0.3275911
    %v691 = vmul.f32 %v675, 0.3275911
    %v692 = vmul.f32 %v676, 0.3275911
    %v693 = vmul.f32 %v677, 0.3275911
    %v694 = vmul.f32 %v678, 0.3275911
    %v695 = vmul.f32 %v679, 0.3275911
    %v696 = vadd.f32 %v680, 1.0
    %v697 = vadd.f32 %v681, 1.0
    %v698 = vadd.f32 %v682, 1.0
    %v699 = vadd.f32 %v683, 1.0
    %v700 = vadd.f32 %v684, 1.0
    %v701 = vadd.f32 %v685, 1.0
    %v702 = vadd.f32 %v686, 1.0
    %v703 = vadd.f32 %v687, 1.0
    %v704 = vadd.f32 %v688, 1.0
    %v705 = vadd.f32 %v689, 1.0
    %v706 = vadd.f32 %v690, 1.0
    %v707 = vadd.f32 %v691, 1.0
    %v708 = vadd.f32 %v692, 1.0
    %v709 = vadd.f32 %v693, 1.0
    %v710 = vadd.f32 %v694, 1.0
    %v711 = vadd.f32 %v695, 1.0
    %v712 = vrcp.pop %v696
    %v713 = vmul.f32 %v696, %v712
    %v714 = vsub.f32 1.0, %v713
    %v715 = vmul.f32 %v712, %v714
    %v716 = vadd.f32 %v712, %v715
    %vm717 = vweird.f32 %v696
    %vm718 = vweird.f32 %v712
    %vm719 = vmor %vm717, %vm718
    %v720 = vsel %vm719, %v712, %v716
    %v721 = vand.u32 2147483647, %v696
    %vm722 = vcmp.eq.f32.partialorder %v721, 8.507059e+37
    %v723 = vand.u32 %v696, 2147483648
    %v724 = vor.u32 1.1754944e-38, %v723
    %v725 = vsel %vm722, %v724, %v720
    %v726 = vmul.f32 1.0, %v725
    %v727 = vrcp.pop %v697
    %v728 = vmul.f32 %v697, %v727
    %v729 = vsub.f32 1.0, %v728
    %v730 = vmul.f32 %v727, %v729
    %v731 = vadd.f32 %v727, %v730
    %vm732 = vweird.f32 %v697
    %vm733 = vweird.f32 %v727
    %vm734 = vmor %vm732, %vm733
    %v735 = vsel %vm734, %v727, %v731
    %v736 = vand.u32 2147483647, %v697
    %vm737 = vcmp.eq.f32.partialorder %v736, 8.507059e+37
    %v738 = vand.u32 %v697, 2147483648
    %v739 = vor.u32 1.1754944e-38, %v738
    %v740 = vsel %vm737, %v739, %v735
    %v741 = vmul.f32 1.0, %v740
    %v742 = vrcp.pop %v698
    %v743 = vmul.f32 %v698, %v742
    %v744 = vsub.f32 1.0, %v743
    %v745 = vmul.f32 %v742, %v744
    %v746 = vadd.f32 %v742, %v745
    %vm747 = vweird.f32 %v698
    %vm748 = vweird.f32 %v742
    %vm749 = vmor %vm747, %vm748
    %v750 = vsel %vm749, %v742, %v746
    %v751 = vand.u32 2147483647, %v698
    %vm752 = vcmp.eq.f32.partialorder %v751, 8.507059e+37
    %v753 = vand.u32 %v698, 2147483648
    %v754 = vor.u32 1.1754944e-38, %v753
    %v755 = vsel %vm752, %v754, %v750
    %v756 = vmul.f32 1.0, %v755
    %v757 = vrcp.pop %v699
    %v758 = vmul.f32 %v699, %v757
    %v759 = vsub.f32 1.0, %v758
    %v760 = vmul.f32 %v757, %v759
    %v761 = vadd.f32 %v757, %v760
    %vm762 = vweird.f32 %v699
    %vm763 = vweird.f32 %v757
    %vm764 = vmor %vm762, %vm763
    %v765 = vsel %vm764, %v757, %v761
    %v766 = vand.u32 2147483647, %v699
    %vm767 = vcmp.eq.f32.partialorder %v766, 8.507059e+37
    %v768 = vand.u32 %v699, 2147483648
    %v769 = vor.u32 1.1754944e-38, %v768
    %v770 = vsel %vm767, %v769, %v765
    %v771 = vmul.f32 1.0, %v770
    %v772 = vrcp.pop %v700
    %v773 = vmul.f32 %v700, %v772
    %v774 = vsub.f32 1.0, %v773
    %v775 = vmul.f32 %v772, %v774
    %v776 = vadd.f32 %v772, %v775
    %vm777 = vweird.f32 %v700
    %vm778 = vweird.f32 %v772
    %vm779 = vmor %vm777, %vm778
    %v780 = vsel %vm779, %v772, %v776
    %v781 = vand.u32 2147483647, %v700
    %vm782 = vcmp.eq.f32.partialorder %v781, 8.507059e+37
    %v783 = vand.u32 %v700, 2147483648
    %v784 = vor.u32 1.1754944e-38, %v783
    %v785 = vsel %vm782, %v784, %v780
    %v786 = vmul.f32 1.0, %v785
    %v787 = vrcp.pop %v701
    %v788 = vmul.f32 %v701, %v787
    %v789 = vsub.f32 1.0, %v788
    %v790 = vmul.f32 %v787, %v789
    %v791 = vadd.f32 %v787, %v790
    %vm792 = vweird.f32 %v701
    %vm793 = vweird.f32 %v787
    %vm794 = vmor %vm792, %vm793
    %v795 = vsel %vm794, %v787, %v791
    %v796 = vand.u32 2147483647, %v701
    %vm797 = vcmp.eq.f32.partialorder %v796, 8.507059e+37
    %v798 = vand.u32 %v701, 2147483648
    %v799 = vor.u32 1.1754944e-38, %v798
    %v800 = vsel %vm797, %v799, %v795
    %v801 = vmul.f32 1.0, %v800
    %v802 = vrcp.pop %v702
    %v803 = vmul.f32 %v702, %v802
    %v804 = vsub.f32 1.0, %v803
    %v805 = vmul.f32 %v802, %v804
    %v806 = vadd.f32 %v802, %v805
    %vm807 = vweird.f32 %v702
    %vm808 = vweird.f32 %v802
    %vm809 = vmor %vm807, %vm808
    %v810 = vsel %vm809, %v802, %v806
    %v811 = vand.u32 2147483647, %v702
    %vm812 = vcmp.eq.f32.partialorder %v811, 8.507059e+37
    %v813 = vand.u32 %v702, 2147483648
    %v814 = vor.u32 1.1754944e-38, %v813
    %v815 = vsel %vm812, %v814, %v810
    %v816 = vmul.f32 1.0, %v815
    %v817 = vrcp.pop %v703
    %v818 = vmul.f32 %v703, %v817
    %v819 = vsub.f32 1.0, %v818
    %v820 = vmul.f32 %v817, %v819
    %v821 = vadd.f32 %v817, %v820
    %vm822 = vweird.f32 %v703
    %vm823 = vweird.f32 %v817
    %vm824 = vmor %vm822, %vm823
    %v825 = vsel %vm824, %v817, %v821
    %v826 = vand.u32 2147483647, %v703
    %vm827 = vcmp.eq.f32.partialorder %v826, 8.507059e+37
    %v828 = vand.u32 %v703, 2147483648
    %v829 = vor.u32 1.1754944e-38, %v828
    %v830 = vsel %vm827, %v829, %v825
    %v831 = vmul.f32 1.0, %v830
    %v832 = vrcp.pop %v704
    %v833 = vmul.f32 %v704, %v832
    %v834 = vsub.f32 1.0, %v833
    %v835 = vmul.f32 %v832, %v834
    %v836 = vadd.f32 %v832, %v835
    %vm837 = vweird.f32 %v704
    %vm838 = vweird.f32 %v832
    %vm839 = vmor %vm837, %vm838
    %v840 = vsel %vm839, %v832, %v836
    %v841 = vand.u32 2147483647, %v704
    %vm842 = vcmp.eq.f32.partialorder %v841, 8.507059e+37
    %v843 = vand.u32 %v704, 2147483648
    %v844 = vor.u32 1.1754944e-38, %v843
    %v845 = vsel %vm842, %v844, %v840
    %v846 = vmul.f32 1.0, %v845
    %v847 = vrcp.pop %v705
    %v848 = vmul.f32 %v705, %v847
    %v849 = vsub.f32 1.0, %v848
    %v850 = vmul.f32 %v847, %v849
    %v851 = vadd.f32 %v847, %v850
    %vm852 = vweird.f32 %v705
    %vm853 = vweird.f32 %v847
    %vm854 = vmor %vm852, %vm853
    %v855 = vsel %vm854, %v847, %v851
    %v856 = vand.u32 2147483647, %v705
    %vm857 = vcmp.eq.f32.partialorder %v856, 8.507059e+37
    %v858 = vand.u32 %v705, 2147483648
    %v859 = vor.u32 1.1754944e-38, %v858
    %v860 = vsel %vm857, %v859, %v855
    %v861 = vmul.f32 1.0, %v860
    %v862 = vrcp.pop %v706
    %v863 = vmul.f32 %v706, %v862
    %v864 = vsub.f32 1.0, %v863
    %v865 = vmul.f32 %v862, %v864
    %v866 = vadd.f32 %v862, %v865
    %vm867 = vweird.f32 %v706
    %vm868 = vweird.f32 %v862
    %vm869 = vmor %vm867, %vm868
    %v870 = vsel %vm869, %v862, %v866
    %v871 = vand.u32 2147483647, %v706
    %vm872 = vcmp.eq.f32.partialorder %v871, 8.507059e+37
    %v873 = vand.u32 %v706, 2147483648
    %v874 = vor.u32 1.1754944e-38, %v873
    %v875 = vsel %vm872, %v874, %v870
    %v876 = vmul.f32 1.0, %v875
    %v877 = vrcp.pop %v707
    %v878 = vmul.f32 %v707, %v877
    %v879 = vsub.f32 1.0, %v878
    %v880 = vmul.f32 %v877, %v879
    %v881 = vadd.f32 %v877, %v880
    %vm882 = vweird.f32 %v707
    %vm883 = vweird.f32 %v877
    %vm884 = vmor %vm882, %vm883
    %v885 = vsel %vm884, %v877, %v881
    %v886 = vand.u32 2147483647, %v707
    %vm887 = vcmp.eq.f32.partialorder %v886, 8.507059e+37
    %v888 = vand.u32 %v707, 2147483648
    %v889 = vor.u32 1.1754944e-38, %v888
    %v890 = vsel %vm887, %v889, %v885
    %v891 = vmul.f32 1.0, %v890
    %v892 = vrcp.pop %v708
    %v893 = vmul.f32 %v708, %v892
    %v894 = vsub.f32 1.0, %v893
    %v895 = vmul.f32 %v892, %v894
    %v896 = vadd.f32 %v892, %v895
    %vm897 = vweird.f32 %v708
    %vm898 = vweird.f32 %v892
    %vm899 = vmor %vm897, %vm898
    %v900 = vsel %vm899, %v892, %v896
    %v901 = vand.u32 2147483647, %v708
    %vm902 = vcmp.eq.f32.partialorder %v901, 8.507059e+37
    %v903 = vand.u32 %v708, 2147483648
    %v904 = vor.u32 1.1754944e-38, %v903
    %v905 = vsel %vm902, %v904, %v900
    %v906 = vmul.f32 1.0, %v905
    %v907 = vrcp.pop %v709
    %v908 = vmul.f32 %v709, %v907
    %v909 = vsub.f32 1.0, %v908
    %v910 = vmul.f32 %v907, %v909
    %v911 = vadd.f32 %v907, %v910
    %vm912 = vweird.f32 %v709
    %vm913 = vweird.f32 %v907
    %vm914 = vmor %vm912, %vm913
    %v915 = vsel %vm914, %v907, %v911
    %v916 = vand.u32 2147483647, %v709
    %vm917 = vcmp.eq.f32.partialorder %v916, 8.507059e+37
    %v918 = vand.u32 %v709, 2147483648
    %v919 = vor.u32 1.1754944e-38, %v918
    %v920 = vsel %vm917, %v919, %v915
    %v921 = vmul.f32 1.0, %v920
    %v922 = vrcp.pop %v710
    %v923 = vmul.f32 %v710, %v922
    %v924 = vsub.f32 1.0, %v923
    %v925 = vmul.f32 %v922, %v924
    %v926 = vadd.f32 %v922, %v925
    %vm927 = vweird.f32 %v710
    %vm928 = vweird.f32 %v922
    %vm929 = vmor %vm927, %vm928
    %v930 = vsel %vm929, %v922, %v926
    %v931 = vand.u32 2147483647, %v710
    %vm932 = vcmp.eq.f32.partialorder %v931, 8.507059e+37
    %v933 = vand.u32 %v710, 2147483648
    %v934 = vor.u32 1.1754944e-38, %v933
    %v935 = vsel %vm932, %v934, %v930
    %v936 = vmul.f32 1.0, %v935
    %v937 = vrcp.pop %v711
    %v938 = vmul.f32 %v711, %v937
    %v939 = vsub.f32 1.0, %v938
    %v940 = vmul.f32 %v937, %v939
    %v941 = vadd.f32 %v937, %v940
    %vm942 = vweird.f32 %v711
    %vm943 = vweird.f32 %v937
    %vm944 = vmor %vm942, %vm943
    %v945 = vsel %vm944, %v937, %v941
    %v946 = vand.u32 2147483647, %v711
    %vm947 = vcmp.eq.f32.partialorder %v946, 8.507059e+37
    %v948 = vand.u32 %v711, 2147483648
    %v949 = vor.u32 1.1754944e-38, %v948
    %v950 = vsel %vm947, %v949, %v945
    %v951 = vmul.f32 1.0, %v950
    %v952 = vmul.f32 %v726, 1.0614054
    %v953 = vmul.f32 %v741, 1.0614054
    %v954 = vmul.f32 %v756, 1.0614054
    %v955 = vmul.f32 %v771, 1.0614054
    %v956 = vmul.f32 %v786, 1.0614054
    %v957 = vmul.f32 %v801, 1.0614054
    %v958 = vmul.f32 %v816, 1.0614054
    %v959 = vmul.f32 %v831, 1.0614054
    %v960 = vmul.f32 %v846, 1.0614054
    %v961 = vmul.f32 %v861, 1.0614054
    %v962 = vmul.f32 %v876, 1.0614054
    %v963 = vmul.f32 %v891, 1.0614054
    %v964 = vmul.f32 %v906, 1.0614054
    %v965 = vmul.f32 %v921, 1.0614054
    %v966 = vmul.f32 %v936, 1.0614054
    %v967 = vmul.f32 %v951, 1.0614054
    %v968 = vadd.f32 %v952, -1.4531521
    %v969 = vadd.f32 %v953, -1.4531521
    %v970 = vadd.f32 %v954, -1.4531521
    %v971 = vadd.f32 %v955, -1.4531521
    %v972 = vadd.f32 %v956, -1.4531521
    %v973 = vadd.f32 %v957, -1.4531521
    %v974 = vadd.f32 %v958, -1.4531521
    %v975 = vadd.f32 %v959, -1.4531521
    %v976 = vadd.f32 %v960, -1.4531521
    %v977 = vadd.f32 %v961, -1.4531521
    %v978 = vadd.f32 %v962, -1.4531521
    %v979 = vadd.f32 %v963, -1.4531521
    %v980 = vadd.f32 %v964, -1.4531521
    %v981 = vadd.f32 %v965, -1.4531521
    %v982 = vadd.f32 %v966, -1.4531521
    %v983 = vadd.f32 %v967, -1.4531521
    %v984 = vmul.f32 %v968, %v726
    %v985 = vmul.f32 %v969, %v741
    %v986 = vmul.f32 %v970, %v756
    %v987 = vmul.f32 %v971, %v771
    %v988 = vmul.f32 %v972, %v786
    %v989 = vmul.f32 %v973, %v801
    %v990 = vmul.f32 %v974, %v816
    %v991 = vmul.f32 %v975, %v831
    %v992 = vmul.f32 %v976, %v846
    %v993 = vmul.f32 %v977, %v861
    %v994 = vmul.f32 %v978, %v876
    %v995 = vmul.f32 %v979, %v891
    %v996 = vmul.f32 %v980, %v906
    %v997 = vmul.f32 %v981, %v921
    %v998 = vmul.f32 %v982, %v936
    %v999 = vmul.f32 %v983, %v951
    %v1000 = vadd.f32 %v984, 1.4214138
    %v1001 = vadd.f32 %v985, 1.4214138
    %v1002 = vadd.f32 %v986, 1.4214138
    %v1003 = vadd.f32 %v987, 1.4214138
    %v1004 = vadd.f32 %v988, 1.4214138
    %v1005 = vadd.f32 %v989, 1.4214138
    %v1006 = vadd.f32 %v990, 1.4214138
    %v1007 = vadd.f32 %v991, 1.4214138
    %v1008 = vadd.f32 %v992, 1.4214138
    %v1009 = vadd.f32 %v993, 1.4214138
    %v1010 = vadd.f32 %v994, 1.4214138
    %v1011 = vadd.f32 %v995, 1.4214138
    %v1012 = vadd.f32 %v996, 1.4214138
    %v1013 = vadd.f32 %v997, 1.4214138
    %v1014 = vadd.f32 %v998, 1.4214138
    %v1015 = vadd.f32 %v999, 1.4214138
    %v1016 = vmul.f32 %v1000, %v726
    %v1017 = vmul.f32 %v1001, %v741
    %v1018 = vmul.f32 %v1002, %v756
    %v1019 = vmul.f32 %v1003, %v771
    %v1020 = vmul.f32 %v1004, %v786
    %v1021 = vmul.f32 %v1005, %v801
    %v1022 = vmul.f32 %v1006, %v816
    %v1023 = vmul.f32 %v1007, %v831
    %v1024 = vmul.f32 %v1008, %v846
    %v1025 = vmul.f32 %v1009, %v861
    %v1026 = vmul.f32 %v1010, %v876
    %v1027 = vmul.f32 %v1011, %v891
    %v1028 = vmul.f32 %v1012, %v906
    %v1029 = vmul.f32 %v1013, %v921
    %v1030 = vmul.f32 %v1014, %v936
    %v1031 = vmul.f32 %v1015, %v951
    %v1032 = vadd.f32 %v1016, -0.28449672
    %v1033 = vadd.f32 %v1017, -0.28449672
    %v1034 = vadd.f32 %v1018, -0.28449672
    %v1035 = vadd.f32 %v1019, -0.28449672
    %v1036 = vadd.f32 %v1020, -0.28449672
    %v1037 = vadd.f32 %v1021, -0.28449672
    %v1038 = vadd.f32 %v1022, -0.28449672
    %v1039 = vadd.f32 %v1023, -0.28449672
    %v1040 = vadd.f32 %v1024, -0.28449672
    %v1041 = vadd.f32 %v1025, -0.28449672
    %v1042 = vadd.f32 %v1026, -0.28449672
    %v1043 = vadd.f32 %v1027, -0.28449672
    %v1044 = vadd.f32 %v1028, -0.28449672
    %v1045 = vadd.f32 %v1029, -0.28449672
    %v1046 = vadd.f32 %v1030, -0.28449672
    %v1047 = vadd.f32 %v1031, -0.28449672
    %v1048 = vmul.f32 %v1032, %v726
    %v1049 = vmul.f32 %v1033, %v741
    %v1050 = vmul.f32 %v1034, %v756
    %v1051 = vmul.f32 %v1035, %v771
    %v1052 = vmul.f32 %v1036, %v786
    %v1053 = vmul.f32 %v1037, %v801
    %v1054 = vmul.f32 %v1038, %v816
    %v1055 = vmul.f32 %v1039, %v831
    %v1056 = vmul.f32 %v1040, %v846
    %v1057 = vmul.f32 %v1041, %v861
    %v1058 = vmul.f32 %v1042, %v876
    %v1059 = vmul.f32 %v1043, %v891
    %v1060 = vmul.f32 %v1044, %v906
    %v1061 = vmul.f32 %v1045, %v921
    %v1062 = vmul.f32 %v1046, %v936
    %v1063 = vmul.f32 %v1047, %v951
    %v1064 = vadd.f32 %v1048, 0.2548296
    %v1065 = vadd.f32 %v1049, 0.2548296
    %v1066 = vadd.f32 %v1050, 0.2548296
    %v1067 = vadd.f32 %v1051, 0.2548296
    %v1068 = vadd.f32 %v1052, 0.2548296
    %v1069 = vadd.f32 %v1053, 0.2548296
    %v1070 = vadd.f32 %v1054, 0.2548296
    %v1071 = vadd.f32 %v1055, 0.2548296
    %v1072 = vadd.f32 %v1056, 0.2548296
    %v1073 = vadd.f32 %v1057, 0.2548296
    %v1074 = vadd.f32 %v1058, 0.2548296
    %v1075 = vadd.f32 %v1059, 0.2548296
    %v1076 = vadd.f32 %v1060, 0.2548296
    %v1077 = vadd.f32 %v1061, 0.2548296
    %v1078 = vadd.f32 %v1062, 0.2548296
    %v1079 = vadd.f32 %v1063, 0.2548296
    %v1080 = vmul.f32 %v1064, %v726
    %v1081 = vmul.f32 %v1065, %v741
    %v1082 = vmul.f32 %v1066, %v756
    %v1083 = vmul.f32 %v1067, %v771
    %v1084 = vmul.f32 %v1068, %v786
    %v1085 = vmul.f32 %v1069, %v801
    %v1086 = vmul.f32 %v1070, %v816
    %v1087 = vmul.f32 %v1071, %v831
    %v1088 = vmul.f32 %v1072, %v846
    %v1089 = vmul.f32 %v1073, %v861
    %v1090 = vmul.f32 %v1074, %v876
    %v1091 = vmul.f32 %v1075, %v891
    %v1092 = vmul.f32 %v1076, %v906
    %v1093 = vmul.f32 %v1077, %v921
    %v1094 = vmul.f32 %v1078, %v936
    %v1095 = vmul.f32 %v1079, %v951
    %v1096 = vsub.f32 0.0, %v664
    %v1097 = vsub.f32 0.0, %v665
    %v1098 = vsub.f32 0.0, %v666
    %v1099 = vsub.f32 0.0, %v667
    %v1100 = vsub.f32 0.0, %v668
    %v1101 = vsub.f32 0.0, %v669
    %v1102 = vsub.f32 0.0, %v670
    %v1103 = vsub.f32 0.0, %v671
    %v1104 = vsub.f32 0.0, %v672
    %v1105 = vsub.f32 0.0, %v673
    %v1106 = vsub.f32 0.0, %v674
    %v1107 = vsub.f32 0.0, %v675
    %v1108 = vsub.f32 0.0, %v676
    %v1109 = vsub.f32 0.0, %v677
    %v1110 = vsub.f32 0.0, %v678
    %v1111 = vsub.f32 0.0, %v679
    %v1112 = vmul.f32 %v1096, %v664
    %v1113 = vmul.f32 %v1097, %v665
    %v1114 = vmul.f32 %v1098, %v666
    %v1115 = vmul.f32 %v1099, %v667
    %v1116 = vmul.f32 %v1100, %v668
    %v1117 = vmul.f32 %v1101, %v669
    %v1118 = vmul.f32 %v1102, %v670
    %v1119 = vmul.f32 %v1103, %v671
    %v1120 = vmul.f32 %v1104, %v672
    %v1121 = vmul.f32 %v1105, %v673
    %v1122 = vmul.f32 %v1106, %v674
    %v1123 = vmul.f32 %v1107, %v675
    %v1124 = vmul.f32 %v1108, %v676
    %v1125 = vmul.f32 %v1109, %v677
    %v1126 = vmul.f32 %v1110, %v678
    %v1127 = vmul.f32 %v1111, %v679
    %v1128 = vmul.f32 %v1112, 1.442695
    %v1129 = vpow.pop %v1128
    %v1130 = vmul.f32 %v1113, 1.442695
    %v1131 = vpow.pop %v1130
    %v1132 = vmul.f32 %v1114, 1.442695
    %v1133 = vpow.pop %v1132
    %v1134 = vmul.f32 %v1115, 1.442695
    %v1135 = vpow.pop %v1134
    %v1136 = vmul.f32 %v1116, 1.442695
    %v1137 = vpow.pop %v1136
    %v1138 = vmul.f32 %v1117, 1.442695
    %v1139 = vpow.pop %v1138
    %v1140 = vmul.f32 %v1118, 1.442695
    %v1141 = vpow.pop %v1140
    %v1142 = vmul.f32 %v1119, 1.442695
    %v1143 = vpow.pop %v1142
    %v1144 = vmul.f32 %v1120, 1.442695
    %v1145 = vpow.pop %v1144
    %v1146 = vmul.f32 %v1121, 1.442695
    %v1147 = vpow.pop %v1146
    %v1148 = vmul.f32 %v1122, 1.442695
    %v1149 = vpow.pop %v1148
    %v1150 = vmul.f32 %v1123, 1.442695
    %v1151 = vpow.pop %v1150
    %v1152 = vmul.f32 %v1124, 1.442695
    %v1153 = vpow.pop %v1152
    %v1154 = vmul.f32 %v1125, 1.442695
    %v1155 = vpow.pop %v1154
    %v1156 = vmul.f32 %v1126, 1.442695
    %v1157 = vpow.pop %v1156
    %v1158 = vmul.f32 %v1127, 1.442695
    %v1159 = vpow.pop %v1158
    %v1160 = vmul.f32 %v1080, %v1129
    %v1161 = vmul.f32 %v1081, %v1131
    %v1162 = vmul.f32 %v1082, %v1133
    %v1163 = vmul.f32 %v1083, %v1135
    %v1164 = vmul.f32 %v1084, %v1137
    %v1165 = vmul.f32 %v1085, %v1139
    %v1166 = vmul.f32 %v1086, %v1141
    %v1167 = vmul.f32 %v1087, %v1143
    %v1168 = vmul.f32 %v1088, %v1145
    %v1169 = vmul.f32 %v1089, %v1147
    %v1170 = vmul.f32 %v1090, %v1149
    %v1171 = vmul.f32 %v1091, %v1151
    %v1172 = vmul.f32 %v1092, %v1153
    %v1173 = vmul.f32 %v1093, %v1155
    %v1174 = vmul.f32 %v1094, %v1157
    %v1175 = vmul.f32 %v1095, %v1159
    %v1176 = vsub.f32 1.0, %v1160
    %v1177 = vsub.f32 1.0, %v1161
    %v1178 = vsub.f32 1.0, %v1162
    %v1179 = vsub.f32 1.0, %v1163
    %v1180 = vsub.f32 1.0, %v1164
    %v1181 = vsub.f32 1.0, %v1165
    %v1182 = vsub.f32 1.0, %v1166
    %v1183 = vsub.f32 1.0, %v1167
    %v1184 = vsub.f32 1.0, %v1168
    %v1185 = vsub.f32 1.0, %v1169
    %v1186 = vsub.f32 1.0, %v1170
    %v1187 = vsub.f32 1.0, %v1171
    %v1188 = vsub.f32 1.0, %v1172
    %v1189 = vsub.f32 1.0, %v1173
    %v1190 = vsub.f32 1.0, %v1174
    %v1191 = vsub.f32 1.0, %v1175
    %v1192 = vmul.f32 %v648, %v1176
    %v1193 = vmul.f32 %v649, %v1177
    %v1194 = vmul.f32 %v650, %v1178
    %v1195 = vmul.f32 %v651, %v1179
    %v1196 = vmul.f32 %v652, %v1180
    %v1197 = vmul.f32 %v653, %v1181
    %v1198 = vmul.f32 %v654, %v1182
    %v1199 = vmul.f32 %v655, %v1183
    %v1200 = vmul.f32 %v656, %v1184
    %v1201 = vmul.f32 %v657, %v1185
    %v1202 = vmul.f32 %v658, %v1186
    %v1203 = vmul.f32 %v659, %v1187
    %v1204 = vmul.f32 %v660, %v1188
    %v1205 = vmul.f32 %v661, %v1189
    %v1206 = vmul.f32 %v662, %v1190
    %v1207 = vmul.f32 %v663, %v1191
    %v1208 = vadd.f32 %v1192, 1.0
    %v1209 = vadd.f32 %v1193, 1.0
    %v1210 = vadd.f32 %v1194, 1.0
    %v1211 = vadd.f32 %v1195, 1.0
    %v1212 = vadd.f32 %v1196, 1.0
    %v1213 = vadd.f32 %v1197, 1.0
    %v1214 = vadd.f32 %v1198, 1.0
    %v1215 = vadd.f32 %v1199, 1.0
    %v1216 = vadd.f32 %v1200, 1.0
    %v1217 = vadd.f32 %v1201, 1.0
    %v1218 = vadd.f32 %v1202, 1.0
    %v1219 = vadd.f32 %v1203, 1.0
    %v1220 = vadd.f32 %v1204, 1.0
    %v1221 = vadd.f32 %v1205, 1.0
    %v1222 = vadd.f32 %v1206, 1.0
    %v1223 = vadd.f32 %v1207, 1.0
    %v1224 = vmul.f32 %v600, %v1208
    %v1225 = vmul.f32 %v601, %v1209
    %v1226 = vmul.f32 %v602, %v1210
    %v1227 = vmul.f32 %v603, %v1211
    %v1228 = vmul.f32 %v604, %v1212
    %v1229 = vmul.f32 %v605, %v1213
    %v1230 = vmul.f32 %v606, %v1214
    %v1231 = vmul.f32 %v607, %v1215
    %v1232 = vmul.f32 %v608, %v1216
    %v1233 = vmul.f32 %v609, %v1217
    %v1234 = vmul.f32 %v610, %v1218
    %v1235 = vmul.f32 %v611, %v1219
    %v1236 = vmul.f32 %v612, %v1220
    %v1237 = vmul.f32 %v613, %v1221
    %v1238 = vmul.f32 %v614, %v1222
    %v1239 = vmul.f32 %v615, %v1223
    %v1240 = vpack.c.bf16 %v1225, %v1224
    %v1241 = vpack.c.bf16 %v1227, %v1226
    %v1242 = vpack.c.bf16 %v1229, %v1228
    %v1243 = vpack.c.bf16 %v1231, %v1230
    %v1244 = vpack.c.bf16 %v1233, %v1232
    %v1245 = vpack.c.bf16 %v1235, %v1234
    %v1246 = vpack.c.bf16 %v1237, %v1236
    %v1247 = vpack.c.bf16 %v1239, %v1238
    %1248 = vst [vmem:[%s3] sm:$0xff] %v1240
    %1249 = vst [vmem:[%s3 + $0x8] sm:$0xff] %v1241
    %1250 = vst [vmem:[%s3 + $0x10] sm:$0xff] %v1242
    %1251 = vst [vmem:[%s3 + $0x18] sm:$0xff] %v1243
    %1252 = vst [vmem:[%s3 + $0x20] sm:$0xff] %v1244
    %1253 = vst [vmem:[%s3 + $0x28] sm:$0xff] %v1245
    %1254 = vst [vmem:[%s3 + $0x30] sm:$0xff] %v1246
    %1255 = vst [vmem:[%s3 + $0x38] sm:$0xff] %v1247
    // Predicated region
    $region18: #{bert_mlm_forward.30} parent=1 // pred_check
      _
    $region19: #{bert_mlm_forward.30} parent=1 // pred_check_branch
      %1257 = sbr.rel (0) target = $region21
    $region20: #{bert_mlm_forward.30} parent=1 // pred_region
      _
    $region21: #{bert_mlm_forward.30} parent=1 // pred_fallthru
      _
    // Predicated region
    $region22: #{bert_mlm_forward.30} parent=1 // pred_check
      _
    $region23: #{bert_mlm_forward.30} parent=1 // pred_check_branch
      %1259 = sbr.rel (0) target = $region25
    $region24: #{bert_mlm_forward.30} parent=1 // pred_region
      _
    $region25: #{bert_mlm_forward.30} parent=1 // pred_fallthru
      _
    %1260 = vsyncpa [#allocation3], 1

// kernel: bert_mlm_forward.33
$region0: #{bert_mlm_forward.33}
  #allocation0 [shape = 'u32[]', space=smem, size = 0x4, offset = 0x4, fixed_abs, tag = 'smem constant byte address 0x4 - core index']
  #allocation1 [shape = 'u32[72,128]{1,0:T(1,128)}', space=vmem, size = 0x9000, scoped, tag = 'internal scratch']
  %s0 = inlined_call_operand.vmem [shape: bf16[32,256], index: 0, kind: input, shape index: {}]
  %s1 = inlined_call_operand.hbm [shape: bf16[256,256], index: 1, kind: input, shape index: {}]
  %s2 = inlined_call_operand.vmem [shape: f32[1,256], index: 2, kind: input, shape index: {}]
  %s3 = inlined_call_operand.vmem [shape: bf16[32,256], index: 3, kind: output, shape index: {}]
  %s4 = sld [smem:[#allocation0]]
  $region26: #{bert_mlm_forward.33} parent=0
    _
  %s6 = ssub.s32 1, %s4
  %s7 = scalar_select 0, %s6, %s4
  $region1: #{bert_mlm_forward.33} parent=0
    #allocation2 [shape = 'u8[131072]{0}', space=vmem, size = 0x20000, scoped, tag = 'input window, operand 1, single buffered']
    #allocation3 [shape = 's32[1]{0}', space=sflag, size = 0x4, scoped, tag = 'scoped memory for bert_mlm_forward.33']
    %8 = vsyncpa [#allocation3], 0
    // Predicated region
    $region2: #{bert_mlm_forward.33} parent=1 // pred_check
      _
    $region3: #{bert_mlm_forward.33} parent=1 // pred_check_branch
      %10 = sbr.rel (0) target = $region5
    $region4: #{bert_mlm_forward.33} parent=1 // pred_region
      _
    $region5: #{bert_mlm_forward.33} parent=1 // pred_fallthru
      _
    // Predicated region
    $region6: #{bert_mlm_forward.33} parent=1 // pred_check
      _
    $region7: #{bert_mlm_forward.33} parent=1 // pred_check_branch
      %12 = sbr.rel (0) target = $region9
    $region8: #{bert_mlm_forward.33} parent=1 // pred_region
      %14 = vsyncadd [#allocation3], 0
      %s15 = sshll.u32 %s1, 4
      %s16 = int_to_ptr.hbm [resolvable:$true] %s15
      %s17 = sshll.u32 [#allocation2], 4
      %s18 = int_to_ptr.vmem [resolvable:$true] %s17
      %23 = dma.hbm_to_vmem [thread:$0]  %s16, 4096, %s18, [#allocation3], 128, 128, 8
    $region9: #{bert_mlm_forward.33} parent=1 // pred_fallthru
      _
    // Predicated region
    $region10: #{bert_mlm_forward.33} parent=1 // pred_check
      _
    $region11: #{bert_mlm_forward.33} parent=1 // pred_check_branch
      %25 = sbr.rel (0) target = $region13
    $region12: #{bert_mlm_forward.33} parent=1 // pred_region
      _
    $region13: #{bert_mlm_forward.33} parent=1 // pred_fallthru
      _
    // Predicated region
    $region14: #{bert_mlm_forward.33} parent=1 // pred_check
      _
    $region15: #{bert_mlm_forward.33} parent=1 // pred_check_branch
      %27 = sbr.rel (0) target = $region17
    $region16: #{bert_mlm_forward.33} parent=1 // pred_region
      %29 = dma.done [#allocation3], 4096
    $region17: #{bert_mlm_forward.33} parent=1 // pred_fallthru
      _
    %v30 = vld [vmem:[%s0] sm:$0xff]
    %v31 = vld [vmem:[%s0 + $0x8] sm:$0xff]
    %v32 = vld [vmem:[%s0 + $0x10] sm:$0xff]
    %v33 = vld [vmem:[%s0 + $0x18] sm:$0xff]
    %v34 = vld [vmem:[#allocation2] sm:$0xff]
    %v35 = vld [vmem:[#allocation2 + $0x8] sm:$0xff]
    %v36 = vld [vmem:[#allocation2 + $0x10] sm:$0xff]
    %v37 = vld [vmem:[#allocation2 + $0x18] sm:$0xff]
    %v38 = vld [vmem:[#allocation2 + $0x20] sm:$0xff]
    %v39 = vld [vmem:[#allocation2 + $0x28] sm:$0xff]
    %v40 = vld [vmem:[#allocation2 + $0x30] sm:$0xff]
    %v41 = vld [vmem:[#allocation2 + $0x38] sm:$0xff]
    %v42 = vld [vmem:[#allocation2 + $0x40] sm:$0xff]
    %v43 = vld [vmem:[#allocation2 + $0x48] sm:$0xff]
    %v44 = vld [vmem:[#allocation2 + $0x50] sm:$0xff]
    %v45 = vld [vmem:[#allocation2 + $0x58] sm:$0xff]
    %v46 = vld [vmem:[#allocation2 + $0x60] sm:$0xff]
    %v47 = vld [vmem:[#allocation2 + $0x68] sm:$0xff]
    %v48 = vld [vmem:[#allocation2 + $0x70] sm:$0xff]
    %v49 = vld [vmem:[#allocation2 + $0x78] sm:$0xff]
    %v50 = vld [vmem:[#allocation2 + $0x80] sm:$0xff]
    %v51 = vld [vmem:[#allocation2 + $0x88] sm:$0xff]
    %v52 = vld [vmem:[#allocation2 + $0x90] sm:$0xff]
    %v53 = vld [vmem:[#allocation2 + $0x98] sm:$0xff]
    %v54 = vld [vmem:[#allocation2 + $0xa0] sm:$0xff]
    %v55 = vld [vmem:[#allocation2 + $0xa8] sm:$0xff]
    %v56 = vld [vmem:[#allocation2 + $0xb0] sm:$0xff]
    %v57 = vld [vmem:[#allocation2 + $0xb8] sm:$0xff]
    %v58 = vld [vmem:[#allocation2 + $0xc0] sm:$0xff]
    %v59 = vld [vmem:[#allocation2 + $0xc8] sm:$0xff]
    %v60 = vld [vmem:[#allocation2 + $0xd0] sm:$0xff]
    %v61 = vld [vmem:[#allocation2 + $0xd8] sm:$0xff]
    %v62 = vld [vmem:[#allocation2 + $0xe0] sm:$0xff]
    %v63 = vld [vmem:[#allocation2 + $0xe8] sm:$0xff]
    %v64 = vld [vmem:[#allocation2 + $0xf0] sm:$0xff]
    %v65 = vld [vmem:[#allocation2 + $0xf8] sm:$0xff]
    %v66 = vld [vmem:[%s2] sm:$0x3]
    %v68 = vperm.slane %v66, 0
    %v69 = vperm.slane %v66, 1
    %v76 = vunpack.c.l.b16 %v30
    %v77 = vunpack.c.h.b16 %v30
    %v78 = vunpack.c.l.b16 %v31
    %v79 = vunpack.c.h.b16 %v31
    %v80 = vunpack.c.l.b16 %v32
    %v81 = vunpack.c.h.b16 %v32
    %v82 = vunpack.c.l.b16 %v33
    %v83 = vunpack.c.h.b16 %v33
    %v84 = vpack.c.b16 %v78, %v76
    %v85 = vpack.c.b16 %v79, %v77
    %v86 = vpack.c.b16 %v82, %v80
    %v87 = vpack.c.b16 %v83, %v81
    %v124 = vunpack.c.l.b16 %v34
    %v125 = vunpack.c.h.b16 %v34
    %v126 = vunpack.c.l.b16 %v35
    %v127 = vunpack.c.h.b16 %v35
    %v128 = vunpack.c.l.b16 %v36
    %v129 = vunpack.c.h.b16 %v36
    %v130 = vunpack.c.l.b16 %v37
    %v131 = vunpack.c.h.b16 %v37
    %v132 = vunpack.c.l.b16 %v38
    %v133 = vunpack.c.h.b16 %v38
    %v134 = vunpack.c.l.b16 %v39
    %v135 = vunpack.c.h.b16 %v39
    %v136 = vunpack.c.l.b16 %v40
    %v137 = vunpack.c.h.b16 %v40
    %v138 = vunpack.c.l.b16 %v41
    %v139 = vunpack.c.h.b16 %v41
    %v140 = vunpack.c.l.b16 %v42
    %v141 = vunpack.c.h.b16 %v42
    %v142 = vunpack.c.l.b16 %v43
    %v143 = vunpack.c.h.b16 %v43
    %v144 = vunpack.c.l.b16 %v44
    %v145 = vunpack.c.h.b16 %v44
    %v146 = vunpack.c.l.b16 %v45
    %v147 = vunpack.c.h.b16 %v45
    %v148 = vunpack.c.l.b16 %v46
    %v149 = vunpack.c.h.b16 %v46
    %v150 = vunpack.c.l.b16 %v47
    %v151 = vunpack.c.h.b16 %v47
    %v152 = vunpack.c.l.b16 %v48
    %v153 = vunpack.c.h.b16 %v48
    %v154 = vunpack.c.l.b16 %v49
    %v155 = vunpack.c.h.b16 %v49
    %v156 = vunpack.c.l.b16 %v50
    %v157 = vunpack.c.h.b16 %v50
    %v158 = vunpack.c.l.b16 %v51
    %v159 = vunpack.c.h.b16 %v51
    %v160 = vunpack.c.l.b16 %v52
    %v161 = vunpack.c.h.b16 %v52
    %v162 = vunpack.c.l.b16 %v53
    %v163 = vunpack.c.h.b16 %v53
    %v164 = vunpack.c.l.b16 %v54
    %v165 = vunpack.c.h.b16 %v54
    %v166 = vunpack.c.l.b16 %v55
    %v167 = vunpack.c.h.b16 %v55
    %v168 = vunpack.c.l.b16 %v56
    %v169 = vunpack.c.h.b16 %v56
    %v170 = vunpack.c.l.b16 %v57
    %v171 = vunpack.c.h.b16 %v57
    %v172 = vunpack.c.l.b16 %v58
    %v173 = vunpack.c.h.b16 %v58
    %v174 = vunpack.c.l.b16 %v59
    %v175 = vunpack.c.h.b16 %v59
    %v176 = vunpack.c.l.b16 %v60
    %v177 = vunpack.c.h.b16 %v60
    %v178 = vunpack.c.l.b16 %v61
    %v179 = vunpack.c.h.b16 %v61
    %v180 = vunpack.c.l.b16 %v62
    %v181 = vunpack.c.h.b16 %v62
    %v182 = vunpack.c.l.b16 %v63
    %v183 = vunpack.c.h.b16 %v63
    %v184 = vunpack.c.l.b16 %v64
    %v185 = vunpack.c.h.b16 %v64
    %v186 = vunpack.c.l.b16 %v65
    %v187 = vunpack.c.h.b16 %v65
    %v188 = vpack.c.b16 %v126, %v124
    %v189 = vpack.c.b16 %v127, %v125
    %v190 = vpack.c.b16 %v130, %v128
    %v191 = vpack.c.b16 %v131, %v129
    %v192 = vpack.c.b16 %v134, %v132
    %v193 = vpack.c.b16 %v135, %v133
    %v194 = vpack.c.b16 %v138, %v136
    %v195 = vpack.c.b16 %v139, %v137
    %v196 = vpack.c.b16 %v142, %v140
    %v197 = vpack.c.b16 %v143, %v141
    %v198 = vpack.c.b16 %v146, %v144
    %v199 = vpack.c.b16 %v147, %v145
    %v200 = vpack.c.b16 %v150, %v148
    %v201 = vpack.c.b16 %v151, %v149
    %v202 = vpack.c.b16 %v154, %v152
    %v203 = vpack.c.b16 %v155, %v153
    %v204 = vpack.c.b16 %v158, %v156
    %v205 = vpack.c.b16 %v159, %v157
    %v206 = vpack.c.b16 %v162, %v160
    %v207 = vpack.c.b16 %v163, %v161
    %v208 = vpack.c.b16 %v166, %v164
    %v209 = vpack.c.b16 %v167, %v165
    %v210 = vpack.c.b16 %v170, %v168
    %v211 = vpack.c.b16 %v171, %v169
    %v212 = vpack.c.b16 %v174, %v172
    %v213 = vpack.c.b16 %v175, %v173
    %v214 = vpack.c.b16 %v178, %v176
    %v215 = vpack.c.b16 %v179, %v177
    %v216 = vpack.c.b16 %v182, %v180
    %v217 = vpack.c.b16 %v183, %v181
    %v218 = vpack.c.b16 %v186, %v184
    %v219 = vpack.c.b16 %v187, %v185
    %252 = vmatpush.bf16.msra.mxu0 %v202
    %253 = vmatpush.bf16.msra.mxu0 %v200
    %254 = vmatpush.bf16.msra.mxu0 %v198
    %255 = vmatpush.bf16.msra.mxu0 %v196
    %256 = vmatpush.bf16.msra.mxu0 %v194
    %257 = vmatpush.bf16.msra.mxu0 %v192
    %258 = vmatpush.bf16.msra.mxu0 %v190
    %259 = vmatpush.bf16.msra.mxu0 %v188
    %260 = vmatmul.bf16.gmra.mxu0 %v84
    %v261 = vpop.f32.mrf.mxu0
    %v262 = vadd.f32 %v68, %v261
    %v263 = vpop.f32.mrf.mxu0
    %v264 = vadd.f32 %v68, %v263
    %265 = vmatmul.bf16.gmra.mxu0 %v86
    %v266 = vpop.f32.mrf.mxu0
    %v267 = vadd.f32 %v68, %v266
    %v268 = vpop.f32.mrf.mxu0
    %v269 = vadd.f32 %v68, %v268
    %270 = vdwg.mxu0
    %271 = vmatpush.bf16.msra.mxu0 %v218
    %272 = vmatpush.bf16.msra.mxu0 %v216
    %273 = vmatpush.bf16.msra.mxu0 %v214
    %274 = vmatpush.bf16.msra.mxu0 %v212
    %275 = vmatpush.bf16.msra.mxu0 %v210
    %276 = vmatpush.bf16.msra.mxu0 %v208
    %277 = vmatpush.bf16.msra.mxu0 %v206
    %278 = vmatpush.bf16.msra.mxu0 %v204
    %279 = vmatmul.bf16.gmra.mxu0 %v85
    %v280 = vpop.f32.mrf.mxu0
    %v281 = vadd.f32 %v262, %v280
    %v282 = vpop.f32.mrf.mxu0
    %v283 = vadd.f32 %v264, %v282
    %284 = vmatmul.bf16.gmra.mxu0 %v87
    %v285 = vpop.f32.mrf.mxu0
    %v286 = vadd.f32 %v267, %v285
    %v287 = vpop.f32.mrf.mxu0
    %v288 = vadd.f32 %v269, %v287
    %289 = vdwg.mxu0
    %290 = vmatpush.bf16.msra.mxu0 %v203
    %291 = vmatpush.bf16.msra.mxu0 %v201
    %292 = vmatpush.bf16.msra.mxu0 %v199
    %293 = vmatpush.bf16.msra.mxu0 %v197
    %294 = vmatpush.bf16.msra.mxu0 %v195
    %295 = vmatpush.bf16.msra.mxu0 %v193
    %296 = vmatpush.bf16.msra.mxu0 %v191
    %297 = vmatpush.bf16.msra.mxu0 %v189
    %298 = vmatmul.bf16.gmra.mxu0 %v84
    %v299 = vpop.f32.mrf.mxu0
    %v300 = vadd.f32 %v69, %v299
    %v301 = vpop.f32.mrf.mxu0
    %v302 = vadd.f32 %v69, %v301
    %303 = vmatmul.bf16.gmra.mxu0 %v86
    %v304 = vpop.f32.mrf.mxu0
    %v305 = vadd.f32 %v69, %v304
    %v306 = vpop.f32.mrf.mxu0
    %v307 = vadd.f32 %v69, %v306
    %308 = vdwg.mxu0
    %309 = vmatpush.bf16.msra.mxu0 %v219
    %310 = vmatpush.bf16.msra.mxu0 %v217
    %311 = vmatpush.bf16.msra.mxu0 %v215
    %312 = vmatpush.bf16.msra.mxu0 %v213
    %313 = vmatpush.bf16.msra.mxu0 %v211
    %314 = vmatpush.bf16.msra.mxu0 %v209
    %315 = vmatpush.bf16.msra.mxu0 %v207
    %316 = vmatpush.bf16.msra.mxu0 %v205
    %317 = vmatmul.bf16.gmra.mxu0 %v85
    %v318 = vpop.f32.mrf.mxu0
    %v319 = vadd.f32 %v300, %v318
    %v320 = vpop.f32.mrf.mxu0
    %v321 = vadd.f32 %v302, %v320
    %322 = vmatmul.bf16.gmra.mxu0 %v87
    %v323 = vpop.f32.mrf.mxu0
    %v324 = vadd.f32 %v305, %v323
    %v325 = vpop.f32.mrf.mxu0
    %v326 = vadd.f32 %v307, %v325
    %327 = vdwg.mxu0
    %v328 = vmul.f32 %v281, 0.5
    %v329 = vmul.f32 %v319, 0.5
    %v330 = vmul.f32 %v283, 0.5
    %v331 = vmul.f32 %v321, 0.5
    %v332 = vmul.f32 %v286, 0.5
    %v333 = vmul.f32 %v324, 0.5
    %v334 = vmul.f32 %v288, 0.5
    %v335 = vmul.f32 %v326, 0.5
    %v336 = vmul.f32 %v281, 0.70710677
    %v337 = vmul.f32 %v319, 0.70710677
    %v338 = vmul.f32 %v283, 0.70710677
    %v339 = vmul.f32 %v321, 0.70710677
    %v340 = vmul.f32 %v286, 0.70710677
    %v341 = vmul.f32 %v324, 0.70710677
    %v342 = vmul.f32 %v288, 0.70710677
    %v343 = vmul.f32 %v326, 0.70710677
    %vm344 = vcmp.ge.f32.partialorder %v336, 0.0
    %vm345 = vcmp.ge.f32.partialorder %v337, 0.0
    %vm346 = vcmp.ge.f32.partialorder %v338, 0.0
    %vm347 = vcmp.ge.f32.partialorder %v339, 0.0
    %vm348 = vcmp.ge.f32.partialorder %v340, 0.0
    %vm349 = vcmp.ge.f32.partialorder %v341, 0.0
    %vm350 = vcmp.ge.f32.partialorder %v342, 0.0
    %vm351 = vcmp.ge.f32.partialorder %v343, 0.0
    %v352 = vsel %vm344, 1.0, -1.0
    %v353 = vsel %vm345, 1.0, -1.0
    %v354 = vsel %vm346, 1.0, -1.0
    %v355 = vsel %vm347, 1.0, -1.0
    %v356 = vsel %vm348, 1.0, -1.0
    %v357 = vsel %vm349, 1.0, -1.0
    %v358 = vsel %vm350, 1.0, -1.0
    %v359 = vsel %vm351, 1.0, -1.0
    %v360 = vand.u32 2147483647, %v336
    %v361 = vand.u32 2147483647, %v337
    %v362 = vand.u32 2147483647, %v338
    %v363 = vand.u32 2147483647, %v339
    %v364 = vand.u32 2147483647, %v340
    %v365 = vand.u32 2147483647, %v341
    %v366 = vand.u32 2147483647, %v342
    %v367 = vand.u32 2147483647, %v343
    %v368 = vmul.f32 %v360, 0.3275911
    %v369 = vmul.f32 %v361, 0.3275911
    %v370 = vmul.f32 %v362, 0.3275911
    %v371 = vmul.f32 %v363, 0.3275911
    %v372 = vmul.f32 %v364, 0.3275911
    %v373 = vmul.f32 %v365, 0.3275911
    %v374 = vmul.f32 %v366, 0.3275911
    %v375 = vmul.f32 %v367, 0.3275911
    %v376 = vadd.f32 %v368, 1.0
    %v377 = vadd.f32 %v369, 1.0
    %v378 = vadd.f32 %v370, 1.0
    %v379 = vadd.f32 %v371, 1.0
    %v380 = vadd.f32 %v372, 1.0
    %v381 = vadd.f32 %v373, 1.0
    %v382 = vadd.f32 %v374, 1.0
    %v383 = vadd.f32 %v375, 1.0
    %v384 = vrcp.pop %v376
    %v385 = vmul.f32 %v376, %v384
    %v386 = vsub.f32 1.0, %v385
    %v387 = vmul.f32 %v384, %v386
    %v388 = vadd.f32 %v384, %v387
    %vm389 = vweird.f32 %v376
    %vm390 = vweird.f32 %v384
    %vm391 = vmor %vm389, %vm390
    %v392 = vsel %vm391, %v384, %v388
    %v393 = vand.u32 2147483647, %v376
    %vm394 = vcmp.eq.f32.partialorder %v393, 8.507059e+37
    %v395 = vand.u32 %v376, 2147483648
    %v396 = vor.u32 1.1754944e-38, %v395
    %v397 = vsel %vm394, %v396, %v392
    %v398 = vmul.f32 1.0, %v397
    %v399 = vrcp.pop %v377
    %v400 = vmul.f32 %v377, %v399
    %v401 = vsub.f32 1.0, %v400
    %v402 = vmul.f32 %v399, %v401
    %v403 = vadd.f32 %v399, %v402
    %vm404 = vweird.f32 %v377
    %vm405 = vweird.f32 %v399
    %vm406 = vmor %vm404, %vm405
    %v407 = vsel %vm406, %v399, %v403
    %v408 = vand.u32 2147483647, %v377
    %vm409 = vcmp.eq.f32.partialorder %v408, 8.507059e+37
    %v410 = vand.u32 %v377, 2147483648
    %v411 = vor.u32 1.1754944e-38, %v410
    %v412 = vsel %vm409, %v411, %v407
    %v413 = vmul.f32 1.0, %v412
    %v414 = vrcp.pop %v378
    %v415 = vmul.f32 %v378, %v414
    %v416 = vsub.f32 1.0, %v415
    %v417 = vmul.f32 %v414, %v416
    %v418 = vadd.f32 %v414, %v417
    %vm419 = vweird.f32 %v378
    %vm420 = vweird.f32 %v414
    %vm421 = vmor %vm419, %vm420
    %v422 = vsel %vm421, %v414, %v418
    %v423 = vand.u32 2147483647, %v378
    %vm424 = vcmp.eq.f32.partialorder %v423, 8.507059e+37
    %v425 = vand.u32 %v378, 2147483648
    %v426 = vor.u32 1.1754944e-38, %v425
    %v427 = vsel %vm424, %v426, %v422
    %v428 = vmul.f32 1.0, %v427
    %v429 = vrcp.pop %v379
    %v430 = vmul.f32 %v379, %v429
    %v431 = vsub.f32 1.0, %v430
    %v432 = vmul.f32 %v429, %v431
    %v433 = vadd.f32 %v429, %v432
    %vm434 = vweird.f32 %v379
    %vm435 = vweird.f32 %v429
    %vm436 = vmor %vm434, %vm435
    %v437 = vsel %vm436, %v429, %v433
    %v438 = vand.u32 2147483647, %v379
    %vm439 = vcmp.eq.f32.partialorder %v438, 8.507059e+37
    %v440 = vand.u32 %v379, 2147483648
    %v441 = vor.u32 1.1754944e-38, %v440
    %v442 = vsel %vm439, %v441, %v437
    %v443 = vmul.f32 1.0, %v442
    %v444 = vrcp.pop %v380
    %v445 = vmul.f32 %v380, %v444
    %v446 = vsub.f32 1.0, %v445
    %v447 = vmul.f32 %v444, %v446
    %v448 = vadd.f32 %v444, %v447
    %vm449 = vweird.f32 %v380
    %vm450 = vweird.f32 %v444
    %vm451 = vmor %vm449, %vm450
    %v452 = vsel %vm451, %v444, %v448
    %v453 = vand.u32 2147483647, %v380
    %vm454 = vcmp.eq.f32.partialorder %v453, 8.507059e+37
    %v455 = vand.u32 %v380, 2147483648
    %v456 = vor.u32 1.1754944e-38, %v455
    %v457 = vsel %vm454, %v456, %v452
    %v458 = vmul.f32 1.0, %v457
    %v459 = vrcp.pop %v381
    %v460 = vmul.f32 %v381, %v459
    %v461 = vsub.f32 1.0, %v460
    %v462 = vmul.f32 %v459, %v461
    %v463 = vadd.f32 %v459, %v462
    %vm464 = vweird.f32 %v381
    %vm465 = vweird.f32 %v459
    %vm466 = vmor %vm464, %vm465
    %v467 = vsel %vm466, %v459, %v463
    %v468 = vand.u32 2147483647, %v381
    %vm469 = vcmp.eq.f32.partialorder %v468, 8.507059e+37
    %v470 = vand.u32 %v381, 2147483648
    %v471 = vor.u32 1.1754944e-38, %v470
    %v472 = vsel %vm469, %v471, %v467
    %v473 = vmul.f32 1.0, %v472
    %v474 = vrcp.pop %v382
    %v475 = vmul.f32 %v382, %v474
    %v476 = vsub.f32 1.0, %v475
    %v477 = vmul.f32 %v474, %v476
    %v478 = vadd.f32 %v474, %v477
    %vm479 = vweird.f32 %v382
    %vm480 = vweird.f32 %v474
    %vm481 = vmor %vm479, %vm480
    %v482 = vsel %vm481, %v474, %v478
    %v483 = vand.u32 2147483647, %v382
    %vm484 = vcmp.eq.f32.partialorder %v483, 8.507059e+37
    %v485 = vand.u32 %v382, 2147483648
    %v486 = vor.u32 1.1754944e-38, %v485
    %v487 = vsel %vm484, %v486, %v482
    %v488 = vmul.f32 1.0, %v487
    %v489 = vrcp.pop %v383
    %v490 = vmul.f32 %v383, %v489
    %v491 = vsub.f32 1.0, %v490
    %v492 = vmul.f32 %v489, %v491
    %v493 = vadd.f32 %v489, %v492
    %vm494 = vweird.f32 %v383
    %vm495 = vweird.f32 %v489
    %vm496 = vmor %vm494, %vm495
    %v497 = vsel %vm496, %v489, %v493
    %v498 = vand.u32 2147483647, %v383
    %vm499 = vcmp.eq.f32.partialorder %v498, 8.507059e+37
    %v500 = vand.u32 %v383, 2147483648
    %v501 = vor.u32 1.1754944e-38, %v500
    %v502 = vsel %vm499, %v501, %v497
    %v503 = vmul.f32 1.0, %v502
    %v504 = vmul.f32 %v398, 1.0614054
    %v505 = vmul.f32 %v413, 1.0614054
    %v506 = vmul.f32 %v428, 1.0614054
    %v507 = vmul.f32 %v443, 1.0614054
    %v508 = vmul.f32 %v458, 1.0614054
    %v509 = vmul.f32 %v473, 1.0614054
    %v510 = vmul.f32 %v488, 1.0614054
    %v511 = vmul.f32 %v503, 1.0614054
    %v512 = vadd.f32 %v504, -1.4531521
    %v513 = vadd.f32 %v505, -1.4531521
    %v514 = vadd.f32 %v506, -1.4531521
    %v515 = vadd.f32 %v507, -1.4531521
    %v516 = vadd.f32 %v508, -1.4531521
    %v517 = vadd.f32 %v509, -1.4531521
    %v518 = vadd.f32 %v510, -1.4531521
    %v519 = vadd.f32 %v511, -1.4531521
    %v520 = vmul.f32 %v512, %v398
    %v521 = vmul.f32 %v513, %v413
    %v522 = vmul.f32 %v514, %v428
    %v523 = vmul.f32 %v515, %v443
    %v524 = vmul.f32 %v516, %v458
    %v525 = vmul.f32 %v517, %v473
    %v526 = vmul.f32 %v518, %v488
    %v527 = vmul.f32 %v519, %v503
    %v528 = vadd.f32 %v520, 1.4214138
    %v529 = vadd.f32 %v521, 1.4214138
    %v530 = vadd.f32 %v522, 1.4214138
    %v531 = vadd.f32 %v523, 1.4214138
    %v532 = vadd.f32 %v524, 1.4214138
    %v533 = vadd.f32 %v525, 1.4214138
    %v534 = vadd.f32 %v526, 1.4214138
    %v535 = vadd.f32 %v527, 1.4214138
    %v536 = vmul.f32 %v528, %v398
    %v537 = vmul.f32 %v529, %v413
    %v538 = vmul.f32 %v530, %v428
    %v539 = vmul.f32 %v531, %v443
    %v540 = vmul.f32 %v532, %v458
    %v541 = vmul.f32 %v533, %v473
    %v542 = vmul.f32 %v534, %v488
    %v543 = vmul.f32 %v535, %v503
    %v544 = vadd.f32 %v536, -0.28449672
    %v545 = vadd.f32 %v537, -0.28449672
    %v546 = vadd.f32 %v538, -0.28449672
    %v547 = vadd.f32 %v539, -0.28449672
    %v548 = vadd.f32 %v540, -0.28449672
    %v549 = vadd.f32 %v541, -0.28449672
    %v550 = vadd.f32 %v542, -0.28449672
    %v551 = vadd.f32 %v543, -0.28449672
    %v552 = vmul.f32 %v544, %v398
    %v553 = vmul.f32 %v545, %v413
    %v554 = vmul.f32 %v546, %v428
    %v555 = vmul.f32 %v547, %v443
    %v556 = vmul.f32 %v548, %v458
    %v557 = vmul.f32 %v549, %v473
    %v558 = vmul.f32 %v550, %v488
    %v559 = vmul.f32 %v551, %v503
    %v560 = vadd.f32 %v552, 0.2548296
    %v561 = vadd.f32 %v553, 0.2548296
    %v562 = vadd.f32 %v554, 0.2548296
    %v563 = vadd.f32 %v555, 0.2548296
    %v564 = vadd.f32 %v556, 0.2548296
    %v565 = vadd.f32 %v557, 0.2548296
    %v566 = vadd.f32 %v558, 0.2548296
    %v567 = vadd.f32 %v559, 0.2548296
    %v568 = vmul.f32 %v560, %v398
    %v569 = vmul.f32 %v561, %v413
    %v570 = vmul.f32 %v562, %v428
    %v571 = vmul.f32 %v563, %v443
    %v572 = vmul.f32 %v564, %v458
    %v573 = vmul.f32 %v565, %v473
    %v574 = vmul.f32 %v566, %v488
    %v575 = vmul.f32 %v567, %v503
    %v576 = vsub.f32 0.0, %v360
    %v577 = vsub.f32 0.0, %v361
    %v578 = vsub.f32 0.0, %v362
    %v579 = vsub.f32 0.0, %v363
    %v580 = vsub.f32 0.0, %v364
    %v581 = vsub.f32 0.0, %v365
    %v582 = vsub.f32 0.0, %v366
    %v583 = vsub.f32 0.0, %v367
    %v584 = vmul.f32 %v576, %v360
    %v585 = vmul.f32 %v577, %v361
    %v586 = vmul.f32 %v578, %v362
    %v587 = vmul.f32 %v579, %v363
    %v588 = vmul.f32 %v580, %v364
    %v589 = vmul.f32 %v581, %v365
    %v590 = vmul.f32 %v582, %v366
    %v591 = vmul.f32 %v583, %v367
    %v592 = vmul.f32 %v584, 1.442695
    %v593 = vpow.pop %v592
    %v594 = vmul.f32 %v585, 1.442695
    %v595 = vpow.pop %v594
    %v596 = vmul.f32 %v586, 1.442695
    %v597 = vpow.pop %v596
    %v598 = vmul.f32 %v587, 1.442695
    %v599 = vpow.pop %v598
    %v600 = vmul.f32 %v588, 1.442695
    %v601 = vpow.pop %v600
    %v602 = vmul.f32 %v589, 1.442695
    %v603 = vpow.pop %v602
    %v604 = vmul.f32 %v590, 1.442695
    %v605 = vpow.pop %v604
    %v606 = vmul.f32 %v591, 1.442695
    %v607 = vpow.pop %v606
    %v608 = vmul.f32 %v568, %v593
    %v609 = vmul.f32 %v569, %v595
    %v610 = vmul.f32 %v570, %v597
    %v611 = vmul.f32 %v571, %v599
    %v612 = vmul.f32 %v572, %v601
    %v613 = vmul.f32 %v573, %v603
    %v614 = vmul.f32 %v574, %v605
    %v615 = vmul.f32 %v575, %v607
    %v616 = vsub.f32 1.0, %v608
    %v617 = vsub.f32 1.0, %v609
    %v618 = vsub.f32 1.0, %v610
    %v619 = vsub.f32 1.0, %v611
    %v620 = vsub.f32 1.0, %v612
    %v621 = vsub.f32 1.0, %v613
    %v622 = vsub.f32 1.0, %v614
    %v623 = vsub.f32 1.0, %v615
    %v624 = vmul.f32 %v352, %v616
    %v625 = vmul.f32 %v353, %v617
    %v626 = vmul.f32 %v354, %v618
    %v627 = vmul.f32 %v355, %v619
    %v628 = vmul.f32 %v356, %v620
    %v629 = vmul.f32 %v357, %v621
    %v630 = vmul.f32 %v358, %v622
    %v631 = vmul.f32 %v359, %v623
    %v632 = vadd.f32 %v624, 1.0
    %v633 = vadd.f32 %v625, 1.0
    %v634 = vadd.f32 %v626, 1.0
    %v635 = vadd.f32 %v627, 1.0
    %v636 = vadd.f32 %v628, 1.0
    %v637 = vadd.f32 %v629, 1.0
    %v638 = vadd.f32 %v630, 1.0
    %v639 = vadd.f32 %v631, 1.0
    %v640 = vmul.f32 %v328, %v632
    %v641 = vmul.f32 %v329, %v633
    %v642 = vmul.f32 %v330, %v634
    %v643 = vmul.f32 %v331, %v635
    %v644 = vmul.f32 %v332, %v636
    %v645 = vmul.f32 %v333, %v637
    %v646 = vmul.f32 %v334, %v638
    %v647 = vmul.f32 %v335, %v639
    %v648 = vpack.c.bf16 %v641, %v640
    %v649 = vpack.c.bf16 %v643, %v642
    %v650 = vpack.c.bf16 %v645, %v644
    %v651 = vpack.c.bf16 %v647, %v646
    %652 = vst [vmem:[%s3] sm:$0xff] %v648
    %653 = vst [vmem:[%s3 + $0x8] sm:$0xff] %v649
    %654 = vst [vmem:[%s3 + $0x10] sm:$0xff] %v650
    %655 = vst [vmem:[%s3 + $0x18] sm:$0xff] %v651
    // Predicated region
    $region18: #{bert_mlm_forward.33} parent=1 // pred_check
      _
    $region19: #{bert_mlm_forward.33} parent=1 // pred_check_branch
      %657 = sbr.rel (0) target = $region21
    $region20: #{bert_mlm_forward.33} parent=1 // pred_region
      _
    $region21: #{bert_mlm_forward.33} parent=1 // pred_fallthru
      _
    // Predicated region
    $region22: #{bert_mlm_forward.33} parent=1 // pred_check
      _
    $region23: #{bert_mlm_forward.33} parent=1 // pred_check_branch
      %659 = sbr.rel (0) target = $region25
    $region24: #{bert_mlm_forward.33} parent=1 // pred_region
      _
    $region25: #{bert_mlm_forward.33} parent=1 // pred_fallthru
      _
    %660 = vsyncpa [#allocation3], 1

// kernel: bert_mlm_forward.35
$region0: #{bert_mlm_forward.35}
  #allocation0 [shape = 'u32[]', space=smem, size = 0x4, offset = 0x4, fixed_abs, tag = 'smem constant byte address 0x4 - core index']
  #allocation1 [shape = 'u32[72,128]{1,0:T(1,128)}', space=vmem, size = 0x9000, scoped, tag = 'internal scratch']
  #allocation2 [shape = 'f32[32,1]{1,0:T(8,128)}', space=vmem, size = 0x4000, scoped, tag = 'scratch operand']
  #allocation3 [shape = 'f32[32,1]{1,0:T(8,128)}', space=vmem, size = 0x4000, scoped, tag = 'scratch operand']
  #allocation4 [shape = 'f32[32,1]{1,0:T(8,128)}', space=vmem, size = 0x4000, scoped, tag = 'scratch operand']
  %s0 = inlined_call_operand.vmem [shape: bf16[32,256], index: 0, kind: input, shape index: {}]
  %s1 = inlined_call_operand.hbm [shape: bf16[1024,256], index: 1, kind: input, shape index: {}]
  %s2 = inlined_call_operand.vmem [shape: f32[1,1024], index: 2, kind: input, shape index: {}]
  %s3 = inlined_call_operand.vmem [shape: s32[32,1], index: 3, kind: input, shape index: {}]
  %s4 = inlined_call_operand.vmem [shape: f32[32,1024], index: 4, kind: output, shape index: {0}]
  %s5 = inlined_call_operand.vmem [shape: f32[32,1], index: 5, kind: output, shape index: {1}]
  %6 = xla_tuple %s4, %s5
  %s7 = sld [smem:[#allocation0]]
  $region46: #{bert_mlm_forward.35} parent=0
    _
  %s9 = ssub.s32 1, %s7
  %s10 = scalar_select 0, %s9, %s7
  $region1: #{bert_mlm_forward.35} parent=0
    #allocation5 [shape = 'u8[524288]{0}', space=vmem, size = 0x80000, scoped, tag = 'input window, operand 1, single buffered']
    #allocation6 [shape = 's32[1]{0}', space=sflag, size = 0x4, scoped, tag = 'scoped memory for bert_mlm_forward.35']
    %11 = vsyncpa [#allocation6], 0
    // Predicated region
    $region2: #{bert_mlm_forward.35} parent=1 // pred_check
      _
    $region3: #{bert_mlm_forward.35} parent=1 // pred_check_branch
      %13 = sbr.rel (0) target = $region5
    $region4: #{bert_mlm_forward.35} parent=1 // pred_region
      _
    $region5: #{bert_mlm_forward.35} parent=1 // pred_fallthru
      _
    // Predicated region
    $region6: #{bert_mlm_forward.35} parent=1 // pred_check
      _
    $region7: #{bert_mlm_forward.35} parent=1 // pred_check_branch
      %15 = sbr.rel (0) target = $region9
    $region8: #{bert_mlm_forward.35} parent=1 // pred_region
      %17 = vsyncadd [#allocation6], 0
      %s18 = sshll.u32 %s1, 4
      %s19 = int_to_ptr.hbm [resolvable:$true] %s18
      %s20 = sshll.u32 [#allocation5], 4
      %s21 = int_to_ptr.vmem [resolvable:$true] %s20
      %26 = dma.hbm_to_vmem [thread:$0]  %s19, 16384, %s21, [#allocation6], 128, 128, 8
    $region9: #{bert_mlm_forward.35} parent=1 // pred_fallthru
      _
    // Predicated region
    $region10: #{bert_mlm_forward.35} parent=1 // pred_check
      _
    $region11: #{bert_mlm_forward.35} parent=1 // pred_check_branch
      %28 = sbr.rel (0) target = $region13
    $region12: #{bert_mlm_forward.35} parent=1 // pred_region
      _
    $region13: #{bert_mlm_forward.35} parent=1 // pred_fallthru
      _
    // Predicated region
    $region14: #{bert_mlm_forward.35} parent=1 // pred_check
      _
    $region15: #{bert_mlm_forward.35} parent=1 // pred_check_branch
      %30 = sbr.rel (0) target = $region17
    $region16: #{bert_mlm_forward.35} parent=1 // pred_region
      _
    $region17: #{bert_mlm_forward.35} parent=1 // pred_fallthru
      _
    // Predicated region
    $region18: #{bert_mlm_forward.35} parent=1 // pred_check
      _
    $region19: #{bert_mlm_forward.35} parent=1 // pred_check_branch
      %32 = sbr.rel (0) target = $region21
    $region20: #{bert_mlm_forward.35} parent=1 // pred_region
      %34 = dma.done [#allocation6], 16384
    $region21: #{bert_mlm_forward.35} parent=1 // pred_fallthru
      _
    %p35 = scmp.eq.s32.totalorder 0, 0
    // Predicated region
    $region22: #{bert_mlm_forward.35} parent=1 // pred_check
      %p36 = pneg %p35
    $region23: #{bert_mlm_forward.35} parent=1 // pred_check_branch
      %38 = sbr.rel (%p36) target = $region25
    $region24: #{bert_mlm_forward.35} parent=1 // pred_region
      %vm39 = vcmask 7168
      %40 = vst.msk [vmem:[#allocation2] sm:$0xff] %vm39, -inf
      %41 = vst.msk [vmem:[#allocation2 + $0x8] sm:$0xff] %vm39, -inf
      %42 = vst.msk [vmem:[#allocation2 + $0x10] sm:$0xff] %vm39, -inf
      %43 = vst.msk [vmem:[#allocation2 + $0x18] sm:$0xff] %vm39, -inf
      %44 = vst.msk [vmem:[#allocation3] sm:$0xff] %vm39, 0.0
      %45 = vst.msk [vmem:[#allocation3 + $0x8] sm:$0xff] %vm39, 0.0
      %46 = vst.msk [vmem:[#allocation3 + $0x10] sm:$0xff] %vm39, 0.0
      %47 = vst.msk [vmem:[#allocation3 + $0x18] sm:$0xff] %vm39, 0.0
      %48 = vst.msk [vmem:[#allocation4] sm:$0xff] %vm39, 0.0
      %49 = vst.msk [vmem:[#allocation4 + $0x8] sm:$0xff] %vm39, 0.0
      %50 = vst.msk [vmem:[#allocation4 + $0x10] sm:$0xff] %vm39, 0.0
      %51 = vst.msk [vmem:[#allocation4 + $0x18] sm:$0xff] %vm39, 0.0
    $region25: #{bert_mlm_forward.35} parent=1 // pred_fallthru
      _
    %v52 = vld [vmem:[%s0] sm:$0xff]
    %v53 = vld [vmem:[%s0 + $0x8] sm:$0xff]
    %v54 = vld [vmem:[%s0 + $0x10] sm:$0xff]
    %v55 = vld [vmem:[%s0 + $0x18] sm:$0xff]
    %v56 = vld [vmem:[#allocation5] sm:$0xff]
    %v57 = vld [vmem:[#allocation5 + $0x8] sm:$0xff]
    %v58 = vld [vmem:[#allocation5 + $0x10] sm:$0xff]
    %v59 = vld [vmem:[#allocation5 + $0x18] sm:$0xff]
    %v60 = vld [vmem:[#allocation5 + $0x20] sm:$0xff]
    %v61 = vld [vmem:[#allocation5 + $0x28] sm:$0xff]
    %v62 = vld [vmem:[#allocation5 + $0x30] sm:$0xff]
    %v63 = vld [vmem:[#allocation5 + $0x38] sm:$0xff]
    %v64 = vld [vmem:[#allocation5 + $0x40] sm:$0xff]
    %v65 = vld [vmem:[#allocation5 + $0x48] sm:$0xff]
    %v66 = vld [vmem:[#allocation5 + $0x50] sm:$0xff]
    %v67 = vld [vmem:[#allocation5 + $0x58] sm:$0xff]
    %v68 = vld [vmem:[#allocation5 + $0x60] sm:$0xff]
    %v69 = vld [vmem:[#allocation5 + $0x68] sm:$0xff]
    %v70 = vld [vmem:[#allocation5 + $0x70] sm:$0xff]
    %v71 = vld [vmem:[#allocation5 + $0x78] sm:$0xff]
    %v72 = vld [vmem:[#allocation5 + $0x80] sm:$0xff]
    %v73 = vld [vmem:[#allocation5 + $0x88] sm:$0xff]
    %v74 = vld [vmem:[#allocation5 + $0x90] sm:$0xff]
    %v75 = vld [vmem:[#allocation5 + $0x98] sm:$0xff]
    %v76 = vld [vmem:[#allocation5 + $0xa0] sm:$0xff]
    %v77 = vld [vmem:[#allocation5 + $0xa8] sm:$0xff]
    %v78 = vld [vmem:[#allocation5 + $0xb0] sm:$0xff]
    %v79 = vld [vmem:[#allocation5 + $0xb8] sm:$0xff]
    %v80 = vld [vmem:[#allocation5 + $0xc0] sm:$0xff]
    %v81 = vld [vmem:[#allocation5 + $0xc8] sm:$0xff]
    %v82 = vld [vmem:[#allocation5 + $0xd0] sm:$0xff]
    %v83 = vld [vmem:[#allocation5 + $0xd8] sm:$0xff]
    %v84 = vld [vmem:[#allocation5 + $0xe0] sm:$0xff]
    %v85 = vld [vmem:[#allocation5 + $0xe8] sm:$0xff]
    %v86 = vld [vmem:[#allocation5 + $0xf0] sm:$0xff]
    %v87 = vld [vmem:[#allocation5 + $0xf8] sm:$0xff]
    %v88 = vld [vmem:[#allocation5 + $0x100] sm:$0xff]
    %v89 = vld [vmem:[#allocation5 + $0x108] sm:$0xff]
    %v90 = vld [vmem:[#allocation5 + $0x110] sm:$0xff]
    %v91 = vld [vmem:[#allocation5 + $0x118] sm:$0xff]
    %v92 = vld [vmem:[#allocation5 + $0x120] sm:$0xff]
    %v93 = vld [vmem:[#allocation5 + $0x128] sm:$0xff]
    %v94 = vld [vmem:[#allocation5 + $0x130] sm:$0xff]
    %v95 = vld [vmem:[#allocation5 + $0x138] sm:$0xff]
    %v96 = vld [vmem:[#allocation5 + $0x140] sm:$0xff]
    %v97 = vld [vmem:[#allocation5 + $0x148] sm:$0xff]
    %v98 = vld [vmem:[#allocation5 + $0x150] sm:$0xff]
    %v99 = vld [vmem:[#allocation5 + $0x158] sm:$0xff]
    %v100 = vld [vmem:[#allocation5 + $0x160] sm:$0xff]
    %v101 = vld [vmem:[#allocation5 + $0x168] sm:$0xff]
    %v102 = vld [vmem:[#allocation5 + $0x170] sm:$0xff]
    %v103 = vld [vmem:[#allocation5 + $0x178] sm:$0xff]
    %v104 = vld [vmem:[#allocation5 + $0x180] sm:$0xff]
    %v105 = vld [vmem:[#allocation5 + $0x188] sm:$0xff]
    %v106 = vld [vmem:[#allocation5 + $0x190] sm:$0xff]
    %v107 = vld [vmem:[#allocation5 + $0x198] sm:$0xff]
    %v108 = vld [vmem:[#allocation5 + $0x1a0] sm:$0xff]
    %v109 = vld [vmem:[#allocation5 + $0x1a8] sm:$0xff]
    %v110 = vld [vmem:[#allocation5 + $0x1b0] sm:$0xff]
    %v111 = vld [vmem:[#allocation5 + $0x1b8] sm:$0xff]
    %v112 = vld [vmem:[#allocation5 + $0x1c0] sm:$0xff]
    %v113 = vld [vmem:[#allocation5 + $0x1c8] sm:$0xff]
    %v114 = vld [vmem:[#allocation5 + $0x1d0] sm:$0xff]
    %v115 = vld [vmem:[#allocation5 + $0x1d8] sm:$0xff]
    %v116 = vld [vmem:[#allocation5 + $0x1e0] sm:$0xff]
    %v117 = vld [vmem:[#allocation5 + $0x1e8] sm:$0xff]
    %v118 = vld [vmem:[#allocation5 + $0x1f0] sm:$0xff]
    %v119 = vld [vmem:[#allocation5 + $0x1f8] sm:$0xff]
    %v120 = vld [vmem:[#allocation5 + $0x200] sm:$0xff]
    %v121 = vld [vmem:[#allocation5 + $0x208] sm:$0xff]
    %v122 = vld [vmem:[#allocation5 + $0x210] sm:$0xff]
    %v123 = vld [vmem:[#allocation5 + $0x218] sm:$0xff]
    %v124 = vld [vmem:[#allocation5 + $0x220] sm:$0xff]
    %v125 = vld [vmem:[#allocation5 + $0x228] sm:$0xff]
    %v126 = vld [vmem:[#allocation5 + $0x230] sm:$0xff]
    %v127 = vld [vmem:[#allocation5 + $0x238] sm:$0xff]
    %v128 = vld [vmem:[#allocation5 + $0x240] sm:$0xff]
    %v129 = vld [vmem:[#allocation5 + $0x248] sm:$0xff]
    %v130 = vld [vmem:[#allocation5 + $0x250] sm:$0xff]
    %v131 = vld [vmem:[#allocation5 + $0x258] sm:$0xff]
    %v132 = vld [vmem:[#allocation5 + $0x260] sm:$0xff]
    %v133 = vld [vmem:[#allocation5 + $0x268] sm:$0xff]
    %v134 = vld [vmem:[#allocation5 + $0x270] sm:$0xff]
    %v135 = vld [vmem:[#allocation5 + $0x278] sm:$0xff]
    %v136 = vld [vmem:[#allocation5 + $0x280] sm:$0xff]
    %v137 = vld [vmem:[#allocation5 + $0x288] sm:$0xff]
    %v138 = vld [vmem:[#allocation5 + $0x290] sm:$0xff]
    %v139 = vld [vmem:[#allocation5 + $0x298] sm:$0xff]
    %v140 = vld [vmem:[#allocation5 + $0x2a0] sm:$0xff]
    %v141 = vld [vmem:[#allocation5 + $0x2a8] sm:$0xff]
    %v142 = vld [vmem:[#allocation5 + $0x2b0] sm:$0xff]
    %v143 = vld [vmem:[#allocation5 + $0x2b8] sm:$0xff]
    %v144 = vld [vmem:[#allocation5 + $0x2c0] sm:$0xff]
    %v145 = vld [vmem:[#allocation5 + $0x2c8] sm:$0xff]
    %v146 = vld [vmem:[#allocation5 + $0x2d0] sm:$0xff]
    %v147 = vld [vmem:[#allocation5 + $0x2d8] sm:$0xff]
    %v148 = vld [vmem:[#allocation5 + $0x2e0] sm:$0xff]
    %v149 = vld [vmem:[#allocation5 + $0x2e8] sm:$0xff]
    %v150 = vld [vmem:[#allocation5 + $0x2f0] sm:$0xff]
    %v151 = vld [vmem:[#allocation5 + $0x2f8] sm:$0xff]
    %v152 = vld [vmem:[#allocation5 + $0x300] sm:$0xff]
    %v153 = vld [vmem:[#allocation5 + $0x308] sm:$0xff]
    %v154 = vld [vmem:[#allocation5 + $0x310] sm:$0xff]
    %v155 = vld [vmem:[#allocation5 + $0x318] sm:$0xff]
    %v156 = vld [vmem:[#allocation5 + $0x320] sm:$0xff]
    %v157 = vld [vmem:[#allocation5 + $0x328] sm:$0xff]
    %v158 = vld [vmem:[#allocation5 + $0x330] sm:$0xff]
    %v159 = vld [vmem:[#allocation5 + $0x338] sm:$0xff]
    %v160 = vld [vmem:[#allocation5 + $0x340] sm:$0xff]
    %v161 = vld [vmem:[#allocation5 + $0x348] sm:$0xff]
    %v162 = vld [vmem:[#allocation5 + $0x350] sm:$0xff]
    %v163 = vld [vmem:[#allocation5 + $0x358] sm:$0xff]
    %v164 = vld [vmem:[#allocation5 + $0x360] sm:$0xff]
    %v165 = vld [vmem:[#allocation5 + $0x368] sm:$0xff]
    %v166 = vld [vmem:[#allocation5 + $0x370] sm:$0xff]
    %v167 = vld [vmem:[#allocation5 + $0x378] sm:$0xff]
    %v168 = vld [vmem:[#allocation5 + $0x380] sm:$0xff]
    %v169 = vld [vmem:[#allocation5 + $0x388] sm:$0xff]
    %v170 = vld [vmem:[#allocation5 + $0x390] sm:$0xff]
    %v171 = vld [vmem:[#allocation5 + $0x398] sm:$0xff]
    %v172 = vld [vmem:[#allocation5 + $0x3a0] sm:$0xff]
    %v173 = vld [vmem:[#allocation5 + $0x3a8] sm:$0xff]
    %v174 = vld [vmem:[#allocation5 + $0x3b0] sm:$0xff]
    %v175 = vld [vmem:[#allocation5 + $0x3b8] sm:$0xff]
    %v176 = vld [vmem:[#allocation5 + $0x3c0] sm:$0xff]
    %v177 = vld [vmem:[#allocation5 + $0x3c8] sm:$0xff]
    %v178 = vld [vmem:[#allocation5 + $0x3d0] sm:$0xff]
    %v179 = vld [vmem:[#allocation5 + $0x3d8] sm:$0xff]
    %v180 = vld [vmem:[#allocation5 + $0x3e0] sm:$0xff]
    %v181 = vld [vmem:[#allocation5 + $0x3e8] sm:$0xff]
    %v182 = vld [vmem:[#allocation5 + $0x3f0] sm:$0xff]
    %v183 = vld [vmem:[#allocation5 + $0x3f8] sm:$0xff]
    %v184 = vld [vmem:[%s2] sm:$0xff]
    %v186 = vperm.slane %v184, 0
    %v187 = vperm.slane %v184, 1
    %v188 = vperm.slane %v184, 2
    %v189 = vperm.slane %v184, 3
    %v190 = vperm.slane %v184, 4
    %v191 = vperm.slane %v184, 5
    %v192 = vperm.slane %v184, 6
    %v193 = vperm.slane %v184, 7
    %v206 = vunpack.c.l.b16 %v52
    %v207 = vunpack.c.h.b16 %v52
    %v208 = vunpack.c.l.b16 %v53
    %v209 = vunpack.c.h.b16 %v53
    %v210 = vunpack.c.l.b16 %v54
    %v211 = vunpack.c.h.b16 %v54
    %v212 = vunpack.c.l.b16 %v55
    %v213 = vunpack.c.h.b16 %v55
    %v214 = vpack.c.b16 %v208, %v206
    %v215 = vpack.c.b16 %v209, %v207
    %v216 = vpack.c.b16 %v212, %v210
    %v217 = vpack.c.b16 %v213, %v211
    %v350 = vunpack.c.l.b16 %v56
    %v351 = vunpack.c.h.b16 %v56
    %v352 = vunpack.c.l.b16 %v57
    %v353 = vunpack.c.h.b16 %v57
    %v354 = vunpack.c.l.b16 %v58
    %v355 = vunpack.c.h.b16 %v58
    %v356 = vunpack.c.l.b16 %v59
    %v357 = vunpack.c.h.b16 %v59
    %v358 = vunpack.c.l.b16 %v60
    %v359 = vunpack.c.h.b16 %v60
    %v360 = vunpack.c.l.b16 %v61
    %v361 = vunpack.c.h.b16 %v61
    %v362 = vunpack.c.l.b16 %v62
    %v363 = vunpack.c.h.b16 %v62
    %v364 = vunpack.c.l.b16 %v63
    %v365 = vunpack.c.h.b16 %v63
    %v366 = vunpack.c.l.b16 %v64
    %v367 = vunpack.c.h.b16 %v64
    %v368 = vunpack.c.l.b16 %v65
    %v369 = vunpack.c.h.b16 %v65
    %v370 = vunpack.c.l.b16 %v66
    %v371 = vunpack.c.h.b16 %v66
    %v372 = vunpack.c.l.b16 %v67
    %v373 = vunpack.c.h.b16 %v67
    %v374 = vunpack.c.l.b16 %v68
    %v375 = vunpack.c.h.b16 %v68
    %v376 = vunpack.c.l.b16 %v69
    %v377 = vunpack.c.h.b16 %v69
    %v378 = vunpack.c.l.b16 %v70
    %v379 = vunpack.c.h.b16 %v70
    %v380 = vunpack.c.l.b16 %v71
    %v381 = vunpack.c.h.b16 %v71
    %v382 = vunpack.c.l.b16 %v72
    %v383 = vunpack.c.h.b16 %v72
    %v384 = vunpack.c.l.b16 %v73
    %v385 = vunpack.c.h.b16 %v73
    %v386 = vunpack.c.l.b16 %v74
    %v387 = vunpack.c.h.b16 %v74
    %v388 = vunpack.c.l.b16 %v75
    %v389 = vunpack.c.h.b16 %v75
    %v390 = vunpack.c.l.b16 %v76
    %v391 = vunpack.c.h.b16 %v76
    %v392 = vunpack.c.l.b16 %v77
    %v393 = vunpack.c.h.b16 %v77
    %v394 = vunpack.c.l.b16 %v78
    %v395 = vunpack.c.h.b16 %v78
    %v396 = vunpack.c.l.b16 %v79
    %v397 = vunpack.c.h.b16 %v79
    %v398 = vunpack.c.l.b16 %v80
    %v399 = vunpack.c.h.b16 %v80
    %v400 = vunpack.c.l.b16 %v81
    %v401 = vunpack.c.h.b16 %v81
    %v402 = vunpack.c.l.b16 %v82
    %v403 = vunpack.c.h.b16 %v82
    %v404 = vunpack.c.l.b16 %v83
    %v405 = vunpack.c.h.b16 %v83
    %v406 = vunpack.c.l.b16 %v84
    %v407 = vunpack.c.h.b16 %v84
    %v408 = vunpack.c.l.b16 %v85
    %v409 = vunpack.c.h.b16 %v85
    %v410 = vunpack.c.l.b16 %v86
    %v411 = vunpack.c.h.b16 %v86
    %v412 = vunpack.c.l.b16 %v87
    %v413 = vunpack.c.h.b16 %v87
    %v414 = vunpack.c.l.b16 %v88
    %v415 = vunpack.c.h.b16 %v88
    %v416 = vunpack.c.l.b16 %v89
    %v417 = vunpack.c.h.b16 %v89
    %v418 = vunpack.c.l.b16 %v90
    %v419 = vunpack.c.h.b16 %v90
    %v420 = vunpack.c.l.b16 %v91
    %v421 = vunpack.c.h.b16 %v91
    %v422 = vunpack.c.l.b16 %v92
    %v423 = vunpack.c.h.b16 %v92
    %v424 = vunpack.c.l.b16 %v93
    %v425 = vunpack.c.h.b16 %v93
    %v426 = vunpack.c.l.b16 %v94
    %v427 = vunpack.c.h.b16 %v94
    %v428 = vunpack.c.l.b16 %v95
    %v429 = vunpack.c.h.b16 %v95
    %v430 = vunpack.c.l.b16 %v96
    %v431 = vunpack.c.h.b16 %v96
    %v432 = vunpack.c.l.b16 %v97
    %v433 = vunpack.c.h.b16 %v97
    %v434 = vunpack.c.l.b16 %v98
    %v435 = vunpack.c.h.b16 %v98
    %v436 = vunpack.c.l.b16 %v99
    %v437 = vunpack.c.h.b16 %v99
    %v438 = vunpack.c.l.b16 %v100
    %v439 = vunpack.c.h.b16 %v100
    %v440 = vunpack.c.l.b16 %v101
    %v441 = vunpack.c.h.b16 %v101
    %v442 = vunpack.c.l.b16 %v102
    %v443 = vunpack.c.h.b16 %v102
    %v444 = vunpack.c.l.b16 %v103
    %v445 = vunpack.c.h.b16 %v103
    %v446 = vunpack.c.l.b16 %v104
    %v447 = vunpack.c.h.b16 %v104
    %v448 = vunpack.c.l.b16 %v105
    %v449 = vunpack.c.h.b16 %v105
    %v450 = vunpack.c.l.b16 %v106
    %v451 = vunpack.c.h.b16 %v106
    %v452 = vunpack.c.l.b16 %v107
    %v453 = vunpack.c.h.b16 %v107
    %v454 = vunpack.c.l.b16 %v108
    %v455 = vunpack.c.h.b16 %v108
    %v456 = vunpack.c.l.b16 %v109
    %v457 = vunpack.c.h.b16 %v109
    %v458 = vunpack.c.l.b16 %v110
    %v459 = vunpack.c.h.b16 %v110
    %v460 = vunpack.c.l.b16 %v111
    %v461 = vunpack.c.h.b16 %v111
    %v462 = vunpack.c.l.b16 %v112
    %v463 = vunpack.c.h.b16 %v112
    %v464 = vunpack.c.l.b16 %v113
    %v465 = vunpack.c.h.b16 %v113
    %v466 = vunpack.c.l.b16 %v114
    %v467 = vunpack.c.h.b16 %v114
    %v468 = vunpack.c.l.b16 %v115
    %v469 = vunpack.c.h.b16 %v115
    %v470 = vunpack.c.l.b16 %v116
    %v471 = vunpack.c.h.b16 %v116
    %v472 = vunpack.c.l.b16 %v117
    %v473 = vunpack.c.h.b16 %v117
    %v474 = vunpack.c.l.b16 %v118
    %v475 = vunpack.c.h.b16 %v118
    %v476 = vunpack.c.l.b16 %v119
    %v477 = vunpack.c.h.b16 %v119
    %v478 = vunpack.c.l.b16 %v120
    %v479 = vunpack.c.h.b16 %v120
    %v480 = vunpack.c.l.b16 %v121
    %v481 = vunpack.c.h.b16 %v121
    %v482 = vunpack.c.l.b16 %v122
    %v483 = vunpack.c.h.b16 %v122
    %v484 = vunpack.c.l.b16 %v123
    %v485 = vunpack.c.h.b16 %v123
    %v486 = vunpack.c.l.b16 %v124
    %v487 = vunpack.c.h.b16 %v124
    %v488 = vunpack.c.l.b16 %v125
    %v489 = vunpack.c.h.b16 %v125
    %v490 = vunpack.c.l.b16 %v126
    %v491 = vunpack.c.h.b16 %v126
    %v492 = vunpack.c.l.b16 %v127
    %v493 = vunpack.c.h.b16 %v127
    %v494 = vunpack.c.l.b16 %v128
    %v495 = vunpack.c.h.b16 %v128
    %v496 = vunpack.c.l.b16 %v129
    %v497 = vunpack.c.h.b16 %v129
    %v498 = vunpack.c.l.b16 %v130
    %v499 = vunpack.c.h.b16 %v130
    %v500 = vunpack.c.l.b16 %v131
    %v501 = vunpack.c.h.b16 %v131
    %v502 = vunpack.c.l.b16 %v132
    %v503 = vunpack.c.h.b16 %v132
    %v504 = vunpack.c.l.b16 %v133
    %v505 = vunpack.c.h.b16 %v133
    %v506 = vunpack.c.l.b16 %v134
    %v507 = vunpack.c.h.b16 %v134
    %v508 = vunpack.c.l.b16 %v135
    %v509 = vunpack.c.h.b16 %v135
    %v510 = vunpack.c.l.b16 %v136
    %v511 = vunpack.c.h.b16 %v136
    %v512 = vunpack.c.l.b16 %v137
    %v513 = vunpack.c.h.b16 %v137
    %v514 = vunpack.c.l.b16 %v138
    %v515 = vunpack.c.h.b16 %v138
    %v516 = vunpack.c.l.b16 %v139
    %v517 = vunpack.c.h.b16 %v139
    %v518 = vunpack.c.l.b16 %v140
    %v519 = vunpack.c.h.b16 %v140
    %v520 = vunpack.c.l.b16 %v141
    %v521 = vunpack.c.h.b16 %v141
    %v522 = vunpack.c.l.b16 %v142
    %v523 = vunpack.c.h.b16 %v142
    %v524 = vunpack.c.l.b16 %v143
    %v525 = vunpack.c.h.b16 %v143
    %v526 = vunpack.c.l.b16 %v144
    %v527 = vunpack.c.h.b16 %v144
    %v528 = vunpack.c.l.b16 %v145
    %v529 = vunpack.c.h.b16 %v145
    %v530 = vunpack.c.l.b16 %v146
    %v531 = vunpack.c.h.b16 %v146
    %v532 = vunpack.c.l.b16 %v147
    %v533 = vunpack.c.h.b16 %v147
    %v534 = vunpack.c.l.b16 %v148
    %v535 = vunpack.c.h.b16 %v148
    %v536 = vunpack.c.l.b16 %v149
    %v537 = vunpack.c.h.b16 %v149
    %v538 = vunpack.c.l.b16 %v150
    %v539 = vunpack.c.h.b16 %v150
    %v540 = vunpack.c.l.b16 %v151
    %v541 = vunpack.c.h.b16 %v151
    %v542 = vunpack.c.l.b16 %v152
    %v543 = vunpack.c.h.b16 %v152
    %v544 = vunpack.c.l.b16 %v153
    %v545 = vunpack.c.h.b16 %v153
    %v546 = vunpack.c.l.b16 %v154
    %v547 = vunpack.c.h.b16 %v154
    %v548 = vunpack.c.l.b16 %v155
    %v549 = vunpack.c.h.b16 %v155
    %v550 = vunpack.c.l.b16 %v156
    %v551 = vunpack.c.h.b16 %v156
    %v552 = vunpack.c.l.b16 %v157
    %v553 = vunpack.c.h.b16 %v157
    %v554 = vunpack.c.l.b16 %v158
    %v555 = vunpack.c.h.b16 %v158
    %v556 = vunpack.c.l.b16 %v159
    %v557 = vunpack.c.h.b16 %v159
    %v558 = vunpack.c.l.b16 %v160
    %v559 = vunpack.c.h.b16 %v160
    %v560 = vunpack.c.l.b16 %v161
    %v561 = vunpack.c.h.b16 %v161
    %v562 = vunpack.c.l.b16 %v162
    %v563 = vunpack.c.h.b16 %v162
    %v564 = vunpack.c.l.b16 %v163
    %v565 = vunpack.c.h.b16 %v163
    %v566 = vunpack.c.l.b16 %v164
    %v567 = vunpack.c.h.b16 %v164
    %v568 = vunpack.c.l.b16 %v165
    %v569 = vunpack.c.h.b16 %v165
    %v570 = vunpack.c.l.b16 %v166
    %v571 = vunpack.c.h.b16 %v166
    %v572 = vunpack.c.l.b16 %v167
    %v573 = vunpack.c.h.b16 %v167
    %v574 = vunpack.c.l.b16 %v168
    %v575 = vunpack.c.h.b16 %v168
    %v576 = vunpack.c.l.b16 %v169
    %v577 = vunpack.c.h.b16 %v169
    %v578 = vunpack.c.l.b16 %v170
    %v579 = vunpack.c.h.b16 %v170
    %v580 = vunpack.c.l.b16 %v171
    %v581 = vunpack.c.h.b16 %v171
    %v582 = vunpack.c.l.b16 %v172
    %v583 = vunpack.c.h.b16 %v172
    %v584 = vunpack.c.l.b16 %v173
    %v585 = vunpack.c.h.b16 %v173
    %v586 = vunpack.c.l.b16 %v174
    %v587 = vunpack.c.h.b16 %v174
    %v588 = vunpack.c.l.b16 %v175
    %v589 = vunpack.c.h.b16 %v175
    %v590 = vunpack.c.l.b16 %v176
    %v591 = vunpack.c.h.b16 %v176
    %v592 = vunpack.c.l.b16 %v177
    %v593 = vunpack.c.h.b16 %v177
    %v594 = vunpack.c.l.b16 %v178
    %v595 = vunpack.c.h.b16 %v178
    %v596 = vunpack.c.l.b16 %v179
    %v597 = vunpack.c.h.b16 %v179
    %v598 = vunpack.c.l.b16 %v180
    %v599 = vunpack.c.h.b16 %v180
    %v600 = vunpack.c.l.b16 %v181
    %v601 = vunpack.c.h.b16 %v181
    %v602 = vunpack.c.l.b16 %v182
    %v603 = vunpack.c.h.b16 %v182
    %v604 = vunpack.c.l.b16 %v183
    %v605 = vunpack.c.h.b16 %v183
    %v606 = vpack.c.b16 %v352, %v350
    %v607 = vpack.c.b16 %v353, %v351
    %v608 = vpack.c.b16 %v356, %v354
    %v609 = vpack.c.b16 %v357, %v355
    %v610 = vpack.c.b16 %v360, %v358
    %v611 = vpack.c.b16 %v361, %v359
    %v612 = vpack.c.b16 %v364, %v362
    %v613 = vpack.c.b16 %v365, %v363
    %v614 = vpack.c.b16 %v368, %v366
    %v615 = vpack.c.b16 %v369, %v367
    %v616 = vpack.c.b16 %v372, %v370
    %v617 = vpack.c.b16 %v373, %v371
    %v618 = vpack.c.b16 %v376, %v374
    %v619 = vpack.c.b16 %v377, %v375
    %v620 = vpack.c.b16 %v380, %v378
    %v621 = vpack.c.b16 %v381, %v379
    %v622 = vpack.c.b16 %v384, %v382
    %v623 = vpack.c.b16 %v385, %v383
    %v624 = vpack.c.b16 %v388, %v386
    %v625 = vpack.c.b16 %v389, %v387
    %v626 = vpack.c.b16 %v392, %v390
    %v627 = vpack.c.b16 %v393, %v391
    %v628 = vpack.c.b16 %v396, %v394
    %v629 = vpack.c.b16 %v397, %v395
    %v630 = vpack.c.b16 %v400, %v398
    %v631 = vpack.c.b16 %v401, %v399
    %v632 = vpack.c.b16 %v404, %v402
    %v633 = vpack.c.b16 %v405, %v403
    %v634 = vpack.c.b16 %v408, %v406
    %v635 = vpack.c.b16 %v409, %v407
    %v636 = vpack.c.b16 %v412, %v410
    %v637 = vpack.c.b16 %v413, %v411
    %v638 = vpack.c.b16 %v416, %v414
    %v639 = vpack.c.b16 %v417, %v415
    %v640 = vpack.c.b16 %v420, %v418
    %v641 = vpack.c.b16 %v421, %v419
    %v642 = vpack.c.b16 %v424, %v422
    %v643 = vpack.c.b16 %v425, %v423
    %v644 = vpack.c.b16 %v428, %v426
    %v645 = vpack.c.b16 %v429, %v427
    %v646 = vpack.c.b16 %v432, %v430
    %v647 = vpack.c.b16 %v433, %v431
    %v648 = vpack.c.b16 %v436, %v434
    %v649 = vpack.c.b16 %v437, %v435
    %v650 = vpack.c.b16 %v440, %v438
    %v651 = vpack.c.b16 %v441, %v439
    %v652 = vpack.c.b16 %v444, %v442
    %v653 = vpack.c.b16 %v445, %v443
    %v654 = vpack.c.b16 %v448, %v446
    %v655 = vpack.c.b16 %v449, %v447
    %v656 = vpack.c.b16 %v452, %v450
    %v657 = vpack.c.b16 %v453, %v451
    %v658 = vpack.c.b16 %v456, %v454
    %v659 = vpack.c.b16 %v457, %v455
    %v660 = vpack.c.b16 %v460, %v458
    %v661 = vpack.c.b16 %v461, %v459
    %v662 = vpack.c.b16 %v464, %v462
    %v663 = vpack.c.b16 %v465, %v463
    %v664 = vpack.c.b16 %v468, %v466
    %v665 = vpack.c.b16 %v469, %v467
    %v666 = vpack.c.b16 %v472, %v470
    %v667 = vpack.c.b16 %v473, %v471
    %v668 = vpack.c.b16 %v476, %v474
    %v669 = vpack.c.b16 %v477, %v475
    %v670 = vpack.c.b16 %v480, %v478
    %v671 = vpack.c.b16 %v481, %v479
    %v672 = vpack.c.b16 %v484, %v482
    %v673 = vpack.c.b16 %v485, %v483
    %v674 = vpack.c.b16 %v488, %v486
    %v675 = vpack.c.b16 %v489, %v487
    %v676 = vpack.c.b16 %v492, %v490
    %v677 = vpack.c.b16 %v493, %v491
    %v678 = vpack.c.b16 %v496, %v494
    %v679 = vpack.c.b16 %v497, %v495
    %v680 = vpack.c.b16 %v500, %v498
    %v681 = vpack.c.b16 %v501, %v499
    %v682 = vpack.c.b16 %v504, %v502
    %v683 = vpack.c.b16 %v505, %v503
    %v684 = vpack.c.b16 %v508, %v506
    %v685 = vpack.c.b16 %v509, %v507
    %v686 = vpack.c.b16 %v512, %v510
    %v687 = vpack.c.b16 %v513, %v511
    %v688 = vpack.c.b16 %v516, %v514
    %v689 = vpack.c.b16 %v517, %v515
    %v690 = vpack.c.b16 %v520, %v518
    %v691 = vpack.c.b16 %v521, %v519
    %v692 = vpack.c.b16 %v524, %v522
    %v693 = vpack.c.b16 %v525, %v523
    %v694 = vpack.c.b16 %v528, %v526
    %v695 = vpack.c.b16 %v529, %v527
    %v696 = vpack.c.b16 %v532, %v530
    %v697 = vpack.c.b16 %v533, %v531
    %v698 = vpack.c.b16 %v536, %v534
    %v699 = vpack.c.b16 %v537, %v535
    %v700 = vpack.c.b16 %v540, %v538
    %v701 = vpack.c.b16 %v541, %v539
    %v702 = vpack.c.b16 %v544, %v542
    %v703 = vpack.c.b16 %v545, %v543
    %v704 = vpack.c.b16 %v548, %v546
    %v705 = vpack.c.b16 %v549, %v547
    %v706 = vpack.c.b16 %v552, %v550
    %v707 = vpack.c.b16 %v553, %v551
    %v708 = vpack.c.b16 %v556, %v554
    %v709 = vpack.c.b16 %v557, %v555
    %v710 = vpack.c.b16 %v560, %v558
    %v711 = vpack.c.b16 %v561, %v559
    %v712 = vpack.c.b16 %v564, %v562
    %v713 = vpack.c.b16 %v565, %v563
    %v714 = vpack.c.b16 %v568, %v566
    %v715 = vpack.c.b16 %v569, %v567
    %v716 = vpack.c.b16 %v572, %v570
    %v717 = vpack.c.b16 %v573, %v571
    %v718 = vpack.c.b16 %v576, %v574
    %v719 = vpack.c.b16 %v577, %v575
    %v720 = vpack.c.b16 %v580, %v578
    %v721 = vpack.c.b16 %v581, %v579
    %v722 = vpack.c.b16 %v584, %v582
    %v723 = vpack.c.b16 %v585, %v583
    %v724 = vpack.c.b16 %v588, %v586
    %v725 = vpack.c.b16 %v589, %v587
    %v726 = vpack.c.b16 %v592, %v590
    %v727 = vpack.c.b16 %v593, %v591
    %v728 = vpack.c.b16 %v596, %v594
    %v729 = vpack.c.b16 %v597, %v595
    %v730 = vpack.c.b16 %v600, %v598
    %v731 = vpack.c.b16 %v601, %v599
    %v732 = vpack.c.b16 %v604, %v602
    %v733 = vpack.c.b16 %v605, %v603
    %862 = vmatpush.bf16.xpose.msra.mxu0 %v620
    %863 = vmatpush.bf16.xpose.msra.mxu0 %v618
    %864 = vmatpush.bf16.xpose.msra.mxu0 %v616
    %865 = vmatpush.bf16.xpose.msra.mxu0 %v614
    %866 = vmatpush.bf16.xpose.msra.mxu0 %v612
    %867 = vmatpush.bf16.xpose.msra.mxu0 %v610
    %868 = vmatpush.bf16.xpose.msra.mxu0 %v608
    %869 = vmatpush.bf16.xpose.msra.mxu0 %v606
    %870 = vmatmul.bf16.gmra.mxu0 %v214
    %v871 = vpop.f32.mrf.mxu0
    %v872 = vadd.f32 %v186, %v871
    %v873 = vpop.f32.mrf.mxu0
    %v874 = vadd.f32 %v186, %v873
    %875 = vmatmul.bf16.gmra.mxu0 %v216
    %v876 = vpop.f32.mrf.mxu0
    %v877 = vadd.f32 %v186, %v876
    %v878 = vpop.f32.mrf.mxu0
    %v879 = vadd.f32 %v186, %v878
    %880 = vdwg.mxu0
    %881 = vmatpush.bf16.xpose.msra.mxu0 %v621
    %882 = vmatpush.bf16.xpose.msra.mxu0 %v619
    %883 = vmatpush.bf16.xpose.msra.mxu0 %v617
    %884 = vmatpush.bf16.xpose.msra.mxu0 %v615
    %885 = vmatpush.bf16.xpose.msra.mxu0 %v613
    %886 = vmatpush.bf16.xpose.msra.mxu0 %v611
    %887 = vmatpush.bf16.xpose.msra.mxu0 %v609
    %888 = vmatpush.bf16.xpose.msra.mxu0 %v607
    %889 = vmatmul.bf16.gmra.mxu0 %v215
    %v890 = vpop.f32.mrf.mxu0
    %v891 = vadd.f32 %v872, %v890
    %v892 = vpop.f32.mrf.mxu0
    %v893 = vadd.f32 %v874, %v892
    %894 = vmatmul.bf16.gmra.mxu0 %v217
    %v895 = vpop.f32.mrf.mxu0
    %v896 = vadd.f32 %v877, %v895
    %v897 = vpop.f32.mrf.mxu0
    %v898 = vadd.f32 %v879, %v897
    %899 = vdwg.mxu0
    %900 = vmatpush.bf16.xpose.msra.mxu0 %v636
    %901 = vmatpush.bf16.xpose.msra.mxu0 %v634
    %902 = vmatpush.bf16.xpose.msra.mxu0 %v632
    %903 = vmatpush.bf16.xpose.msra.mxu0 %v630
    %904 = vmatpush.bf16.xpose.msra.mxu0 %v628
    %905 = vmatpush.bf16.xpose.msra.mxu0 %v626
    %906 = vmatpush.bf16.xpose.msra.mxu0 %v624
    %907 = vmatpush.bf16.xpose.msra.mxu0 %v622
    %908 = vmatmul.bf16.gmra.mxu0 %v214
    %v909 = vpop.f32.mrf.mxu0
    %v910 = vadd.f32 %v187, %v909
    %v911 = vpop.f32.mrf.mxu0
    %v912 = vadd.f32 %v187, %v911
    %913 = vmatmul.bf16.gmra.mxu0 %v216
    %v914 = vpop.f32.mrf.mxu0
    %v915 = vadd.f32 %v187, %v914
    %v916 = vpop.f32.mrf.mxu0
    %v917 = vadd.f32 %v187, %v916
    %918 = vdwg.mxu0
    %919 = vmatpush.bf16.xpose.msra.mxu0 %v637
    %920 = vmatpush.bf16.xpose.msra.mxu0 %v635
    %921 = vmatpush.bf16.xpose.msra.mxu0 %v633
    %922 = vmatpush.bf16.xpose.msra.mxu0 %v631
    %923 = vmatpush.bf16.xpose.msra.mxu0 %v629
    %924 = vmatpush.bf16.xpose.msra.mxu0 %v627
    %925 = vmatpush.bf16.xpose.msra.mxu0 %v625
    %926 = vmatpush.bf16.xpose.msra.mxu0 %v623
    %927 = vmatmul.bf16.gmra.mxu0 %v215
    %v928 = vpop.f32.mrf.mxu0
    %v929 = vadd.f32 %v910, %v928
    %v930 = vpop.f32.mrf.mxu0
    %v931 = vadd.f32 %v912, %v930
    %932 = vmatmul.bf16.gmra.mxu0 %v217
    %v933 = vpop.f32.mrf.mxu0
    %v934 = vadd.f32 %v915, %v933
    %v935 = vpop.f32.mrf.mxu0
    %v936 = vadd.f32 %v917, %v935
    %937 = vdwg.mxu0
    %938 = vmatpush.bf16.xpose.msra.mxu0 %v652
    %939 = vmatpush.bf16.xpose.msra.mxu0 %v650
    %940 = vmatpush.bf16.xpose.msra.mxu0 %v648
    %941 = vmatpush.bf16.xpose.msra.mxu0 %v646
    %942 = vmatpush.bf16.xpose.msra.mxu0 %v644
    %943 = vmatpush.bf16.xpose.msra.mxu0 %v642
    %944 = vmatpush.bf16.xpose.msra.mxu0 %v640
    %945 = vmatpush.bf16.xpose.msra.mxu0 %v638
    %946 = vmatmul.bf16.gmra.mxu0 %v214
    %v947 = vpop.f32.mrf.mxu0
    %v948 = vadd.f32 %v188, %v947
    %v949 = vpop.f32.mrf.mxu0
    %v950 = vadd.f32 %v188, %v949
    %951 = vmatmul.bf16.gmra.mxu0 %v216
    %v952 = vpop.f32.mrf.mxu0
    %v953 = vadd.f32 %v188, %v952
    %v954 = vpop.f32.mrf.mxu0
    %v955 = vadd.f32 %v188, %v954
    %956 = vdwg.mxu0
    %957 = vmatpush.bf16.xpose.msra.mxu0 %v653
    %958 = vmatpush.bf16.xpose.msra.mxu0 %v651
    %959 = vmatpush.bf16.xpose.msra.mxu0 %v649
    %960 = vmatpush.bf16.xpose.msra.mxu0 %v647
    %961 = vmatpush.bf16.xpose.msra.mxu0 %v645
    %962 = vmatpush.bf16.xpose.msra.mxu0 %v643
    %963 = vmatpush.bf16.xpose.msra.mxu0 %v641
    %964 = vmatpush.bf16.xpose.msra.mxu0 %v639
    %965 = vmatmul.bf16.gmra.mxu0 %v215
    %v966 = vpop.f32.mrf.mxu0
    %v967 = vadd.f32 %v948, %v966
    %v968 = vpop.f32.mrf.mxu0
    %v969 = vadd.f32 %v950, %v968
    %970 = vmatmul.bf16.gmra.mxu0 %v217
    %v971 = vpop.f32.mrf.mxu0
    %v972 = vadd.f32 %v953, %v971
    %v973 = vpop.f32.mrf.mxu0
    %v974 = vadd.f32 %v955, %v973
    %975 = vdwg.mxu0
    %976 = vmatpush.bf16.xpose.msra.mxu0 %v668
    %977 = vmatpush.bf16.xpose.msra.mxu0 %v666
    %978 = vmatpush.bf16.xpose.msra.mxu0 %v664
    %979 = vmatpush.bf16.xpose.msra.mxu0 %v662
    %980 = vmatpush.bf16.xpose.msra.mxu0 %v660
    %981 = vmatpush.bf16.xpose.msra.mxu0 %v658
    %982 = vmatpush.bf16.xpose.msra.mxu0 %v656
    %983 = vmatpush.bf16.xpose.msra.mxu0 %v654
    %984 = vmatmul.bf16.gmra.mxu0 %v214
    %v985 = vpop.f32.mrf.mxu0
    %v986 = vadd.f32 %v189, %v985
    %v987 = vpop.f32.mrf.mxu0
    %v988 = vadd.f32 %v189, %v987
    %989 = vmatmul.bf16.gmra.mxu0 %v216
    %v990 = vpop.f32.mrf.mxu0
    %v991 = vadd.f32 %v189, %v990
    %v992 = vpop.f32.mrf.mxu0
    %v993 = vadd.f32 %v189, %v992
    %994 = vdwg.mxu0
    %995 = vmatpush.bf16.xpose.msra.mxu0 %v669
    %996 = vmatpush.bf16.xpose.msra.mxu0 %v667
    %997 = vmatpush.bf16.xpose.msra.mxu0 %v665
    %998 = vmatpush.bf16.xpose.msra.mxu0 %v663
    %999 = vmatpush.bf16.xpose.msra.mxu0 %v661
    %1000 = vmatpush.bf16.xpose.msra.mxu0 %v659
    %1001 = vmatpush.bf16.xpose.msra.mxu0 %v657
    %1002 = vmatpush.bf16.xpose.msra.mxu0 %v655
    %1003 = vmatmul.bf16.gmra.mxu0 %v215
    %v1004 = vpop.f32.mrf.mxu0
    %v1005 = vadd.f32 %v986, %v1004
    %v1006 = vpop.f32.mrf.mxu0
    %v1007 = vadd.f32 %v988, %v1006
    %1008 = vmatmul.bf16.gmra.mxu0 %v217
    %v1009 = vpop.f32.mrf.mxu0
    %v1010 = vadd.f32 %v991, %v1009
    %v1011 = vpop.f32.mrf.mxu0
    %v1012 = vadd.f32 %v993, %v1011
    %1013 = vdwg.mxu0
    %1014 = vmatpush.bf16.xpose.msra.mxu0 %v684
    %1015 = vmatpush.bf16.xpose.msra.mxu0 %v682
    %1016 = vmatpush.bf16.xpose.msra.mxu0 %v680
    %1017 = vmatpush.bf16.xpose.msra.mxu0 %v678
    %1018 = vmatpush.bf16.xpose.msra.mxu0 %v676
    %1019 = vmatpush.bf16.xpose.msra.mxu0 %v674
    %1020 = vmatpush.bf16.xpose.msra.mxu0 %v672
    %1021 = vmatpush.bf16.xpose.msra.mxu0 %v670
    %1022 = vmatmul.bf16.gmra.mxu0 %v214
    %v1023 = vpop.f32.mrf.mxu0
    %v1024 = vadd.f32 %v190, %v1023
    %v1025 = vpop.f32.mrf.mxu0
    %v1026 = vadd.f32 %v190, %v1025
    %1027 = vmatmul.bf16.gmra.mxu0 %v216
    %v1028 = vpop.f32.mrf.mxu0
    %v1029 = vadd.f32 %v190, %v1028
    %v1030 = vpop.f32.mrf.mxu0
    %v1031 = vadd.f32 %v190, %v1030
    %1032 = vdwg.mxu0
    %1033 = vmatpush.bf16.xpose.msra.mxu0 %v685
    %1034 = vmatpush.bf16.xpose.msra.mxu0 %v683
    %1035 = vmatpush.bf16.xpose.msra.mxu0 %v681
    %1036 = vmatpush.bf16.xpose.msra.mxu0 %v679
    %1037 = vmatpush.bf16.xpose.msra.mxu0 %v677
    %1038 = vmatpush.bf16.xpose.msra.mxu0 %v675
    %1039 = vmatpush.bf16.xpose.msra.mxu0 %v673
    %1040 = vmatpush.bf16.xpose.msra.mxu0 %v671
    %1041 = vmatmul.bf16.gmra.mxu0 %v215
    %v1042 = vpop.f32.mrf.mxu0
    %v1043 = vadd.f32 %v1024, %v1042
    %v1044 = vpop.f32.mrf.mxu0
    %v1045 = vadd.f32 %v1026, %v1044
    %1046 = vmatmul.bf16.gmra.mxu0 %v217
    %v1047 = vpop.f32.mrf.mxu0
    %v1048 = vadd.f32 %v1029, %v1047
    %v1049 = vpop.f32.mrf.mxu0
    %v1050 = vadd.f32 %v1031, %v1049
    %1051 = vdwg.mxu0
    %1052 = vmatpush.bf16.xpose.msra.mxu0 %v700
    %1053 = vmatpush.bf16.xpose.msra.mxu0 %v698
    %1054 = vmatpush.bf16.xpose.msra.mxu0 %v696
    %1055 = vmatpush.bf16.xpose.msra.mxu0 %v694
    %1056 = vmatpush.bf16.xpose.msra.mxu0 %v692
    %1057 = vmatpush.bf16.xpose.msra.mxu0 %v690
    %1058 = vmatpush.bf16.xpose.msra.mxu0 %v688
    %1059 = vmatpush.bf16.xpose.msra.mxu0 %v686
    %1060 = vmatmul.bf16.gmra.mxu0 %v214
    %v1061 = vpop.f32.mrf.mxu0
    %v1062 = vadd.f32 %v191, %v1061
    %v1063 = vpop.f32.mrf.mxu0
    %v1064 = vadd.f32 %v191, %v1063
    %1065 = vmatmul.bf16.gmra.mxu0 %v216
    %v1066 = vpop.f32.mrf.mxu0
    %v1067 = vadd.f32 %v191, %v1066
    %v1068 = vpop.f32.mrf.mxu0
    %v1069 = vadd.f32 %v191, %v1068
    %1070 = vdwg.mxu0
    %1071 = vmatpush.bf16.xpose.msra.mxu0 %v701
    %1072 = vmatpush.bf16.xpose.msra.mxu0 %v699
    %1073 = vmatpush.bf16.xpose.msra.mxu0 %v697
    %1074 = vmatpush.bf16.xpose.msra.mxu0 %v695
    %1075 = vmatpush.bf16.xpose.msra.mxu0 %v693
    %1076 = vmatpush.bf16.xpose.msra.mxu0 %v691
    %1077 = vmatpush.bf16.xpose.msra.mxu0 %v689
    %1078 = vmatpush.bf16.xpose.msra.mxu0 %v687
    %1079 = vmatmul.bf16.gmra.mxu0 %v215
    %v1080 = vpop.f32.mrf.mxu0
    %v1081 = vadd.f32 %v1062, %v1080
    %v1082 = vpop.f32.mrf.mxu0
    %v1083 = vadd.f32 %v1064, %v1082
    %1084 = vmatmul.bf16.gmra.mxu0 %v217
    %v1085 = vpop.f32.mrf.mxu0
    %v1086 = vadd.f32 %v1067, %v1085
    %v1087 = vpop.f32.mrf.mxu0
    %v1088 = vadd.f32 %v1069, %v1087
    %1089 = vdwg.mxu0
    %1090 = vmatpush.bf16.xpose.msra.mxu0 %v716
    %1091 = vmatpush.bf16.xpose.msra.mxu0 %v714
    %1092 = vmatpush.bf16.xpose.msra.mxu0 %v712
    %1093 = vmatpush.bf16.xpose.msra.mxu0 %v710
    %1094 = vmatpush.bf16.xpose.msra.mxu0 %v708
    %1095 = vmatpush.bf16.xpose.msra.mxu0 %v706
    %1096 = vmatpush.bf16.xpose.msra.mxu0 %v704
    %1097 = vmatpush.bf16.xpose.msra.mxu0 %v702
    %1098 = vmatmul.bf16.gmra.mxu0 %v214
    %v1099 = vpop.f32.mrf.mxu0
    %v1100 = vadd.f32 %v192, %v1099
    %v1101 = vpop.f32.mrf.mxu0
    %v1102 = vadd.f32 %v192, %v1101
    %1103 = vmatmul.bf16.gmra.mxu0 %v216
    %v1104 = vpop.f32.mrf.mxu0
    %v1105 = vadd.f32 %v192, %v1104
    %v1106 = vpop.f32.mrf.mxu0
    %v1107 = vadd.f32 %v192, %v1106
    %1108 = vdwg.mxu0
    %1109 = vmatpush.bf16.xpose.msra.mxu0 %v717
    %1110 = vmatpush.bf16.xpose.msra.mxu0 %v715
    %1111 = vmatpush.bf16.xpose.msra.mxu0 %v713
    %1112 = vmatpush.bf16.xpose.msra.mxu0 %v711
    %1113 = vmatpush.bf16.xpose.msra.mxu0 %v709
    %1114 = vmatpush.bf16.xpose.msra.mxu0 %v707
    %1115 = vmatpush.bf16.xpose.msra.mxu0 %v705
    %1116 = vmatpush.bf16.xpose.msra.mxu0 %v703
    %1117 = vmatmul.bf16.gmra.mxu0 %v215
    %v1118 = vpop.f32.mrf.mxu0
    %v1119 = vadd.f32 %v1100, %v1118
    %v1120 = vpop.f32.mrf.mxu0
    %v1121 = vadd.f32 %v1102, %v1120
    %1122 = vmatmul.bf16.gmra.mxu0 %v217
    %v1123 = vpop.f32.mrf.mxu0
    %v1124 = vadd.f32 %v1105, %v1123
    %v1125 = vpop.f32.mrf.mxu0
    %v1126 = vadd.f32 %v1107, %v1125
    %1127 = vdwg.mxu0
    %1128 = vmatpush.bf16.xpose.msra.mxu0 %v732
    %1129 = vmatpush.bf16.xpose.msra.mxu0 %v730
    %1130 = vmatpush.bf16.xpose.msra.mxu0 %v728
    %1131 = vmatpush.bf16.xpose.msra.mxu0 %v726
    %1132 = vmatpush.bf16.xpose.msra.mxu0 %v724
    %1133 = vmatpush.bf16.xpose.msra.mxu0 %v722
    %1134 = vmatpush.bf16.xpose.msra.mxu0 %v720
    %1135 = vmatpush.bf16.xpose.msra.mxu0 %v718
    %1136 = vmatmul.bf16.gmra.mxu0 %v214
    %v1137 = vpop.f32.mrf.mxu0
    %v1138 = vadd.f32 %v193, %v1137
    %v1139 = vpop.f32.mrf.mxu0
    %v1140 = vadd.f32 %v193, %v1139
    %1141 = vmatmul.bf16.gmra.mxu0 %v216
    %v1142 = vpop.f32.mrf.mxu0
    %v1143 = vadd.f32 %v193, %v1142
    %v1144 = vpop.f32.mrf.mxu0
    %v1145 = vadd.f32 %v193, %v1144
    %1146 = vdwg.mxu0
    %1147 = vmatpush.bf16.xpose.msra.mxu0 %v733
    %1148 = vmatpush.bf16.xpose.msra.mxu0 %v731
    %1149 = vmatpush.bf16.xpose.msra.mxu0 %v729
    %1150 = vmatpush.bf16.xpose.msra.mxu0 %v727
    %1151 = vmatpush.bf16.xpose.msra.mxu0 %v725
    %1152 = vmatpush.bf16.xpose.msra.mxu0 %v723
    %1153 = vmatpush.bf16.xpose.msra.mxu0 %v721
    %1154 = vmatpush.bf16.xpose.msra.mxu0 %v719
    %1155 = vmatmul.bf16.gmra.mxu0 %v215
    %v1156 = vpop.f32.mrf.mxu0
    %v1157 = vadd.f32 %v1138, %v1156
    %v1158 = vpop.f32.mrf.mxu0
    %v1159 = vadd.f32 %v1140, %v1158
    %1160 = vmatmul.bf16.gmra.mxu0 %v217
    %v1161 = vpop.f32.mrf.mxu0
    %v1162 = vadd.f32 %v1143, %v1161
    %v1163 = vpop.f32.mrf.mxu0
    %v1164 = vadd.f32 %v1145, %v1163
    %1165 = vdwg.mxu0
    %1166 = vst [vmem:[%s4] sm:$0xff] %v891
    %1167 = vst [vmem:[%s4 + $0x8] sm:$0xff] %v929
    %1168 = vst [vmem:[%s4 + $0x10] sm:$0xff] %v967
    %1169 = vst [vmem:[%s4 + $0x18] sm:$0xff] %v1005
    %1170 = vst [vmem:[%s4 + $0x20] sm:$0xff] %v1043
    %1171 = vst [vmem:[%s4 + $0x28] sm:$0xff] %v1081
    %1172 = vst [vmem:[%s4 + $0x30] sm:$0xff] %v1119
    %1173 = vst [vmem:[%s4 + $0x38] sm:$0xff] %v1157
    %1174 = vst [vmem:[%s4 + $0x40] sm:$0xff] %v893
    %1175 = vst [vmem:[%s4 + $0x48] sm:$0xff] %v931
    %1176 = vst [vmem:[%s4 + $0x50] sm:$0xff] %v969
    %1177 = vst [vmem:[%s4 + $0x58] sm:$0xff] %v1007
    %1178 = vst [vmem:[%s4 + $0x60] sm:$0xff] %v1045
    %1179 = vst [vmem:[%s4 + $0x68] sm:$0xff] %v1083
    %1180 = vst [vmem:[%s4 + $0x70] sm:$0xff] %v1121
    %1181 = vst [vmem:[%s4 + $0x78] sm:$0xff] %v1159
    %1182 = vst [vmem:[%s4 + $0x80] sm:$0xff] %v896
    %1183 = vst [vmem:[%s4 + $0x88] sm:$0xff] %v934
    %1184 = vst [vmem:[%s4 + $0x90] sm:$0xff] %v972
    %1185 = vst [vmem:[%s4 + $0x98] sm:$0xff] %v1010
    %1186 = vst [vmem:[%s4 + $0xa0] sm:$0xff] %v1048
    %1187 = vst [vmem:[%s4 + $0xa8] sm:$0xff] %v1086
    %1188 = vst [vmem:[%s4 + $0xb0] sm:$0xff] %v1124
    %1189 = vst [vmem:[%s4 + $0xb8] sm:$0xff] %v1162
    %1190 = vst [vmem:[%s4 + $0xc0] sm:$0xff] %v898
    %1191 = vst [vmem:[%s4 + $0xc8] sm:$0xff] %v936
    %1192 = vst [vmem:[%s4 + $0xd0] sm:$0xff] %v974
    %1193 = vst [vmem:[%s4 + $0xd8] sm:$0xff] %v1012
    %1194 = vst [vmem:[%s4 + $0xe0] sm:$0xff] %v1050
    %1195 = vst [vmem:[%s4 + $0xe8] sm:$0xff] %v1088
    %1196 = vst [vmem:[%s4 + $0xf0] sm:$0xff] %v1126
    %1197 = vst [vmem:[%s4 + $0xf8] sm:$0xff] %v1164
    %v1198 = vld [vmem:[%s3] sm:$0xff]
    %v1199 = vld [vmem:[%s3 + $0x8] sm:$0xff]
    %v1200 = vld [vmem:[%s3 + $0x10] sm:$0xff]
    %v1201 = vld [vmem:[%s3 + $0x18] sm:$0xff]
    %v1202 = vld [vmem:[#allocation2] sm:$0xff]
    %v1203 = vld [vmem:[#allocation2 + $0x8] sm:$0xff]
    %v1204 = vld [vmem:[#allocation2 + $0x10] sm:$0xff]
    %v1205 = vld [vmem:[#allocation2 + $0x18] sm:$0xff]
    %v1206 = vmax.f32 %v891, %v929
    %v1207 = vmax.f32 %v1206, %v967
    %v1208 = vmax.f32 %v1207, %v1005
    %v1209 = vmax.f32 %v1208, %v1043
    %v1210 = vmax.f32 %v1209, %v1081
    %v1211 = vmax.f32 %v1210, %v1119
    %v1212 = vmax.f32 %v1211, %v1157
    %1213 = vmax.xlane.f32.xlu0 %v1212
    %v1214 = vpop.xlane.xlu0 %1213
    %v1215 = vmax.f32 %v893, %v931
    %v1216 = vmax.f32 %v1215, %v969
    %v1217 = vmax.f32 %v1216, %v1007
    %v1218 = vmax.f32 %v1217, %v1045
    %v1219 = vmax.f32 %v1218, %v1083
    %v1220 = vmax.f32 %v1219, %v1121
    %v1221 = vmax.f32 %v1220, %v1159
    %1222 = vmax.xlane.f32.xlu0 %v1221
    %v1223 = vpop.xlane.xlu0 %1222
    %v1224 = vmax.f32 %v896, %v934
    %v1225 = vmax.f32 %v1224, %v972
    %v1226 = vmax.f32 %v1225, %v1010
    %v1227 = vmax.f32 %v1226, %v1048
    %v1228 = vmax.f32 %v1227, %v1086
    %v1229 = vmax.f32 %v1228, %v1124
    %v1230 = vmax.f32 %v1229, %v1162
    %1231 = vmax.xlane.f32.xlu0 %v1230
    %v1232 = vpop.xlane.xlu0 %1231
    %v1233 = vmax.f32 %v898, %v936
    %v1234 = vmax.f32 %v1233, %v974
    %v1235 = vmax.f32 %v1234, %v1012
    %v1236 = vmax.f32 %v1235, %v1050
    %v1237 = vmax.f32 %v1236, %v1088
    %v1238 = vmax.f32 %v1237, %v1126
    %v1239 = vmax.f32 %v1238, %v1164
    %1240 = vmax.xlane.f32.xlu0 %v1239
    %v1241 = vpop.xlane.xlu0 %1240
    %v1242 = vmax.f32 %v1202, %v1214
    %v1243 = vmax.f32 %v1203, %v1223
    %v1244 = vmax.f32 %v1204, %v1232
    %v1245 = vmax.f32 %v1205, %v1241
    %v1246 = vsub.f32 %v1202, %v1242
    %v1247 = vsub.f32 %v1203, %v1243
    %v1248 = vsub.f32 %v1204, %v1244
    %v1249 = vsub.f32 %v1205, %v1245
    %v1250 = vmul.f32 %v1246, 1.442695
    %v1251 = vpow.pop %v1250
    %v1252 = vmul.f32 %v1247, 1.442695
    %v1253 = vpow.pop %v1252
    %v1254 = vmul.f32 %v1248, 1.442695
    %v1255 = vpow.pop %v1254
    %v1256 = vmul.f32 %v1249, 1.442695
    %v1257 = vpow.pop %v1256
    %v1258 = vld [vmem:[#allocation3] sm:$0xff]
    %v1259 = vld [vmem:[#allocation3 + $0x8] sm:$0xff]
    %v1260 = vld [vmem:[#allocation3 + $0x10] sm:$0xff]
    %v1261 = vld [vmem:[#allocation3 + $0x18] sm:$0xff]
    %v1262 = vmul.f32 %v1251, %v1258
    %v1263 = vmul.f32 %v1253, %v1259
    %v1264 = vmul.f32 %v1255, %v1260
    %v1265 = vmul.f32 %v1257, %v1261
    %1267 = vset.pattern.permute.xlu0 0
    %1268 = vperm.xlu0 %1267, %v1242
    %v1269 = vpop.permute.xlu0 %1268
    %1272 = vset.pattern.permute.xlu0 0
    %1273 = vperm.xlu0 %1272, %v1243
    %v1274 = vpop.permute.xlu0 %1273
    %1277 = vset.pattern.permute.xlu0 0
    %1278 = vperm.xlu0 %1277, %v1244
    %v1279 = vpop.permute.xlu0 %1278
    %1282 = vset.pattern.permute.xlu0 0
    %1283 = vperm.xlu0 %1282, %v1245
    %v1284 = vpop.permute.xlu0 %1283
    %v1286 = vsub.f32 %v891, %v1269
    %v1287 = vsub.f32 %v929, %v1269
    %v1288 = vsub.f32 %v967, %v1269
    %v1289 = vsub.f32 %v1005, %v1269
    %v1290 = vsub.f32 %v1043, %v1269
    %v1291 = vsub.f32 %v1081, %v1269
    %v1292 = vsub.f32 %v1119, %v1269
    %v1293 = vsub.f32 %v1157, %v1269
    %v1294 = vsub.f32 %v893, %v1274
    %v1295 = vsub.f32 %v931, %v1274
    %v1296 = vsub.f32 %v969, %v1274
    %v1297 = vsub.f32 %v1007, %v1274
    %v1298 = vsub.f32 %v1045, %v1274
    %v1299 = vsub.f32 %v1083, %v1274
    %v1300 = vsub.f32 %v1121, %v1274
    %v1301 = vsub.f32 %v1159, %v1274
    %v1302 = vsub.f32 %v896, %v1279
    %v1303 = vsub.f32 %v934, %v1279
    %v1304 = vsub.f32 %v972, %v1279
    %v1305 = vsub.f32 %v1010, %v1279
    %v1306 = vsub.f32 %v1048, %v1279
    %v1307 = vsub.f32 %v1086, %v1279
    %v1308 = vsub.f32 %v1124, %v1279
    %v1309 = vsub.f32 %v1162, %v1279
    %v1310 = vsub.f32 %v898, %v1284
    %v1311 = vsub.f32 %v936, %v1284
    %v1312 = vsub.f32 %v974, %v1284
    %v1313 = vsub.f32 %v1012, %v1284
    %v1314 = vsub.f32 %v1050, %v1284
    %v1315 = vsub.f32 %v1088, %v1284
    %v1316 = vsub.f32 %v1126, %v1284
    %v1317 = vsub.f32 %v1164, %v1284
    %v1318 = vmul.f32 %v1286, 1.442695
    %v1319 = vpow.pop %v1318
    %v1320 = vmul.f32 %v1287, 1.442695
    %v1321 = vpow.pop %v1320
    %v1322 = vmul.f32 %v1288, 1.442695
    %v1323 = vpow.pop %v1322
    %v1324 = vmul.f32 %v1289, 1.442695
    %v1325 = vpow.pop %v1324
    %v1326 = vmul.f32 %v1290, 1.442695
    %v1327 = vpow.pop %v1326
    %v1328 = vmul.f32 %v1291, 1.442695
    %v1329 = vpow.pop %v1328
    %v1330 = vmul.f32 %v1292, 1.442695
    %v1331 = vpow.pop %v1330
    %v1332 = vmul.f32 %v1293, 1.442695
    %v1333 = vpow.pop %v1332
    %v1334 = vmul.f32 %v1294, 1.442695
    %v1335 = vpow.pop %v1334
    %v1336 = vmul.f32 %v1295, 1.442695
    %v1337 = vpow.pop %v1336
    %v1338 = vmul.f32 %v1296, 1.442695
    %v1339 = vpow.pop %v1338
    %v1340 = vmul.f32 %v1297, 1.442695
    %v1341 = vpow.pop %v1340
    %v1342 = vmul.f32 %v1298, 1.442695
    %v1343 = vpow.pop %v1342
    %v1344 = vmul.f32 %v1299, 1.442695
    %v1345 = vpow.pop %v1344
    %v1346 = vmul.f32 %v1300, 1.442695
    %v1347 = vpow.pop %v1346
    %v1348 = vmul.f32 %v1301, 1.442695
    %v1349 = vpow.pop %v1348
    %v1350 = vmul.f32 %v1302, 1.442695
    %v1351 = vpow.pop %v1350
    %v1352 = vmul.f32 %v1303, 1.442695
    %v1353 = vpow.pop %v1352
    %v1354 = vmul.f32 %v1304, 1.442695
    %v1355 = vpow.pop %v1354
    %v1356 = vmul.f32 %v1305, 1.442695
    %v1357 = vpow.pop %v1356
    %v1358 = vmul.f32 %v1306, 1.442695
    %v1359 = vpow.pop %v1358
    %v1360 = vmul.f32 %v1307, 1.442695
    %v1361 = vpow.pop %v1360
    %v1362 = vmul.f32 %v1308, 1.442695
    %v1363 = vpow.pop %v1362
    %v1364 = vmul.f32 %v1309, 1.442695
    %v1365 = vpow.pop %v1364
    %v1366 = vmul.f32 %v1310, 1.442695
    %v1367 = vpow.pop %v1366
    %v1368 = vmul.f32 %v1311, 1.442695
    %v1369 = vpow.pop %v1368
    %v1370 = vmul.f32 %v1312, 1.442695
    %v1371 = vpow.pop %v1370
    %v1372 = vmul.f32 %v1313, 1.442695
    %v1373 = vpow.pop %v1372
    %v1374 = vmul.f32 %v1314, 1.442695
    %v1375 = vpow.pop %v1374
    %v1376 = vmul.f32 %v1315, 1.442695
    %v1377 = vpow.pop %v1376
    %v1378 = vmul.f32 %v1316, 1.442695
    %v1379 = vpow.pop %v1378
    %v1380 = vmul.f32 %v1317, 1.442695
    %v1381 = vpow.pop %v1380
    %v1382 = vadd.f32 %v1319, %v1321
    %v1383 = vadd.f32 %v1382, %v1323
    %v1384 = vadd.f32 %v1383, %v1325
    %v1385 = vadd.f32 %v1384, %v1327
    %v1386 = vadd.f32 %v1385, %v1329
    %v1387 = vadd.f32 %v1386, %v1331
    %v1388 = vadd.f32 %v1387, %v1333
    %1389 = vadd.xlane.f32.xlu0 %v1388
    %v1390 = vpop.xlane.xlu0 %1389
    %v1391 = vadd.f32 %v1335, %v1337
    %v1392 = vadd.f32 %v1391, %v1339
    %v1393 = vadd.f32 %v1392, %v1341
    %v1394 = vadd.f32 %v1393, %v1343
    %v1395 = vadd.f32 %v1394, %v1345
    %v1396 = vadd.f32 %v1395, %v1347
    %v1397 = vadd.f32 %v1396, %v1349
    %1398 = vadd.xlane.f32.xlu0 %v1397
    %v1399 = vpop.xlane.xlu0 %1398
    %v1400 = vadd.f32 %v1351, %v1353
    %v1401 = vadd.f32 %v1400, %v1355
    %v1402 = vadd.f32 %v1401, %v1357
    %v1403 = vadd.f32 %v1402, %v1359
    %v1404 = vadd.f32 %v1403, %v1361
    %v1405 = vadd.f32 %v1404, %v1363
    %v1406 = vadd.f32 %v1405, %v1365
    %1407 = vadd.xlane.f32.xlu0 %v1406
    %v1408 = vpop.xlane.xlu0 %1407
    %v1409 = vadd.f32 %v1367, %v1369
    %v1410 = vadd.f32 %v1409, %v1371
    %v1411 = vadd.f32 %v1410, %v1373
    %v1412 = vadd.f32 %v1411, %v1375
    %v1413 = vadd.f32 %v1412, %v1377
    %v1414 = vadd.f32 %v1413, %v1379
    %v1415 = vadd.f32 %v1414, %v1381
    %1416 = vadd.xlane.f32.xlu0 %v1415
    %v1417 = vpop.xlane.xlu0 %1416
    %v1418 = vadd.f32 %v1262, %v1390
    %v1419 = vadd.f32 %v1263, %v1399
    %v1420 = vadd.f32 %v1264, %v1408
    %v1421 = vadd.f32 %v1265, %v1417
    %vm1422 = vcmask 7168
    %1423 = vst.msk [vmem:[#allocation3] sm:$0xff] %vm1422, %v1418
    %1424 = vst.msk [vmem:[#allocation3 + $0x8] sm:$0xff] %vm1422, %v1419
    %1425 = vst.msk [vmem:[#allocation3 + $0x10] sm:$0xff] %vm1422, %v1420
    %1426 = vst.msk [vmem:[#allocation3 + $0x18] sm:$0xff] %vm1422, %v1421
    %1427 = vst.msk [vmem:[#allocation2] sm:$0xff] %vm1422, %v1242
    %1428 = vst.msk [vmem:[#allocation2 + $0x8] sm:$0xff] %vm1422, %v1243
    %1429 = vst.msk [vmem:[#allocation2 + $0x10] sm:$0xff] %vm1422, %v1244
    %1430 = vst.msk [vmem:[#allocation2 + $0x18] sm:$0xff] %vm1422, %v1245
    %v1431 = vlaneseq
    %v1432 = vand.u32 %v1431, 127
    %v1433 = vadd.s32 %v1432, 128
    %v1434 = vadd.s32 %v1432, 256
    %v1435 = vadd.s32 %v1432, 384
    %v1436 = vadd.s32 %v1432, 512
    %v1437 = vadd.s32 %v1432, 640
    %v1438 = vadd.s32 %v1432, 768
    %v1439 = vadd.s32 %v1432, 896
    %s1440 = smul.u32 0, 1024
    %v1441 = vstv %s1440
    %v1442 = vadd.s32 %v1432, %v1441
    %v1443 = vadd.s32 %v1433, %v1441
    %v1444 = vadd.s32 %v1434, %v1441
    %v1445 = vadd.s32 %v1435, %v1441
    %v1446 = vadd.s32 %v1436, %v1441
    %v1447 = vadd.s32 %v1437, %v1441
    %v1448 = vadd.s32 %v1438, %v1441
    %v1449 = vadd.s32 %v1439, %v1441
    %v1450 = vld [vmem:[#allocation4] sm:$0xff]
    %v1451 = vld [vmem:[#allocation4 + $0x8] sm:$0xff]
    %v1452 = vld [vmem:[#allocation4 + $0x10] sm:$0xff]
    %v1453 = vld [vmem:[#allocation4 + $0x18] sm:$0xff]
    %1454 = vset.pattern.permute.xlu0 0
    %1455 = vperm.xlu0 %1454, %v1198
    %v1456 = vpop.permute.xlu0 %1455
    %1457 = vset.pattern.permute.xlu0 0
    %1458 = vperm.xlu0 %1457, %v1199
    %v1459 = vpop.permute.xlu0 %1458
    %1460 = vset.pattern.permute.xlu0 0
    %1461 = vperm.xlu0 %1460, %v1200
    %v1462 = vpop.permute.xlu0 %1461
    %1463 = vset.pattern.permute.xlu0 0
    %1464 = vperm.xlu0 %1463, %v1201
    %v1465 = vpop.permute.xlu0 %1464
    %vm1466 = vcmp.eq.s32.totalorder %v1442, %v1456
    %vm1467 = vcmp.eq.s32.totalorder %v1443, %v1456
    %vm1468 = vcmp.eq.s32.totalorder %v1444, %v1456
    %vm1469 = vcmp.eq.s32.totalorder %v1445, %v1456
    %vm1470 = vcmp.eq.s32.totalorder %v1446, %v1456
    %vm1471 = vcmp.eq.s32.totalorder %v1447, %v1456
    %vm1472 = vcmp.eq.s32.totalorder %v1448, %v1456
    %vm1473 = vcmp.eq.s32.totalorder %v1449, %v1456
    %vm1474 = vcmp.eq.s32.totalorder %v1442, %v1459
    %vm1475 = vcmp.eq.s32.totalorder %v1443, %v1459
    %vm1476 = vcmp.eq.s32.totalorder %v1444, %v1459
    %vm1477 = vcmp.eq.s32.totalorder %v1445, %v1459
    %vm1478 = vcmp.eq.s32.totalorder %v1446, %v1459
    %vm1479 = vcmp.eq.s32.totalorder %v1447, %v1459
    %vm1480 = vcmp.eq.s32.totalorder %v1448, %v1459
    %vm1481 = vcmp.eq.s32.totalorder %v1449, %v1459
    %vm1482 = vcmp.eq.s32.totalorder %v1442, %v1462
    %vm1483 = vcmp.eq.s32.totalorder %v1443, %v1462
    %vm1484 = vcmp.eq.s32.totalorder %v1444, %v1462
    %vm1485 = vcmp.eq.s32.totalorder %v1445, %v1462
    %vm1486 = vcmp.eq.s32.totalorder %v1446, %v1462
    %vm1487 = vcmp.eq.s32.totalorder %v1447, %v1462
    %vm1488 = vcmp.eq.s32.totalorder %v1448, %v1462
    %vm1489 = vcmp.eq.s32.totalorder %v1449, %v1462
    %vm1490 = vcmp.eq.s32.totalorder %v1442, %v1465
    %vm1491 = vcmp.eq.s32.totalorder %v1443, %v1465
    %vm1492 = vcmp.eq.s32.totalorder %v1444, %v1465
    %vm1493 = vcmp.eq.s32.totalorder %v1445, %v1465
    %vm1494 = vcmp.eq.s32.totalorder %v1446, %v1465
    %vm1495 = vcmp.eq.s32.totalorder %v1447, %v1465
    %vm1496 = vcmp.eq.s32.totalorder %v1448, %v1465
    %vm1497 = vcmp.eq.s32.totalorder %v1449, %v1465
    %v1498 = vsel %vm1466, %v891, 0.0
    %v1499 = vsel %vm1467, %v929, 0.0
    %v1500 = vsel %vm1468, %v967, 0.0
    %v1501 = vsel %vm1469, %v1005, 0.0
    %v1502 = vsel %vm1470, %v1043, 0.0
    %v1503 = vsel %vm1471, %v1081, 0.0
    %v1504 = vsel %vm1472, %v1119, 0.0
    %v1505 = vsel %vm1473, %v1157, 0.0
    %v1506 = vsel %vm1474, %v893, 0.0
    %v1507 = vsel %vm1475, %v931, 0.0
    %v1508 = vsel %vm1476, %v969, 0.0
    %v1509 = vsel %vm1477, %v1007, 0.0
    %v1510 = vsel %vm1478, %v1045, 0.0
    %v1511 = vsel %vm1479, %v1083, 0.0
    %v1512 = vsel %vm1480, %v1121, 0.0
    %v1513 = vsel %vm1481, %v1159, 0.0
    %v1514 = vsel %vm1482, %v896, 0.0
    %v1515 = vsel %vm1483, %v934, 0.0
    %v1516 = vsel %vm1484, %v972, 0.0
    %v1517 = vsel %vm1485, %v1010, 0.0
    %v1518 = vsel %vm1486, %v1048, 0.0
    %v1519 = vsel %vm1487, %v1086, 0.0
    %v1520 = vsel %vm1488, %v1124, 0.0
    %v1521 = vsel %vm1489, %v1162, 0.0
    %v1522 = vsel %vm1490, %v898, 0.0
    %v1523 = vsel %vm1491, %v936, 0.0
    %v1524 = vsel %vm1492, %v974, 0.0
    %v1525 = vsel %vm1493, %v1012, 0.0
    %v1526 = vsel %vm1494, %v1050, 0.0
    %v1527 = vsel %vm1495, %v1088, 0.0
    %v1528 = vsel %vm1496, %v1126, 0.0
    %v1529 = vsel %vm1497, %v1164, 0.0
    %v1530 = vadd.f32 %v1498, %v1499
    %v1531 = vadd.f32 %v1530, %v1500
    %v1532 = vadd.f32 %v1531, %v1501
    %v1533 = vadd.f32 %v1532, %v1502
    %v1534 = vadd.f32 %v1533, %v1503
    %v1535 = vadd.f32 %v1534, %v1504
    %v1536 = vadd.f32 %v1535, %v1505
    %1537 = vadd.xlane.f32.xlu0 %v1536
    %v1538 = vpop.xlane.xlu0 %1537
    %v1539 = vadd.f32 %v1506, %v1507
    %v1540 = vadd.f32 %v1539, %v1508
    %v1541 = vadd.f32 %v1540, %v1509
    %v1542 = vadd.f32 %v1541, %v1510
    %v1543 = vadd.f32 %v1542, %v1511
    %v1544 = vadd.f32 %v1543, %v1512
    %v1545 = vadd.f32 %v1544, %v1513
    %1546 = vadd.xlane.f32.xlu0 %v1545
    %v1547 = vpop.xlane.xlu0 %1546
    %v1548 = vadd.f32 %v1514, %v1515
    %v1549 = vadd.f32 %v1548, %v1516
    %v1550 = vadd.f32 %v1549, %v1517
    %v1551 = vadd.f32 %v1550, %v1518
    %v1552 = vadd.f32 %v1551, %v1519
    %v1553 = vadd.f32 %v1552, %v1520
    %v1554 = vadd.f32 %v1553, %v1521
    %1555 = vadd.xlane.f32.xlu0 %v1554
    %v1556 = vpop.xlane.xlu0 %1555
    %v1557 = vadd.f32 %v1522, %v1523
    %v1558 = vadd.f32 %v1557, %v1524
    %v1559 = vadd.f32 %v1558, %v1525
    %v1560 = vadd.f32 %v1559, %v1526
    %v1561 = vadd.f32 %v1560, %v1527
    %v1562 = vadd.f32 %v1561, %v1528
    %v1563 = vadd.f32 %v1562, %v1529
    %1564 = vadd.xlane.f32.xlu0 %v1563
    %v1565 = vpop.xlane.xlu0 %1564
    %v1566 = vadd.f32 %v1450, %v1538
    %v1567 = vadd.f32 %v1451, %v1547
    %v1568 = vadd.f32 %v1452, %v1556
    %v1569 = vadd.f32 %v1453, %v1565
    %1570 = vst.msk [vmem:[#allocation4] sm:$0xff] %vm1422, %v1566
    %1571 = vst.msk [vmem:[#allocation4 + $0x8] sm:$0xff] %vm1422, %v1567
    %1572 = vst.msk [vmem:[#allocation4 + $0x10] sm:$0xff] %vm1422, %v1568
    %1573 = vst.msk [vmem:[#allocation4 + $0x18] sm:$0xff] %vm1422, %v1569
    // Predicated region
    $region26: #{bert_mlm_forward.35} parent=1 // pred_check
      %p1574 = pneg %p35
    $region27: #{bert_mlm_forward.35} parent=1 // pred_check_branch
      %1576 = sbr.rel (%p1574) target = $region29
    $region28: #{bert_mlm_forward.35} parent=1 // pred_region
      %v1577 = vld [vmem:[#allocation2] sm:$0xff]
      %v1578 = vld [vmem:[#allocation2 + $0x8] sm:$0xff]
      %v1579 = vld [vmem:[#allocation2 + $0x10] sm:$0xff]
      %v1580 = vld [vmem:[#allocation2 + $0x18] sm:$0xff]
      %v1581 = vld [vmem:[#allocation3] sm:$0xff]
      %v1582 = vld [vmem:[#allocation3 + $0x8] sm:$0xff]
      %v1583 = vld [vmem:[#allocation3 + $0x10] sm:$0xff]
      %v1584 = vld [vmem:[#allocation3 + $0x18] sm:$0xff]
      %v1585 = vlog2.pop %v1581
      %v1586 = vmul.f32 %v1585, 0.6931472
      %v1587 = vlog2.pop %v1582
      %v1588 = vmul.f32 %v1587, 0.6931472
      %v1589 = vlog2.pop %v1583
      %v1590 = vmul.f32 %v1589, 0.6931472
      %v1591 = vlog2.pop %v1584
      %v1592 = vmul.f32 %v1591, 0.6931472
      %v1593 = vadd.f32 %v1577, %v1586
      %v1594 = vadd.f32 %v1578, %v1588
      %v1595 = vadd.f32 %v1579, %v1590
      %v1596 = vadd.f32 %v1580, %v1592
      %vm1597 = vcmp.ne.s32.totalorder %v1198, 4294967196
      %vm1598 = vcmp.ne.s32.totalorder %v1199, 4294967196
      %vm1599 = vcmp.ne.s32.totalorder %v1200, 4294967196
      %vm1600 = vcmp.ne.s32.totalorder %v1201, 4294967196
      %v1601 = vsel %vm1597, 1, 0
      %v1602 = vsel %vm1598, 1, 0
      %v1603 = vsel %vm1599, 1, 0
      %v1604 = vsel %vm1600, 1, 0
      %v1605 = vcvt.s32.f32 %v1601
      %v1606 = vcvt.s32.f32 %v1602
      %v1607 = vcvt.s32.f32 %v1603
      %v1608 = vcvt.s32.f32 %v1604
      %v1609 = vld [vmem:[#allocation4] sm:$0xff]
      %v1610 = vld [vmem:[#allocation4 + $0x8] sm:$0xff]
      %v1611 = vld [vmem:[#allocation4 + $0x10] sm:$0xff]
      %v1612 = vld [vmem:[#allocation4 + $0x18] sm:$0xff]
      %v1613 = vsub.f32 %v1593, %v1609
      %v1614 = vsub.f32 %v1594, %v1610
      %v1615 = vsub.f32 %v1595, %v1611
      %v1616 = vsub.f32 %v1596, %v1612
      %v1617 = vmul.f32 %v1613, %v1605
      %v1618 = vmul.f32 %v1614, %v1606
      %v1619 = vmul.f32 %v1615, %v1607
      %v1620 = vmul.f32 %v1616, %v1608
      %1621 = vst.msk [vmem:[%s5] sm:$0xff] %vm1422, %v1617
      %1622 = vst.msk [vmem:[%s5 + $0x8] sm:$0xff] %vm1422, %v1618
      %1623 = vst.msk [vmem:[%s5 + $0x10] sm:$0xff] %vm1422, %v1619
      %1624 = vst.msk [vmem:[%s5 + $0x18] sm:$0xff] %vm1422, %v1620
    $region29: #{bert_mlm_forward.35} parent=1 // pred_fallthru
      _
    // Predicated region
    $region30: #{bert_mlm_forward.35} parent=1 // pred_check
      _
    $region31: #{bert_mlm_forward.35} parent=1 // pred_check_branch
      %1626 = sbr.rel (0) target = $region33
    $region32: #{bert_mlm_forward.35} parent=1 // pred_region
      _
    $region33: #{bert_mlm_forward.35} parent=1 // pred_fallthru
      _
    // Predicated region
    $region34: #{bert_mlm_forward.35} parent=1 // pred_check
      _
    $region35: #{bert_mlm_forward.35} parent=1 // pred_check_branch
      %1628 = sbr.rel (0) target = $region37
    $region36: #{bert_mlm_forward.35} parent=1 // pred_region
      _
    $region37: #{bert_mlm_forward.35} parent=1 // pred_fallthru
      _
    // Predicated region
    $region38: #{bert_mlm_forward.35} parent=1 // pred_check
      _
    $region39: #{bert_mlm_forward.35} parent=1 // pred_check_branch
      %1630 = sbr.rel (0) target = $region41
    $region40: #{bert_mlm_forward.35} parent=1 // pred_region
      _
    $region41: #{bert_mlm_forward.35} parent=1 // pred_fallthru
      _
    // Predicated region
    $region42: #{bert_mlm_forward.35} parent=1 // pred_check
      _
    $region43: #{bert_mlm_forward.35} parent=1 // pred_check_branch
      %1632 = sbr.rel (0) target = $region45
    $region44: #{bert_mlm_forward.35} parent=1 // pred_region
      _
    $region45: #{bert_mlm_forward.35} parent=1 // pred_fallthru
      _
    %1633 = vsyncpa [#allocation6], 1

</llo_original>
